<compile_context>
chip_gen: v7x
topology: tpu7x:2x2x1
jax: 0.10.0
libtpu: 0.0.40
codegen_flags: <defaults>
</compile_context>

<pallas_src>
import numpy as np
import jax
import jax.numpy as jnp
from jax.experimental import pallas as pl
from jax.experimental.pallas import tpu as pltpu

# ---- hyper-parameters (small, consistent with the PyTorch module) -----------
B = 2             # batch
N_ELEC = 13       # n_channels (spectral attention hard-codes 13x13 weights)
T = 32            # input_window_size
NF = T // 2 + 1   # rfft bins = 17
F1 = 8
D = 2
F2 = F1 * D       # 16
KL = 64           # big temporal conv kernel
KG = 8            # graph temporal conv kernel
KS = 16           # separable depthwise kernel
N_CLASSES = 4
BN_EPS = 1e-3
WIDE = F1 * T     # 256 lanes in the "wide" 8-channel layout
TQ = T // 4       # 8 pooled time columns


# =============================== fused kernel ================================
def merged_model_kernel(x_ref, dre_f_ref, dim_f_ref, mqk_ref, wvt_ref,
                        dre_c_ref, dim_c_ref, idft_re_ref, idft_im_ref,
                        toe0_ref, bnw_s_ref, bnw_b_ref, gg_ref, tw_ref,
                        spa_ref, bns_s_ref, bns_b_ref, p4_ref, e_sep_ref,
                        wdw_ref, sumk_ref, wp_ref, bnp_s_ref, bnp_b_ref,
                        wl_ref, bsel_ref, blin_ref, out_ref, w_ref):
    f32 = jnp.float32

    def mm(a, b):
        return jnp.dot(a, b, preferred_element_type=f32)

    def elu(v):
        return jnp.where(v > 0.0, v, jnp.exp(jnp.minimum(v, 0.0)) - 1.0)

    dre_f = dre_f_ref[...]      # (NF, T)  Re DFT, freq-major
    dim_f = dim_f_ref[...]      # (NF, T)  Im DFT, freq-major
    mqk = mqk_ref[...]          # (13, 13) = Wq @ Wk^T
    wvt = wvt_ref[...]          # (13, 13) = Wv^T
    dre_c = dre_c_ref[...]      # (T, NF)  Re DFT, channel-major
    dim_c = dim_c_ref[...]      # (T, NF)
    idft_re = idft_re_ref[...]  # (NF, T)  IDFT (weights folded in)
    idft_im = idft_im_ref[...]  # (NF, T)

    # ---------------- stage 1: spectral self-attention ----------------------
    ys = []
    for b in range(x_ref.shape[0]):
        xb = x_ref[b]                                               # (13, T)
        # rfft, freq-major, via contract-over-time (rhs-transposed) einsums
        xr = jnp.einsum('ft,ct->fc', dre_f, xb, preferred_element_type=f32)
        xi = jnp.einsum('ft,ct->fc', dim_f, xb, preferred_element_type=f32)
        # complex logits  A = Z (Wq Wk^T) Z^T,  Z = rfft(x)^T (freq-major)
        mr = mm(xr, mqk)
        mi = mm(xi, mqk)
        a_re = (jnp.einsum('fc,gc->fg', mr, xr, preferred_element_type=f32)
                - jnp.einsum('fc,gc->fg', mi, xi, preferred_element_type=f32))
        a_im = (jnp.einsum('fc,gc->fg', mr, xi, preferred_element_type=f32)
                + jnp.einsum('fc,gc->fg', mi, xr, preferred_element_type=f32))
        mag = jnp.sqrt(a_re * a_re + a_im * a_im)                   # torch.abs
        w_ref[b] = mag
        e = jnp.exp(mag - jnp.max(mag, axis=-1, keepdims=True))
        attn = e * pl.reciprocal(jnp.sum(e, axis=-1, keepdims=True), approx=True)
        # value path kept channel-major:  O^T = Wv^T X attn^T
        xv = mm(wvt, xb)                                            # (13, T)
        v_re = mm(xv, dre_c)                                        # (13, NF)
        v_im = mm(xv, dim_c)
        o_re = jnp.einsum('cg,fg->cf', v_re, attn, preferred_element_type=f32)
        o_im = jnp.einsum('cg,fg->cf', v_im, attn, preferred_element_type=f32)
        # irfft (DC/Nyquist imag dropped) -> attended signal (13, T)
        ys.append(mm(o_re, idft_re) + mm(o_im, idft_im))
    y = jnp.concatenate(ys, axis=0)                                 # (B*13, T)

    # ---------------- stage 2: GCN-EEGNet stack ("wide" layout) -------------
    bnw_s = bnw_s_ref[...]      # (1, 256)  BN(F1) scale per (channel,time) lane
    bnw_b = bnw_b_ref[...]
    tw = tw_ref[...]            # (256, 256) graph temporal conv, all taps fused

    # Conv2d(1, F1, (1, KL), 'same') as one Toeplitz matmul, then BatchNorm2d(F1)
    hw = mm(y, toe0_ref[...])                                       # (B*13, 256)
    hw = hw * bnw_s + bnw_b

    # 3 x [ graph mix (per input channel) -> temporal conv -> BN -> ELU ]
    for _layer in range(3):
        mixed = [mm(gg_ref[i], hw[:, i * T:(i + 1) * T]) for i in range(F1)]
        hmix = jnp.concatenate(mixed, axis=1)                       # (B*13, 256)
        hw = elu(mm(hmix, tw) * bnw_s + bnw_b)

    # spatial depthwise conv (Conv2dWithConstraint) -> BN -> ELU -> AvgPool(1,4)
    sblk = [mm(spa_ref[o], hw[:, o * T:(o + 1) * T]) for o in range(F1)]
    s = jnp.concatenate(sblk, axis=0)                               # (B*F2, T)
    s = elu(s * bns_s_ref[...] + bns_b_ref[...])
    s = mm(s, p4_ref[...])                                          # (B*F2, T//4)

    # separable conv: depthwise (1, KS) via shift-expansion matmuls, pointwise
    sw = mm(s, e_sep_ref[...])                                      # (B*F2, KS*TQ)
    dsep = mm(sw * wdw_ref[...], sumk_ref[...])                     # (B*F2, TQ)
    pp = mm(wp_ref[...], dsep)                                      # pointwise 1x1
    pp = elu(pp * bnp_s_ref[...] + bnp_b_ref[...])

    # AvgPool2d((1,8)) -> 1 column, flatten, Linear -> (B, N_CLASSES)
    feat = jnp.mean(pp, axis=1, keepdims=True)                      # (B*F2, 1)
    out_ref[...] = mm(bsel_ref[...], feat * wl_ref[...]) + blin_ref[...]


# =============================== host-side glue ==============================
def get_adjacency_matrix(n):
    edges = [(1, 2), (1, 3), (1, 4), (1, 5), (1, 6), (2, 3), (2, 7), (2, 8),
             (3, 4), (3, 9), (4, 5), (4, 10), (5, 6), (5, 11), (6, 12), (6, 13)]
    a = np.zeros((n, n), np.float32)
    for i, j in edges:
        a[i - 1, j - 1] = 1.0
        a[j - 1, i - 1] = 1.0
    for i in range(n):
        a[i, i] = 1.0
    return a


def init_params(key):
    keys = jax.random.split(key, 10)
    p = {}
    p['wq'] = jax.random.normal(keys[0], (N_ELEC, N_ELEC), jnp.float32)
    p['wk'] = jax.random.normal(keys[1], (N_ELEC, N_ELEC), jnp.float32)
    p['wv'] = jax.random.normal(keys[2], (N_ELEC, N_ELEC), jnp.float32)
    p['conv1_w'] = 0.1 * jax.random.normal(keys[3], (F1, 1, 1, KL), jnp.float32)
    p['importance'] = jax.random.normal(keys[4], (F1, N_ELEC, N_ELEC), jnp.float32)
    p['graph_tconv_w'] = 0.1 * jax.random.normal(keys[5], (F1, F1, 1, KG), jnp.float32)
    p['spatial_w'] = jax.random.normal(keys[6], (F2, 1, N_ELEC, 1), jnp.float32)
    p['depthwise_w'] = 0.1 * jax.random.normal(keys[7], (F2, 1, 1, KS), jnp.float32)
    p['pointwise_w'] = 0.1 * jax.random.normal(keys[8], (F2, F2, 1, 1), jnp.float32)
    p['linear_w'] = 0.1 * jax.random.normal(keys[9], (N_CLASSES, F2), jnp.float32)
    p['linear_b'] = jnp.zeros((N_CLASSES,), jnp.float32)
    return p


def band_matrix(taps, width, left_pad):
    """M[p, t] = taps[p - t + left_pad]  =>  (x @ M)[t] = sum_k taps[k]*x[t+k-left_pad]."""
    m = np.zeros((width, width), np.float32)
    for k in range(len(taps)):
        d = k - left_pad
        if -width < d < width:
            m += np.float32(taps[k]) * np.eye(width, k=-d, dtype=np.float32)
    return m


def build_operands(p, bsz):
    ops = {}
    # DFT / IDFT matrices (rfft / irfft as matmuls)
    t = np.arange(T, dtype=np.float64)[:, None]
    f = np.arange(NF, dtype=np.float64)[None, :]
    ang = 2.0 * np.pi * t * f / T
    dre_c = np.cos(ang)                                   # (T, NF)
    dim_c = -np.sin(ang)
    ops['dre_f'] = jnp.asarray(dre_c.T, jnp.float32)      # (NF, T)
    ops['dim_f'] = jnp.asarray(dim_c.T, jnp.float32)
    ops['dre_c'] = jnp.asarray(dre_c, jnp.float32)
    ops['dim_c'] = jnp.asarray(dim_c, jnp.float32)
    wgt = np.full((NF,), 2.0)
    wgt[0] = 1.0
    wgt[-1] = 1.0
    ops['idft_re'] = jnp.asarray((dre_c * wgt[None, :] / T).T, jnp.float32)
    ops['idft_im'] = jnp.asarray((dim_c * wgt[None, :] / T).T, jnp.float32)

    wq, wk, wv = (np.asarray(p['wq']), np.asarray(p['wk']), np.asarray(p['wv']))
    ops['mqk'] = jnp.asarray(wq @ wk.T, jnp.float32)
    ops['wvt'] = jnp.asarray(wv.T, jnp.float32)

    # conv1 as Toeplitz (padding folded in): (T, F1*T)
    w1 = np.asarray(p['conv1_w'])[:, 0, 0, :]
    toe0 = np.zeros((T, F1 * T), np.float32)
    for c in range(F1):
        toe0[:, c * T:(c + 1) * T] = band_matrix(w1[c], T, (KL - 1) // 2)
    ops['toe0'] = jnp.asarray(toe0)

    # BatchNorm (eval mode: mean 0, var 1, gamma 1, beta 0)
    scale = np.float32(1.0 / np.sqrt(1.0 + BN_EPS))
    nrow = bsz * F2
    ops['bnw_s'] = jnp.full((1, F1 * T), scale, jnp.float32)
    ops['bnw_b'] = jnp.zeros((1, F1 * T), jnp.float32)
    ops['bns_s'] = jnp.full((nrow, 1), scale, jnp.float32)
    ops['bns_b'] = jnp.zeros((nrow, 1), jnp.float32)
    ops['bnp_s'] = jnp.full((nrow, 1), scale, jnp.float32)
    ops['bnp_b'] = jnp.zeros((nrow, 1), jnp.float32)

    # graph mix: block-diag (over batch) of adj * importance[i]
    adj = get_adjacency_matrix(N_ELEC)
    imp = np.asarray(p['importance'])
    gg = np.zeros((F1, bsz * N_ELEC, bsz * N_ELEC), np.float32)
    for i in range(F1):
        gi = adj * imp[i]
        for b in range(bsz):
            gg[i, b * N_ELEC:(b + 1) * N_ELEC, b * N_ELEC:(b + 1) * N_ELEC] = gi
    ops['gg'] = jnp.asarray(gg)

    # graph temporal conv, all taps + channel mixing fused: (F1*T, F1*T)
    wt = np.asarray(p['graph_tconv_w'])[:, :, 0, :]       # (out, in, KG)
    tw = np.zeros((F1 * T, F1 * T), np.float32)
    for i in range(F1):
        for o in range(F1):
            tw[i * T:(i + 1) * T, o * T:(o + 1) * T] = band_matrix(wt[o, i], T, (KG - 1) // 2)
    ops['tw'] = jnp.asarray(tw)

    # spatial depthwise conv (Conv2dWithConstraint: renorm p=2, dim=0, maxnorm=1)
    wsp = np.asarray(p['spatial_w'])
    norms = np.sqrt((wsp ** 2).sum(axis=(1, 2, 3)))
    factor = np.where(norms > 1.0, 1.0 / (norms + 1e-7), 1.0)
    wsp2 = (wsp * factor[:, None, None, None])[:, 0, :, 0]   # (F2, N_ELEC)
    spa = np.zeros((F1, bsz * D, bsz * N_ELEC), np.float32)
    for o in range(F1):
        for b in range(bsz):
            for mp in range(D):
                spa[o, b * D + mp, b * N_ELEC:(b + 1) * N_ELEC] = wsp2[o * D + mp]
    ops['spa'] = jnp.asarray(spa)

    # row r = o*(bsz*D) + b*D + mp  <->  channel m = o*D + mp, batch b
    m_of = np.zeros((nrow,), np.int32)
    b_of = np.zeros((nrow,), np.int32)
    for r in range(nrow):
        o, rem = divmod(r, bsz * D)
        b, mp = divmod(rem, D)
        m_of[r] = o * D + mp
        b_of[r] = b

    # AvgPool2d((1,4)) as matmul
    p4 = np.zeros((T, TQ), np.float32)
    for tt in range(T):
        p4[tt, tt // 4] = 0.25
    ops['p4'] = jnp.asarray(p4)

    # separable depthwise (1, KS), pad KS//2, as shift-expansion matmuls
    # (only the first TQ output columns matter: AvgPool(1,8) over width TQ+1)
    e_sep = np.zeros((TQ, KS * TQ), np.float32)
    sumk = np.zeros((KS * TQ, TQ), np.float32)
    for k in range(KS):
        for tt in range(TQ):
            u = tt + k - KS // 2
            if 0 <= u < TQ:
                e_sep[u, k * TQ + tt] = 1.0
            sumk[k * TQ + tt, tt] = 1.0
    ops['e_sep'] = jnp.asarray(e_sep)
    ops['sumk'] = jnp.asarray(sumk)
    wd = np.asarray(p['depthwise_w'])[:, 0, 0, :]
    wdw = np.zeros((nrow, KS * TQ), np.float32)
    for r in range(nrow):
        for k in range(KS):
            wdw[r, k * TQ:(k + 1) * TQ] = wd[m_of[r], k]
    ops['wdw'] = jnp.asarray(wdw)

    # pointwise conv (F2 -> F2, 1x1) in row layout (batch block structure)
    wpp = np.asarray(p['pointwise_w'])[:, :, 0, 0]
    wp_big = np.zeros((nrow, nrow), np.float32)
    for r2 in range(nrow):
        for r1 in range(nrow):
            if b_of[r2] == b_of[r1]:
                wp_big[r2, r1] = wpp[m_of[r2], m_of[r1]]
    ops['wp'] = jnp.asarray(wp_big)

    # classifier (flatten + Linear) in row layout
    wl = np.asarray(p['linear_w'])
    wl_rows = np.zeros((nrow, N_CLASSES), np.float32)
    bsel = np.zeros((bsz, nrow), np.float32)
    for r in range(nrow):
        wl_rows[r, :] = wl[:, m_of[r]]
        bsel[b_of[r], r] = 1.0
    ops['wl'] = jnp.asarray(wl_rows)
    ops['bsel'] = jnp.asarray(bsel)
    ops['blin'] = jnp.asarray(np.asarray(p['linear_b'])[None, :], jnp.float32)
    return ops


def merged_model_forward(x, params, ops):
    def vm():
        return pl.BlockSpec(memory_space=pltpu.MemorySpace.VMEM)

    ins = [x, ops['dre_f'], ops['dim_f'], ops['mqk'], ops['wvt'],
           ops['dre_c'], ops['dim_c'], ops['idft_re'], ops['idft_im'],
           ops['toe0'], ops['bnw_s'], ops['bnw_b'], ops['gg'], ops['tw'],
           ops['spa'], ops['bns_s'], ops['bns_b'], ops['p4'], ops['e_sep'],
           ops['wdw'], ops['sumk'], ops['wp'], ops['bnp_s'], ops['bnp_b'],
           ops['wl'], ops['bsel'], ops['blin']]
    bsz = x.shape[0]
    # NOTE: no grid — whole problem is < 1 MiB and latency-bound; everything
    # stays resident in VMEM. (On v7x with larger batch, batch could become a
    # "parallel" grid axis to use both TensorCores.)
    logits, weights = pl.pallas_call(
        merged_model_kernel,
        out_shape=(jax.ShapeDtypeStruct((bsz, N_CLASSES), jnp.float32),
                   jax.ShapeDtypeStruct((bsz, NF, NF), jnp.float32)),
        in_specs=[vm() for _ in ins],
        out_specs=(vm(), vm()),
    )(*ins)
    # (gcn_output, weights, weight_s) — weight_s is the raw importance parameter
    return logits, weights, params['importance']


if __name__ == "__main__":
    key = jax.random.PRNGKey(0)
    pkey, xkey = jax.random.split(key)
    params = init_params(pkey)
    ops = build_operands(params, B)

    x = jax.random.normal(xkey, (B, N_ELEC, T), jnp.float32)

    fwd = jax.jit(lambda xx: merged_model_forward(xx, params, ops))
    logits, weights, weight_s = fwd(x)
    jax.block_until_ready((logits, weights, weight_s))

    assert logits.shape == (B, N_CLASSES)
    assert weights.shape == (B, NF, NF)
    assert weight_s.shape == (F1, N_ELEC, N_ELEC)
    assert bool(jnp.all(jnp.isfinite(logits)))
    assert bool(jnp.all(jnp.isfinite(weights)))
    print("KERNEL_OK")
</pallas_src>

<mosaic_0001>
module attributes {stable_mosaic.version = 11 : i64} {
  func.func @merged_model_kernel(%arg0: memref<2x13x32xf32, #tpu.memory_space<vmem>>, %arg1: memref<17x32xf32, #tpu.memory_space<vmem>>, %arg2: memref<17x32xf32, #tpu.memory_space<vmem>>, %arg3: memref<13x13xf32, #tpu.memory_space<vmem>>, %arg4: memref<13x13xf32, #tpu.memory_space<vmem>>, %arg5: memref<32x17xf32, #tpu.memory_space<vmem>>, %arg6: memref<32x17xf32, #tpu.memory_space<vmem>>, %arg7: memref<17x32xf32, #tpu.memory_space<vmem>>, %arg8: memref<17x32xf32, #tpu.memory_space<vmem>>, %arg9: memref<32x256xf32, #tpu.memory_space<vmem>>, %arg10: memref<1x256xf32, #tpu.memory_space<vmem>>, %arg11: memref<1x256xf32, #tpu.memory_space<vmem>>, %arg12: memref<8x26x26xf32, #tpu.memory_space<vmem>>, %arg13: memref<256x256xf32, #tpu.memory_space<vmem>>, %arg14: memref<8x4x26xf32, #tpu.memory_space<vmem>>, %arg15: memref<32x1xf32, #tpu.memory_space<vmem>>, %arg16: memref<32x1xf32, #tpu.memory_space<vmem>>, %arg17: memref<32x8xf32, #tpu.memory_space<vmem>>, %arg18: memref<8x128xf32, #tpu.memory_space<vmem>>, %arg19: memref<32x128xf32, #tpu.memory_space<vmem>>, %arg20: memref<128x8xf32, #tpu.memory_space<vmem>>, %arg21: memref<32x32xf32, #tpu.memory_space<vmem>>, %arg22: memref<32x1xf32, #tpu.memory_space<vmem>>, %arg23: memref<32x1xf32, #tpu.memory_space<vmem>>, %arg24: memref<32x4xf32, #tpu.memory_space<vmem>>, %arg25: memref<2x32xf32, #tpu.memory_space<vmem>>, %arg26: memref<1x4xf32, #tpu.memory_space<vmem>>, %arg27: memref<2x4xf32, #tpu.memory_space<vmem>>, %arg28: memref<2x17x17xf32, #tpu.memory_space<vmem>>) attributes {dimension_semantics = [], scalar_prefetch = 0 : i64, scratch_operands = 0 : i64, tpu.core_type = #tpu.core_type<tc>} {
    %c0 = arith.constant 0 : index
    %c0_0 = arith.constant 0 : index
    %0 = vector.load %arg1[%c0, %c0_0] : memref<17x32xf32, #tpu.memory_space<vmem>>, vector<17x32xf32>
    %c0_1 = arith.constant 0 : index
    %c0_2 = arith.constant 0 : index
    %1 = vector.load %arg2[%c0_1, %c0_2] : memref<17x32xf32, #tpu.memory_space<vmem>>, vector<17x32xf32>
    %c0_3 = arith.constant 0 : index
    %c0_4 = arith.constant 0 : index
    %2 = vector.load %arg3[%c0_3, %c0_4] : memref<13x13xf32, #tpu.memory_space<vmem>>, vector<13x13xf32>
    %c0_5 = arith.constant 0 : index
    %c0_6 = arith.constant 0 : index
    %3 = vector.load %arg4[%c0_5, %c0_6] : memref<13x13xf32, #tpu.memory_space<vmem>>, vector<13x13xf32>
    %c0_7 = arith.constant 0 : index
    %c0_8 = arith.constant 0 : index
    %4 = vector.load %arg5[%c0_7, %c0_8] : memref<32x17xf32, #tpu.memory_space<vmem>>, vector<32x17xf32>
    %c0_9 = arith.constant 0 : index
    %c0_10 = arith.constant 0 : index
    %5 = vector.load %arg6[%c0_9, %c0_10] : memref<32x17xf32, #tpu.memory_space<vmem>>, vector<32x17xf32>
    %c0_11 = arith.constant 0 : index
    %c0_12 = arith.constant 0 : index
    %6 = vector.load %arg7[%c0_11, %c0_12] : memref<17x32xf32, #tpu.memory_space<vmem>>, vector<17x32xf32>
    %c0_13 = arith.constant 0 : index
    %c0_14 = arith.constant 0 : index
    %7 = vector.load %arg8[%c0_13, %c0_14] : memref<17x32xf32, #tpu.memory_space<vmem>>, vector<17x32xf32>
    %c0_15 = arith.constant 0 : index
    %c0_16 = arith.constant 0 : index
    %c0_17 = arith.constant 0 : index
    %8 = vector.load %arg0[%c0_15, %c0_16, %c0_17] : memref<2x13x32xf32, #tpu.memory_space<vmem>>, vector<1x13x32xf32>
    %9 = vector.shape_cast %8 : vector<1x13x32xf32> to vector<13x32xf32>
    "tpu.trace_start"() <{level = 10 : i32, message = "ft,ct->fc"}> : () -> ()
    %cst = arith.constant dense<0.000000e+00> : vector<17x13xf32>
    %10 = tpu.matmul %0, %9, %cst {dimension_numbers = #tpu.dot_dimension_numbers<[1], [1], [0], [0], [0, 0, 1, 0], [], []>} : vector<17x32xf32>, vector<13x32xf32>, vector<17x13xf32> -> vector<17x13xf32>
    %cst_18 = arith.constant dense<0.000000e+00> : vector<17x13xf32>
    %11 = tpu.matmul %1, %9, %cst_18 {dimension_numbers = #tpu.dot_dimension_numbers<[1], [1], [0], [0], [0, 0, 1, 0], [], []>} : vector<17x32xf32>, vector<13x32xf32>, vector<17x13xf32> -> vector<17x13xf32>
    "tpu.trace_stop"() : () -> ()
    %cst_19 = arith.constant dense<0.000000e+00> : vector<17x13xf32>
    %12 = tpu.matmul %10, %2, %cst_19 {dimension_numbers = #tpu.dot_dimension_numbers<[1], [0], [0], [1], [0, 0, 1, 1], [], []>} : vector<17x13xf32>, vector<13x13xf32>, vector<17x13xf32> -> vector<17x13xf32>
    %cst_20 = arith.constant dense<0.000000e+00> : vector<17x13xf32>
    %13 = tpu.matmul %11, %2, %cst_20 {dimension_numbers = #tpu.dot_dimension_numbers<[1], [0], [0], [1], [0, 0, 1, 1], [], []>} : vector<17x13xf32>, vector<13x13xf32>, vector<17x13xf32> -> vector<17x13xf32>
    "tpu.trace_start"() <{level = 10 : i32, message = "fc,gc->fg"}> : () -> ()
    %cst_21 = arith.constant dense<0.000000e+00> : vector<17x17xf32>
    %14 = tpu.matmul %12, %10, %cst_21 {dimension_numbers = #tpu.dot_dimension_numbers<[1], [1], [0], [0], [0, 0, 1, 0], [], []>} : vector<17x13xf32>, vector<17x13xf32>, vector<17x17xf32> -> vector<17x17xf32>
    %cst_22 = arith.constant dense<0.000000e+00> : vector<17x17xf32>
    %15 = tpu.matmul %13, %11, %cst_22 {dimension_numbers = #tpu.dot_dimension_numbers<[1], [1], [0], [0], [0, 0, 1, 0], [], []>} : vector<17x13xf32>, vector<17x13xf32>, vector<17x17xf32> -> vector<17x17xf32>
    "tpu.trace_stop"() : () -> ()
    %16 = arith.subf %14, %15 : vector<17x17xf32>
    "tpu.trace_start"() <{level = 10 : i32, message = "fc,gc->fg"}> : () -> ()
    %cst_23 = arith.constant dense<0.000000e+00> : vector<17x17xf32>
    %17 = tpu.matmul %12, %11, %cst_23 {dimension_numbers = #tpu.dot_dimension_numbers<[1], [1], [0], [0], [0, 0, 1, 0], [], []>} : vector<17x13xf32>, vector<17x13xf32>, vector<17x17xf32> -> vector<17x17xf32>
    %cst_24 = arith.constant dense<0.000000e+00> : vector<17x17xf32>
    %18 = tpu.matmul %13, %10, %cst_24 {dimension_numbers = #tpu.dot_dimension_numbers<[1], [1], [0], [0], [0, 0, 1, 0], [], []>} : vector<17x13xf32>, vector<17x13xf32>, vector<17x17xf32> -> vector<17x17xf32>
    "tpu.trace_stop"() : () -> ()
    %19 = arith.addf %17, %18 : vector<17x17xf32>
    %20 = arith.mulf %16, %16 : vector<17x17xf32>
    %21 = arith.mulf %19, %19 : vector<17x17xf32>
    %22 = arith.addf %20, %21 : vector<17x17xf32>
    %23 = math.sqrt %22 : vector<17x17xf32>
    %c0_25 = arith.constant 0 : index
    %c0_26 = arith.constant 0 : index
    %c0_27 = arith.constant 0 : index
    %24 = vector.load %arg28[%c0_25, %c0_26, %c0_27] : memref<2x17x17xf32, #tpu.memory_space<vmem>>, vector<1x17x17xf32>
    %25 = vector.shape_cast %24 : vector<1x17x17xf32> to vector<17x17xf32>
    %26 = vector.shape_cast %23 : vector<17x17xf32> to vector<1x17x17xf32>
    tpu.vector_store %arg28[%c0_25, %c0_26, %c0_27], %26 {strides = array<i32>} : memref<2x17x17xf32, #tpu.memory_space<vmem>>, vector<1x17x17xf32>,
    %cst_28 = arith.constant dense<0xFF800000> : vector<17xf32>
    %27 = vector.multi_reduction <maximumf>, %23, %cst_28 [1] : vector<17x17xf32> to vector<17xf32>
    %28 = vector.shape_cast %27 : vector<17xf32> to vector<17x1xf32>
    %29 = vector.broadcast %28 : vector<17x1xf32> to vector<17x17xf32>
    %30 = arith.subf %23, %29 : vector<17x17xf32>
    %31 = math.exp %30 : vector<17x17xf32>
    %cst_29 = arith.constant dense<0.000000e+00> : vector<17xf32>
    %32 = vector.multi_reduction <add>, %31, %cst_29 [1] : vector<17x17xf32> to vector<17xf32>
    %33 = vector.shape_cast %32 : vector<17xf32> to vector<17x1xf32>
    %34 = tpu.reciprocal %33 {approx = true} : vector<17x1xf32> -> vector<17x1xf32>
    %35 = vector.broadcast %34 : vector<17x1xf32> to vector<17x17xf32>
    %36 = arith.mulf %31, %35 : vector<17x17xf32>
    %cst_30 = arith.constant dense<0.000000e+00> : vector<13x32xf32>
    %37 = tpu.matmul %3, %9, %cst_30 {dimension_numbers = #tpu.dot_dimension_numbers<[1], [0], [0], [1], [0, 0, 1, 1], [], []>} : vector<13x13xf32>, vector<13x32xf32>, vector<13x32xf32> -> vector<13x32xf32>
    %cst_31 = arith.constant dense<0.000000e+00> : vector<13x17xf32>
    %38 = tpu.matmul %37, %4, %cst_31 {dimension_numbers = #tpu.dot_dimension_numbers<[1], [0], [0], [1], [0, 0, 1, 1], [], []>} : vector<13x32xf32>, vector<32x17xf32>, vector<13x17xf32> -> vector<13x17xf32>
    %cst_32 = arith.constant dense<0.000000e+00> : vector<13x17xf32>
    %39 = tpu.matmul %37, %5, %cst_32 {dimension_numbers = #tpu.dot_dimension_numbers<[1], [0], [0], [1], [0, 0, 1, 1], [], []>} : vector<13x32xf32>, vector<32x17xf32>, vector<13x17xf32> -> vector<13x17xf32>
    "tpu.trace_start"() <{level = 10 : i32, message = "cg,fg->cf"}> : () -> ()
    %cst_33 = arith.constant dense<0.000000e+00> : vector<13x17xf32>
    %40 = tpu.matmul %38, %36, %cst_33 {dimension_numbers = #tpu.dot_dimension_numbers<[1], [1], [0], [0], [0, 0, 1, 0], [], []>} : vector<13x17xf32>, vector<17x17xf32>, vector<13x17xf32> -> vector<13x17xf32>
    %cst_34 = arith.constant dense<0.000000e+00> : vector<13x17xf32>
    %41 = tpu.matmul %39, %36, %cst_34 {dimension_numbers = #tpu.dot_dimension_numbers<[1], [1], [0], [0], [0, 0, 1, 0], [], []>} : vector<13x17xf32>, vector<17x17xf32>, vector<13x17xf32> -> vector<13x17xf32>
    "tpu.trace_stop"() : () -> ()
    %cst_35 = arith.constant dense<0.000000e+00> : vector<13x32xf32>
    %42 = tpu.matmul %40, %6, %cst_35 {dimension_numbers = #tpu.dot_dimension_numbers<[1], [0], [0], [1], [0, 0, 1, 1], [], []>} : vector<13x17xf32>, vector<17x32xf32>, vector<13x32xf32> -> vector<13x32xf32>
    %cst_36 = arith.constant dense<0.000000e+00> : vector<13x32xf32>
    %43 = tpu.matmul %41, %7, %cst_36 {dimension_numbers = #tpu.dot_dimension_numbers<[1], [0], [0], [1], [0, 0, 1, 1], [], []>} : vector<13x17xf32>, vector<17x32xf32>, vector<13x32xf32> -> vector<13x32xf32>
    %44 = arith.addf %42, %43 : vector<13x32xf32>
    %c1 = arith.constant 1 : index
    %c0_37 = arith.constant 0 : index
    %c0_38 = arith.constant 0 : index
    %45 = vector.load %arg0[%c1, %c0_37, %c0_38] : memref<2x13x32xf32, #tpu.memory_space<vmem>>, vector<1x13x32xf32>
    %46 = vector.shape_cast %45 : vector<1x13x32xf32> to vector<13x32xf32>
    "tpu.trace_start"() <{level = 10 : i32, message = "ft,ct->fc"}> : () -> ()
    %cst_39 = arith.constant dense<0.000000e+00> : vector<17x13xf32>
    %47 = tpu.matmul %0, %46, %cst_39 {dimension_numbers = #tpu.dot_dimension_numbers<[1], [1], [0], [0], [0, 0, 1, 0], [], []>} : vector<17x32xf32>, vector<13x32xf32>, vector<17x13xf32> -> vector<17x13xf32>
    %cst_40 = arith.constant dense<0.000000e+00> : vector<17x13xf32>
    %48 = tpu.matmul %1, %46, %cst_40 {dimension_numbers = #tpu.dot_dimension_numbers<[1], [1], [0], [0], [0, 0, 1, 0], [], []>} : vector<17x32xf32>, vector<13x32xf32>, vector<17x13xf32> -> vector<17x13xf32>
    "tpu.trace_stop"() : () -> ()
    %cst_41 = arith.constant dense<0.000000e+00> : vector<17x13xf32>
    %49 = tpu.matmul %47, %2, %cst_41 {dimension_numbers = #tpu.dot_dimension_numbers<[1], [0], [0], [1], [0, 0, 1, 1], [], []>} : vector<17x13xf32>, vector<13x13xf32>, vector<17x13xf32> -> vector<17x13xf32>
    %cst_42 = arith.constant dense<0.000000e+00> : vector<17x13xf32>
    %50 = tpu.matmul %48, %2, %cst_42 {dimension_numbers = #tpu.dot_dimension_numbers<[1], [0], [0], [1], [0, 0, 1, 1], [], []>} : vector<17x13xf32>, vector<13x13xf32>, vector<17x13xf32> -> vector<17x13xf32>
    "tpu.trace_start"() <{level = 10 : i32, message = "fc,gc->fg"}> : () -> ()
    %cst_43 = arith.constant dense<0.000000e+00> : vector<17x17xf32>
    %51 = tpu.matmul %49, %47, %cst_43 {dimension_numbers = #tpu.dot_dimension_numbers<[1], [1], [0], [0], [0, 0, 1, 0], [], []>} : vector<17x13xf32>, vector<17x13xf32>, vector<17x17xf32> -> vector<17x17xf32>
    %cst_44 = arith.constant dense<0.000000e+00> : vector<17x17xf32>
    %52 = tpu.matmul %50, %48, %cst_44 {dimension_numbers = #tpu.dot_dimension_numbers<[1], [1], [0], [0], [0, 0, 1, 0], [], []>} : vector<17x13xf32>, vector<17x13xf32>, vector<17x17xf32> -> vector<17x17xf32>
    "tpu.trace_stop"() : () -> ()
    %53 = arith.subf %51, %52 : vector<17x17xf32>
    "tpu.trace_start"() <{level = 10 : i32, message = "fc,gc->fg"}> : () -> ()
    %cst_45 = arith.constant dense<0.000000e+00> : vector<17x17xf32>
    %54 = tpu.matmul %49, %48, %cst_45 {dimension_numbers = #tpu.dot_dimension_numbers<[1], [1], [0], [0], [0, 0, 1, 0], [], []>} : vector<17x13xf32>, vector<17x13xf32>, vector<17x17xf32> -> vector<17x17xf32>
    %cst_46 = arith.constant dense<0.000000e+00> : vector<17x17xf32>
    %55 = tpu.matmul %50, %47, %cst_46 {dimension_numbers = #tpu.dot_dimension_numbers<[1], [1], [0], [0], [0, 0, 1, 0], [], []>} : vector<17x13xf32>, vector<17x13xf32>, vector<17x17xf32> -> vector<17x17xf32>
    "tpu.trace_stop"() : () -> ()
    %56 = arith.addf %54, %55 : vector<17x17xf32>
    %57 = arith.mulf %53, %53 : vector<17x17xf32>
    %58 = arith.mulf %56, %56 : vector<17x17xf32>
    %59 = arith.addf %57, %58 : vector<17x17xf32>
    %60 = math.sqrt %59 : vector<17x17xf32>
    %c1_47 = arith.constant 1 : index
    %c0_48 = arith.constant 0 : index
    %c0_49 = arith.constant 0 : index
    %61 = vector.load %arg28[%c1_47, %c0_48, %c0_49] : memref<2x17x17xf32, #tpu.memory_space<vmem>>, vector<1x17x17xf32>
    %62 = vector.shape_cast %61 : vector<1x17x17xf32> to vector<17x17xf32>
    %63 = vector.shape_cast %60 : vector<17x17xf32> to vector<1x17x17xf32>
    tpu.vector_store %arg28[%c1_47, %c0_48, %c0_49], %63 {strides = array<i32>} : memref<2x17x17xf32, #tpu.memory_space<vmem>>, vector<1x17x17xf32>,
    %cst_50 = arith.constant dense<0xFF800000> : vector<17xf32>
    %64 = vector.multi_reduction <maximumf>, %60, %cst_50 [1] : vector<17x17xf32> to vector<17xf32>
    %65 = vector.shape_cast %64 : vector<17xf32> to vector<17x1xf32>
    %66 = vector.broadcast %65 : vector<17x1xf32> to vector<17x17xf32>
    %67 = arith.subf %60, %66 : vector<17x17xf32>
    %68 = math.exp %67 : vector<17x17xf32>
    %cst_51 = arith.constant dense<0.000000e+00> : vector<17xf32>
    %69 = vector.multi_reduction <add>, %68, %cst_51 [1] : vector<17x17xf32> to vector<17xf32>
    %70 = vector.shape_cast %69 : vector<17xf32> to vector<17x1xf32>
    %71 = tpu.reciprocal %70 {approx = true} : vector<17x1xf32> -> vector<17x1xf32>
    %72 = vector.broadcast %71 : vector<17x1xf32> to vector<17x17xf32>
    %73 = arith.mulf %68, %72 : vector<17x17xf32>
    %cst_52 = arith.constant dense<0.000000e+00> : vector<13x32xf32>
    %74 = tpu.matmul %3, %46, %cst_52 {dimension_numbers = #tpu.dot_dimension_numbers<[1], [0], [0], [1], [0, 0, 1, 1], [], []>} : vector<13x13xf32>, vector<13x32xf32>, vector<13x32xf32> -> vector<13x32xf32>
    %cst_53 = arith.constant dense<0.000000e+00> : vector<13x17xf32>
    %75 = tpu.matmul %74, %4, %cst_53 {dimension_numbers = #tpu.dot_dimension_numbers<[1], [0], [0], [1], [0, 0, 1, 1], [], []>} : vector<13x32xf32>, vector<32x17xf32>, vector<13x17xf32> -> vector<13x17xf32>
    %cst_54 = arith.constant dense<0.000000e+00> : vector<13x17xf32>
    %76 = tpu.matmul %74, %5, %cst_54 {dimension_numbers = #tpu.dot_dimension_numbers<[1], [0], [0], [1], [0, 0, 1, 1], [], []>} : vector<13x32xf32>, vector<32x17xf32>, vector<13x17xf32> -> vector<13x17xf32>
    "tpu.trace_start"() <{level = 10 : i32, message = "cg,fg->cf"}> : () -> ()
    %cst_55 = arith.constant dense<0.000000e+00> : vector<13x17xf32>
    %77 = tpu.matmul %75, %73, %cst_55 {dimension_numbers = #tpu.dot_dimension_numbers<[1], [1], [0], [0], [0, 0, 1, 0], [], []>} : vector<13x17xf32>, vector<17x17xf32>, vector<13x17xf32> -> vector<13x17xf32>
    %cst_56 = arith.constant dense<0.000000e+00> : vector<13x17xf32>
    %78 = tpu.matmul %76, %73, %cst_56 {dimension_numbers = #tpu.dot_dimension_numbers<[1], [1], [0], [0], [0, 0, 1, 0], [], []>} : vector<13x17xf32>, vector<17x17xf32>, vector<13x17xf32> -> vector<13x17xf32>
    "tpu.trace_stop"() : () -> ()
    %cst_57 = arith.constant dense<0.000000e+00> : vector<13x32xf32>
    %79 = tpu.matmul %77, %6, %cst_57 {dimension_numbers = #tpu.dot_dimension_numbers<[1], [0], [0], [1], [0, 0, 1, 1], [], []>} : vector<13x17xf32>, vector<17x32xf32>, vector<13x32xf32> -> vector<13x32xf32>
    %cst_58 = arith.constant dense<0.000000e+00> : vector<13x32xf32>
    %80 = tpu.matmul %78, %7, %cst_58 {dimension_numbers = #tpu.dot_dimension_numbers<[1], [0], [0], [1], [0, 0, 1, 1], [], []>} : vector<13x17xf32>, vector<17x32xf32>, vector<13x32xf32> -> vector<13x32xf32>
    %81 = arith.addf %79, %80 : vector<13x32xf32>
    %82 = tpu.concatenate %44, %81 in 0 : vector<13x32xf32>, vector<13x32xf32> -> vector<26x32xf32>
    %c0_59 = arith.constant 0 : index
    %c0_60 = arith.constant 0 : index
    %83 = vector.load %arg10[%c0_59, %c0_60] : memref<1x256xf32, #tpu.memory_space<vmem>>, vector<1x256xf32>
    %c0_61 = arith.constant 0 : index
    %c0_62 = arith.constant 0 : index
    %84 = vector.load %arg11[%c0_61, %c0_62] : memref<1x256xf32, #tpu.memory_space<vmem>>, vector<1x256xf32>
    %c0_63 = arith.constant 0 : index
    %c0_64 = arith.constant 0 : index
    %85 = vector.load %arg13[%c0_63, %c0_64] : memref<256x256xf32, #tpu.memory_space<vmem>>, vector<256x256xf32>
    %c0_65 = arith.constant 0 : index
    %c0_66 = arith.constant 0 : index
    %86 = vector.load %arg9[%c0_65, %c0_66] : memref<32x256xf32, #tpu.memory_space<vmem>>, vector<32x256xf32>
    %cst_67 = arith.constant dense<0.000000e+00> : vector<26x256xf32>
    %87 = tpu.matmul %82, %86, %cst_67 {dimension_numbers = #tpu.dot_dimension_numbers<[1], [0], [0], [1], [0, 0, 1, 1], [], []>} : vector<26x32xf32>, vector<32x256xf32>, vector<26x256xf32> -> vector<26x256xf32>
    %88 = vector.broadcast %83 : vector<1x256xf32> to vector<26x256xf32>
    %89 = arith.mulf %87, %88 : vector<26x256xf32>
    %90 = vector.broadcast %84 : vector<1x256xf32> to vector<26x256xf32>
    %91 = arith.addf %89, %90 : vector<26x256xf32>
    %c0_68 = arith.constant 0 : index
    %c0_69 = arith.constant 0 : index
    %c0_70 = arith.constant 0 : index
    %92 = vector.load %arg12[%c0_68, %c0_69, %c0_70] : memref<8x26x26xf32, #tpu.memory_space<vmem>>, vector<1x26x26xf32>
    %93 = vector.shape_cast %92 : vector<1x26x26xf32> to vector<26x26xf32>
    %94 = vector.extract_strided_slice %91 {offsets = [0, 0], sizes = [26, 32], strides = [1, 1]} : vector<26x256xf32> to vector<26x32xf32>
    %cst_71 = arith.constant dense<0.000000e+00> : vector<26x32xf32>
    %95 = tpu.matmul %93, %94, %cst_71 {dimension_numbers = #tpu.dot_dimension_numbers<[1], [0], [0], [1], [0, 0, 1, 1], [], []>} : vector<26x26xf32>, vector<26x32xf32>, vector<26x32xf32> -> vector<26x32xf32>
    %c1_72 = arith.constant 1 : index
    %c0_73 = arith.constant 0 : index
    %c0_74 = arith.constant 0 : index
    %96 = vector.load %arg12[%c1_72, %c0_73, %c0_74] : memref<8x26x26xf32, #tpu.memory_space<vmem>>, vector<1x26x26xf32>
    %97 = vector.shape_cast %96 : vector<1x26x26xf32> to vector<26x26xf32>
    %98 = vector.extract_strided_slice %91 {offsets = [0, 32], sizes = [26, 32], strides = [1, 1]} : vector<26x256xf32> to vector<26x32xf32>
    %cst_75 = arith.constant dense<0.000000e+00> : vector<26x32xf32>
    %99 = tpu.matmul %97, %98, %cst_75 {dimension_numbers = #tpu.dot_dimension_numbers<[1], [0], [0], [1], [0, 0, 1, 1], [], []>} : vector<26x26xf32>, vector<26x32xf32>, vector<26x32xf32> -> vector<26x32xf32>
    %c2 = arith.constant 2 : index
    %c0_76 = arith.constant 0 : index
    %c0_77 = arith.constant 0 : index
    %100 = vector.load %arg12[%c2, %c0_76, %c0_77] : memref<8x26x26xf32, #tpu.memory_space<vmem>>, vector<1x26x26xf32>
    %101 = vector.shape_cast %100 : vector<1x26x26xf32> to vector<26x26xf32>
    %102 = vector.extract_strided_slice %91 {offsets = [0, 64], sizes = [26, 32], strides = [1, 1]} : vector<26x256xf32> to vector<26x32xf32>
    %cst_78 = arith.constant dense<0.000000e+00> : vector<26x32xf32>
    %103 = tpu.matmul %101, %102, %cst_78 {dimension_numbers = #tpu.dot_dimension_numbers<[1], [0], [0], [1], [0, 0, 1, 1], [], []>} : vector<26x26xf32>, vector<26x32xf32>, vector<26x32xf32> -> vector<26x32xf32>
    %c3 = arith.constant 3 : index
    %c0_79 = arith.constant 0 : index
    %c0_80 = arith.constant 0 : index
    %104 = vector.load %arg12[%c3, %c0_79, %c0_80] : memref<8x26x26xf32, #tpu.memory_space<vmem>>, vector<1x26x26xf32>
    %105 = vector.shape_cast %104 : vector<1x26x26xf32> to vector<26x26xf32>
    %106 = vector.extract_strided_slice %91 {offsets = [0, 96], sizes = [26, 32], strides = [1, 1]} : vector<26x256xf32> to vector<26x32xf32>
    %cst_81 = arith.constant dense<0.000000e+00> : vector<26x32xf32>
    %107 = tpu.matmul %105, %106, %cst_81 {dimension_numbers = #tpu.dot_dimension_numbers<[1], [0], [0], [1], [0, 0, 1, 1], [], []>} : vector<26x26xf32>, vector<26x32xf32>, vector<26x32xf32> -> vector<26x32xf32>
    %c4 = arith.constant 4 : index
    %c0_82 = arith.constant 0 : index
    %c0_83 = arith.constant 0 : index
    %108 = vector.load %arg12[%c4, %c0_82, %c0_83] : memref<8x26x26xf32, #tpu.memory_space<vmem>>, vector<1x26x26xf32>
    %109 = vector.shape_cast %108 : vector<1x26x26xf32> to vector<26x26xf32>
    %110 = vector.extract_strided_slice %91 {offsets = [0, 128], sizes = [26, 32], strides = [1, 1]} : vector<26x256xf32> to vector<26x32xf32>
    %cst_84 = arith.constant dense<0.000000e+00> : vector<26x32xf32>
    %111 = tpu.matmul %109, %110, %cst_84 {dimension_numbers = #tpu.dot_dimension_numbers<[1], [0], [0], [1], [0, 0, 1, 1], [], []>} : vector<26x26xf32>, vector<26x32xf32>, vector<26x32xf32> -> vector<26x32xf32>
    %c5 = arith.constant 5 : index
    %c0_85 = arith.constant 0 : index
    %c0_86 = arith.constant 0 : index
    %112 = vector.load %arg12[%c5, %c0_85, %c0_86] : memref<8x26x26xf32, #tpu.memory_space<vmem>>, vector<1x26x26xf32>
    %113 = vector.shape_cast %112 : vector<1x26x26xf32> to vector<26x26xf32>
    %114 = vector.extract_strided_slice %91 {offsets = [0, 160], sizes = [26, 32], strides = [1, 1]} : vector<26x256xf32> to vector<26x32xf32>
    %cst_87 = arith.constant dense<0.000000e+00> : vector<26x32xf32>
    %115 = tpu.matmul %113, %114, %cst_87 {dimension_numbers = #tpu.dot_dimension_numbers<[1], [0], [0], [1], [0, 0, 1, 1], [], []>} : vector<26x26xf32>, vector<26x32xf32>, vector<26x32xf32> -> vector<26x32xf32>
    %c6 = arith.constant 6 : index
    %c0_88 = arith.constant 0 : index
    %c0_89 = arith.constant 0 : index
    %116 = vector.load %arg12[%c6, %c0_88, %c0_89] : memref<8x26x26xf32, #tpu.memory_space<vmem>>, vector<1x26x26xf32>
    %117 = vector.shape_cast %116 : vector<1x26x26xf32> to vector<26x26xf32>
    %118 = vector.extract_strided_slice %91 {offsets = [0, 192], sizes = [26, 32], strides = [1, 1]} : vector<26x256xf32> to vector<26x32xf32>
    %cst_90 = arith.constant dense<0.000000e+00> : vector<26x32xf32>
    %119 = tpu.matmul %117, %118, %cst_90 {dimension_numbers = #tpu.dot_dimension_numbers<[1], [0], [0], [1], [0, 0, 1, 1], [], []>} : vector<26x26xf32>, vector<26x32xf32>, vector<26x32xf32> -> vector<26x32xf32>
    %c7 = arith.constant 7 : index
    %c0_91 = arith.constant 0 : index
    %c0_92 = arith.constant 0 : index
    %120 = vector.load %arg12[%c7, %c0_91, %c0_92] : memref<8x26x26xf32, #tpu.memory_space<vmem>>, vector<1x26x26xf32>
    %121 = vector.shape_cast %120 : vector<1x26x26xf32> to vector<26x26xf32>
    %122 = vector.extract_strided_slice %91 {offsets = [0, 224], sizes = [26, 32], strides = [1, 1]} : vector<26x256xf32> to vector<26x32xf32>
    %cst_93 = arith.constant dense<0.000000e+00> : vector<26x32xf32>
    %123 = tpu.matmul %121, %122, %cst_93 {dimension_numbers = #tpu.dot_dimension_numbers<[1], [0], [0], [1], [0, 0, 1, 1], [], []>} : vector<26x26xf32>, vector<26x32xf32>, vector<26x32xf32> -> vector<26x32xf32>
    %124 = tpu.concatenate %95, %99, %103, %107, %111, %115, %119, %123 in 1 : vector<26x32xf32>, vector<26x32xf32>, vector<26x32xf32>, vector<26x32xf32>, vector<26x32xf32>, vector<26x32xf32>, vector<26x32xf32>, vector<26x32xf32> -> vector<26x256xf32>
    %cst_94 = arith.constant dense<0.000000e+00> : vector<26x256xf32>
    %125 = tpu.matmul %124, %85, %cst_94 {dimension_numbers = #tpu.dot_dimension_numbers<[1], [0], [0], [1], [0, 0, 1, 1], [], []>} : vector<26x256xf32>, vector<256x256xf32>, vector<26x256xf32> -> vector<26x256xf32>
    %126 = vector.broadcast %83 : vector<1x256xf32> to vector<26x256xf32>
    %127 = arith.mulf %125, %126 : vector<26x256xf32>
    %128 = vector.broadcast %84 : vector<1x256xf32> to vector<26x256xf32>
    %129 = arith.addf %127, %128 : vector<26x256xf32>
    %cst_95 = arith.constant 0.000000e+00 : f32
    %130 = vector.broadcast %cst_95 : f32 to vector<26x256xf32>
    %131 = arith.cmpf ogt, %129, %130 : vector<26x256xf32>
    %cst_96 = arith.constant 0.000000e+00 : f32
    %132 = vector.broadcast %cst_96 : f32 to vector<26x256xf32>
    %133 = arith.minimumf %129, %132 : vector<26x256xf32>
    %134 = math.exp %133 : vector<26x256xf32>
    %cst_97 = arith.constant 1.000000e+00 : f32
    %135 = vector.broadcast %cst_97 : f32 to vector<26x256xf32>
    %136 = arith.subf %134, %135 : vector<26x256xf32>
    %137 = arith.select %131, %129, %136 : vector<26x256xi1>, vector<26x256xf32>
    %c0_98 = arith.constant 0 : index
    %c0_99 = arith.constant 0 : index
    %c0_100 = arith.constant 0 : index
    %138 = vector.load %arg12[%c0_98, %c0_99, %c0_100] : memref<8x26x26xf32, #tpu.memory_space<vmem>>, vector<1x26x26xf32>
    %139 = vector.shape_cast %138 : vector<1x26x26xf32> to vector<26x26xf32>
    %140 = vector.extract_strided_slice %137 {offsets = [0, 0], sizes = [26, 32], strides = [1, 1]} : vector<26x256xf32> to vector<26x32xf32>
    %cst_101 = arith.constant dense<0.000000e+00> : vector<26x32xf32>
    %141 = tpu.matmul %139, %140, %cst_101 {dimension_numbers = #tpu.dot_dimension_numbers<[1], [0], [0], [1], [0, 0, 1, 1], [], []>} : vector<26x26xf32>, vector<26x32xf32>, vector<26x32xf32> -> vector<26x32xf32>
    %c1_102 = arith.constant 1 : index
    %c0_103 = arith.constant 0 : index
    %c0_104 = arith.constant 0 : index
    %142 = vector.load %arg12[%c1_102, %c0_103, %c0_104] : memref<8x26x26xf32, #tpu.memory_space<vmem>>, vector<1x26x26xf32>
    %143 = vector.shape_cast %142 : vector<1x26x26xf32> to vector<26x26xf32>
    %144 = vector.extract_strided_slice %137 {offsets = [0, 32], sizes = [26, 32], strides = [1, 1]} : vector<26x256xf32> to vector<26x32xf32>
    %cst_105 = arith.constant dense<0.000000e+00> : vector<26x32xf32>
    %145 = tpu.matmul %143, %144, %cst_105 {dimension_numbers = #tpu.dot_dimension_numbers<[1], [0], [0], [1], [0, 0, 1, 1], [], []>} : vector<26x26xf32>, vector<26x32xf32>, vector<26x32xf32> -> vector<26x32xf32>
    %c2_106 = arith.constant 2 : index
    %c0_107 = arith.constant 0 : index
    %c0_108 = arith.constant 0 : index
    %146 = vector.load %arg12[%c2_106, %c0_107, %c0_108] : memref<8x26x26xf32, #tpu.memory_space<vmem>>, vector<1x26x26xf32>
    %147 = vector.shape_cast %146 : vector<1x26x26xf32> to vector<26x26xf32>
    %148 = vector.extract_strided_slice %137 {offsets = [0, 64], sizes = [26, 32], strides = [1, 1]} : vector<26x256xf32> to vector<26x32xf32>
    %cst_109 = arith.constant dense<0.000000e+00> : vector<26x32xf32>
    %149 = tpu.matmul %147, %148, %cst_109 {dimension_numbers = #tpu.dot_dimension_numbers<[1], [0], [0], [1], [0, 0, 1, 1], [], []>} : vector<26x26xf32>, vector<26x32xf32>, vector<26x32xf32> -> vector<26x32xf32>
    %c3_110 = arith.constant 3 : index
    %c0_111 = arith.constant 0 : index
    %c0_112 = arith.constant 0 : index
    %150 = vector.load %arg12[%c3_110, %c0_111, %c0_112] : memref<8x26x26xf32, #tpu.memory_space<vmem>>, vector<1x26x26xf32>
    %151 = vector.shape_cast %150 : vector<1x26x26xf32> to vector<26x26xf32>
    %152 = vector.extract_strided_slice %137 {offsets = [0, 96], sizes = [26, 32], strides = [1, 1]} : vector<26x256xf32> to vector<26x32xf32>
    %cst_113 = arith.constant dense<0.000000e+00> : vector<26x32xf32>
    %153 = tpu.matmul %151, %152, %cst_113 {dimension_numbers = #tpu.dot_dimension_numbers<[1], [0], [0], [1], [0, 0, 1, 1], [], []>} : vector<26x26xf32>, vector<26x32xf32>, vector<26x32xf32> -> vector<26x32xf32>
    %c4_114 = arith.constant 4 : index
    %c0_115 = arith.constant 0 : index
    %c0_116 = arith.constant 0 : index
    %154 = vector.load %arg12[%c4_114, %c0_115, %c0_116] : memref<8x26x26xf32, #tpu.memory_space<vmem>>, vector<1x26x26xf32>
    %155 = vector.shape_cast %154 : vector<1x26x26xf32> to vector<26x26xf32>
    %156 = vector.extract_strided_slice %137 {offsets = [0, 128], sizes = [26, 32], strides = [1, 1]} : vector<26x256xf32> to vector<26x32xf32>
    %cst_117 = arith.constant dense<0.000000e+00> : vector<26x32xf32>
    %157 = tpu.matmul %155, %156, %cst_117 {dimension_numbers = #tpu.dot_dimension_numbers<[1], [0], [0], [1], [0, 0, 1, 1], [], []>} : vector<26x26xf32>, vector<26x32xf32>, vector<26x32xf32> -> vector<26x32xf32>
    %c5_118 = arith.constant 5 : index
    %c0_119 = arith.constant 0 : index
    %c0_120 = arith.constant 0 : index
    %158 = vector.load %arg12[%c5_118, %c0_119, %c0_120] : memref<8x26x26xf32, #tpu.memory_space<vmem>>, vector<1x26x26xf32>
    %159 = vector.shape_cast %158 : vector<1x26x26xf32> to vector<26x26xf32>
    %160 = vector.extract_strided_slice %137 {offsets = [0, 160], sizes = [26, 32], strides = [1, 1]} : vector<26x256xf32> to vector<26x32xf32>
    %cst_121 = arith.constant dense<0.000000e+00> : vector<26x32xf32>
    %161 = tpu.matmul %159, %160, %cst_121 {dimension_numbers = #tpu.dot_dimension_numbers<[1], [0], [0], [1], [0, 0, 1, 1], [], []>} : vector<26x26xf32>, vector<26x32xf32>, vector<26x32xf32> -> vector<26x32xf32>
    %c6_122 = arith.constant 6 : index
    %c0_123 = arith.constant 0 : index
    %c0_124 = arith.constant 0 : index
    %162 = vector.load %arg12[%c6_122, %c0_123, %c0_124] : memref<8x26x26xf32, #tpu.memory_space<vmem>>, vector<1x26x26xf32>
    %163 = vector.shape_cast %162 : vector<1x26x26xf32> to vector<26x26xf32>
    %164 = vector.extract_strided_slice %137 {offsets = [0, 192], sizes = [26, 32], strides = [1, 1]} : vector<26x256xf32> to vector<26x32xf32>
    %cst_125 = arith.constant dense<0.000000e+00> : vector<26x32xf32>
    %165 = tpu.matmul %163, %164, %cst_125 {dimension_numbers = #tpu.dot_dimension_numbers<[1], [0], [0], [1], [0, 0, 1, 1], [], []>} : vector<26x26xf32>, vector<26x32xf32>, vector<26x32xf32> -> vector<26x32xf32>
    %c7_126 = arith.constant 7 : index
    %c0_127 = arith.constant 0 : index
    %c0_128 = arith.constant 0 : index
    %166 = vector.load %arg12[%c7_126, %c0_127, %c0_128] : memref<8x26x26xf32, #tpu.memory_space<vmem>>, vector<1x26x26xf32>
    %167 = vector.shape_cast %166 : vector<1x26x26xf32> to vector<26x26xf32>
    %168 = vector.extract_strided_slice %137 {offsets = [0, 224], sizes = [26, 32], strides = [1, 1]} : vector<26x256xf32> to vector<26x32xf32>
    %cst_129 = arith.constant dense<0.000000e+00> : vector<26x32xf32>
    %169 = tpu.matmul %167, %168, %cst_129 {dimension_numbers = #tpu.dot_dimension_numbers<[1], [0], [0], [1], [0, 0, 1, 1], [], []>} : vector<26x26xf32>, vector<26x32xf32>, vector<26x32xf32> -> vector<26x32xf32>
    %170 = tpu.concatenate %141, %145, %149, %153, %157, %161, %165, %169 in 1 : vector<26x32xf32>, vector<26x32xf32>, vector<26x32xf32>, vector<26x32xf32>, vector<26x32xf32>, vector<26x32xf32>, vector<26x32xf32>, vector<26x32xf32> -> vector<26x256xf32>
    %cst_130 = arith.constant dense<0.000000e+00> : vector<26x256xf32>
    %171 = tpu.matmul %170, %85, %cst_130 {dimension_numbers = #tpu.dot_dimension_numbers<[1], [0], [0], [1], [0, 0, 1, 1], [], []>} : vector<26x256xf32>, vector<256x256xf32>, vector<26x256xf32> -> vector<26x256xf32>
    %172 = vector.broadcast %83 : vector<1x256xf32> to vector<26x256xf32>
    %173 = arith.mulf %171, %172 : vector<26x256xf32>
    %174 = vector.broadcast %84 : vector<1x256xf32> to vector<26x256xf32>
    %175 = arith.addf %173, %174 : vector<26x256xf32>
    %cst_131 = arith.constant 0.000000e+00 : f32
    %176 = vector.broadcast %cst_131 : f32 to vector<26x256xf32>
    %177 = arith.cmpf ogt, %175, %176 : vector<26x256xf32>
    %cst_132 = arith.constant 0.000000e+00 : f32
    %178 = vector.broadcast %cst_132 : f32 to vector<26x256xf32>
    %179 = arith.minimumf %175, %178 : vector<26x256xf32>
    %180 = math.exp %179 : vector<26x256xf32>
    %cst_133 = arith.constant 1.000000e+00 : f32
    %181 = vector.broadcast %cst_133 : f32 to vector<26x256xf32>
    %182 = arith.subf %180, %181 : vector<26x256xf32>
    %183 = arith.select %177, %175, %182 : vector<26x256xi1>, vector<26x256xf32>
    %c0_134 = arith.constant 0 : index
    %c0_135 = arith.constant 0 : index
    %c0_136 = arith.constant 0 : index
    %184 = vector.load %arg12[%c0_134, %c0_135, %c0_136] : memref<8x26x26xf32, #tpu.memory_space<vmem>>, vector<1x26x26xf32>
    %185 = vector.shape_cast %184 : vector<1x26x26xf32> to vector<26x26xf32>
    %186 = vector.extract_strided_slice %183 {offsets = [0, 0], sizes = [26, 32], strides = [1, 1]} : vector<26x256xf32> to vector<26x32xf32>
    %cst_137 = arith.constant dense<0.000000e+00> : vector<26x32xf32>
    %187 = tpu.matmul %185, %186, %cst_137 {dimension_numbers = #tpu.dot_dimension_numbers<[1], [0], [0], [1], [0, 0, 1, 1], [], []>} : vector<26x26xf32>, vector<26x32xf32>, vector<26x32xf32> -> vector<26x32xf32>
    %c1_138 = arith.constant 1 : index
    %c0_139 = arith.constant 0 : index
    %c0_140 = arith.constant 0 : index
    %188 = vector.load %arg12[%c1_138, %c0_139, %c0_140] : memref<8x26x26xf32, #tpu.memory_space<vmem>>, vector<1x26x26xf32>
    %189 = vector.shape_cast %188 : vector<1x26x26xf32> to vector<26x26xf32>
    %190 = vector.extract_strided_slice %183 {offsets = [0, 32], sizes = [26, 32], strides = [1, 1]} : vector<26x256xf32> to vector<26x32xf32>
    %cst_141 = arith.constant dense<0.000000e+00> : vector<26x32xf32>
    %191 = tpu.matmul %189, %190, %cst_141 {dimension_numbers = #tpu.dot_dimension_numbers<[1], [0], [0], [1], [0, 0, 1, 1], [], []>} : vector<26x26xf32>, vector<26x32xf32>, vector<26x32xf32> -> vector<26x32xf32>
    %c2_142 = arith.constant 2 : index
    %c0_143 = arith.constant 0 : index
    %c0_144 = arith.constant 0 : index
    %192 = vector.load %arg12[%c2_142, %c0_143, %c0_144] : memref<8x26x26xf32, #tpu.memory_space<vmem>>, vector<1x26x26xf32>
    %193 = vector.shape_cast %192 : vector<1x26x26xf32> to vector<26x26xf32>
    %194 = vector.extract_strided_slice %183 {offsets = [0, 64], sizes = [26, 32], strides = [1, 1]} : vector<26x256xf32> to vector<26x32xf32>
    %cst_145 = arith.constant dense<0.000000e+00> : vector<26x32xf32>
    %195 = tpu.matmul %193, %194, %cst_145 {dimension_numbers = #tpu.dot_dimension_numbers<[1], [0], [0], [1], [0, 0, 1, 1], [], []>} : vector<26x26xf32>, vector<26x32xf32>, vector<26x32xf32> -> vector<26x32xf32>
    %c3_146 = arith.constant 3 : index
    %c0_147 = arith.constant 0 : index
    %c0_148 = arith.constant 0 : index
    %196 = vector.load %arg12[%c3_146, %c0_147, %c0_148] : memref<8x26x26xf32, #tpu.memory_space<vmem>>, vector<1x26x26xf32>
    %197 = vector.shape_cast %196 : vector<1x26x26xf32> to vector<26x26xf32>
    %198 = vector.extract_strided_slice %183 {offsets = [0, 96], sizes = [26, 32], strides = [1, 1]} : vector<26x256xf32> to vector<26x32xf32>
    %cst_149 = arith.constant dense<0.000000e+00> : vector<26x32xf32>
    %199 = tpu.matmul %197, %198, %cst_149 {dimension_numbers = #tpu.dot_dimension_numbers<[1], [0], [0], [1], [0, 0, 1, 1], [], []>} : vector<26x26xf32>, vector<26x32xf32>, vector<26x32xf32> -> vector<26x32xf32>
    %c4_150 = arith.constant 4 : index
    %c0_151 = arith.constant 0 : index
    %c0_152 = arith.constant 0 : index
    %200 = vector.load %arg12[%c4_150, %c0_151, %c0_152] : memref<8x26x26xf32, #tpu.memory_space<vmem>>, vector<1x26x26xf32>
    %201 = vector.shape_cast %200 : vector<1x26x26xf32> to vector<26x26xf32>
    %202 = vector.extract_strided_slice %183 {offsets = [0, 128], sizes = [26, 32], strides = [1, 1]} : vector<26x256xf32> to vector<26x32xf32>
    %cst_153 = arith.constant dense<0.000000e+00> : vector<26x32xf32>
    %203 = tpu.matmul %201, %202, %cst_153 {dimension_numbers = #tpu.dot_dimension_numbers<[1], [0], [0], [1], [0, 0, 1, 1], [], []>} : vector<26x26xf32>, vector<26x32xf32>, vector<26x32xf32> -> vector<26x32xf32>
    %c5_154 = arith.constant 5 : index
    %c0_155 = arith.constant 0 : index
    %c0_156 = arith.constant 0 : index
    %204 = vector.load %arg12[%c5_154, %c0_155, %c0_156] : memref<8x26x26xf32, #tpu.memory_space<vmem>>, vector<1x26x26xf32>
    %205 = vector.shape_cast %204 : vector<1x26x26xf32> to vector<26x26xf32>
    %206 = vector.extract_strided_slice %183 {offsets = [0, 160], sizes = [26, 32], strides = [1, 1]} : vector<26x256xf32> to vector<26x32xf32>
    %cst_157 = arith.constant dense<0.000000e+00> : vector<26x32xf32>
    %207 = tpu.matmul %205, %206, %cst_157 {dimension_numbers = #tpu.dot_dimension_numbers<[1], [0], [0], [1], [0, 0, 1, 1], [], []>} : vector<26x26xf32>, vector<26x32xf32>, vector<26x32xf32> -> vector<26x32xf32>
    %c6_158 = arith.constant 6 : index
    %c0_159 = arith.constant 0 : index
    %c0_160 = arith.constant 0 : index
    %208 = vector.load %arg12[%c6_158, %c0_159, %c0_160] : memref<8x26x26xf32, #tpu.memory_space<vmem>>, vector<1x26x26xf32>
    %209 = vector.shape_cast %208 : vector<1x26x26xf32> to vector<26x26xf32>
    %210 = vector.extract_strided_slice %183 {offsets = [0, 192], sizes = [26, 32], strides = [1, 1]} : vector<26x256xf32> to vector<26x32xf32>
    %cst_161 = arith.constant dense<0.000000e+00> : vector<26x32xf32>
    %211 = tpu.matmul %209, %210, %cst_161 {dimension_numbers = #tpu.dot_dimension_numbers<[1], [0], [0], [1], [0, 0, 1, 1], [], []>} : vector<26x26xf32>, vector<26x32xf32>, vector<26x32xf32> -> vector<26x32xf32>
    %c7_162 = arith.constant 7 : index
    %c0_163 = arith.constant 0 : index
    %c0_164 = arith.constant 0 : index
    %212 = vector.load %arg12[%c7_162, %c0_163, %c0_164] : memref<8x26x26xf32, #tpu.memory_space<vmem>>, vector<1x26x26xf32>
    %213 = vector.shape_cast %212 : vector<1x26x26xf32> to vector<26x26xf32>
    %214 = vector.extract_strided_slice %183 {offsets = [0, 224], sizes = [26, 32], strides = [1, 1]} : vector<26x256xf32> to vector<26x32xf32>
    %cst_165 = arith.constant dense<0.000000e+00> : vector<26x32xf32>
    %215 = tpu.matmul %213, %214, %cst_165 {dimension_numbers = #tpu.dot_dimension_numbers<[1], [0], [0], [1], [0, 0, 1, 1], [], []>} : vector<26x26xf32>, vector<26x32xf32>, vector<26x32xf32> -> vector<26x32xf32>
    %216 = tpu.concatenate %187, %191, %195, %199, %203, %207, %211, %215 in 1 : vector<26x32xf32>, vector<26x32xf32>, vector<26x32xf32>, vector<26x32xf32>, vector<26x32xf32>, vector<26x32xf32>, vector<26x32xf32>, vector<26x32xf32> -> vector<26x256xf32>
    %cst_166 = arith.constant dense<0.000000e+00> : vector<26x256xf32>
    %217 = tpu.matmul %216, %85, %cst_166 {dimension_numbers = #tpu.dot_dimension_numbers<[1], [0], [0], [1], [0, 0, 1, 1], [], []>} : vector<26x256xf32>, vector<256x256xf32>, vector<26x256xf32> -> vector<26x256xf32>
    %218 = vector.broadcast %83 : vector<1x256xf32> to vector<26x256xf32>
    %219 = arith.mulf %217, %218 : vector<26x256xf32>
    %220 = vector.broadcast %84 : vector<1x256xf32> to vector<26x256xf32>
    %221 = arith.addf %219, %220 : vector<26x256xf32>
    %cst_167 = arith.constant 0.000000e+00 : f32
    %222 = vector.broadcast %cst_167 : f32 to vector<26x256xf32>
    %223 = arith.cmpf ogt, %221, %222 : vector<26x256xf32>
    %cst_168 = arith.constant 0.000000e+00 : f32
    %224 = vector.broadcast %cst_168 : f32 to vector<26x256xf32>
    %225 = arith.minimumf %221, %224 : vector<26x256xf32>
    %226 = math.exp %225 : vector<26x256xf32>
    %cst_169 = arith.constant 1.000000e+00 : f32
    %227 = vector.broadcast %cst_169 : f32 to vector<26x256xf32>
    %228 = arith.subf %226, %227 : vector<26x256xf32>
    %229 = arith.select %223, %221, %228 : vector<26x256xi1>, vector<26x256xf32>
    %c0_170 = arith.constant 0 : index
    %c0_171 = arith.constant 0 : index
    %c0_172 = arith.constant 0 : index
    %230 = vector.load %arg14[%c0_170, %c0_171, %c0_172] : memref<8x4x26xf32, #tpu.memory_space<vmem>>, vector<1x4x26xf32>
    %231 = vector.shape_cast %230 : vector<1x4x26xf32> to vector<4x26xf32>
    %232 = vector.extract_strided_slice %229 {offsets = [0, 0], sizes = [26, 32], strides = [1, 1]} : vector<26x256xf32> to vector<26x32xf32>
    %cst_173 = arith.constant dense<0.000000e+00> : vector<4x32xf32>
    %233 = tpu.matmul %231, %232, %cst_173 {dimension_numbers = #tpu.dot_dimension_numbers<[1], [0], [0], [1], [0, 0, 1, 1], [], []>} : vector<4x26xf32>, vector<26x32xf32>, vector<4x32xf32> -> vector<4x32xf32>
    %c1_174 = arith.constant 1 : index
    %c0_175 = arith.constant 0 : index
    %c0_176 = arith.constant 0 : index
    %234 = vector.load %arg14[%c1_174, %c0_175, %c0_176] : memref<8x4x26xf32, #tpu.memory_space<vmem>>, vector<1x4x26xf32>
    %235 = vector.shape_cast %234 : vector<1x4x26xf32> to vector<4x26xf32>
    %236 = vector.extract_strided_slice %229 {offsets = [0, 32], sizes = [26, 32], strides = [1, 1]} : vector<26x256xf32> to vector<26x32xf32>
    %cst_177 = arith.constant dense<0.000000e+00> : vector<4x32xf32>
    %237 = tpu.matmul %235, %236, %cst_177 {dimension_numbers = #tpu.dot_dimension_numbers<[1], [0], [0], [1], [0, 0, 1, 1], [], []>} : vector<4x26xf32>, vector<26x32xf32>, vector<4x32xf32> -> vector<4x32xf32>
    %c2_178 = arith.constant 2 : index
    %c0_179 = arith.constant 0 : index
    %c0_180 = arith.constant 0 : index
    %238 = vector.load %arg14[%c2_178, %c0_179, %c0_180] : memref<8x4x26xf32, #tpu.memory_space<vmem>>, vector<1x4x26xf32>
    %239 = vector.shape_cast %238 : vector<1x4x26xf32> to vector<4x26xf32>
    %240 = vector.extract_strided_slice %229 {offsets = [0, 64], sizes = [26, 32], strides = [1, 1]} : vector<26x256xf32> to vector<26x32xf32>
    %cst_181 = arith.constant dense<0.000000e+00> : vector<4x32xf32>
    %241 = tpu.matmul %239, %240, %cst_181 {dimension_numbers = #tpu.dot_dimension_numbers<[1], [0], [0], [1], [0, 0, 1, 1], [], []>} : vector<4x26xf32>, vector<26x32xf32>, vector<4x32xf32> -> vector<4x32xf32>
    %c3_182 = arith.constant 3 : index
    %c0_183 = arith.constant 0 : index
    %c0_184 = arith.constant 0 : index
    %242 = vector.load %arg14[%c3_182, %c0_183, %c0_184] : memref<8x4x26xf32, #tpu.memory_space<vmem>>, vector<1x4x26xf32>
    %243 = vector.shape_cast %242 : vector<1x4x26xf32> to vector<4x26xf32>
    %244 = vector.extract_strided_slice %229 {offsets = [0, 96], sizes = [26, 32], strides = [1, 1]} : vector<26x256xf32> to vector<26x32xf32>
    %cst_185 = arith.constant dense<0.000000e+00> : vector<4x32xf32>
    %245 = tpu.matmul %243, %244, %cst_185 {dimension_numbers = #tpu.dot_dimension_numbers<[1], [0], [0], [1], [0, 0, 1, 1], [], []>} : vector<4x26xf32>, vector<26x32xf32>, vector<4x32xf32> -> vector<4x32xf32>
    %c4_186 = arith.constant 4 : index
    %c0_187 = arith.constant 0 : index
    %c0_188 = arith.constant 0 : index
    %246 = vector.load %arg14[%c4_186, %c0_187, %c0_188] : memref<8x4x26xf32, #tpu.memory_space<vmem>>, vector<1x4x26xf32>
    %247 = vector.shape_cast %246 : vector<1x4x26xf32> to vector<4x26xf32>
    %248 = vector.extract_strided_slice %229 {offsets = [0, 128], sizes = [26, 32], strides = [1, 1]} : vector<26x256xf32> to vector<26x32xf32>
    %cst_189 = arith.constant dense<0.000000e+00> : vector<4x32xf32>
    %249 = tpu.matmul %247, %248, %cst_189 {dimension_numbers = #tpu.dot_dimension_numbers<[1], [0], [0], [1], [0, 0, 1, 1], [], []>} : vector<4x26xf32>, vector<26x32xf32>, vector<4x32xf32> -> vector<4x32xf32>
    %c5_190 = arith.constant 5 : index
    %c0_191 = arith.constant 0 : index
    %c0_192 = arith.constant 0 : index
    %250 = vector.load %arg14[%c5_190, %c0_191, %c0_192] : memref<8x4x26xf32, #tpu.memory_space<vmem>>, vector<1x4x26xf32>
    %251 = vector.shape_cast %250 : vector<1x4x26xf32> to vector<4x26xf32>
    %252 = vector.extract_strided_slice %229 {offsets = [0, 160], sizes = [26, 32], strides = [1, 1]} : vector<26x256xf32> to vector<26x32xf32>
    %cst_193 = arith.constant dense<0.000000e+00> : vector<4x32xf32>
    %253 = tpu.matmul %251, %252, %cst_193 {dimension_numbers = #tpu.dot_dimension_numbers<[1], [0], [0], [1], [0, 0, 1, 1], [], []>} : vector<4x26xf32>, vector<26x32xf32>, vector<4x32xf32> -> vector<4x32xf32>
    %c6_194 = arith.constant 6 : index
    %c0_195 = arith.constant 0 : index
    %c0_196 = arith.constant 0 : index
    %254 = vector.load %arg14[%c6_194, %c0_195, %c0_196] : memref<8x4x26xf32, #tpu.memory_space<vmem>>, vector<1x4x26xf32>
    %255 = vector.shape_cast %254 : vector<1x4x26xf32> to vector<4x26xf32>
    %256 = vector.extract_strided_slice %229 {offsets = [0, 192], sizes = [26, 32], strides = [1, 1]} : vector<26x256xf32> to vector<26x32xf32>
    %cst_197 = arith.constant dense<0.000000e+00> : vector<4x32xf32>
    %257 = tpu.matmul %255, %256, %cst_197 {dimension_numbers = #tpu.dot_dimension_numbers<[1], [0], [0], [1], [0, 0, 1, 1], [], []>} : vector<4x26xf32>, vector<26x32xf32>, vector<4x32xf32> -> vector<4x32xf32>
    %c7_198 = arith.constant 7 : index
    %c0_199 = arith.constant 0 : index
    %c0_200 = arith.constant 0 : index
    %258 = vector.load %arg14[%c7_198, %c0_199, %c0_200] : memref<8x4x26xf32, #tpu.memory_space<vmem>>, vector<1x4x26xf32>
    %259 = vector.shape_cast %258 : vector<1x4x26xf32> to vector<4x26xf32>
    %260 = vector.extract_strided_slice %229 {offsets = [0, 224], sizes = [26, 32], strides = [1, 1]} : vector<26x256xf32> to vector<26x32xf32>
    %cst_201 = arith.constant dense<0.000000e+00> : vector<4x32xf32>
    %261 = tpu.matmul %259, %260, %cst_201 {dimension_numbers = #tpu.dot_dimension_numbers<[1], [0], [0], [1], [0, 0, 1, 1], [], []>} : vector<4x26xf32>, vector<26x32xf32>, vector<4x32xf32> -> vector<4x32xf32>
    %262 = tpu.concatenate %233, %237, %241, %245, %249, %253, %257, %261 in 0 : vector<4x32xf32>, vector<4x32xf32>, vector<4x32xf32>, vector<4x32xf32>, vector<4x32xf32>, vector<4x32xf32>, vector<4x32xf32>, vector<4x32xf32> -> vector<32x32xf32>
    %c0_202 = arith.constant 0 : index
    %c0_203 = arith.constant 0 : index
    %263 = vector.load %arg15[%c0_202, %c0_203] : memref<32x1xf32, #tpu.memory_space<vmem>>, vector<32x1xf32>
    %264 = vector.broadcast %263 : vector<32x1xf32> to vector<32x32xf32>
    %265 = arith.mulf %262, %264 : vector<32x32xf32>
    %c0_204 = arith.constant 0 : index
    %c0_205 = arith.constant 0 : index
    %266 = vector.load %arg16[%c0_204, %c0_205] : memref<32x1xf32, #tpu.memory_space<vmem>>, vector<32x1xf32>
    %267 = vector.broadcast %266 : vector<32x1xf32> to vector<32x32xf32>
    %268 = arith.addf %265, %267 : vector<32x32xf32>
    %cst_206 = arith.constant 0.000000e+00 : f32
    %269 = vector.broadcast %cst_206 : f32 to vector<32x32xf32>
    %270 = arith.cmpf ogt, %268, %269 : vector<32x32xf32>
    %cst_207 = arith.constant 0.000000e+00 : f32
    %271 = vector.broadcast %cst_207 : f32 to vector<32x32xf32>
    %272 = arith.minimumf %268, %271 : vector<32x32xf32>
    %273 = math.exp %272 : vector<32x32xf32>
    %cst_208 = arith.constant 1.000000e+00 : f32
    %274 = vector.broadcast %cst_208 : f32 to vector<32x32xf32>
    %275 = arith.subf %273, %274 : vector<32x32xf32>
    %276 = arith.select %270, %268, %275 : vector<32x32xi1>, vector<32x32xf32>
    %c0_209 = arith.constant 0 : index
    %c0_210 = arith.constant 0 : index
    %277 = vector.load %arg17[%c0_209, %c0_210] : memref<32x8xf32, #tpu.memory_space<vmem>>, vector<32x8xf32>
    %cst_211 = arith.constant dense<0.000000e+00> : vector<32x8xf32>
    %278 = tpu.matmul %276, %277, %cst_211 {dimension_numbers = #tpu.dot_dimension_numbers<[1], [0], [0], [1], [0, 0, 1, 1], [], []>} : vector<32x32xf32>, vector<32x8xf32>, vector<32x8xf32> -> vector<32x8xf32>
    %c0_212 = arith.constant 0 : index
    %c0_213 = arith.constant 0 : index
    %279 = vector.load %arg18[%c0_212, %c0_213] : memref<8x128xf32, #tpu.memory_space<vmem>>, vector<8x128xf32>
    %cst_214 = arith.constant dense<0.000000e+00> : vector<32x128xf32>
    %280 = tpu.matmul %278, %279, %cst_214 {dimension_numbers = #tpu.dot_dimension_numbers<[1], [0], [0], [1], [0, 0, 1, 1], [], []>} : vector<32x8xf32>, vector<8x128xf32>, vector<32x128xf32> -> vector<32x128xf32>
    %c0_215 = arith.constant 0 : index
    %c0_216 = arith.constant 0 : index
    %281 = vector.load %arg19[%c0_215, %c0_216] : memref<32x128xf32, #tpu.memory_space<vmem>>, vector<32x128xf32>
    %282 = arith.mulf %280, %281 : vector<32x128xf32>
    %c0_217 = arith.constant 0 : index
    %c0_218 = arith.constant 0 : index
    %283 = vector.load %arg20[%c0_217, %c0_218] : memref<128x8xf32, #tpu.memory_space<vmem>>, vector<128x8xf32>
    %cst_219 = arith.constant dense<0.000000e+00> : vector<32x8xf32>
    %284 = tpu.matmul %282, %283, %cst_219 {dimension_numbers = #tpu.dot_dimension_numbers<[1], [0], [0], [1], [0, 0, 1, 1], [], []>} : vector<32x128xf32>, vector<128x8xf32>, vector<32x8xf32> -> vector<32x8xf32>
    %c0_220 = arith.constant 0 : index
    %c0_221 = arith.constant 0 : index
    %285 = vector.load %arg21[%c0_220, %c0_221] : memref<32x32xf32, #tpu.memory_space<vmem>>, vector<32x32xf32>
    %cst_222 = arith.constant dense<0.000000e+00> : vector<32x8xf32>
    %286 = tpu.matmul %285, %284, %cst_222 {dimension_numbers = #tpu.dot_dimension_numbers<[1], [0], [0], [1], [0, 0, 1, 1], [], []>} : vector<32x32xf32>, vector<32x8xf32>, vector<32x8xf32> -> vector<32x8xf32>
    %c0_223 = arith.constant 0 : index
    %c0_224 = arith.constant 0 : index
    %287 = vector.load %arg22[%c0_223, %c0_224] : memref<32x1xf32, #tpu.memory_space<vmem>>, vector<32x1xf32>
    %288 = vector.broadcast %287 : vector<32x1xf32> to vector<32x8xf32>
    %289 = arith.mulf %286, %288 : vector<32x8xf32>
    %c0_225 = arith.constant 0 : index
    %c0_226 = arith.constant 0 : index
    %290 = vector.load %arg23[%c0_225, %c0_226] : memref<32x1xf32, #tpu.memory_space<vmem>>, vector<32x1xf32>
    %291 = vector.broadcast %290 : vector<32x1xf32> to vector<32x8xf32>
    %292 = arith.addf %289, %291 : vector<32x8xf32>
    %cst_227 = arith.constant 0.000000e+00 : f32
    %293 = vector.broadcast %cst_227 : f32 to vector<32x8xf32>
    %294 = arith.cmpf ogt, %292, %293 : vector<32x8xf32>
    %cst_228 = arith.constant 0.000000e+00 : f32
    %295 = vector.broadcast %cst_228 : f32 to vector<32x8xf32>
    %296 = arith.minimumf %292, %295 : vector<32x8xf32>
    %297 = math.exp %296 : vector<32x8xf32>
    %cst_229 = arith.constant 1.000000e+00 : f32
    %298 = vector.broadcast %cst_229 : f32 to vector<32x8xf32>
    %299 = arith.subf %297, %298 : vector<32x8xf32>
    %300 = arith.select %294, %292, %299 : vector<32x8xi1>, vector<32x8xf32>
    %cst_230 = arith.constant dense<0.000000e+00> : vector<32xf32>
    %301 = vector.multi_reduction <add>, %300, %cst_230 [1] : vector<32x8xf32> to vector<32xf32>
    %302 = vector.shape_cast %301 : vector<32xf32> to vector<32x1xf32>
    %cst_231 = arith.constant 8.000000e+00 : f32
    %303 = vector.broadcast %cst_231 : f32 to vector<32x1xf32>
    %304 = arith.divf %302, %303 : vector<32x1xf32>
    %c0_232 = arith.constant 0 : index
    %c0_233 = arith.constant 0 : index
    %305 = vector.load %arg25[%c0_232, %c0_233] : memref<2x32xf32, #tpu.memory_space<vmem>>, vector<2x32xf32>
    %c0_234 = arith.constant 0 : index
    %c0_235 = arith.constant 0 : index
    %306 = vector.load %arg24[%c0_234, %c0_235] : memref<32x4xf32, #tpu.memory_space<vmem>>, vector<32x4xf32>
    %307 = vector.broadcast %304 : vector<32x1xf32> to vector<32x4xf32>
    %308 = arith.mulf %307, %306 : vector<32x4xf32>
    %cst_236 = arith.constant dense<0.000000e+00> : vector<2x4xf32>
    %309 = tpu.matmul %305, %308, %cst_236 {dimension_numbers = #tpu.dot_dimension_numbers<[1], [0], [0], [1], [0, 0, 1, 1], [], []>} : vector<2x32xf32>, vector<32x4xf32>, vector<2x4xf32> -> vector<2x4xf32>
    %c0_237 = arith.constant 0 : index
    %c0_238 = arith.constant 0 : index
    %310 = vector.load %arg26[%c0_237, %c0_238] : memref<1x4xf32, #tpu.memory_space<vmem>>, vector<1x4xf32>
    %311 = vector.broadcast %310 : vector<1x4xf32> to vector<2x4xf32>
    %312 = arith.addf %309, %311 : vector<2x4xf32>
    %c0_239 = arith.constant 0 : index
    %c0_240 = arith.constant 0 : index
    %313 = vector.load %arg27[%c0_239, %c0_240] : memref<2x4xf32, #tpu.memory_space<vmem>>, vector<2x4xf32>
    tpu.vector_store %arg27[%c0_239, %c0_240], %312 {strides = array<i32>} : memref<2x4xf32, #tpu.memory_space<vmem>>, vector<2x4xf32>,
    return
  }
}

</mosaic_0001>

<llo_original>
// kernel: _lambda_.1
$region0: #{_lambda_.1}
  #allocation0 [shape = 'u32[]', space=smem, size = 0x4, offset = 0x4, fixed_abs, tag = 'smem constant byte address 0x4 - core index']
  #allocation1 [shape = 'u32[144,128]{1,0:T(1,128)}', space=vmem, size = 0x12000, scoped, tag = 'internal scratch']
  %s0 = inlined_call_operand.vmem [shape: f32[2,13,32], index: 0, kind: input, shape index: {}]
  %s1 = inlined_call_operand.hbm [shape: f32[17,32], index: 1, kind: input, shape index: {}]
  %s2 = inlined_call_operand.hbm [shape: f32[17,32], index: 2, kind: input, shape index: {}]
  %s3 = inlined_call_operand.hbm [shape: f32[13,13], index: 3, kind: input, shape index: {}]
  %s4 = inlined_call_operand.hbm [shape: f32[13,13], index: 4, kind: input, shape index: {}]
  %s5 = inlined_call_operand.hbm [shape: f32[32,17], index: 5, kind: input, shape index: {}]
  %s6 = inlined_call_operand.hbm [shape: f32[32,17], index: 6, kind: input, shape index: {}]
  %s7 = inlined_call_operand.hbm [shape: f32[17,32], index: 7, kind: input, shape index: {}]
  %s8 = inlined_call_operand.hbm [shape: f32[17,32], index: 8, kind: input, shape index: {}]
  %s9 = inlined_call_operand.vmem [shape: f32[32,256], index: 9, kind: input, shape index: {}]
  %s10 = inlined_call_operand.vmem [shape: f32[1,256], index: 10, kind: input, shape index: {}]
  %s11 = inlined_call_operand.vmem [shape: f32[1,256], index: 11, kind: input, shape index: {}]
  %s12 = inlined_call_operand.hbm [shape: f32[8,26,26], index: 12, kind: input, shape index: {}]
  %s13 = inlined_call_operand.hbm [shape: f32[256,256], index: 13, kind: input, shape index: {}]
  %s14 = inlined_call_operand.hbm [shape: f32[8,4,26], index: 14, kind: input, shape index: {}]
  %s15 = inlined_call_operand.vmem [shape: f32[32,1], index: 15, kind: input, shape index: {}, may-alias: {15,22}]
  %s16 = inlined_call_operand.vmem [shape: f32[32,1], index: 16, kind: input, shape index: {}, may-alias: {16,23}]
  %s17 = inlined_call_operand.hbm [shape: f32[32,8], index: 17, kind: input, shape index: {}]
  %s18 = inlined_call_operand.vmem [shape: f32[8,128], index: 18, kind: input, shape index: {}]
  %s19 = inlined_call_operand.hbm [shape: f32[32,128], index: 19, kind: input, shape index: {}]
  %s20 = inlined_call_operand.vmem [shape: f32[128,8], index: 20, kind: input, shape index: {}]
  %s21 = inlined_call_operand.hbm [shape: f32[32,32], index: 21, kind: input, shape index: {}]
  %s22 = inlined_call_operand.vmem [shape: f32[32,1], index: 22, kind: input, shape index: {}, may-alias: {15,22}]
  %s23 = inlined_call_operand.vmem [shape: f32[32,1], index: 23, kind: input, shape index: {}, may-alias: {16,23}]
  %s24 = inlined_call_operand.hbm [shape: f32[32,4], index: 24, kind: input, shape index: {}]
  %s25 = inlined_call_operand.vmem [shape: f32[2,32], index: 25, kind: input, shape index: {}]
  %s26 = inlined_call_operand.vmem [shape: f32[1,4], index: 26, kind: input, shape index: {}]
  %s27 = inlined_call_operand.hbm [shape: f32[2,4], index: 27, kind: output, shape index: {0}]
  %s28 = inlined_call_operand.vmem [shape: f32[2,17,17], index: 28, kind: output, shape index: {1}]
  %29 = xla_tuple %s27, %s28
  %s30 = sld [smem:[#allocation0]]
  $region186: #{_lambda_.1} parent=0
    _
  %s32 = ssub.s32 1, %s30
  %s33 = scalar_select 0, %s32, %s30
  $region1: #{_lambda_.1} parent=0
    #allocation2 [shape = 'u8[12288]{0}', space=vmem, size = 0x3000, scoped, tag = 'input window, operand 1, single buffered']
    #allocation3 [shape = 's32[1]{0}', space=sflag, size = 0x4, scoped, tag = 'scoped memory for _lambda_.1']
    #allocation4 [shape = 's32[1]{0}', space=sflag, size = 0x4, scoped, tag = 'scoped memory for _lambda_.1']
    #allocation5 [shape = 'u8[12288]{0}', space=vmem, size = 0x3000, scoped, tag = 'input window, operand 2, single buffered']
    #allocation6 [shape = 's32[1]{0}', space=sflag, size = 0x4, scoped, tag = 'scoped memory for _lambda_.1']
    #allocation7 [shape = 'u8[8192]{0}', space=vmem, size = 0x2000, scoped, tag = 'input window, operand 3, single buffered']
    #allocation8 [shape = 'u8[8192]{0}', space=vmem, size = 0x2000, scoped, tag = 'input window, operand 4, single buffered']
    #allocation9 [shape = 's32[1]{0}', space=sflag, size = 0x4, scoped, tag = 'scoped memory for _lambda_.1']
    #allocation10 [shape = 'u8[16384]{0}', space=vmem, size = 0x4000, scoped, tag = 'input window, operand 5, single buffered']
    #allocation11 [shape = 'u8[16384]{0}', space=vmem, size = 0x4000, scoped, tag = 'input window, operand 6, single buffered']
    #allocation12 [shape = 's32[1]{0}', space=sflag, size = 0x4, scoped, tag = 'scoped memory for _lambda_.1']
    #allocation13 [shape = 'u8[12288]{0}', space=vmem, size = 0x3000, scoped, tag = 'input window, operand 7, single buffered']
    #allocation14 [shape = 'u8[12288]{0}', space=vmem, size = 0x3000, scoped, tag = 'input window, operand 8, single buffered']
    #allocation15 [shape = 's32[1]{0}', space=sflag, size = 0x4, scoped, tag = 'scoped memory for _lambda_.1']
    #allocation16 [shape = 'u8[131072]{0}', space=vmem, size = 0x20000, scoped, tag = 'input window, operand 12, single buffered']
    #allocation17 [shape = 'u8[262144]{0}', space=vmem, size = 0x40000, scoped, tag = 'input window, operand 13, single buffered']
    #allocation18 [shape = 's32[1]{0}', space=sflag, size = 0x4, scoped, tag = 'scoped memory for _lambda_.1']
    #allocation19 [shape = 'u8[16384]{0}', space=vmem, size = 0x4000, scoped, tag = 'input window, operand 14, single buffered']
    #allocation20 [shape = 'u8[16384]{0}', space=vmem, size = 0x4000, scoped, tag = 'input window, operand 17, single buffered']
    #allocation21 [shape = 's32[1]{0}', space=sflag, size = 0x4, scoped, tag = 'scoped memory for _lambda_.1']
    #allocation22 [shape = 'u8[16384]{0}', space=vmem, size = 0x4000, scoped, tag = 'input window, operand 19, single buffered']
    #allocation23 [shape = 'u8[16384]{0}', space=vmem, size = 0x4000, scoped, tag = 'input window, operand 21, single buffered']
    #allocation24 [shape = 's32[1]{0}', space=sflag, size = 0x4, scoped, tag = 'scoped memory for _lambda_.1']
    #allocation25 [shape = 'u8[16384]{0}', space=vmem, size = 0x4000, scoped, tag = 'input window, operand 24, single buffered']
    #allocation26 [shape = 'u8[1024]{0}', space=vmem, size = 0x400, scoped, tag = 'output window, operand 0, single buffered']
    %34 = vsyncpa [#allocation3], 0
    %35 = vsyncpa [#allocation6], 0
    %36 = vsyncpa [#allocation9], 0
    %37 = vsyncpa [#allocation12], 0
    %38 = vsyncpa [#allocation15], 0
    %39 = vsyncpa [#allocation18], 0
    %40 = vsyncpa [#allocation21], 0
    %41 = vsyncpa [#allocation24], 0
    %42 = vsyncpa [#allocation4], 0
    // Predicated region
    $region2: #{_lambda_.1} parent=1 // pred_check
      _
    $region3: #{_lambda_.1} parent=1 // pred_check_branch
      %44 = sbr.rel (0) target = $region5
    $region4: #{_lambda_.1} parent=1 // pred_region
      _
    $region5: #{_lambda_.1} parent=1 // pred_fallthru
      _
    // Predicated region
    $region6: #{_lambda_.1} parent=1 // pred_check
      _
    $region7: #{_lambda_.1} parent=1 // pred_check_branch
      %46 = sbr.rel (0) target = $region9
    $region8: #{_lambda_.1} parent=1 // pred_region
      %s48 = ssub.s32 384, 384
      %49 = vsyncadd [#allocation3], %s48
      %s50 = sshll.u32 [#allocation2], 4
      %s51 = int_to_ptr.vmem [resolvable:$true] %s50
      %56 = dma.hbm_to_vmem [thread:$0]  %s1, 384, %s51, [#allocation3], 128, 128, 8
    $region9: #{_lambda_.1} parent=1 // pred_fallthru
      _
    // Predicated region
    $region10: #{_lambda_.1} parent=1 // pred_check
      _
    $region11: #{_lambda_.1} parent=1 // pred_check_branch
      %58 = sbr.rel (0) target = $region13
    $region12: #{_lambda_.1} parent=1 // pred_region
      %s60 = ssub.s32 384, 384
      %61 = vsyncadd [#allocation6], %s60
      %s62 = sshll.u32 [#allocation5], 4
      %s63 = int_to_ptr.vmem [resolvable:$true] %s62
      %68 = dma.hbm_to_vmem [thread:$0]  %s2, 384, %s63, [#allocation6], 128, 128, 8
    $region13: #{_lambda_.1} parent=1 // pred_fallthru
      _
    // Predicated region
    $region14: #{_lambda_.1} parent=1 // pred_check
      _
    $region15: #{_lambda_.1} parent=1 // pred_check_branch
      %70 = sbr.rel (0) target = $region17
    $region16: #{_lambda_.1} parent=1 // pred_region
      %s72 = ssub.s32 256, 256
      %73 = vsyncadd [#allocation6], %s72
      %s74 = sshll.u32 [#allocation7], 4
      %s75 = int_to_ptr.vmem [resolvable:$true] %s74
      %80 = dma.hbm_to_vmem [thread:$0]  %s3, 256, %s75, [#allocation6], 128, 128, 8
    $region17: #{_lambda_.1} parent=1 // pred_fallthru
      _
    // Predicated region
    $region18: #{_lambda_.1} parent=1 // pred_check
      _
    $region19: #{_lambda_.1} parent=1 // pred_check_branch
      %82 = sbr.rel (0) target = $region21
    $region20: #{_lambda_.1} parent=1 // pred_region
      %s84 = ssub.s32 256, 256
      %85 = vsyncadd [#allocation9], %s84
      %s86 = sshll.u32 [#allocation8], 4
      %s87 = int_to_ptr.vmem [resolvable:$true] %s86
      %92 = dma.hbm_to_vmem [thread:$0]  %s4, 256, %s87, [#allocation9], 128, 128, 8
    $region21: #{_lambda_.1} parent=1 // pred_fallthru
      _
    // Predicated region
    $region22: #{_lambda_.1} parent=1 // pred_check
      _
    $region23: #{_lambda_.1} parent=1 // pred_check_branch
      %94 = sbr.rel (0) target = $region25
    $region24: #{_lambda_.1} parent=1 // pred_region
      %s96 = ssub.s32 512, 512
      %97 = vsyncadd [#allocation9], %s96
      %s98 = sshll.u32 [#allocation10], 4
      %s99 = int_to_ptr.vmem [resolvable:$true] %s98
      %104 = dma.hbm_to_vmem [thread:$0]  %s5, 512, %s99, [#allocation9], 128, 128, 8
    $region25: #{_lambda_.1} parent=1 // pred_fallthru
      _
    // Predicated region
    $region26: #{_lambda_.1} parent=1 // pred_check
      _
    $region27: #{_lambda_.1} parent=1 // pred_check_branch
      %106 = sbr.rel (0) target = $region29
    $region28: #{_lambda_.1} parent=1 // pred_region
      %s108 = ssub.s32 512, 512
      %109 = vsyncadd [#allocation12], %s108
      %s110 = sshll.u32 [#allocation11], 4
      %s111 = int_to_ptr.vmem [resolvable:$true] %s110
      %116 = dma.hbm_to_vmem [thread:$0]  %s6, 512, %s111, [#allocation12], 128, 128, 8
    $region29: #{_lambda_.1} parent=1 // pred_fallthru
      _
    // Predicated region
    $region30: #{_lambda_.1} parent=1 // pred_check
      _
    $region31: #{_lambda_.1} parent=1 // pred_check_branch
      %118 = sbr.rel (0) target = $region33
    $region32: #{_lambda_.1} parent=1 // pred_region
      %s120 = ssub.s32 384, 384
      %121 = vsyncadd [#allocation12], %s120
      %s122 = sshll.u32 [#allocation13], 4
      %s123 = int_to_ptr.vmem [resolvable:$true] %s122
      %128 = dma.hbm_to_vmem [thread:$0]  %s7, 384, %s123, [#allocation12], 128, 128, 8
    $region33: #{_lambda_.1} parent=1 // pred_fallthru
      _
    // Predicated region
    $region34: #{_lambda_.1} parent=1 // pred_check
      _
    $region35: #{_lambda_.1} parent=1 // pred_check_branch
      %130 = sbr.rel (0) target = $region37
    $region36: #{_lambda_.1} parent=1 // pred_region
      %s132 = ssub.s32 384, 384
      %133 = vsyncadd [#allocation15], %s132
      %s134 = sshll.u32 [#allocation14], 4
      %s135 = int_to_ptr.vmem [resolvable:$true] %s134
      %140 = dma.hbm_to_vmem [thread:$0]  %s8, 384, %s135, [#allocation15], 128, 128, 8
    $region37: #{_lambda_.1} parent=1 // pred_fallthru
      _
    // Predicated region
    $region38: #{_lambda_.1} parent=1 // pred_check
      _
    $region39: #{_lambda_.1} parent=1 // pred_check_branch
      %142 = sbr.rel (0) target = $region41
    $region40: #{_lambda_.1} parent=1 // pred_region
      _
    $region41: #{_lambda_.1} parent=1 // pred_fallthru
      _
    // Predicated region
    $region42: #{_lambda_.1} parent=1 // pred_check
      _
    $region43: #{_lambda_.1} parent=1 // pred_check_branch
      %144 = sbr.rel (0) target = $region45
    $region44: #{_lambda_.1} parent=1 // pred_region
      _
    $region45: #{_lambda_.1} parent=1 // pred_fallthru
      _
    // Predicated region
    $region46: #{_lambda_.1} parent=1 // pred_check
      _
    $region47: #{_lambda_.1} parent=1 // pred_check_branch
      %146 = sbr.rel (0) target = $region49
    $region48: #{_lambda_.1} parent=1 // pred_region
      _
    $region49: #{_lambda_.1} parent=1 // pred_fallthru
      _
    // Predicated region
    $region50: #{_lambda_.1} parent=1 // pred_check
      _
    $region51: #{_lambda_.1} parent=1 // pred_check_branch
      %148 = sbr.rel (0) target = $region53
    $region52: #{_lambda_.1} parent=1 // pred_region
      %s150 = ssub.s32 4096, 4096
      %151 = vsyncadd [#allocation15], %s150
      %s152 = sshll.u32 [#allocation16], 4
      %s153 = int_to_ptr.vmem [resolvable:$true] %s152
      %158 = dma.hbm_to_vmem [thread:$0]  %s12, 4096, %s153, [#allocation15], 128, 128, 8
    $region53: #{_lambda_.1} parent=1 // pred_fallthru
      _
    // Predicated region
    $region54: #{_lambda_.1} parent=1 // pred_check
      _
    $region55: #{_lambda_.1} parent=1 // pred_check_branch
      %160 = sbr.rel (0) target = $region57
    $region56: #{_lambda_.1} parent=1 // pred_region
      %s162 = ssub.s32 8192, 8192
      %163 = vsyncadd [#allocation18], %s162
      %s164 = sshll.u32 [#allocation17], 4
      %s165 = int_to_ptr.vmem [resolvable:$true] %s164
      %170 = dma.hbm_to_vmem [thread:$0]  %s13, 8192, %s165, [#allocation18], 256, 256, 16
    $region57: #{_lambda_.1} parent=1 // pred_fallthru
      _
    // Predicated region
    $region58: #{_lambda_.1} parent=1 // pred_check
      _
    $region59: #{_lambda_.1} parent=1 // pred_check_branch
      %172 = sbr.rel (0) target = $region61
    $region60: #{_lambda_.1} parent=1 // pred_region
      %s174 = ssub.s32 512, 512
      %175 = vsyncadd [#allocation18], %s174
      %s176 = sshll.u32 [#allocation19], 4
      %s177 = int_to_ptr.vmem [resolvable:$true] %s176
      %182 = dma.hbm_to_vmem [thread:$0]  %s14, 512, %s177, [#allocation18], 64, 64, 4
    $region61: #{_lambda_.1} parent=1 // pred_fallthru
      _
    // Predicated region
    $region62: #{_lambda_.1} parent=1 // pred_check
      _
    $region63: #{_lambda_.1} parent=1 // pred_check_branch
      %184 = sbr.rel (0) target = $region65
    $region64: #{_lambda_.1} parent=1 // pred_region
      _
    $region65: #{_lambda_.1} parent=1 // pred_fallthru
      _
    // Predicated region
    $region66: #{_lambda_.1} parent=1 // pred_check
      _
    $region67: #{_lambda_.1} parent=1 // pred_check_branch
      %186 = sbr.rel (0) target = $region69
    $region68: #{_lambda_.1} parent=1 // pred_region
      _
    $region69: #{_lambda_.1} parent=1 // pred_fallthru
      _
    // Predicated region
    $region70: #{_lambda_.1} parent=1 // pred_check
      _
    $region71: #{_lambda_.1} parent=1 // pred_check_branch
      %188 = sbr.rel (0) target = $region73
    $region72: #{_lambda_.1} parent=1 // pred_region
      %s190 = ssub.s32 512, 512
      %191 = vsyncadd [#allocation21], %s190
      %s192 = sshll.u32 [#allocation20], 4
      %s193 = int_to_ptr.vmem [resolvable:$true] %s192
      %198 = dma.hbm_to_vmem [thread:$0]  %s17, 512, %s193, [#allocation21], 128, 128, 8
    $region73: #{_lambda_.1} parent=1 // pred_fallthru
      _
    // Predicated region
    $region74: #{_lambda_.1} parent=1 // pred_check
      _
    $region75: #{_lambda_.1} parent=1 // pred_check_branch
      %200 = sbr.rel (0) target = $region77
    $region76: #{_lambda_.1} parent=1 // pred_region
      _
    $region77: #{_lambda_.1} parent=1 // pred_fallthru
      _
    // Predicated region
    $region78: #{_lambda_.1} parent=1 // pred_check
      _
    $region79: #{_lambda_.1} parent=1 // pred_check_branch
      %202 = sbr.rel (0) target = $region81
    $region80: #{_lambda_.1} parent=1 // pred_region
      %s204 = ssub.s32 512, 512
      %205 = vsyncadd [#allocation21], %s204
      %s206 = sshll.u32 [#allocation22], 4
      %s207 = int_to_ptr.vmem [resolvable:$true] %s206
      %212 = dma.hbm_to_vmem [thread:$0]  %s19, 512, %s207, [#allocation21], 128, 128, 8
    $region81: #{_lambda_.1} parent=1 // pred_fallthru
      _
    // Predicated region
    $region82: #{_lambda_.1} parent=1 // pred_check
      _
    $region83: #{_lambda_.1} parent=1 // pred_check_branch
      %214 = sbr.rel (0) target = $region85
    $region84: #{_lambda_.1} parent=1 // pred_region
      _
    $region85: #{_lambda_.1} parent=1 // pred_fallthru
      _
    // Predicated region
    $region86: #{_lambda_.1} parent=1 // pred_check
      _
    $region87: #{_lambda_.1} parent=1 // pred_check_branch
      %216 = sbr.rel (0) target = $region89
    $region88: #{_lambda_.1} parent=1 // pred_region
      %s218 = ssub.s32 512, 512
      %219 = vsyncadd [#allocation24], %s218
      %s220 = sshll.u32 [#allocation23], 4
      %s221 = int_to_ptr.vmem [resolvable:$true] %s220
      %226 = dma.hbm_to_vmem [thread:$0]  %s21, 512, %s221, [#allocation24], 128, 128, 8
    $region89: #{_lambda_.1} parent=1 // pred_fallthru
      _
    // Predicated region
    $region90: #{_lambda_.1} parent=1 // pred_check
      _
    $region91: #{_lambda_.1} parent=1 // pred_check_branch
      %228 = sbr.rel (0) target = $region93
    $region92: #{_lambda_.1} parent=1 // pred_region
      _
    $region93: #{_lambda_.1} parent=1 // pred_fallthru
      _
    // Predicated region
    $region94: #{_lambda_.1} parent=1 // pred_check
      _
    $region95: #{_lambda_.1} parent=1 // pred_check_branch
      %230 = sbr.rel (0) target = $region97
    $region96: #{_lambda_.1} parent=1 // pred_region
      _
    $region97: #{_lambda_.1} parent=1 // pred_fallthru
      _
    // Predicated region
    $region98: #{_lambda_.1} parent=1 // pred_check
      _
    $region99: #{_lambda_.1} parent=1 // pred_check_branch
      %232 = sbr.rel (0) target = $region101
    $region100: #{_lambda_.1} parent=1 // pred_region
      %s234 = ssub.s32 512, 512
      %235 = vsyncadd [#allocation24], %s234
      %s236 = sshll.u32 [#allocation25], 4
      %s237 = int_to_ptr.vmem [resolvable:$true] %s236
      %242 = dma.hbm_to_vmem [thread:$0]  %s24, 512, %s237, [#allocation24], 128, 128, 8
    $region101: #{_lambda_.1} parent=1 // pred_fallthru
      _
    // Predicated region
    $region102: #{_lambda_.1} parent=1 // pred_check
      _
    $region103: #{_lambda_.1} parent=1 // pred_check_branch
      %244 = sbr.rel (0) target = $region105
    $region104: #{_lambda_.1} parent=1 // pred_region
      _
    $region105: #{_lambda_.1} parent=1 // pred_fallthru
      _
    // Predicated region
    $region106: #{_lambda_.1} parent=1 // pred_check
      _
    $region107: #{_lambda_.1} parent=1 // pred_check_branch
      %246 = sbr.rel (0) target = $region109
    $region108: #{_lambda_.1} parent=1 // pred_region
      _
    $region109: #{_lambda_.1} parent=1 // pred_fallthru
      _
    // Predicated region
    $region110: #{_lambda_.1} parent=1 // pred_check
      _
    $region111: #{_lambda_.1} parent=1 // pred_check_branch
      %248 = sbr.rel (0) target = $region113
    $region112: #{_lambda_.1} parent=1 // pred_region
      %249 = dma.done [#allocation3], 384
    $region113: #{_lambda_.1} parent=1 // pred_fallthru
      _
    // Predicated region
    $region114: #{_lambda_.1} parent=1 // pred_check
      _
    $region115: #{_lambda_.1} parent=1 // pred_check_branch
      %251 = sbr.rel (0) target = $region117
    $region116: #{_lambda_.1} parent=1 // pred_region
      %252 = dma.done [#allocation6], 384
    $region117: #{_lambda_.1} parent=1 // pred_fallthru
      _
    // Predicated region
    $region118: #{_lambda_.1} parent=1 // pred_check
      _
    $region119: #{_lambda_.1} parent=1 // pred_check_branch
      %254 = sbr.rel (0) target = $region121
    $region120: #{_lambda_.1} parent=1 // pred_region
      %255 = dma.done [#allocation6], 256
    $region121: #{_lambda_.1} parent=1 // pred_fallthru
      _
    // Predicated region
    $region122: #{_lambda_.1} parent=1 // pred_check
      _
    $region123: #{_lambda_.1} parent=1 // pred_check_branch
      %257 = sbr.rel (0) target = $region125
    $region124: #{_lambda_.1} parent=1 // pred_region
      %258 = dma.done [#allocation9], 256
    $region125: #{_lambda_.1} parent=1 // pred_fallthru
      _
    // Predicated region
    $region126: #{_lambda_.1} parent=1 // pred_check
      _
    $region127: #{_lambda_.1} parent=1 // pred_check_branch
      %260 = sbr.rel (0) target = $region129
    $region128: #{_lambda_.1} parent=1 // pred_region
      %261 = dma.done [#allocation9], 512
    $region129: #{_lambda_.1} parent=1 // pred_fallthru
      _
    // Predicated region
    $region130: #{_lambda_.1} parent=1 // pred_check
      _
    $region131: #{_lambda_.1} parent=1 // pred_check_branch
      %263 = sbr.rel (0) target = $region133
    $region132: #{_lambda_.1} parent=1 // pred_region
      %264 = dma.done [#allocation12], 512
    $region133: #{_lambda_.1} parent=1 // pred_fallthru
      _
    // Predicated region
    $region134: #{_lambda_.1} parent=1 // pred_check
      _
    $region135: #{_lambda_.1} parent=1 // pred_check_branch
      %266 = sbr.rel (0) target = $region137
    $region136: #{_lambda_.1} parent=1 // pred_region
      %267 = dma.done [#allocation12], 384
    $region137: #{_lambda_.1} parent=1 // pred_fallthru
      _
    // Predicated region
    $region138: #{_lambda_.1} parent=1 // pred_check
      _
    $region139: #{_lambda_.1} parent=1 // pred_check_branch
      %269 = sbr.rel (0) target = $region141
    $region140: #{_lambda_.1} parent=1 // pred_region
      %270 = dma.done [#allocation15], 384
    $region141: #{_lambda_.1} parent=1 // pred_fallthru
      _
    // Predicated region
    $region142: #{_lambda_.1} parent=1 // pred_check
      _
    $region143: #{_lambda_.1} parent=1 // pred_check_branch
      %272 = sbr.rel (0) target = $region145
    $region144: #{_lambda_.1} parent=1 // pred_region
      %273 = dma.done [#allocation15], 4096
    $region145: #{_lambda_.1} parent=1 // pred_fallthru
      _
    // Predicated region
    $region146: #{_lambda_.1} parent=1 // pred_check
      _
    $region147: #{_lambda_.1} parent=1 // pred_check_branch
      %275 = sbr.rel (0) target = $region149
    $region148: #{_lambda_.1} parent=1 // pred_region
      %276 = dma.done [#allocation18], 8192
    $region149: #{_lambda_.1} parent=1 // pred_fallthru
      _
    // Predicated region
    $region150: #{_lambda_.1} parent=1 // pred_check
      _
    $region151: #{_lambda_.1} parent=1 // pred_check_branch
      %278 = sbr.rel (0) target = $region153
    $region152: #{_lambda_.1} parent=1 // pred_region
      %279 = dma.done [#allocation18], 512
    $region153: #{_lambda_.1} parent=1 // pred_fallthru
      _
    // Predicated region
    $region154: #{_lambda_.1} parent=1 // pred_check
      _
    $region155: #{_lambda_.1} parent=1 // pred_check_branch
      %281 = sbr.rel (0) target = $region157
    $region156: #{_lambda_.1} parent=1 // pred_region
      %282 = dma.done [#allocation21], 512
    $region157: #{_lambda_.1} parent=1 // pred_fallthru
      _
    // Predicated region
    $region158: #{_lambda_.1} parent=1 // pred_check
      _
    $region159: #{_lambda_.1} parent=1 // pred_check_branch
      %284 = sbr.rel (0) target = $region161
    $region160: #{_lambda_.1} parent=1 // pred_region
      %285 = dma.done [#allocation21], 512
    $region161: #{_lambda_.1} parent=1 // pred_fallthru
      _
    // Predicated region
    $region162: #{_lambda_.1} parent=1 // pred_check
      _
    $region163: #{_lambda_.1} parent=1 // pred_check_branch
      %287 = sbr.rel (0) target = $region165
    $region164: #{_lambda_.1} parent=1 // pred_region
      %288 = dma.done [#allocation24], 512
    $region165: #{_lambda_.1} parent=1 // pred_fallthru
      _
    // Predicated region
    $region166: #{_lambda_.1} parent=1 // pred_check
      _
    $region167: #{_lambda_.1} parent=1 // pred_check_branch
      %290 = sbr.rel (0) target = $region169
    $region168: #{_lambda_.1} parent=1 // pred_region
      %291 = dma.done [#allocation24], 512
    $region169: #{_lambda_.1} parent=1 // pred_fallthru
      _
    %v292 = vld [vmem:[#allocation2] sm:$0xff]
    %v293 = vld [vmem:[#allocation2 + $0x8] sm:$0xff]
    %v294 = vld [vmem:[#allocation2 + $0x10] sm:$0x1]
    %v295 = vld [vmem:[#allocation5] sm:$0xff]
    %v296 = vld [vmem:[#allocation5 + $0x8] sm:$0xff]
    %v297 = vld [vmem:[#allocation5 + $0x10] sm:$0x1]
    %v298 = vld [vmem:[#allocation7] sm:$0xff]
    %v299 = vld [vmem:[#allocation7 + $0x8] sm:$0x1f]
    %v300 = vld [vmem:[#allocation8] sm:$0xff]
    %v301 = vld [vmem:[#allocation8 + $0x8] sm:$0x1f]
    %v302 = vld [vmem:[#allocation10] sm:$0xff]
    %v303 = vld [vmem:[#allocation10 + $0x8] sm:$0xff]
    %v304 = vld [vmem:[#allocation10 + $0x10] sm:$0xff]
    %v305 = vld [vmem:[#allocation10 + $0x18] sm:$0xff]
    %v306 = vld [vmem:[#allocation11] sm:$0xff]
    %v307 = vld [vmem:[#allocation11 + $0x8] sm:$0xff]
    %v308 = vld [vmem:[#allocation11 + $0x10] sm:$0xff]
    %v309 = vld [vmem:[#allocation11 + $0x18] sm:$0xff]
    %v310 = vld [vmem:[#allocation13] sm:$0xff]
    %v311 = vld [vmem:[#allocation13 + $0x8] sm:$0xff]
    %v312 = vld [vmem:[#allocation13 + $0x10] sm:$0x1]
    %v313 = vld [vmem:[#allocation14] sm:$0xff]
    %v314 = vld [vmem:[#allocation14 + $0x8] sm:$0xff]
    %v315 = vld [vmem:[#allocation14 + $0x10] sm:$0x1]
    %v316 = vld [vmem:[%s0] sm:$0xff]
    %v317 = vld [vmem:[%s0 + $0x8] sm:$0x1f]
    %vm318 = vcmask 261120
    %v320 = vsel %vm318, %v292, 0
    %v323 = vsel %vm318, %v293, 0
    %v326 = vsel %vm318, %v294, 0
    %v329 = vsel %vm318, %v316, 0
    %v332 = vsel %vm318, %v317, 0
    %334 = vmatprep.subr.mxu0 0.0
    %335 = vmatpush1.xpose.msra.mxu0 %v329
    %336 = vmatprep.subr.mxu0 0.0
    %337 = vmatpush1.xpose.msra.mxu0 %v332
    %338 = vmatprep.subr.mxu0 0.0
    %339 = vmatpush1.xpose.msra.mxu0 0.0
    %340 = vmatprep.subr.mxu0 0.0
    %341 = vmatpush1.xpose.msra.mxu0 0.0
    %342 = vmatprep.subr.mxu0 0.0
    %343 = vmatpush1.xpose.msra.mxu0 0.0
    %344 = vmatprep.subr.mxu0 0.0
    %345 = vmatpush1.xpose.msra.mxu0 0.0
    %346 = vmatprep.subr.mxu0 0.0
    %347 = vmatpush1.xpose.msra.mxu0 0.0
    %348 = vmatprep.subr.mxu0 0.0
    %349 = vmatpush1.xpose.msra.mxu0 0.0
    %350 = vmatprep.subr.mxu0 0.0
    %351 = vmatpush1.xpose.msra.mxu0 0.0
    %352 = vmatprep.subr.mxu0 0.0
    %353 = vmatpush1.xpose.msra.mxu0 0.0
    %354 = vmatprep.subr.mxu0 0.0
    %355 = vmatpush1.xpose.msra.mxu0 0.0
    %356 = vmatprep.subr.mxu0 0.0
    %357 = vmatpush1.xpose.msra.mxu0 0.0
    %358 = vmatprep.subr.mxu0 0.0
    %359 = vmatpush1.xpose.msra.mxu0 0.0
    %360 = vmatprep.subr.mxu0 0.0
    %361 = vmatpush1.xpose.msra.mxu0 0.0
    %362 = vmatprep.subr.mxu0 0.0
    %363 = vmatpush1.xpose.msra.mxu0 0.0
    %364 = vmatprep.subr.mxu0 0.0
    %365 = vmatpush1.xpose.msra.mxu0 0.0
    %366 = vmatprep.subr.mxu0 0.0
    %367 = vmatpush1.xpose.msra.mxu0 0.0
    %368 = vmatprep.subr.mxu0 0.0
    %369 = vmatpush1.xpose.msra.mxu0 0.0
    %370 = vmatprep.subr.mxu0 0.0
    %371 = vmatpush1.xpose.msra.mxu0 0.0
    %372 = vmatprep.subr.mxu0 0.0
    %373 = vmatpush1.xpose.msra.mxu0 0.0
    %374 = vmatprep.subr.mxu0 0.0
    %375 = vmatpush1.xpose.msra.mxu0 0.0
    %376 = vmatprep.subr.mxu0 0.0
    %377 = vmatpush1.xpose.msra.mxu0 0.0
    %378 = vmatprep.subr.mxu0 0.0
    %379 = vmatpush1.xpose.msra.mxu0 0.0
    %380 = vmatprep.subr.mxu0 0.0
    %381 = vmatpush1.xpose.msra.mxu0 0.0
    %382 = vmatprep.subr.mxu0 0.0
    %383 = vmatpush1.xpose.msra.mxu0 0.0
    %384 = vmatprep.subr.mxu0 0.0
    %385 = vmatpush1.xpose.msra.mxu0 0.0
    %386 = vmatprep.subr.mxu0 0.0
    %387 = vmatpush1.xpose.msra.mxu0 0.0
    %388 = vmatprep.subr.mxu0 0.0
    %389 = vmatpush1.xpose.msra.mxu0 0.0
    %390 = vmatprep.subr.mxu0 0.0
    %391 = vmatpush1.xpose.msra.mxu0 0.0
    %392 = vmatprep.subr.mxu0 0.0
    %393 = vmatpush1.xpose.msra.mxu0 0.0
    %394 = vmatprep.subr.mxu0 0.0
    %395 = vmatpush1.xpose.msra.mxu0 0.0
    %396 = vmatprep.subr.mxu0 0.0
    %397 = vmatpush1.xpose.msra.mxu0 0.0
    %398 = vmatprep.mubr.f32.mxu0 0.0
    %399 = vmatmul.mubr.f32.gmra.mrb[0].mxu0 %v320
    %v400 = vpop.f32.mrb[0].mxu0
    %v401 = vadd.f32 0.0, %v400
    %v402 = vpop.f32.mrb[0].mxu0
    %403 = vmatprep.mubr.f32.mxu0 0.0
    %404 = vmatmul.mubr.f32.gmra.mrb[0].mxu0 %v323
    %v405 = vpop.f32.mrb[0].mxu0
    %v406 = vadd.f32 0.0, %v405
    %v407 = vpop.f32.mrb[0].mxu0
    %408 = vmatprep.mubr.f32.mxu0 0.0
    %409 = vmatmul.mubr.f32.gmra.mrb[0].mxu0 %v326
    %v410 = vpop.f32.mrb[0].mxu0
    %v411 = vadd.f32 0.0, %v410
    %v412 = vpop.f32.mrb[0].mxu0
    %413 = vdwg.mxu0
    %v415 = vsel %vm318, %v295, 0
    %v418 = vsel %vm318, %v296, 0
    %v421 = vsel %vm318, %v297, 0
    %423 = vmatprep.subr.mxu0 0.0
    %424 = vmatpush1.xpose.msra.mxu0 %v329
    %425 = vmatprep.subr.mxu0 0.0
    %426 = vmatpush1.xpose.msra.mxu0 %v332
    %427 = vmatprep.subr.mxu0 0.0
    %428 = vmatpush1.xpose.msra.mxu0 0.0
    %429 = vmatprep.subr.mxu0 0.0
    %430 = vmatpush1.xpose.msra.mxu0 0.0
    %431 = vmatprep.subr.mxu0 0.0
    %432 = vmatpush1.xpose.msra.mxu0 0.0
    %433 = vmatprep.subr.mxu0 0.0
    %434 = vmatpush1.xpose.msra.mxu0 0.0
    %435 = vmatprep.subr.mxu0 0.0
    %436 = vmatpush1.xpose.msra.mxu0 0.0
    %437 = vmatprep.subr.mxu0 0.0
    %438 = vmatpush1.xpose.msra.mxu0 0.0
    %439 = vmatprep.subr.mxu0 0.0
    %440 = vmatpush1.xpose.msra.mxu0 0.0
    %441 = vmatprep.subr.mxu0 0.0
    %442 = vmatpush1.xpose.msra.mxu0 0.0
    %443 = vmatprep.subr.mxu0 0.0
    %444 = vmatpush1.xpose.msra.mxu0 0.0
    %445 = vmatprep.subr.mxu0 0.0
    %446 = vmatpush1.xpose.msra.mxu0 0.0
    %447 = vmatprep.subr.mxu0 0.0
    %448 = vmatpush1.xpose.msra.mxu0 0.0
    %449 = vmatprep.subr.mxu0 0.0
    %450 = vmatpush1.xpose.msra.mxu0 0.0
    %451 = vmatprep.subr.mxu0 0.0
    %452 = vmatpush1.xpose.msra.mxu0 0.0
    %453 = vmatprep.subr.mxu0 0.0
    %454 = vmatpush1.xpose.msra.mxu0 0.0
    %455 = vmatprep.subr.mxu0 0.0
    %456 = vmatpush1.xpose.msra.mxu0 0.0
    %457 = vmatprep.subr.mxu0 0.0
    %458 = vmatpush1.xpose.msra.mxu0 0.0
    %459 = vmatprep.subr.mxu0 0.0
    %460 = vmatpush1.xpose.msra.mxu0 0.0
    %461 = vmatprep.subr.mxu0 0.0
    %462 = vmatpush1.xpose.msra.mxu0 0.0
    %463 = vmatprep.subr.mxu0 0.0
    %464 = vmatpush1.xpose.msra.mxu0 0.0
    %465 = vmatprep.subr.mxu0 0.0
    %466 = vmatpush1.xpose.msra.mxu0 0.0
    %467 = vmatprep.subr.mxu0 0.0
    %468 = vmatpush1.xpose.msra.mxu0 0.0
    %469 = vmatprep.subr.mxu0 0.0
    %470 = vmatpush1.xpose.msra.mxu0 0.0
    %471 = vmatprep.subr.mxu0 0.0
    %472 = vmatpush1.xpose.msra.mxu0 0.0
    %473 = vmatprep.subr.mxu0 0.0
    %474 = vmatpush1.xpose.msra.mxu0 0.0
    %475 = vmatprep.subr.mxu0 0.0
    %476 = vmatpush1.xpose.msra.mxu0 0.0
    %477 = vmatprep.subr.mxu0 0.0
    %478 = vmatpush1.xpose.msra.mxu0 0.0
    %479 = vmatprep.subr.mxu0 0.0
    %480 = vmatpush1.xpose.msra.mxu0 0.0
    %481 = vmatprep.subr.mxu0 0.0
    %482 = vmatpush1.xpose.msra.mxu0 0.0
    %483 = vmatprep.subr.mxu0 0.0
    %484 = vmatpush1.xpose.msra.mxu0 0.0
    %485 = vmatprep.subr.mxu0 0.0
    %486 = vmatpush1.xpose.msra.mxu0 0.0
    %487 = vmatprep.mubr.f32.mxu0 0.0
    %488 = vmatmul.mubr.f32.gmra.mrb[0].mxu0 %v415
    %v489 = vpop.f32.mrb[0].mxu0
    %v490 = vadd.f32 0.0, %v489
    %v491 = vpop.f32.mrb[0].mxu0
    %492 = vmatprep.mubr.f32.mxu0 0.0
    %493 = vmatmul.mubr.f32.gmra.mrb[0].mxu0 %v418
    %v494 = vpop.f32.mrb[0].mxu0
    %v495 = vadd.f32 0.0, %v494
    %v496 = vpop.f32.mrb[0].mxu0
    %497 = vmatprep.mubr.f32.mxu0 0.0
    %498 = vmatmul.mubr.f32.gmra.mrb[0].mxu0 %v421
    %v499 = vpop.f32.mrb[0].mxu0
    %v500 = vadd.f32 0.0, %v499
    %v501 = vpop.f32.mrb[0].mxu0
    %502 = vdwg.mxu0
    %vm503 = vcmask 105472
    %v505 = vsel %vm503, %v401, 0
    %v508 = vsel %vm503, %v406, 0
    %v511 = vsel %vm503, %v411, 0
    %vm513 = vcmask 1044480
    %v515 = vsel %vm513, %v299, 0
    %517 = vmatprep.subr.mxu0 0.0
    %518 = vmatpush1.msra.mxu0 %v298
    %519 = vmatprep.subr.mxu0 0.0
    %520 = vmatpush1.msra.mxu0 %v515
    %521 = vmatprep.subr.mxu0 0.0
    %522 = vmatpush1.msra.mxu0 0.0
    %523 = vmatprep.subr.mxu0 0.0
    %524 = vmatpush1.msra.mxu0 0.0
    %525 = vmatprep.subr.mxu0 0.0
    %526 = vmatpush1.msra.mxu0 0.0
    %527 = vmatprep.subr.mxu0 0.0
    %528 = vmatpush1.msra.mxu0 0.0
    %529 = vmatprep.subr.mxu0 0.0
    %530 = vmatpush1.msra.mxu0 0.0
    %531 = vmatprep.subr.mxu0 0.0
    %532 = vmatpush1.msra.mxu0 0.0
    %533 = vmatprep.subr.mxu0 0.0
    %534 = vmatpush1.msra.mxu0 0.0
    %535 = vmatprep.subr.mxu0 0.0
    %536 = vmatpush1.msra.mxu0 0.0
    %537 = vmatprep.subr.mxu0 0.0
    %538 = vmatpush1.msra.mxu0 0.0
    %539 = vmatprep.subr.mxu0 0.0
    %540 = vmatpush1.msra.mxu0 0.0
    %541 = vmatprep.subr.mxu0 0.0
    %542 = vmatpush1.msra.mxu0 0.0
    %543 = vmatprep.subr.mxu0 0.0
    %544 = vmatpush1.msra.mxu0 0.0
    %545 = vmatprep.subr.mxu0 0.0
    %546 = vmatpush1.msra.mxu0 0.0
    %547 = vmatprep.subr.mxu0 0.0
    %548 = vmatpush1.msra.mxu0 0.0
    %549 = vmatprep.subr.mxu0 0.0
    %550 = vmatpush1.msra.mxu0 0.0
    %551 = vmatprep.subr.mxu0 0.0
    %552 = vmatpush1.msra.mxu0 0.0
    %553 = vmatprep.subr.mxu0 0.0
    %554 = vmatpush1.msra.mxu0 0.0
    %555 = vmatprep.subr.mxu0 0.0
    %556 = vmatpush1.msra.mxu0 0.0
    %557 = vmatprep.subr.mxu0 0.0
    %558 = vmatpush1.msra.mxu0 0.0
    %559 = vmatprep.subr.mxu0 0.0
    %560 = vmatpush1.msra.mxu0 0.0
    %561 = vmatprep.subr.mxu0 0.0
    %562 = vmatpush1.msra.mxu0 0.0
    %563 = vmatprep.subr.mxu0 0.0
    %564 = vmatpush1.msra.mxu0 0.0
    %565 = vmatprep.subr.mxu0 0.0
    %566 = vmatpush1.msra.mxu0 0.0
    %567 = vmatprep.subr.mxu0 0.0
    %568 = vmatpush1.msra.mxu0 0.0
    %569 = vmatprep.subr.mxu0 0.0
    %570 = vmatpush1.msra.mxu0 0.0
    %571 = vmatprep.subr.mxu0 0.0
    %572 = vmatpush1.msra.mxu0 0.0
    %573 = vmatprep.subr.mxu0 0.0
    %574 = vmatpush1.msra.mxu0 0.0
    %575 = vmatprep.subr.mxu0 0.0
    %576 = vmatpush1.msra.mxu0 0.0
    %577 = vmatprep.subr.mxu0 0.0
    %578 = vmatpush1.msra.mxu0 0.0
    %579 = vmatprep.subr.mxu0 0.0
    %580 = vmatpush1.msra.mxu0 0.0
    %581 = vmatprep.mubr.f32.mxu0 0.0
    %582 = vmatmul.mubr.f32.gmra.mrb[0].mxu0 %v505
    %v583 = vpop.f32.mrb[0].mxu0
    %v584 = vadd.f32 0.0, %v583
    %v585 = vpop.f32.mrb[0].mxu0
    %586 = vmatprep.mubr.f32.mxu0 0.0
    %587 = vmatmul.mubr.f32.gmra.mrb[0].mxu0 %v508
    %v588 = vpop.f32.mrb[0].mxu0
    %v589 = vadd.f32 0.0, %v588
    %v590 = vpop.f32.mrb[0].mxu0
    %591 = vmatprep.mubr.f32.mxu0 0.0
    %592 = vmatmul.mubr.f32.gmra.mrb[0].mxu0 %v511
    %v593 = vpop.f32.mrb[0].mxu0
    %v594 = vadd.f32 0.0, %v593
    %v595 = vpop.f32.mrb[0].mxu0
    %596 = vdwg.mxu0
    %v598 = vsel %vm503, %v490, 0
    %v601 = vsel %vm503, %v495, 0
    %v604 = vsel %vm503, %v500, 0
    %606 = vmatprep.subr.mxu0 0.0
    %607 = vmatpush1.msra.mxu0 %v298
    %608 = vmatprep.subr.mxu0 0.0
    %609 = vmatpush1.msra.mxu0 %v515
    %610 = vmatprep.subr.mxu0 0.0
    %611 = vmatpush1.msra.mxu0 0.0
    %612 = vmatprep.subr.mxu0 0.0
    %613 = vmatpush1.msra.mxu0 0.0
    %614 = vmatprep.subr.mxu0 0.0
    %615 = vmatpush1.msra.mxu0 0.0
    %616 = vmatprep.subr.mxu0 0.0
    %617 = vmatpush1.msra.mxu0 0.0
    %618 = vmatprep.subr.mxu0 0.0
    %619 = vmatpush1.msra.mxu0 0.0
    %620 = vmatprep.subr.mxu0 0.0
    %621 = vmatpush1.msra.mxu0 0.0
    %622 = vmatprep.subr.mxu0 0.0
    %623 = vmatpush1.msra.mxu0 0.0
    %624 = vmatprep.subr.mxu0 0.0
    %625 = vmatpush1.msra.mxu0 0.0
    %626 = vmatprep.subr.mxu0 0.0
    %627 = vmatpush1.msra.mxu0 0.0
    %628 = vmatprep.subr.mxu0 0.0
    %629 = vmatpush1.msra.mxu0 0.0
    %630 = vmatprep.subr.mxu0 0.0
    %631 = vmatpush1.msra.mxu0 0.0
    %632 = vmatprep.subr.mxu0 0.0
    %633 = vmatpush1.msra.mxu0 0.0
    %634 = vmatprep.subr.mxu0 0.0
    %635 = vmatpush1.msra.mxu0 0.0
    %636 = vmatprep.subr.mxu0 0.0
    %637 = vmatpush1.msra.mxu0 0.0
    %638 = vmatprep.subr.mxu0 0.0
    %639 = vmatpush1.msra.mxu0 0.0
    %640 = vmatprep.subr.mxu0 0.0
    %641 = vmatpush1.msra.mxu0 0.0
    %642 = vmatprep.subr.mxu0 0.0
    %643 = vmatpush1.msra.mxu0 0.0
    %644 = vmatprep.subr.mxu0 0.0
    %645 = vmatpush1.msra.mxu0 0.0
    %646 = vmatprep.subr.mxu0 0.0
    %647 = vmatpush1.msra.mxu0 0.0
    %648 = vmatprep.subr.mxu0 0.0
    %649 = vmatpush1.msra.mxu0 0.0
    %650 = vmatprep.subr.mxu0 0.0
    %651 = vmatpush1.msra.mxu0 0.0
    %652 = vmatprep.subr.mxu0 0.0
    %653 = vmatpush1.msra.mxu0 0.0
    %654 = vmatprep.subr.mxu0 0.0
    %655 = vmatpush1.msra.mxu0 0.0
    %656 = vmatprep.subr.mxu0 0.0
    %657 = vmatpush1.msra.mxu0 0.0
    %658 = vmatprep.subr.mxu0 0.0
    %659 = vmatpush1.msra.mxu0 0.0
    %660 = vmatprep.subr.mxu0 0.0
    %661 = vmatpush1.msra.mxu0 0.0
    %662 = vmatprep.subr.mxu0 0.0
    %663 = vmatpush1.msra.mxu0 0.0
    %664 = vmatprep.subr.mxu0 0.0
    %665 = vmatpush1.msra.mxu0 0.0
    %666 = vmatprep.subr.mxu0 0.0
    %667 = vmatpush1.msra.mxu0 0.0
    %668 = vmatprep.subr.mxu0 0.0
    %669 = vmatpush1.msra.mxu0 0.0
    %670 = vmatprep.mubr.f32.mxu0 0.0
    %671 = vmatmul.mubr.f32.gmra.mrb[0].mxu0 %v598
    %v672 = vpop.f32.mrb[0].mxu0
    %v673 = vadd.f32 0.0, %v672
    %v674 = vpop.f32.mrb[0].mxu0
    %675 = vmatprep.mubr.f32.mxu0 0.0
    %676 = vmatmul.mubr.f32.gmra.mrb[0].mxu0 %v601
    %v677 = vpop.f32.mrb[0].mxu0
    %v678 = vadd.f32 0.0, %v677
    %v679 = vpop.f32.mrb[0].mxu0
    %680 = vmatprep.mubr.f32.mxu0 0.0
    %681 = vmatmul.mubr.f32.gmra.mrb[0].mxu0 %v604
    %v682 = vpop.f32.mrb[0].mxu0
    %v683 = vadd.f32 0.0, %v682
    %v684 = vpop.f32.mrb[0].mxu0
    %685 = vdwg.mxu0
    %v687 = vsel %vm503, %v584, 0
    %v690 = vsel %vm503, %v589, 0
    %v693 = vsel %vm503, %v594, 0
    %695 = vmatprep.subr.mxu0 0.0
    %696 = vmatpush1.xpose.msra.mxu0 %v505
    %697 = vmatprep.subr.mxu0 0.0
    %698 = vmatpush1.xpose.msra.mxu0 %v508
    %699 = vmatprep.subr.mxu0 0.0
    %700 = vmatpush1.xpose.msra.mxu0 %v511
    %701 = vmatprep.subr.mxu0 0.0
    %702 = vmatpush1.xpose.msra.mxu0 0.0
    %703 = vmatprep.subr.mxu0 0.0
    %704 = vmatpush1.xpose.msra.mxu0 0.0
    %705 = vmatprep.subr.mxu0 0.0
    %706 = vmatpush1.xpose.msra.mxu0 0.0
    %707 = vmatprep.subr.mxu0 0.0
    %708 = vmatpush1.xpose.msra.mxu0 0.0
    %709 = vmatprep.subr.mxu0 0.0
    %710 = vmatpush1.xpose.msra.mxu0 0.0
    %711 = vmatprep.subr.mxu0 0.0
    %712 = vmatpush1.xpose.msra.mxu0 0.0
    %713 = vmatprep.subr.mxu0 0.0
    %714 = vmatpush1.xpose.msra.mxu0 0.0
    %715 = vmatprep.subr.mxu0 0.0
    %716 = vmatpush1.xpose.msra.mxu0 0.0
    %717 = vmatprep.subr.mxu0 0.0
    %718 = vmatpush1.xpose.msra.mxu0 0.0
    %719 = vmatprep.subr.mxu0 0.0
    %720 = vmatpush1.xpose.msra.mxu0 0.0
    %721 = vmatprep.subr.mxu0 0.0
    %722 = vmatpush1.xpose.msra.mxu0 0.0
    %723 = vmatprep.subr.mxu0 0.0
    %724 = vmatpush1.xpose.msra.mxu0 0.0
    %725 = vmatprep.subr.mxu0 0.0
    %726 = vmatpush1.xpose.msra.mxu0 0.0
    %727 = vmatprep.subr.mxu0 0.0
    %728 = vmatpush1.xpose.msra.mxu0 0.0
    %729 = vmatprep.subr.mxu0 0.0
    %730 = vmatpush1.xpose.msra.mxu0 0.0
    %731 = vmatprep.subr.mxu0 0.0
    %732 = vmatpush1.xpose.msra.mxu0 0.0
    %733 = vmatprep.subr.mxu0 0.0
    %734 = vmatpush1.xpose.msra.mxu0 0.0
    %735 = vmatprep.subr.mxu0 0.0
    %736 = vmatpush1.xpose.msra.mxu0 0.0
    %737 = vmatprep.subr.mxu0 0.0
    %738 = vmatpush1.xpose.msra.mxu0 0.0
    %739 = vmatprep.subr.mxu0 0.0
    %740 = vmatpush1.xpose.msra.mxu0 0.0
    %741 = vmatprep.subr.mxu0 0.0
    %742 = vmatpush1.xpose.msra.mxu0 0.0
    %743 = vmatprep.subr.mxu0 0.0
    %744 = vmatpush1.xpose.msra.mxu0 0.0
    %745 = vmatprep.subr.mxu0 0.0
    %746 = vmatpush1.xpose.msra.mxu0 0.0
    %747 = vmatprep.subr.mxu0 0.0
    %748 = vmatpush1.xpose.msra.mxu0 0.0
    %749 = vmatprep.subr.mxu0 0.0
    %750 = vmatpush1.xpose.msra.mxu0 0.0
    %751 = vmatprep.subr.mxu0 0.0
    %752 = vmatpush1.xpose.msra.mxu0 0.0
    %753 = vmatprep.subr.mxu0 0.0
    %754 = vmatpush1.xpose.msra.mxu0 0.0
    %755 = vmatprep.subr.mxu0 0.0
    %756 = vmatpush1.xpose.msra.mxu0 0.0
    %757 = vmatprep.subr.mxu0 0.0
    %758 = vmatpush1.xpose.msra.mxu0 0.0
    %759 = vmatprep.mubr.f32.mxu0 0.0
    %760 = vmatmul.mubr.f32.gmra.mrb[0].mxu0 %v687
    %v761 = vpop.f32.mrb[0].mxu0
    %v762 = vadd.f32 0.0, %v761
    %v763 = vpop.f32.mrb[0].mxu0
    %764 = vmatprep.mubr.f32.mxu0 0.0
    %765 = vmatmul.mubr.f32.gmra.mrb[0].mxu0 %v690
    %v766 = vpop.f32.mrb[0].mxu0
    %v767 = vadd.f32 0.0, %v766
    %v768 = vpop.f32.mrb[0].mxu0
    %769 = vmatprep.mubr.f32.mxu0 0.0
    %770 = vmatmul.mubr.f32.gmra.mrb[0].mxu0 %v693
    %v771 = vpop.f32.mrb[0].mxu0
    %v772 = vadd.f32 0.0, %v771
    %v773 = vpop.f32.mrb[0].mxu0
    %774 = vdwg.mxu0
    %v776 = vsel %vm503, %v673, 0
    %v779 = vsel %vm503, %v678, 0
    %v782 = vsel %vm503, %v683, 0
    %784 = vmatprep.subr.mxu0 0.0
    %785 = vmatpush1.xpose.msra.mxu0 %v598
    %786 = vmatprep.subr.mxu0 0.0
    %787 = vmatpush1.xpose.msra.mxu0 %v601
    %788 = vmatprep.subr.mxu0 0.0
    %789 = vmatpush1.xpose.msra.mxu0 %v604
    %790 = vmatprep.subr.mxu0 0.0
    %791 = vmatpush1.xpose.msra.mxu0 0.0
    %792 = vmatprep.subr.mxu0 0.0
    %793 = vmatpush1.xpose.msra.mxu0 0.0
    %794 = vmatprep.subr.mxu0 0.0
    %795 = vmatpush1.xpose.msra.mxu0 0.0
    %796 = vmatprep.subr.mxu0 0.0
    %797 = vmatpush1.xpose.msra.mxu0 0.0
    %798 = vmatprep.subr.mxu0 0.0
    %799 = vmatpush1.xpose.msra.mxu0 0.0
    %800 = vmatprep.subr.mxu0 0.0
    %801 = vmatpush1.xpose.msra.mxu0 0.0
    %802 = vmatprep.subr.mxu0 0.0
    %803 = vmatpush1.xpose.msra.mxu0 0.0
    %804 = vmatprep.subr.mxu0 0.0
    %805 = vmatpush1.xpose.msra.mxu0 0.0
    %806 = vmatprep.subr.mxu0 0.0
    %807 = vmatpush1.xpose.msra.mxu0 0.0
    %808 = vmatprep.subr.mxu0 0.0
    %809 = vmatpush1.xpose.msra.mxu0 0.0
    %810 = vmatprep.subr.mxu0 0.0
    %811 = vmatpush1.xpose.msra.mxu0 0.0
    %812 = vmatprep.subr.mxu0 0.0
    %813 = vmatpush1.xpose.msra.mxu0 0.0
    %814 = vmatprep.subr.mxu0 0.0
    %815 = vmatpush1.xpose.msra.mxu0 0.0
    %816 = vmatprep.subr.mxu0 0.0
    %817 = vmatpush1.xpose.msra.mxu0 0.0
    %818 = vmatprep.subr.mxu0 0.0
    %819 = vmatpush1.xpose.msra.mxu0 0.0
    %820 = vmatprep.subr.mxu0 0.0
    %821 = vmatpush1.xpose.msra.mxu0 0.0
    %822 = vmatprep.subr.mxu0 0.0
    %823 = vmatpush1.xpose.msra.mxu0 0.0
    %824 = vmatprep.subr.mxu0 0.0
    %825 = vmatpush1.xpose.msra.mxu0 0.0
    %826 = vmatprep.subr.mxu0 0.0
    %827 = vmatpush1.xpose.msra.mxu0 0.0
    %828 = vmatprep.subr.mxu0 0.0
    %829 = vmatpush1.xpose.msra.mxu0 0.0
    %830 = vmatprep.subr.mxu0 0.0
    %831 = vmatpush1.xpose.msra.mxu0 0.0
    %832 = vmatprep.subr.mxu0 0.0
    %833 = vmatpush1.xpose.msra.mxu0 0.0
    %834 = vmatprep.subr.mxu0 0.0
    %835 = vmatpush1.xpose.msra.mxu0 0.0
    %836 = vmatprep.subr.mxu0 0.0
    %837 = vmatpush1.xpose.msra.mxu0 0.0
    %838 = vmatprep.subr.mxu0 0.0
    %839 = vmatpush1.xpose.msra.mxu0 0.0
    %840 = vmatprep.subr.mxu0 0.0
    %841 = vmatpush1.xpose.msra.mxu0 0.0
    %842 = vmatprep.subr.mxu0 0.0
    %843 = vmatpush1.xpose.msra.mxu0 0.0
    %844 = vmatprep.subr.mxu0 0.0
    %845 = vmatpush1.xpose.msra.mxu0 0.0
    %846 = vmatprep.subr.mxu0 0.0
    %847 = vmatpush1.xpose.msra.mxu0 0.0
    %848 = vmatprep.mubr.f32.mxu0 0.0
    %849 = vmatmul.mubr.f32.gmra.mrb[0].mxu0 %v776
    %v850 = vpop.f32.mrb[0].mxu0
    %v851 = vadd.f32 0.0, %v850
    %v852 = vpop.f32.mrb[0].mxu0
    %853 = vmatprep.mubr.f32.mxu0 0.0
    %854 = vmatmul.mubr.f32.gmra.mrb[0].mxu0 %v779
    %v855 = vpop.f32.mrb[0].mxu0
    %v856 = vadd.f32 0.0, %v855
    %v857 = vpop.f32.mrb[0].mxu0
    %858 = vmatprep.mubr.f32.mxu0 0.0
    %859 = vmatmul.mubr.f32.gmra.mrb[0].mxu0 %v782
    %v860 = vpop.f32.mrb[0].mxu0
    %v861 = vadd.f32 0.0, %v860
    %v862 = vpop.f32.mrb[0].mxu0
    %863 = vdwg.mxu0
    %v864 = vsub.f32 %v762, %v851
    %v865 = vsub.f32 %v767, %v856
    %v866 = vsub.f32 %v772, %v861
    %867 = vmatprep.subr.mxu0 0.0
    %868 = vmatpush1.xpose.msra.mxu0 %v505
    %869 = vmatprep.subr.mxu0 0.0
    %870 = vmatpush1.xpose.msra.mxu0 %v508
    %871 = vmatprep.subr.mxu0 0.0
    %872 = vmatpush1.xpose.msra.mxu0 %v511
    %873 = vmatprep.subr.mxu0 0.0
    %874 = vmatpush1.xpose.msra.mxu0 0.0
    %875 = vmatprep.subr.mxu0 0.0
    %876 = vmatpush1.xpose.msra.mxu0 0.0
    %877 = vmatprep.subr.mxu0 0.0
    %878 = vmatpush1.xpose.msra.mxu0 0.0
    %879 = vmatprep.subr.mxu0 0.0
    %880 = vmatpush1.xpose.msra.mxu0 0.0
    %881 = vmatprep.subr.mxu0 0.0
    %882 = vmatpush1.xpose.msra.mxu0 0.0
    %883 = vmatprep.subr.mxu0 0.0
    %884 = vmatpush1.xpose.msra.mxu0 0.0
    %885 = vmatprep.subr.mxu0 0.0
    %886 = vmatpush1.xpose.msra.mxu0 0.0
    %887 = vmatprep.subr.mxu0 0.0
    %888 = vmatpush1.xpose.msra.mxu0 0.0
    %889 = vmatprep.subr.mxu0 0.0
    %890 = vmatpush1.xpose.msra.mxu0 0.0
    %891 = vmatprep.subr.mxu0 0.0
    %892 = vmatpush1.xpose.msra.mxu0 0.0
    %893 = vmatprep.subr.mxu0 0.0
    %894 = vmatpush1.xpose.msra.mxu0 0.0
    %895 = vmatprep.subr.mxu0 0.0
    %896 = vmatpush1.xpose.msra.mxu0 0.0
    %897 = vmatprep.subr.mxu0 0.0
    %898 = vmatpush1.xpose.msra.mxu0 0.0
    %899 = vmatprep.subr.mxu0 0.0
    %900 = vmatpush1.xpose.msra.mxu0 0.0
    %901 = vmatprep.subr.mxu0 0.0
    %902 = vmatpush1.xpose.msra.mxu0 0.0
    %903 = vmatprep.subr.mxu0 0.0
    %904 = vmatpush1.xpose.msra.mxu0 0.0
    %905 = vmatprep.subr.mxu0 0.0
    %906 = vmatpush1.xpose.msra.mxu0 0.0
    %907 = vmatprep.subr.mxu0 0.0
    %908 = vmatpush1.xpose.msra.mxu0 0.0
    %909 = vmatprep.subr.mxu0 0.0
    %910 = vmatpush1.xpose.msra.mxu0 0.0
    %911 = vmatprep.subr.mxu0 0.0
    %912 = vmatpush1.xpose.msra.mxu0 0.0
    %913 = vmatprep.subr.mxu0 0.0
    %914 = vmatpush1.xpose.msra.mxu0 0.0
    %915 = vmatprep.subr.mxu0 0.0
    %916 = vmatpush1.xpose.msra.mxu0 0.0
    %917 = vmatprep.subr.mxu0 0.0
    %918 = vmatpush1.xpose.msra.mxu0 0.0
    %919 = vmatprep.subr.mxu0 0.0
    %920 = vmatpush1.xpose.msra.mxu0 0.0
    %921 = vmatprep.subr.mxu0 0.0
    %922 = vmatpush1.xpose.msra.mxu0 0.0
    %923 = vmatprep.subr.mxu0 0.0
    %924 = vmatpush1.xpose.msra.mxu0 0.0
    %925 = vmatprep.subr.mxu0 0.0
    %926 = vmatpush1.xpose.msra.mxu0 0.0
    %927 = vmatprep.subr.mxu0 0.0
    %928 = vmatpush1.xpose.msra.mxu0 0.0
    %929 = vmatprep.subr.mxu0 0.0
    %930 = vmatpush1.xpose.msra.mxu0 0.0
    %931 = vmatprep.mubr.f32.mxu0 0.0
    %932 = vmatmul.mubr.f32.gmra.mrb[0].mxu0 %v776
    %v933 = vpop.f32.mrb[0].mxu0
    %v934 = vadd.f32 0.0, %v933
    %v935 = vpop.f32.mrb[0].mxu0
    %936 = vmatprep.mubr.f32.mxu0 0.0
    %937 = vmatmul.mubr.f32.gmra.mrb[0].mxu0 %v779
    %v938 = vpop.f32.mrb[0].mxu0
    %v939 = vadd.f32 0.0, %v938
    %v940 = vpop.f32.mrb[0].mxu0
    %941 = vmatprep.mubr.f32.mxu0 0.0
    %942 = vmatmul.mubr.f32.gmra.mrb[0].mxu0 %v782
    %v943 = vpop.f32.mrb[0].mxu0
    %v944 = vadd.f32 0.0, %v943
    %v945 = vpop.f32.mrb[0].mxu0
    %946 = vdwg.mxu0
    %947 = vmatprep.subr.mxu0 0.0
    %948 = vmatpush1.xpose.msra.mxu0 %v598
    %949 = vmatprep.subr.mxu0 0.0
    %950 = vmatpush1.xpose.msra.mxu0 %v601
    %951 = vmatprep.subr.mxu0 0.0
    %952 = vmatpush1.xpose.msra.mxu0 %v604
    %953 = vmatprep.subr.mxu0 0.0
    %954 = vmatpush1.xpose.msra.mxu0 0.0
    %955 = vmatprep.subr.mxu0 0.0
    %956 = vmatpush1.xpose.msra.mxu0 0.0
    %957 = vmatprep.subr.mxu0 0.0
    %958 = vmatpush1.xpose.msra.mxu0 0.0
    %959 = vmatprep.subr.mxu0 0.0
    %960 = vmatpush1.xpose.msra.mxu0 0.0
    %961 = vmatprep.subr.mxu0 0.0
    %962 = vmatpush1.xpose.msra.mxu0 0.0
    %963 = vmatprep.subr.mxu0 0.0
    %964 = vmatpush1.xpose.msra.mxu0 0.0
    %965 = vmatprep.subr.mxu0 0.0
    %966 = vmatpush1.xpose.msra.mxu0 0.0
    %967 = vmatprep.subr.mxu0 0.0
    %968 = vmatpush1.xpose.msra.mxu0 0.0
    %969 = vmatprep.subr.mxu0 0.0
    %970 = vmatpush1.xpose.msra.mxu0 0.0
    %971 = vmatprep.subr.mxu0 0.0
    %972 = vmatpush1.xpose.msra.mxu0 0.0
    %973 = vmatprep.subr.mxu0 0.0
    %974 = vmatpush1.xpose.msra.mxu0 0.0
    %975 = vmatprep.subr.mxu0 0.0
    %976 = vmatpush1.xpose.msra.mxu0 0.0
    %977 = vmatprep.subr.mxu0 0.0
    %978 = vmatpush1.xpose.msra.mxu0 0.0
    %979 = vmatprep.subr.mxu0 0.0
    %980 = vmatpush1.xpose.msra.mxu0 0.0
    %981 = vmatprep.subr.mxu0 0.0
    %982 = vmatpush1.xpose.msra.mxu0 0.0
    %983 = vmatprep.subr.mxu0 0.0
    %984 = vmatpush1.xpose.msra.mxu0 0.0
    %985 = vmatprep.subr.mxu0 0.0
    %986 = vmatpush1.xpose.msra.mxu0 0.0
    %987 = vmatprep.subr.mxu0 0.0
    %988 = vmatpush1.xpose.msra.mxu0 0.0
    %989 = vmatprep.subr.mxu0 0.0
    %990 = vmatpush1.xpose.msra.mxu0 0.0
    %991 = vmatprep.subr.mxu0 0.0
    %992 = vmatpush1.xpose.msra.mxu0 0.0
    %993 = vmatprep.subr.mxu0 0.0
    %994 = vmatpush1.xpose.msra.mxu0 0.0
    %995 = vmatprep.subr.mxu0 0.0
    %996 = vmatpush1.xpose.msra.mxu0 0.0
    %997 = vmatprep.subr.mxu0 0.0
    %998 = vmatpush1.xpose.msra.mxu0 0.0
    %999 = vmatprep.subr.mxu0 0.0
    %1000 = vmatpush1.xpose.msra.mxu0 0.0
    %1001 = vmatprep.subr.mxu0 0.0
    %1002 = vmatpush1.xpose.msra.mxu0 0.0
    %1003 = vmatprep.subr.mxu0 0.0
    %1004 = vmatpush1.xpose.msra.mxu0 0.0
    %1005 = vmatprep.subr.mxu0 0.0
    %1006 = vmatpush1.xpose.msra.mxu0 0.0
    %1007 = vmatprep.subr.mxu0 0.0
    %1008 = vmatpush1.xpose.msra.mxu0 0.0
    %1009 = vmatprep.subr.mxu0 0.0
    %1010 = vmatpush1.xpose.msra.mxu0 0.0
    %1011 = vmatprep.mubr.f32.mxu0 0.0
    %1012 = vmatmul.mubr.f32.gmra.mrb[0].mxu0 %v687
    %v1013 = vpop.f32.mrb[0].mxu0
    %v1014 = vadd.f32 %v934, %v1013
    %v1015 = vpop.f32.mrb[0].mxu0
    %1016 = vmatprep.mubr.f32.mxu0 0.0
    %1017 = vmatmul.mubr.f32.gmra.mrb[0].mxu0 %v690
    %v1018 = vpop.f32.mrb[0].mxu0
    %v1019 = vadd.f32 %v939, %v1018
    %v1020 = vpop.f32.mrb[0].mxu0
    %1021 = vmatprep.mubr.f32.mxu0 0.0
    %1022 = vmatmul.mubr.f32.gmra.mrb[0].mxu0 %v693
    %v1023 = vpop.f32.mrb[0].mxu0
    %v1024 = vadd.f32 %v944, %v1023
    %v1025 = vpop.f32.mrb[0].mxu0
    %1026 = vdwg.mxu0
    %v1027 = vmul.f32 %v864, %v864
    %v1028 = vmul.f32 %v865, %v865
    %v1029 = vmul.f32 %v866, %v866
    %v1030 = vmul.f32 %v1014, %v1014
    %v1031 = vmul.f32 %v1019, %v1019
    %v1032 = vmul.f32 %v1024, %v1024
    %v1033 = vadd.f32 %v1027, %v1030
    %v1034 = vadd.f32 %v1028, %v1031
    %v1035 = vadd.f32 %v1029, %v1032
    %v1036 = vrsqrt.pop %v1033
    %v1037 = vmul.f32 %v1033, %v1036
    %vm1038 = vcmp.eq.f32.partialorder %v1033, inf
    %v1039 = vsel %vm1038, %v1033, %v1037
    %vm1040 = vcmp.eq.f32.partialorder %v1033, 0.0
    %v1041 = vand.u32 %v1033, 2147483648
    %v1042 = vsel %vm1040, %v1041, %v1039
    %v1043 = vrsqrt.pop %v1034
    %v1044 = vmul.f32 %v1034, %v1043
    %vm1045 = vcmp.eq.f32.partialorder %v1034, inf
    %v1046 = vsel %vm1045, %v1034, %v1044
    %vm1047 = vcmp.eq.f32.partialorder %v1034, 0.0
    %v1048 = vand.u32 %v1034, 2147483648
    %v1049 = vsel %vm1047, %v1048, %v1046
    %v1050 = vrsqrt.pop %v1035
    %v1051 = vmul.f32 %v1035, %v1050
    %vm1052 = vcmp.eq.f32.partialorder %v1035, inf
    %v1053 = vsel %vm1052, %v1035, %v1051
    %vm1054 = vcmp.eq.f32.partialorder %v1035, 0.0
    %v1055 = vand.u32 %v1035, 2147483648
    %v1056 = vsel %vm1054, %v1055, %v1053
    %vm1057 = vcmask 138240
    %1058 = vst.msk [vmem:[%s28] sm:$0xff] %vm1057, %v1042
    %1059 = vst.msk [vmem:[%s28 + $0x8] sm:$0xff] %vm1057, %v1049
    %vm1060 = vcmask 131072
    %1061 = vst.msk [vmem:[%s28 + $0x10] sm:$0x1] %vm1060, %v1056
    %v1062 = vsel %vm1057, %v1042, -inf
    %1063 = vmax.xlane.f32.xlu0 %v1062
    %v1064 = vpop.xlane.xlu0 %1063
    %v1065 = vsel %vm1057, %v1049, -inf
    %1066 = vmax.xlane.f32.xlu0 %v1065
    %v1067 = vpop.xlane.xlu0 %1066
    %v1068 = vsel %vm1060, %v1056, -inf
    %1069 = vmax.xlane.f32.xlu0 %v1068
    %v1070 = vpop.xlane.xlu0 %1069
    %v1071 = vsub.f32 %v1042, %v1064
    %v1072 = vsub.f32 %v1049, %v1067
    %v1073 = vsub.f32 %v1056, %v1070
    %v1074 = vmul.f32 %v1071, 1.442695
    %v1075 = vpow.pop %v1074
    %v1076 = vmul.f32 %v1072, 1.442695
    %v1077 = vpow.pop %v1076
    %v1078 = vmul.f32 %v1073, 1.442695
    %v1079 = vpow.pop %v1078
    %v1080 = vsel %vm1057, %v1075, 0.0
    %1081 = vadd.xlane.f32.xlu0 %v1080
    %v1082 = vpop.xlane.xlu0 %1081
    %v1083 = vsel %vm1057, %v1077, 0.0
    %1084 = vadd.xlane.f32.xlu0 %v1083
    %v1085 = vpop.xlane.xlu0 %1084
    %v1086 = vsel %vm1060, %v1079, 0.0
    %1087 = vadd.xlane.f32.xlu0 %v1086
    %v1088 = vpop.xlane.xlu0 %1087
    %v1089 = vrcp.pop %v1082
    %v1090 = vrcp.pop %v1085
    %v1091 = vrcp.pop %v1088
    %v1092 = vmul.f32 %v1075, %v1089
    %v1093 = vmul.f32 %v1077, %v1090
    %v1094 = vmul.f32 %v1079, %v1091
    %v1096 = vsel %vm503, %v300, 0
    %v1099 = vsel %vm503, %v301, 0
    %v1101 = vsel %vm513, %v317, 0
    %1103 = vmatprep.subr.mxu0 0.0
    %1104 = vmatpush1.msra.mxu0 %v316
    %1105 = vmatprep.subr.mxu0 0.0
    %1106 = vmatpush1.msra.mxu0 %v1101
    %1107 = vmatprep.subr.mxu0 0.0
    %1108 = vmatpush1.msra.mxu0 0.0
    %1109 = vmatprep.subr.mxu0 0.0
    %1110 = vmatpush1.msra.mxu0 0.0
    %1111 = vmatprep.subr.mxu0 0.0
    %1112 = vmatpush1.msra.mxu0 0.0
    %1113 = vmatprep.subr.mxu0 0.0
    %1114 = vmatpush1.msra.mxu0 0.0
    %1115 = vmatprep.subr.mxu0 0.0
    %1116 = vmatpush1.msra.mxu0 0.0
    %1117 = vmatprep.subr.mxu0 0.0
    %1118 = vmatpush1.msra.mxu0 0.0
    %1119 = vmatprep.subr.mxu0 0.0
    %1120 = vmatpush1.msra.mxu0 0.0
    %1121 = vmatprep.subr.mxu0 0.0
    %1122 = vmatpush1.msra.mxu0 0.0
    %1123 = vmatprep.subr.mxu0 0.0
    %1124 = vmatpush1.msra.mxu0 0.0
    %1125 = vmatprep.subr.mxu0 0.0
    %1126 = vmatpush1.msra.mxu0 0.0
    %1127 = vmatprep.subr.mxu0 0.0
    %1128 = vmatpush1.msra.mxu0 0.0
    %1129 = vmatprep.subr.mxu0 0.0
    %1130 = vmatpush1.msra.mxu0 0.0
    %1131 = vmatprep.subr.mxu0 0.0
    %1132 = vmatpush1.msra.mxu0 0.0
    %1133 = vmatprep.subr.mxu0 0.0
    %1134 = vmatpush1.msra.mxu0 0.0
    %1135 = vmatprep.subr.mxu0 0.0
    %1136 = vmatpush1.msra.mxu0 0.0
    %1137 = vmatprep.subr.mxu0 0.0
    %1138 = vmatpush1.msra.mxu0 0.0
    %1139 = vmatprep.subr.mxu0 0.0
    %1140 = vmatpush1.msra.mxu0 0.0
    %1141 = vmatprep.subr.mxu0 0.0
    %1142 = vmatpush1.msra.mxu0 0.0
    %1143 = vmatprep.subr.mxu0 0.0
    %1144 = vmatpush1.msra.mxu0 0.0
    %1145 = vmatprep.subr.mxu0 0.0
    %1146 = vmatpush1.msra.mxu0 0.0
    %1147 = vmatprep.subr.mxu0 0.0
    %1148 = vmatpush1.msra.mxu0 0.0
    %1149 = vmatprep.subr.mxu0 0.0
    %1150 = vmatpush1.msra.mxu0 0.0
    %1151 = vmatprep.subr.mxu0 0.0
    %1152 = vmatpush1.msra.mxu0 0.0
    %1153 = vmatprep.subr.mxu0 0.0
    %1154 = vmatpush1.msra.mxu0 0.0
    %1155 = vmatprep.subr.mxu0 0.0
    %1156 = vmatpush1.msra.mxu0 0.0
    %1157 = vmatprep.subr.mxu0 0.0
    %1158 = vmatpush1.msra.mxu0 0.0
    %1159 = vmatprep.subr.mxu0 0.0
    %1160 = vmatpush1.msra.mxu0 0.0
    %1161 = vmatprep.subr.mxu0 0.0
    %1162 = vmatpush1.msra.mxu0 0.0
    %1163 = vmatprep.subr.mxu0 0.0
    %1164 = vmatpush1.msra.mxu0 0.0
    %1165 = vmatprep.subr.mxu0 0.0
    %1166 = vmatpush1.msra.mxu0 0.0
    %1167 = vmatprep.mubr.f32.mxu0 0.0
    %1168 = vmatmul.mubr.f32.gmra.mrb[0].mxu0 %v1096
    %v1169 = vpop.f32.mrb[0].mxu0
    %v1170 = vadd.f32 0.0, %v1169
    %v1171 = vpop.f32.mrb[0].mxu0
    %1172 = vmatprep.mubr.f32.mxu0 0.0
    %1173 = vmatmul.mubr.f32.gmra.mrb[0].mxu0 %v1099
    %v1174 = vpop.f32.mrb[0].mxu0
    %v1175 = vadd.f32 0.0, %v1174
    %v1176 = vpop.f32.mrb[0].mxu0
    %1177 = vdwg.mxu0
    %v1179 = vsel %vm318, %v1170, 0
    %v1182 = vsel %vm318, %v1175, 0
    %1184 = vmatprep.subr.mxu0 0.0
    %1185 = vmatpush1.msra.mxu0 %v302
    %1186 = vmatprep.subr.mxu0 0.0
    %1187 = vmatpush1.msra.mxu0 %v303
    %1188 = vmatprep.subr.mxu0 0.0
    %1189 = vmatpush1.msra.mxu0 %v304
    %1190 = vmatprep.subr.mxu0 0.0
    %1191 = vmatpush1.msra.mxu0 %v305
    %1192 = vmatprep.subr.mxu0 0.0
    %1193 = vmatpush1.msra.mxu0 0.0
    %1194 = vmatprep.subr.mxu0 0.0
    %1195 = vmatpush1.msra.mxu0 0.0
    %1196 = vmatprep.subr.mxu0 0.0
    %1197 = vmatpush1.msra.mxu0 0.0
    %1198 = vmatprep.subr.mxu0 0.0
    %1199 = vmatpush1.msra.mxu0 0.0
    %1200 = vmatprep.subr.mxu0 0.0
    %1201 = vmatpush1.msra.mxu0 0.0
    %1202 = vmatprep.subr.mxu0 0.0
    %1203 = vmatpush1.msra.mxu0 0.0
    %1204 = vmatprep.subr.mxu0 0.0
    %1205 = vmatpush1.msra.mxu0 0.0
    %1206 = vmatprep.subr.mxu0 0.0
    %1207 = vmatpush1.msra.mxu0 0.0
    %1208 = vmatprep.subr.mxu0 0.0
    %1209 = vmatpush1.msra.mxu0 0.0
    %1210 = vmatprep.subr.mxu0 0.0
    %1211 = vmatpush1.msra.mxu0 0.0
    %1212 = vmatprep.subr.mxu0 0.0
    %1213 = vmatpush1.msra.mxu0 0.0
    %1214 = vmatprep.subr.mxu0 0.0
    %1215 = vmatpush1.msra.mxu0 0.0
    %1216 = vmatprep.subr.mxu0 0.0
    %1217 = vmatpush1.msra.mxu0 0.0
    %1218 = vmatprep.subr.mxu0 0.0
    %1219 = vmatpush1.msra.mxu0 0.0
    %1220 = vmatprep.subr.mxu0 0.0
    %1221 = vmatpush1.msra.mxu0 0.0
    %1222 = vmatprep.subr.mxu0 0.0
    %1223 = vmatpush1.msra.mxu0 0.0
    %1224 = vmatprep.subr.mxu0 0.0
    %1225 = vmatpush1.msra.mxu0 0.0
    %1226 = vmatprep.subr.mxu0 0.0
    %1227 = vmatpush1.msra.mxu0 0.0
    %1228 = vmatprep.subr.mxu0 0.0
    %1229 = vmatpush1.msra.mxu0 0.0
    %1230 = vmatprep.subr.mxu0 0.0
    %1231 = vmatpush1.msra.mxu0 0.0
    %1232 = vmatprep.subr.mxu0 0.0
    %1233 = vmatpush1.msra.mxu0 0.0
    %1234 = vmatprep.subr.mxu0 0.0
    %1235 = vmatpush1.msra.mxu0 0.0
    %1236 = vmatprep.subr.mxu0 0.0
    %1237 = vmatpush1.msra.mxu0 0.0
    %1238 = vmatprep.subr.mxu0 0.0
    %1239 = vmatpush1.msra.mxu0 0.0
    %1240 = vmatprep.subr.mxu0 0.0
    %1241 = vmatpush1.msra.mxu0 0.0
    %1242 = vmatprep.subr.mxu0 0.0
    %1243 = vmatpush1.msra.mxu0 0.0
    %1244 = vmatprep.subr.mxu0 0.0
    %1245 = vmatpush1.msra.mxu0 0.0
    %1246 = vmatprep.subr.mxu0 0.0
    %1247 = vmatpush1.msra.mxu0 0.0
    %1248 = vmatprep.mubr.f32.mxu0 0.0
    %1249 = vmatmul.mubr.f32.gmra.mrb[0].mxu0 %v1179
    %v1250 = vpop.f32.mrb[0].mxu0
    %v1251 = vadd.f32 0.0, %v1250
    %v1252 = vpop.f32.mrb[0].mxu0
    %1253 = vmatprep.mubr.f32.mxu0 0.0
    %1254 = vmatmul.mubr.f32.gmra.mrb[0].mxu0 %v1182
    %v1255 = vpop.f32.mrb[0].mxu0
    %v1256 = vadd.f32 0.0, %v1255
    %v1257 = vpop.f32.mrb[0].mxu0
    %1258 = vdwg.mxu0
    %1259 = vmatprep.subr.mxu0 0.0
    %1260 = vmatpush1.msra.mxu0 %v306
    %1261 = vmatprep.subr.mxu0 0.0
    %1262 = vmatpush1.msra.mxu0 %v307
    %1263 = vmatprep.subr.mxu0 0.0
    %1264 = vmatpush1.msra.mxu0 %v308
    %1265 = vmatprep.subr.mxu0 0.0
    %1266 = vmatpush1.msra.mxu0 %v309
    %1267 = vmatprep.subr.mxu0 0.0
    %1268 = vmatpush1.msra.mxu0 0.0
    %1269 = vmatprep.subr.mxu0 0.0
    %1270 = vmatpush1.msra.mxu0 0.0
    %1271 = vmatprep.subr.mxu0 0.0
    %1272 = vmatpush1.msra.mxu0 0.0
    %1273 = vmatprep.subr.mxu0 0.0
    %1274 = vmatpush1.msra.mxu0 0.0
    %1275 = vmatprep.subr.mxu0 0.0
    %1276 = vmatpush1.msra.mxu0 0.0
    %1277 = vmatprep.subr.mxu0 0.0
    %1278 = vmatpush1.msra.mxu0 0.0
    %1279 = vmatprep.subr.mxu0 0.0
    %1280 = vmatpush1.msra.mxu0 0.0
    %1281 = vmatprep.subr.mxu0 0.0
    %1282 = vmatpush1.msra.mxu0 0.0
    %1283 = vmatprep.subr.mxu0 0.0
    %1284 = vmatpush1.msra.mxu0 0.0
    %1285 = vmatprep.subr.mxu0 0.0
    %1286 = vmatpush1.msra.mxu0 0.0
    %1287 = vmatprep.subr.mxu0 0.0
    %1288 = vmatpush1.msra.mxu0 0.0
    %1289 = vmatprep.subr.mxu0 0.0
    %1290 = vmatpush1.msra.mxu0 0.0
    %1291 = vmatprep.subr.mxu0 0.0
    %1292 = vmatpush1.msra.mxu0 0.0
    %1293 = vmatprep.subr.mxu0 0.0
    %1294 = vmatpush1.msra.mxu0 0.0
    %1295 = vmatprep.subr.mxu0 0.0
    %1296 = vmatpush1.msra.mxu0 0.0
    %1297 = vmatprep.subr.mxu0 0.0
    %1298 = vmatpush1.msra.mxu0 0.0
    %1299 = vmatprep.subr.mxu0 0.0
    %1300 = vmatpush1.msra.mxu0 0.0
    %1301 = vmatprep.subr.mxu0 0.0
    %1302 = vmatpush1.msra.mxu0 0.0
    %1303 = vmatprep.subr.mxu0 0.0
    %1304 = vmatpush1.msra.mxu0 0.0
    %1305 = vmatprep.subr.mxu0 0.0
    %1306 = vmatpush1.msra.mxu0 0.0
    %1307 = vmatprep.subr.mxu0 0.0
    %1308 = vmatpush1.msra.mxu0 0.0
    %1309 = vmatprep.subr.mxu0 0.0
    %1310 = vmatpush1.msra.mxu0 0.0
    %1311 = vmatprep.subr.mxu0 0.0
    %1312 = vmatpush1.msra.mxu0 0.0
    %1313 = vmatprep.subr.mxu0 0.0
    %1314 = vmatpush1.msra.mxu0 0.0
    %1315 = vmatprep.subr.mxu0 0.0
    %1316 = vmatpush1.msra.mxu0 0.0
    %1317 = vmatprep.subr.mxu0 0.0
    %1318 = vmatpush1.msra.mxu0 0.0
    %1319 = vmatprep.subr.mxu0 0.0
    %1320 = vmatpush1.msra.mxu0 0.0
    %1321 = vmatprep.subr.mxu0 0.0
    %1322 = vmatpush1.msra.mxu0 0.0
    %1323 = vmatprep.mubr.f32.mxu0 0.0
    %1324 = vmatmul.mubr.f32.gmra.mrb[0].mxu0 %v1179
    %v1325 = vpop.f32.mrb[0].mxu0
    %v1326 = vadd.f32 0.0, %v1325
    %v1327 = vpop.f32.mrb[0].mxu0
    %1328 = vmatprep.mubr.f32.mxu0 0.0
    %1329 = vmatmul.mubr.f32.gmra.mrb[0].mxu0 %v1182
    %v1330 = vpop.f32.mrb[0].mxu0
    %v1331 = vadd.f32 0.0, %v1330
    %v1332 = vpop.f32.mrb[0].mxu0
    %1333 = vdwg.mxu0
    %v1335 = vsel %vm1057, %v1251, 0
    %v1338 = vsel %vm1057, %v1256, 0
    %v1341 = vsel %vm1057, %v1092, 0
    %v1344 = vsel %vm1057, %v1093, 0
    %v1347 = vsel %vm1057, %v1094, 0
    %1349 = vmatprep.subr.mxu0 0.0
    %1350 = vmatpush1.xpose.msra.mxu0 %v1341
    %1351 = vmatprep.subr.mxu0 0.0
    %1352 = vmatpush1.xpose.msra.mxu0 %v1344
    %1353 = vmatprep.subr.mxu0 0.0
    %1354 = vmatpush1.xpose.msra.mxu0 %v1347
    %1355 = vmatprep.subr.mxu0 0.0
    %1356 = vmatpush1.xpose.msra.mxu0 0.0
    %1357 = vmatprep.subr.mxu0 0.0
    %1358 = vmatpush1.xpose.msra.mxu0 0.0
    %1359 = vmatprep.subr.mxu0 0.0
    %1360 = vmatpush1.xpose.msra.mxu0 0.0
    %1361 = vmatprep.subr.mxu0 0.0
    %1362 = vmatpush1.xpose.msra.mxu0 0.0
    %1363 = vmatprep.subr.mxu0 0.0
    %1364 = vmatpush1.xpose.msra.mxu0 0.0
    %1365 = vmatprep.subr.mxu0 0.0
    %1366 = vmatpush1.xpose.msra.mxu0 0.0
    %1367 = vmatprep.subr.mxu0 0.0
    %1368 = vmatpush1.xpose.msra.mxu0 0.0
    %1369 = vmatprep.subr.mxu0 0.0
    %1370 = vmatpush1.xpose.msra.mxu0 0.0
    %1371 = vmatprep.subr.mxu0 0.0
    %1372 = vmatpush1.xpose.msra.mxu0 0.0
    %1373 = vmatprep.subr.mxu0 0.0
    %1374 = vmatpush1.xpose.msra.mxu0 0.0
    %1375 = vmatprep.subr.mxu0 0.0
    %1376 = vmatpush1.xpose.msra.mxu0 0.0
    %1377 = vmatprep.subr.mxu0 0.0
    %1378 = vmatpush1.xpose.msra.mxu0 0.0
    %1379 = vmatprep.subr.mxu0 0.0
    %1380 = vmatpush1.xpose.msra.mxu0 0.0
    %1381 = vmatprep.subr.mxu0 0.0
    %1382 = vmatpush1.xpose.msra.mxu0 0.0
    %1383 = vmatprep.subr.mxu0 0.0
    %1384 = vmatpush1.xpose.msra.mxu0 0.0
    %1385 = vmatprep.subr.mxu0 0.0
    %1386 = vmatpush1.xpose.msra.mxu0 0.0
    %1387 = vmatprep.subr.mxu0 0.0
    %1388 = vmatpush1.xpose.msra.mxu0 0.0
    %1389 = vmatprep.subr.mxu0 0.0
    %1390 = vmatpush1.xpose.msra.mxu0 0.0
    %1391 = vmatprep.subr.mxu0 0.0
    %1392 = vmatpush1.xpose.msra.mxu0 0.0
    %1393 = vmatprep.subr.mxu0 0.0
    %1394 = vmatpush1.xpose.msra.mxu0 0.0
    %1395 = vmatprep.subr.mxu0 0.0
    %1396 = vmatpush1.xpose.msra.mxu0 0.0
    %1397 = vmatprep.subr.mxu0 0.0
    %1398 = vmatpush1.xpose.msra.mxu0 0.0
    %1399 = vmatprep.subr.mxu0 0.0
    %1400 = vmatpush1.xpose.msra.mxu0 0.0
    %1401 = vmatprep.subr.mxu0 0.0
    %1402 = vmatpush1.xpose.msra.mxu0 0.0
    %1403 = vmatprep.subr.mxu0 0.0
    %1404 = vmatpush1.xpose.msra.mxu0 0.0
    %1405 = vmatprep.subr.mxu0 0.0
    %1406 = vmatpush1.xpose.msra.mxu0 0.0
    %1407 = vmatprep.subr.mxu0 0.0
    %1408 = vmatpush1.xpose.msra.mxu0 0.0
    %1409 = vmatprep.subr.mxu0 0.0
    %1410 = vmatpush1.xpose.msra.mxu0 0.0
    %1411 = vmatprep.subr.mxu0 0.0
    %1412 = vmatpush1.xpose.msra.mxu0 0.0
    %1413 = vmatprep.mubr.f32.mxu0 0.0
    %1414 = vmatmul.mubr.f32.gmra.mrb[0].mxu0 %v1335
    %v1415 = vpop.f32.mrb[0].mxu0
    %v1416 = vadd.f32 0.0, %v1415
    %v1417 = vpop.f32.mrb[0].mxu0
    %1418 = vmatprep.mubr.f32.mxu0 0.0
    %1419 = vmatmul.mubr.f32.gmra.mrb[0].mxu0 %v1338
    %v1420 = vpop.f32.mrb[0].mxu0
    %v1421 = vadd.f32 0.0, %v1420
    %v1422 = vpop.f32.mrb[0].mxu0
    %1423 = vdwg.mxu0
    %v1425 = vsel %vm1057, %v1326, 0
    %v1428 = vsel %vm1057, %v1331, 0
    %1430 = vmatprep.subr.mxu0 0.0
    %1431 = vmatpush1.xpose.msra.mxu0 %v1341
    %1432 = vmatprep.subr.mxu0 0.0
    %1433 = vmatpush1.xpose.msra.mxu0 %v1344
    %1434 = vmatprep.subr.mxu0 0.0
    %1435 = vmatpush1.xpose.msra.mxu0 %v1347
    %1436 = vmatprep.subr.mxu0 0.0
    %1437 = vmatpush1.xpose.msra.mxu0 0.0
    %1438 = vmatprep.subr.mxu0 0.0
    %1439 = vmatpush1.xpose.msra.mxu0 0.0
    %1440 = vmatprep.subr.mxu0 0.0
    %1441 = vmatpush1.xpose.msra.mxu0 0.0
    %1442 = vmatprep.subr.mxu0 0.0
    %1443 = vmatpush1.xpose.msra.mxu0 0.0
    %1444 = vmatprep.subr.mxu0 0.0
    %1445 = vmatpush1.xpose.msra.mxu0 0.0
    %1446 = vmatprep.subr.mxu0 0.0
    %1447 = vmatpush1.xpose.msra.mxu0 0.0
    %1448 = vmatprep.subr.mxu0 0.0
    %1449 = vmatpush1.xpose.msra.mxu0 0.0
    %1450 = vmatprep.subr.mxu0 0.0
    %1451 = vmatpush1.xpose.msra.mxu0 0.0
    %1452 = vmatprep.subr.mxu0 0.0
    %1453 = vmatpush1.xpose.msra.mxu0 0.0
    %1454 = vmatprep.subr.mxu0 0.0
    %1455 = vmatpush1.xpose.msra.mxu0 0.0
    %1456 = vmatprep.subr.mxu0 0.0
    %1457 = vmatpush1.xpose.msra.mxu0 0.0
    %1458 = vmatprep.subr.mxu0 0.0
    %1459 = vmatpush1.xpose.msra.mxu0 0.0
    %1460 = vmatprep.subr.mxu0 0.0
    %1461 = vmatpush1.xpose.msra.mxu0 0.0
    %1462 = vmatprep.subr.mxu0 0.0
    %1463 = vmatpush1.xpose.msra.mxu0 0.0
    %1464 = vmatprep.subr.mxu0 0.0
    %1465 = vmatpush1.xpose.msra.mxu0 0.0
    %1466 = vmatprep.subr.mxu0 0.0
    %1467 = vmatpush1.xpose.msra.mxu0 0.0
    %1468 = vmatprep.subr.mxu0 0.0
    %1469 = vmatpush1.xpose.msra.mxu0 0.0
    %1470 = vmatprep.subr.mxu0 0.0
    %1471 = vmatpush1.xpose.msra.mxu0 0.0
    %1472 = vmatprep.subr.mxu0 0.0
    %1473 = vmatpush1.xpose.msra.mxu0 0.0
    %1474 = vmatprep.subr.mxu0 0.0
    %1475 = vmatpush1.xpose.msra.mxu0 0.0
    %1476 = vmatprep.subr.mxu0 0.0
    %1477 = vmatpush1.xpose.msra.mxu0 0.0
    %1478 = vmatprep.subr.mxu0 0.0
    %1479 = vmatpush1.xpose.msra.mxu0 0.0
    %1480 = vmatprep.subr.mxu0 0.0
    %1481 = vmatpush1.xpose.msra.mxu0 0.0
    %1482 = vmatprep.subr.mxu0 0.0
    %1483 = vmatpush1.xpose.msra.mxu0 0.0
    %1484 = vmatprep.subr.mxu0 0.0
    %1485 = vmatpush1.xpose.msra.mxu0 0.0
    %1486 = vmatprep.subr.mxu0 0.0
    %1487 = vmatpush1.xpose.msra.mxu0 0.0
    %1488 = vmatprep.subr.mxu0 0.0
    %1489 = vmatpush1.xpose.msra.mxu0 0.0
    %1490 = vmatprep.subr.mxu0 0.0
    %1491 = vmatpush1.xpose.msra.mxu0 0.0
    %1492 = vmatprep.subr.mxu0 0.0
    %1493 = vmatpush1.xpose.msra.mxu0 0.0
    %1494 = vmatprep.mubr.f32.mxu0 0.0
    %1495 = vmatmul.mubr.f32.gmra.mrb[0].mxu0 %v1425
    %v1496 = vpop.f32.mrb[0].mxu0
    %v1497 = vadd.f32 0.0, %v1496
    %v1498 = vpop.f32.mrb[0].mxu0
    %1499 = vmatprep.mubr.f32.mxu0 0.0
    %1500 = vmatmul.mubr.f32.gmra.mrb[0].mxu0 %v1428
    %v1501 = vpop.f32.mrb[0].mxu0
    %v1502 = vadd.f32 0.0, %v1501
    %v1503 = vpop.f32.mrb[0].mxu0
    %1504 = vdwg.mxu0
    %v1506 = vsel %vm1057, %v1497, 0
    %v1509 = vsel %vm1057, %v1502, 0
    %vm1511 = vcmask 1040384
    %v1513 = vsel %vm1511, %v315, 0
    %1515 = vmatprep.subr.mxu0 0.0
    %1516 = vmatpush1.msra.mxu0 %v313
    %1517 = vmatprep.subr.mxu0 0.0
    %1518 = vmatpush1.msra.mxu0 %v314
    %1519 = vmatprep.subr.mxu0 0.0
    %1520 = vmatpush1.msra.mxu0 %v1513
    %1521 = vmatprep.subr.mxu0 0.0
    %1522 = vmatpush1.msra.mxu0 0.0
    %1523 = vmatprep.subr.mxu0 0.0
    %1524 = vmatpush1.msra.mxu0 0.0
    %1525 = vmatprep.subr.mxu0 0.0
    %1526 = vmatpush1.msra.mxu0 0.0
    %1527 = vmatprep.subr.mxu0 0.0
    %1528 = vmatpush1.msra.mxu0 0.0
    %1529 = vmatprep.subr.mxu0 0.0
    %1530 = vmatpush1.msra.mxu0 0.0
    %1531 = vmatprep.subr.mxu0 0.0
    %1532 = vmatpush1.msra.mxu0 0.0
    %1533 = vmatprep.subr.mxu0 0.0
    %1534 = vmatpush1.msra.mxu0 0.0
    %1535 = vmatprep.subr.mxu0 0.0
    %1536 = vmatpush1.msra.mxu0 0.0
    %1537 = vmatprep.subr.mxu0 0.0
    %1538 = vmatpush1.msra.mxu0 0.0
    %1539 = vmatprep.subr.mxu0 0.0
    %1540 = vmatpush1.msra.mxu0 0.0
    %1541 = vmatprep.subr.mxu0 0.0
    %1542 = vmatpush1.msra.mxu0 0.0
    %1543 = vmatprep.subr.mxu0 0.0
    %1544 = vmatpush1.msra.mxu0 0.0
    %1545 = vmatprep.subr.mxu0 0.0
    %1546 = vmatpush1.msra.mxu0 0.0
    %1547 = vmatprep.subr.mxu0 0.0
    %1548 = vmatpush1.msra.mxu0 0.0
    %1549 = vmatprep.subr.mxu0 0.0
    %1550 = vmatpush1.msra.mxu0 0.0
    %1551 = vmatprep.subr.mxu0 0.0
    %1552 = vmatpush1.msra.mxu0 0.0
    %1553 = vmatprep.subr.mxu0 0.0
    %1554 = vmatpush1.msra.mxu0 0.0
    %1555 = vmatprep.subr.mxu0 0.0
    %1556 = vmatpush1.msra.mxu0 0.0
    %1557 = vmatprep.subr.mxu0 0.0
    %1558 = vmatpush1.msra.mxu0 0.0
    %1559 = vmatprep.subr.mxu0 0.0
    %1560 = vmatpush1.msra.mxu0 0.0
    %1561 = vmatprep.subr.mxu0 0.0
    %1562 = vmatpush1.msra.mxu0 0.0
    %1563 = vmatprep.subr.mxu0 0.0
    %1564 = vmatpush1.msra.mxu0 0.0
    %1565 = vmatprep.subr.mxu0 0.0
    %1566 = vmatpush1.msra.mxu0 0.0
    %1567 = vmatprep.subr.mxu0 0.0
    %1568 = vmatpush1.msra.mxu0 0.0
    %1569 = vmatprep.subr.mxu0 0.0
    %1570 = vmatpush1.msra.mxu0 0.0
    %1571 = vmatprep.subr.mxu0 0.0
    %1572 = vmatpush1.msra.mxu0 0.0
    %1573 = vmatprep.subr.mxu0 0.0
    %1574 = vmatpush1.msra.mxu0 0.0
    %1575 = vmatprep.subr.mxu0 0.0
    %1576 = vmatpush1.msra.mxu0 0.0
    %1577 = vmatprep.subr.mxu0 0.0
    %1578 = vmatpush1.msra.mxu0 0.0
    %1579 = vmatprep.mubr.f32.mxu0 0.0
    %1580 = vmatmul.mubr.f32.gmra.mrb[0].mxu0 %v1506
    %v1581 = vpop.f32.mrb[0].mxu0
    %v1582 = vadd.f32 0.0, %v1581
    %v1583 = vpop.f32.mrb[0].mxu0
    %1584 = vmatprep.mubr.f32.mxu0 0.0
    %1585 = vmatmul.mubr.f32.gmra.mrb[0].mxu0 %v1509
    %v1586 = vpop.f32.mrb[0].mxu0
    %v1587 = vadd.f32 0.0, %v1586
    %v1588 = vpop.f32.mrb[0].mxu0
    %1589 = vdwg.mxu0
    %v1591 = vsel %vm1057, %v1416, 0
    %v1594 = vsel %vm1057, %v1421, 0
    %v1597 = vsel %vm1511, %v312, 0
    %1599 = vmatprep.subr.mxu0 0.0
    %1600 = vmatpush1.msra.mxu0 %v310
    %1601 = vmatprep.subr.mxu0 0.0
    %1602 = vmatpush1.msra.mxu0 %v311
    %1603 = vmatprep.subr.mxu0 0.0
    %1604 = vmatpush1.msra.mxu0 %v1597
    %1605 = vmatprep.subr.mxu0 0.0
    %1606 = vmatpush1.msra.mxu0 0.0
    %1607 = vmatprep.subr.mxu0 0.0
    %1608 = vmatpush1.msra.mxu0 0.0
    %1609 = vmatprep.subr.mxu0 0.0
    %1610 = vmatpush1.msra.mxu0 0.0
    %1611 = vmatprep.subr.mxu0 0.0
    %1612 = vmatpush1.msra.mxu0 0.0
    %1613 = vmatprep.subr.mxu0 0.0
    %1614 = vmatpush1.msra.mxu0 0.0
    %1615 = vmatprep.subr.mxu0 0.0
    %1616 = vmatpush1.msra.mxu0 0.0
    %1617 = vmatprep.subr.mxu0 0.0
    %1618 = vmatpush1.msra.mxu0 0.0
    %1619 = vmatprep.subr.mxu0 0.0
    %1620 = vmatpush1.msra.mxu0 0.0
    %1621 = vmatprep.subr.mxu0 0.0
    %1622 = vmatpush1.msra.mxu0 0.0
    %1623 = vmatprep.subr.mxu0 0.0
    %1624 = vmatpush1.msra.mxu0 0.0
    %1625 = vmatprep.subr.mxu0 0.0
    %1626 = vmatpush1.msra.mxu0 0.0
    %1627 = vmatprep.subr.mxu0 0.0
    %1628 = vmatpush1.msra.mxu0 0.0
    %1629 = vmatprep.subr.mxu0 0.0
    %1630 = vmatpush1.msra.mxu0 0.0
    %1631 = vmatprep.subr.mxu0 0.0
    %1632 = vmatpush1.msra.mxu0 0.0
    %1633 = vmatprep.subr.mxu0 0.0
    %1634 = vmatpush1.msra.mxu0 0.0
    %1635 = vmatprep.subr.mxu0 0.0
    %1636 = vmatpush1.msra.mxu0 0.0
    %1637 = vmatprep.subr.mxu0 0.0
    %1638 = vmatpush1.msra.mxu0 0.0
    %1639 = vmatprep.subr.mxu0 0.0
    %1640 = vmatpush1.msra.mxu0 0.0
    %1641 = vmatprep.subr.mxu0 0.0
    %1642 = vmatpush1.msra.mxu0 0.0
    %1643 = vmatprep.subr.mxu0 0.0
    %1644 = vmatpush1.msra.mxu0 0.0
    %1645 = vmatprep.subr.mxu0 0.0
    %1646 = vmatpush1.msra.mxu0 0.0
    %1647 = vmatprep.subr.mxu0 0.0
    %1648 = vmatpush1.msra.mxu0 0.0
    %1649 = vmatprep.subr.mxu0 0.0
    %1650 = vmatpush1.msra.mxu0 0.0
    %1651 = vmatprep.subr.mxu0 0.0
    %1652 = vmatpush1.msra.mxu0 0.0
    %1653 = vmatprep.subr.mxu0 0.0
    %1654 = vmatpush1.msra.mxu0 0.0
    %1655 = vmatprep.subr.mxu0 0.0
    %1656 = vmatpush1.msra.mxu0 0.0
    %1657 = vmatprep.subr.mxu0 0.0
    %1658 = vmatpush1.msra.mxu0 0.0
    %1659 = vmatprep.subr.mxu0 0.0
    %1660 = vmatpush1.msra.mxu0 0.0
    %1661 = vmatprep.subr.mxu0 0.0
    %1662 = vmatpush1.msra.mxu0 0.0
    %1663 = vmatprep.mubr.f32.mxu0 0.0
    %1664 = vmatmul.mubr.f32.gmra.mrb[0].mxu0 %v1591
    %v1665 = vpop.f32.mrb[0].mxu0
    %v1666 = vadd.f32 %v1582, %v1665
    %v1667 = vpop.f32.mrb[0].mxu0
    %1668 = vmatprep.mubr.f32.mxu0 0.0
    %1669 = vmatmul.mubr.f32.gmra.mrb[0].mxu0 %v1594
    %v1670 = vpop.f32.mrb[0].mxu0
    %v1671 = vadd.f32 %v1587, %v1670
    %v1672 = vpop.f32.mrb[0].mxu0
    %1673 = vdwg.mxu0
    %s1674 = scalar_lea.vmem %s0, 16
    %v1675 = vld [vmem:[%s1674] sm:$0xff]
    %v1676 = vld [vmem:[%s1674 + $0x8] sm:$0x1f]
    %v1678 = vsel %vm318, %v1675, 0
    %v1681 = vsel %vm318, %v1676, 0
    %1683 = vmatprep.subr.mxu0 0.0
    %1684 = vmatpush1.xpose.msra.mxu0 %v1678
    %1685 = vmatprep.subr.mxu0 0.0
    %1686 = vmatpush1.xpose.msra.mxu0 %v1681
    %1687 = vmatprep.subr.mxu0 0.0
    %1688 = vmatpush1.xpose.msra.mxu0 0.0
    %1689 = vmatprep.subr.mxu0 0.0
    %1690 = vmatpush1.xpose.msra.mxu0 0.0
    %1691 = vmatprep.subr.mxu0 0.0
    %1692 = vmatpush1.xpose.msra.mxu0 0.0
    %1693 = vmatprep.subr.mxu0 0.0
    %1694 = vmatpush1.xpose.msra.mxu0 0.0
    %1695 = vmatprep.subr.mxu0 0.0
    %1696 = vmatpush1.xpose.msra.mxu0 0.0
    %1697 = vmatprep.subr.mxu0 0.0
    %1698 = vmatpush1.xpose.msra.mxu0 0.0
    %1699 = vmatprep.subr.mxu0 0.0
    %1700 = vmatpush1.xpose.msra.mxu0 0.0
    %1701 = vmatprep.subr.mxu0 0.0
    %1702 = vmatpush1.xpose.msra.mxu0 0.0
    %1703 = vmatprep.subr.mxu0 0.0
    %1704 = vmatpush1.xpose.msra.mxu0 0.0
    %1705 = vmatprep.subr.mxu0 0.0
    %1706 = vmatpush1.xpose.msra.mxu0 0.0
    %1707 = vmatprep.subr.mxu0 0.0
    %1708 = vmatpush1.xpose.msra.mxu0 0.0
    %1709 = vmatprep.subr.mxu0 0.0
    %1710 = vmatpush1.xpose.msra.mxu0 0.0
    %1711 = vmatprep.subr.mxu0 0.0
    %1712 = vmatpush1.xpose.msra.mxu0 0.0
    %1713 = vmatprep.subr.mxu0 0.0
    %1714 = vmatpush1.xpose.msra.mxu0 0.0
    %1715 = vmatprep.subr.mxu0 0.0
    %1716 = vmatpush1.xpose.msra.mxu0 0.0
    %1717 = vmatprep.subr.mxu0 0.0
    %1718 = vmatpush1.xpose.msra.mxu0 0.0
    %1719 = vmatprep.subr.mxu0 0.0
    %1720 = vmatpush1.xpose.msra.mxu0 0.0
    %1721 = vmatprep.subr.mxu0 0.0
    %1722 = vmatpush1.xpose.msra.mxu0 0.0
    %1723 = vmatprep.subr.mxu0 0.0
    %1724 = vmatpush1.xpose.msra.mxu0 0.0
    %1725 = vmatprep.subr.mxu0 0.0
    %1726 = vmatpush1.xpose.msra.mxu0 0.0
    %1727 = vmatprep.subr.mxu0 0.0
    %1728 = vmatpush1.xpose.msra.mxu0 0.0
    %1729 = vmatprep.subr.mxu0 0.0
    %1730 = vmatpush1.xpose.msra.mxu0 0.0
    %1731 = vmatprep.subr.mxu0 0.0
    %1732 = vmatpush1.xpose.msra.mxu0 0.0
    %1733 = vmatprep.subr.mxu0 0.0
    %1734 = vmatpush1.xpose.msra.mxu0 0.0
    %1735 = vmatprep.subr.mxu0 0.0
    %1736 = vmatpush1.xpose.msra.mxu0 0.0
    %1737 = vmatprep.subr.mxu0 0.0
    %1738 = vmatpush1.xpose.msra.mxu0 0.0
    %1739 = vmatprep.subr.mxu0 0.0
    %1740 = vmatpush1.xpose.msra.mxu0 0.0
    %1741 = vmatprep.subr.mxu0 0.0
    %1742 = vmatpush1.xpose.msra.mxu0 0.0
    %1743 = vmatprep.subr.mxu0 0.0
    %1744 = vmatpush1.xpose.msra.mxu0 0.0
    %1745 = vmatprep.subr.mxu0 0.0
    %1746 = vmatpush1.xpose.msra.mxu0 0.0
    %1747 = vmatprep.mubr.f32.mxu0 0.0
    %1748 = vmatmul.mubr.f32.gmra.mrb[0].mxu0 %v320
    %v1749 = vpop.f32.mrb[0].mxu0
    %v1750 = vadd.f32 0.0, %v1749
    %v1751 = vpop.f32.mrb[0].mxu0
    %1752 = vmatprep.mubr.f32.mxu0 0.0
    %1753 = vmatmul.mubr.f32.gmra.mrb[0].mxu0 %v323
    %v1754 = vpop.f32.mrb[0].mxu0
    %v1755 = vadd.f32 0.0, %v1754
    %v1756 = vpop.f32.mrb[0].mxu0
    %1757 = vmatprep.mubr.f32.mxu0 0.0
    %1758 = vmatmul.mubr.f32.gmra.mrb[0].mxu0 %v326
    %v1759 = vpop.f32.mrb[0].mxu0
    %v1760 = vadd.f32 0.0, %v1759
    %v1761 = vpop.f32.mrb[0].mxu0
    %1762 = vdwg.mxu0
    %1763 = vmatprep.subr.mxu0 0.0
    %1764 = vmatpush1.xpose.msra.mxu0 %v1678
    %1765 = vmatprep.subr.mxu0 0.0
    %1766 = vmatpush1.xpose.msra.mxu0 %v1681
    %1767 = vmatprep.subr.mxu0 0.0
    %1768 = vmatpush1.xpose.msra.mxu0 0.0
    %1769 = vmatprep.subr.mxu0 0.0
    %1770 = vmatpush1.xpose.msra.mxu0 0.0
    %1771 = vmatprep.subr.mxu0 0.0
    %1772 = vmatpush1.xpose.msra.mxu0 0.0
    %1773 = vmatprep.subr.mxu0 0.0
    %1774 = vmatpush1.xpose.msra.mxu0 0.0
    %1775 = vmatprep.subr.mxu0 0.0
    %1776 = vmatpush1.xpose.msra.mxu0 0.0
    %1777 = vmatprep.subr.mxu0 0.0
    %1778 = vmatpush1.xpose.msra.mxu0 0.0
    %1779 = vmatprep.subr.mxu0 0.0
    %1780 = vmatpush1.xpose.msra.mxu0 0.0
    %1781 = vmatprep.subr.mxu0 0.0
    %1782 = vmatpush1.xpose.msra.mxu0 0.0
    %1783 = vmatprep.subr.mxu0 0.0
    %1784 = vmatpush1.xpose.msra.mxu0 0.0
    %1785 = vmatprep.subr.mxu0 0.0
    %1786 = vmatpush1.xpose.msra.mxu0 0.0
    %1787 = vmatprep.subr.mxu0 0.0
    %1788 = vmatpush1.xpose.msra.mxu0 0.0
    %1789 = vmatprep.subr.mxu0 0.0
    %1790 = vmatpush1.xpose.msra.mxu0 0.0
    %1791 = vmatprep.subr.mxu0 0.0
    %1792 = vmatpush1.xpose.msra.mxu0 0.0
    %1793 = vmatprep.subr.mxu0 0.0
    %1794 = vmatpush1.xpose.msra.mxu0 0.0
    %1795 = vmatprep.subr.mxu0 0.0
    %1796 = vmatpush1.xpose.msra.mxu0 0.0
    %1797 = vmatprep.subr.mxu0 0.0
    %1798 = vmatpush1.xpose.msra.mxu0 0.0
    %1799 = vmatprep.subr.mxu0 0.0
    %1800 = vmatpush1.xpose.msra.mxu0 0.0
    %1801 = vmatprep.subr.mxu0 0.0
    %1802 = vmatpush1.xpose.msra.mxu0 0.0
    %1803 = vmatprep.subr.mxu0 0.0
    %1804 = vmatpush1.xpose.msra.mxu0 0.0
    %1805 = vmatprep.subr.mxu0 0.0
    %1806 = vmatpush1.xpose.msra.mxu0 0.0
    %1807 = vmatprep.subr.mxu0 0.0
    %1808 = vmatpush1.xpose.msra.mxu0 0.0
    %1809 = vmatprep.subr.mxu0 0.0
    %1810 = vmatpush1.xpose.msra.mxu0 0.0
    %1811 = vmatprep.subr.mxu0 0.0
    %1812 = vmatpush1.xpose.msra.mxu0 0.0
    %1813 = vmatprep.subr.mxu0 0.0
    %1814 = vmatpush1.xpose.msra.mxu0 0.0
    %1815 = vmatprep.subr.mxu0 0.0
    %1816 = vmatpush1.xpose.msra.mxu0 0.0
    %1817 = vmatprep.subr.mxu0 0.0
    %1818 = vmatpush1.xpose.msra.mxu0 0.0
    %1819 = vmatprep.subr.mxu0 0.0
    %1820 = vmatpush1.xpose.msra.mxu0 0.0
    %1821 = vmatprep.subr.mxu0 0.0
    %1822 = vmatpush1.xpose.msra.mxu0 0.0
    %1823 = vmatprep.subr.mxu0 0.0
    %1824 = vmatpush1.xpose.msra.mxu0 0.0
    %1825 = vmatprep.subr.mxu0 0.0
    %1826 = vmatpush1.xpose.msra.mxu0 0.0
    %1827 = vmatprep.mubr.f32.mxu0 0.0
    %1828 = vmatmul.mubr.f32.gmra.mrb[0].mxu0 %v415
    %v1829 = vpop.f32.mrb[0].mxu0
    %v1830 = vadd.f32 0.0, %v1829
    %v1831 = vpop.f32.mrb[0].mxu0
    %1832 = vmatprep.mubr.f32.mxu0 0.0
    %1833 = vmatmul.mubr.f32.gmra.mrb[0].mxu0 %v418
    %v1834 = vpop.f32.mrb[0].mxu0
    %v1835 = vadd.f32 0.0, %v1834
    %v1836 = vpop.f32.mrb[0].mxu0
    %1837 = vmatprep.mubr.f32.mxu0 0.0
    %1838 = vmatmul.mubr.f32.gmra.mrb[0].mxu0 %v421
    %v1839 = vpop.f32.mrb[0].mxu0
    %v1840 = vadd.f32 0.0, %v1839
    %v1841 = vpop.f32.mrb[0].mxu0
    %1842 = vdwg.mxu0
    %v1844 = vsel %vm503, %v1750, 0
    %v1847 = vsel %vm503, %v1755, 0
    %v1850 = vsel %vm503, %v1760, 0
    %1852 = vmatprep.subr.mxu0 0.0
    %1853 = vmatpush1.msra.mxu0 %v298
    %1854 = vmatprep.subr.mxu0 0.0
    %1855 = vmatpush1.msra.mxu0 %v515
    %1856 = vmatprep.subr.mxu0 0.0
    %1857 = vmatpush1.msra.mxu0 0.0
    %1858 = vmatprep.subr.mxu0 0.0
    %1859 = vmatpush1.msra.mxu0 0.0
    %1860 = vmatprep.subr.mxu0 0.0
    %1861 = vmatpush1.msra.mxu0 0.0
    %1862 = vmatprep.subr.mxu0 0.0
    %1863 = vmatpush1.msra.mxu0 0.0
    %1864 = vmatprep.subr.mxu0 0.0
    %1865 = vmatpush1.msra.mxu0 0.0
    %1866 = vmatprep.subr.mxu0 0.0
    %1867 = vmatpush1.msra.mxu0 0.0
    %1868 = vmatprep.subr.mxu0 0.0
    %1869 = vmatpush1.msra.mxu0 0.0
    %1870 = vmatprep.subr.mxu0 0.0
    %1871 = vmatpush1.msra.mxu0 0.0
    %1872 = vmatprep.subr.mxu0 0.0
    %1873 = vmatpush1.msra.mxu0 0.0
    %1874 = vmatprep.subr.mxu0 0.0
    %1875 = vmatpush1.msra.mxu0 0.0
    %1876 = vmatprep.subr.mxu0 0.0
    %1877 = vmatpush1.msra.mxu0 0.0
    %1878 = vmatprep.subr.mxu0 0.0
    %1879 = vmatpush1.msra.mxu0 0.0
    %1880 = vmatprep.subr.mxu0 0.0
    %1881 = vmatpush1.msra.mxu0 0.0
    %1882 = vmatprep.subr.mxu0 0.0
    %1883 = vmatpush1.msra.mxu0 0.0
    %1884 = vmatprep.subr.mxu0 0.0
    %1885 = vmatpush1.msra.mxu0 0.0
    %1886 = vmatprep.subr.mxu0 0.0
    %1887 = vmatpush1.msra.mxu0 0.0
    %1888 = vmatprep.subr.mxu0 0.0
    %1889 = vmatpush1.msra.mxu0 0.0
    %1890 = vmatprep.subr.mxu0 0.0
    %1891 = vmatpush1.msra.mxu0 0.0
    %1892 = vmatprep.subr.mxu0 0.0
    %1893 = vmatpush1.msra.mxu0 0.0
    %1894 = vmatprep.subr.mxu0 0.0
    %1895 = vmatpush1.msra.mxu0 0.0
    %1896 = vmatprep.subr.mxu0 0.0
    %1897 = vmatpush1.msra.mxu0 0.0
    %1898 = vmatprep.subr.mxu0 0.0
    %1899 = vmatpush1.msra.mxu0 0.0
    %1900 = vmatprep.subr.mxu0 0.0
    %1901 = vmatpush1.msra.mxu0 0.0
    %1902 = vmatprep.subr.mxu0 0.0
    %1903 = vmatpush1.msra.mxu0 0.0
    %1904 = vmatprep.subr.mxu0 0.0
    %1905 = vmatpush1.msra.mxu0 0.0
    %1906 = vmatprep.subr.mxu0 0.0
    %1907 = vmatpush1.msra.mxu0 0.0
    %1908 = vmatprep.subr.mxu0 0.0
    %1909 = vmatpush1.msra.mxu0 0.0
    %1910 = vmatprep.subr.mxu0 0.0
    %1911 = vmatpush1.msra.mxu0 0.0
    %1912 = vmatprep.subr.mxu0 0.0
    %1913 = vmatpush1.msra.mxu0 0.0
    %1914 = vmatprep.subr.mxu0 0.0
    %1915 = vmatpush1.msra.mxu0 0.0
    %1916 = vmatprep.mubr.f32.mxu0 0.0
    %1917 = vmatmul.mubr.f32.gmra.mrb[0].mxu0 %v1844
    %v1918 = vpop.f32.mrb[0].mxu0
    %v1919 = vadd.f32 0.0, %v1918
    %v1920 = vpop.f32.mrb[0].mxu0
    %1921 = vmatprep.mubr.f32.mxu0 0.0
    %1922 = vmatmul.mubr.f32.gmra.mrb[0].mxu0 %v1847
    %v1923 = vpop.f32.mrb[0].mxu0
    %v1924 = vadd.f32 0.0, %v1923
    %v1925 = vpop.f32.mrb[0].mxu0
    %1926 = vmatprep.mubr.f32.mxu0 0.0
    %1927 = vmatmul.mubr.f32.gmra.mrb[0].mxu0 %v1850
    %v1928 = vpop.f32.mrb[0].mxu0
    %v1929 = vadd.f32 0.0, %v1928
    %v1930 = vpop.f32.mrb[0].mxu0
    %1931 = vdwg.mxu0
    %v1933 = vsel %vm503, %v1830, 0
    %v1936 = vsel %vm503, %v1835, 0
    %v1939 = vsel %vm503, %v1840, 0
    %1941 = vmatprep.subr.mxu0 0.0
    %1942 = vmatpush1.msra.mxu0 %v298
    %1943 = vmatprep.subr.mxu0 0.0
    %1944 = vmatpush1.msra.mxu0 %v515
    %1945 = vmatprep.subr.mxu0 0.0
    %1946 = vmatpush1.msra.mxu0 0.0
    %1947 = vmatprep.subr.mxu0 0.0
    %1948 = vmatpush1.msra.mxu0 0.0
    %1949 = vmatprep.subr.mxu0 0.0
    %1950 = vmatpush1.msra.mxu0 0.0
    %1951 = vmatprep.subr.mxu0 0.0
    %1952 = vmatpush1.msra.mxu0 0.0
    %1953 = vmatprep.subr.mxu0 0.0
    %1954 = vmatpush1.msra.mxu0 0.0
    %1955 = vmatprep.subr.mxu0 0.0
    %1956 = vmatpush1.msra.mxu0 0.0
    %1957 = vmatprep.subr.mxu0 0.0
    %1958 = vmatpush1.msra.mxu0 0.0
    %1959 = vmatprep.subr.mxu0 0.0
    %1960 = vmatpush1.msra.mxu0 0.0
    %1961 = vmatprep.subr.mxu0 0.0
    %1962 = vmatpush1.msra.mxu0 0.0
    %1963 = vmatprep.subr.mxu0 0.0
    %1964 = vmatpush1.msra.mxu0 0.0
    %1965 = vmatprep.subr.mxu0 0.0
    %1966 = vmatpush1.msra.mxu0 0.0
    %1967 = vmatprep.subr.mxu0 0.0
    %1968 = vmatpush1.msra.mxu0 0.0
    %1969 = vmatprep.subr.mxu0 0.0
    %1970 = vmatpush1.msra.mxu0 0.0
    %1971 = vmatprep.subr.mxu0 0.0
    %1972 = vmatpush1.msra.mxu0 0.0
    %1973 = vmatprep.subr.mxu0 0.0
    %1974 = vmatpush1.msra.mxu0 0.0
    %1975 = vmatprep.subr.mxu0 0.0
    %1976 = vmatpush1.msra.mxu0 0.0
    %1977 = vmatprep.subr.mxu0 0.0
    %1978 = vmatpush1.msra.mxu0 0.0
    %1979 = vmatprep.subr.mxu0 0.0
    %1980 = vmatpush1.msra.mxu0 0.0
    %1981 = vmatprep.subr.mxu0 0.0
    %1982 = vmatpush1.msra.mxu0 0.0
    %1983 = vmatprep.subr.mxu0 0.0
    %1984 = vmatpush1.msra.mxu0 0.0
    %1985 = vmatprep.subr.mxu0 0.0
    %1986 = vmatpush1.msra.mxu0 0.0
    %1987 = vmatprep.subr.mxu0 0.0
    %1988 = vmatpush1.msra.mxu0 0.0
    %1989 = vmatprep.subr.mxu0 0.0
    %1990 = vmatpush1.msra.mxu0 0.0
    %1991 = vmatprep.subr.mxu0 0.0
    %1992 = vmatpush1.msra.mxu0 0.0
    %1993 = vmatprep.subr.mxu0 0.0
    %1994 = vmatpush1.msra.mxu0 0.0
    %1995 = vmatprep.subr.mxu0 0.0
    %1996 = vmatpush1.msra.mxu0 0.0
    %1997 = vmatprep.subr.mxu0 0.0
    %1998 = vmatpush1.msra.mxu0 0.0
    %1999 = vmatprep.subr.mxu0 0.0
    %2000 = vmatpush1.msra.mxu0 0.0
    %2001 = vmatprep.subr.mxu0 0.0
    %2002 = vmatpush1.msra.mxu0 0.0
    %2003 = vmatprep.subr.mxu0 0.0
    %2004 = vmatpush1.msra.mxu0 0.0
    %2005 = vmatprep.mubr.f32.mxu0 0.0
    %2006 = vmatmul.mubr.f32.gmra.mrb[0].mxu0 %v1933
    %v2007 = vpop.f32.mrb[0].mxu0
    %v2008 = vadd.f32 0.0, %v2007
    %v2009 = vpop.f32.mrb[0].mxu0
    %2010 = vmatprep.mubr.f32.mxu0 0.0
    %2011 = vmatmul.mubr.f32.gmra.mrb[0].mxu0 %v1936
    %v2012 = vpop.f32.mrb[0].mxu0
    %v2013 = vadd.f32 0.0, %v2012
    %v2014 = vpop.f32.mrb[0].mxu0
    %2015 = vmatprep.mubr.f32.mxu0 0.0
    %2016 = vmatmul.mubr.f32.gmra.mrb[0].mxu0 %v1939
    %v2017 = vpop.f32.mrb[0].mxu0
    %v2018 = vadd.f32 0.0, %v2017
    %v2019 = vpop.f32.mrb[0].mxu0
    %2020 = vdwg.mxu0
    %v2022 = vsel %vm503, %v1919, 0
    %v2025 = vsel %vm503, %v1924, 0
    %v2028 = vsel %vm503, %v1929, 0
    %2030 = vmatprep.subr.mxu0 0.0
    %2031 = vmatpush1.xpose.msra.mxu0 %v1844
    %2032 = vmatprep.subr.mxu0 0.0
    %2033 = vmatpush1.xpose.msra.mxu0 %v1847
    %2034 = vmatprep.subr.mxu0 0.0
    %2035 = vmatpush1.xpose.msra.mxu0 %v1850
    %2036 = vmatprep.subr.mxu0 0.0
    %2037 = vmatpush1.xpose.msra.mxu0 0.0
    %2038 = vmatprep.subr.mxu0 0.0
    %2039 = vmatpush1.xpose.msra.mxu0 0.0
    %2040 = vmatprep.subr.mxu0 0.0
    %2041 = vmatpush1.xpose.msra.mxu0 0.0
    %2042 = vmatprep.subr.mxu0 0.0
    %2043 = vmatpush1.xpose.msra.mxu0 0.0
    %2044 = vmatprep.subr.mxu0 0.0
    %2045 = vmatpush1.xpose.msra.mxu0 0.0
    %2046 = vmatprep.subr.mxu0 0.0
    %2047 = vmatpush1.xpose.msra.mxu0 0.0
    %2048 = vmatprep.subr.mxu0 0.0
    %2049 = vmatpush1.xpose.msra.mxu0 0.0
    %2050 = vmatprep.subr.mxu0 0.0
    %2051 = vmatpush1.xpose.msra.mxu0 0.0
    %2052 = vmatprep.subr.mxu0 0.0
    %2053 = vmatpush1.xpose.msra.mxu0 0.0
    %2054 = vmatprep.subr.mxu0 0.0
    %2055 = vmatpush1.xpose.msra.mxu0 0.0
    %2056 = vmatprep.subr.mxu0 0.0
    %2057 = vmatpush1.xpose.msra.mxu0 0.0
    %2058 = vmatprep.subr.mxu0 0.0
    %2059 = vmatpush1.xpose.msra.mxu0 0.0
    %2060 = vmatprep.subr.mxu0 0.0
    %2061 = vmatpush1.xpose.msra.mxu0 0.0
    %2062 = vmatprep.subr.mxu0 0.0
    %2063 = vmatpush1.xpose.msra.mxu0 0.0
    %2064 = vmatprep.subr.mxu0 0.0
    %2065 = vmatpush1.xpose.msra.mxu0 0.0
    %2066 = vmatprep.subr.mxu0 0.0
    %2067 = vmatpush1.xpose.msra.mxu0 0.0
    %2068 = vmatprep.subr.mxu0 0.0
    %2069 = vmatpush1.xpose.msra.mxu0 0.0
    %2070 = vmatprep.subr.mxu0 0.0
    %2071 = vmatpush1.xpose.msra.mxu0 0.0
    %2072 = vmatprep.subr.mxu0 0.0
    %2073 = vmatpush1.xpose.msra.mxu0 0.0
    %2074 = vmatprep.subr.mxu0 0.0
    %2075 = vmatpush1.xpose.msra.mxu0 0.0
    %2076 = vmatprep.subr.mxu0 0.0
    %2077 = vmatpush1.xpose.msra.mxu0 0.0
    %2078 = vmatprep.subr.mxu0 0.0
    %2079 = vmatpush1.xpose.msra.mxu0 0.0
    %2080 = vmatprep.subr.mxu0 0.0
    %2081 = vmatpush1.xpose.msra.mxu0 0.0
    %2082 = vmatprep.subr.mxu0 0.0
    %2083 = vmatpush1.xpose.msra.mxu0 0.0
    %2084 = vmatprep.subr.mxu0 0.0
    %2085 = vmatpush1.xpose.msra.mxu0 0.0
    %2086 = vmatprep.subr.mxu0 0.0
    %2087 = vmatpush1.xpose.msra.mxu0 0.0
    %2088 = vmatprep.subr.mxu0 0.0
    %2089 = vmatpush1.xpose.msra.mxu0 0.0
    %2090 = vmatprep.subr.mxu0 0.0
    %2091 = vmatpush1.xpose.msra.mxu0 0.0
    %2092 = vmatprep.subr.mxu0 0.0
    %2093 = vmatpush1.xpose.msra.mxu0 0.0
    %2094 = vmatprep.mubr.f32.mxu0 0.0
    %2095 = vmatmul.mubr.f32.gmra.mrb[0].mxu0 %v2022
    %v2096 = vpop.f32.mrb[0].mxu0
    %v2097 = vadd.f32 0.0, %v2096
    %v2098 = vpop.f32.mrb[0].mxu0
    %2099 = vmatprep.mubr.f32.mxu0 0.0
    %2100 = vmatmul.mubr.f32.gmra.mrb[0].mxu0 %v2025
    %v2101 = vpop.f32.mrb[0].mxu0
    %v2102 = vadd.f32 0.0, %v2101
    %v2103 = vpop.f32.mrb[0].mxu0
    %2104 = vmatprep.mubr.f32.mxu0 0.0
    %2105 = vmatmul.mubr.f32.gmra.mrb[0].mxu0 %v2028
    %v2106 = vpop.f32.mrb[0].mxu0
    %v2107 = vadd.f32 0.0, %v2106
    %v2108 = vpop.f32.mrb[0].mxu0
    %2109 = vdwg.mxu0
    %v2111 = vsel %vm503, %v2008, 0
    %v2114 = vsel %vm503, %v2013, 0
    %v2117 = vsel %vm503, %v2018, 0
    %2119 = vmatprep.subr.mxu0 0.0
    %2120 = vmatpush1.xpose.msra.mxu0 %v1933
    %2121 = vmatprep.subr.mxu0 0.0
    %2122 = vmatpush1.xpose.msra.mxu0 %v1936
    %2123 = vmatprep.subr.mxu0 0.0
    %2124 = vmatpush1.xpose.msra.mxu0 %v1939
    %2125 = vmatprep.subr.mxu0 0.0
    %2126 = vmatpush1.xpose.msra.mxu0 0.0
    %2127 = vmatprep.subr.mxu0 0.0
    %2128 = vmatpush1.xpose.msra.mxu0 0.0
    %2129 = vmatprep.subr.mxu0 0.0
    %2130 = vmatpush1.xpose.msra.mxu0 0.0
    %2131 = vmatprep.subr.mxu0 0.0
    %2132 = vmatpush1.xpose.msra.mxu0 0.0
    %2133 = vmatprep.subr.mxu0 0.0
    %2134 = vmatpush1.xpose.msra.mxu0 0.0
    %2135 = vmatprep.subr.mxu0 0.0
    %2136 = vmatpush1.xpose.msra.mxu0 0.0
    %2137 = vmatprep.subr.mxu0 0.0
    %2138 = vmatpush1.xpose.msra.mxu0 0.0
    %2139 = vmatprep.subr.mxu0 0.0
    %2140 = vmatpush1.xpose.msra.mxu0 0.0
    %2141 = vmatprep.subr.mxu0 0.0
    %2142 = vmatpush1.xpose.msra.mxu0 0.0
    %2143 = vmatprep.subr.mxu0 0.0
    %2144 = vmatpush1.xpose.msra.mxu0 0.0
    %2145 = vmatprep.subr.mxu0 0.0
    %2146 = vmatpush1.xpose.msra.mxu0 0.0
    %2147 = vmatprep.subr.mxu0 0.0
    %2148 = vmatpush1.xpose.msra.mxu0 0.0
    %2149 = vmatprep.subr.mxu0 0.0
    %2150 = vmatpush1.xpose.msra.mxu0 0.0
    %2151 = vmatprep.subr.mxu0 0.0
    %2152 = vmatpush1.xpose.msra.mxu0 0.0
    %2153 = vmatprep.subr.mxu0 0.0
    %2154 = vmatpush1.xpose.msra.mxu0 0.0
    %2155 = vmatprep.subr.mxu0 0.0
    %2156 = vmatpush1.xpose.msra.mxu0 0.0
    %2157 = vmatprep.subr.mxu0 0.0
    %2158 = vmatpush1.xpose.msra.mxu0 0.0
    %2159 = vmatprep.subr.mxu0 0.0
    %2160 = vmatpush1.xpose.msra.mxu0 0.0
    %2161 = vmatprep.subr.mxu0 0.0
    %2162 = vmatpush1.xpose.msra.mxu0 0.0
    %2163 = vmatprep.subr.mxu0 0.0
    %2164 = vmatpush1.xpose.msra.mxu0 0.0
    %2165 = vmatprep.subr.mxu0 0.0
    %2166 = vmatpush1.xpose.msra.mxu0 0.0
    %2167 = vmatprep.subr.mxu0 0.0
    %2168 = vmatpush1.xpose.msra.mxu0 0.0
    %2169 = vmatprep.subr.mxu0 0.0
    %2170 = vmatpush1.xpose.msra.mxu0 0.0
    %2171 = vmatprep.subr.mxu0 0.0
    %2172 = vmatpush1.xpose.msra.mxu0 0.0
    %2173 = vmatprep.subr.mxu0 0.0
    %2174 = vmatpush1.xpose.msra.mxu0 0.0
    %2175 = vmatprep.subr.mxu0 0.0
    %2176 = vmatpush1.xpose.msra.mxu0 0.0
    %2177 = vmatprep.subr.mxu0 0.0
    %2178 = vmatpush1.xpose.msra.mxu0 0.0
    %2179 = vmatprep.subr.mxu0 0.0
    %2180 = vmatpush1.xpose.msra.mxu0 0.0
    %2181 = vmatprep.subr.mxu0 0.0
    %2182 = vmatpush1.xpose.msra.mxu0 0.0
    %2183 = vmatprep.mubr.f32.mxu0 0.0
    %2184 = vmatmul.mubr.f32.gmra.mrb[0].mxu0 %v2111
    %v2185 = vpop.f32.mrb[0].mxu0
    %v2186 = vadd.f32 0.0, %v2185
    %v2187 = vpop.f32.mrb[0].mxu0
    %2188 = vmatprep.mubr.f32.mxu0 0.0
    %2189 = vmatmul.mubr.f32.gmra.mrb[0].mxu0 %v2114
    %v2190 = vpop.f32.mrb[0].mxu0
    %v2191 = vadd.f32 0.0, %v2190
    %v2192 = vpop.f32.mrb[0].mxu0
    %2193 = vmatprep.mubr.f32.mxu0 0.0
    %2194 = vmatmul.mubr.f32.gmra.mrb[0].mxu0 %v2117
    %v2195 = vpop.f32.mrb[0].mxu0
    %v2196 = vadd.f32 0.0, %v2195
    %v2197 = vpop.f32.mrb[0].mxu0
    %2198 = vdwg.mxu0
    %v2199 = vsub.f32 %v2097, %v2186
    %v2200 = vsub.f32 %v2102, %v2191
    %v2201 = vsub.f32 %v2107, %v2196
    %2202 = vmatprep.subr.mxu0 0.0
    %2203 = vmatpush1.xpose.msra.mxu0 %v1844
    %2204 = vmatprep.subr.mxu0 0.0
    %2205 = vmatpush1.xpose.msra.mxu0 %v1847
    %2206 = vmatprep.subr.mxu0 0.0
    %2207 = vmatpush1.xpose.msra.mxu0 %v1850
    %2208 = vmatprep.subr.mxu0 0.0
    %2209 = vmatpush1.xpose.msra.mxu0 0.0
    %2210 = vmatprep.subr.mxu0 0.0
    %2211 = vmatpush1.xpose.msra.mxu0 0.0
    %2212 = vmatprep.subr.mxu0 0.0
    %2213 = vmatpush1.xpose.msra.mxu0 0.0
    %2214 = vmatprep.subr.mxu0 0.0
    %2215 = vmatpush1.xpose.msra.mxu0 0.0
    %2216 = vmatprep.subr.mxu0 0.0
    %2217 = vmatpush1.xpose.msra.mxu0 0.0
    %2218 = vmatprep.subr.mxu0 0.0
    %2219 = vmatpush1.xpose.msra.mxu0 0.0
    %2220 = vmatprep.subr.mxu0 0.0
    %2221 = vmatpush1.xpose.msra.mxu0 0.0
    %2222 = vmatprep.subr.mxu0 0.0
    %2223 = vmatpush1.xpose.msra.mxu0 0.0
    %2224 = vmatprep.subr.mxu0 0.0
    %2225 = vmatpush1.xpose.msra.mxu0 0.0
    %2226 = vmatprep.subr.mxu0 0.0
    %2227 = vmatpush1.xpose.msra.mxu0 0.0
    %2228 = vmatprep.subr.mxu0 0.0
    %2229 = vmatpush1.xpose.msra.mxu0 0.0
    %2230 = vmatprep.subr.mxu0 0.0
    %2231 = vmatpush1.xpose.msra.mxu0 0.0
    %2232 = vmatprep.subr.mxu0 0.0
    %2233 = vmatpush1.xpose.msra.mxu0 0.0
    %2234 = vmatprep.subr.mxu0 0.0
    %2235 = vmatpush1.xpose.msra.mxu0 0.0
    %2236 = vmatprep.subr.mxu0 0.0
    %2237 = vmatpush1.xpose.msra.mxu0 0.0
    %2238 = vmatprep.subr.mxu0 0.0
    %2239 = vmatpush1.xpose.msra.mxu0 0.0
    %2240 = vmatprep.subr.mxu0 0.0
    %2241 = vmatpush1.xpose.msra.mxu0 0.0
    %2242 = vmatprep.subr.mxu0 0.0
    %2243 = vmatpush1.xpose.msra.mxu0 0.0
    %2244 = vmatprep.subr.mxu0 0.0
    %2245 = vmatpush1.xpose.msra.mxu0 0.0
    %2246 = vmatprep.subr.mxu0 0.0
    %2247 = vmatpush1.xpose.msra.mxu0 0.0
    %2248 = vmatprep.subr.mxu0 0.0
    %2249 = vmatpush1.xpose.msra.mxu0 0.0
    %2250 = vmatprep.subr.mxu0 0.0
    %2251 = vmatpush1.xpose.msra.mxu0 0.0
    %2252 = vmatprep.subr.mxu0 0.0
    %2253 = vmatpush1.xpose.msra.mxu0 0.0
    %2254 = vmatprep.subr.mxu0 0.0
    %2255 = vmatpush1.xpose.msra.mxu0 0.0
    %2256 = vmatprep.subr.mxu0 0.0
    %2257 = vmatpush1.xpose.msra.mxu0 0.0
    %2258 = vmatprep.subr.mxu0 0.0
    %2259 = vmatpush1.xpose.msra.mxu0 0.0
    %2260 = vmatprep.subr.mxu0 0.0
    %2261 = vmatpush1.xpose.msra.mxu0 0.0
    %2262 = vmatprep.subr.mxu0 0.0
    %2263 = vmatpush1.xpose.msra.mxu0 0.0
    %2264 = vmatprep.subr.mxu0 0.0
    %2265 = vmatpush1.xpose.msra.mxu0 0.0
    %2266 = vmatprep.mubr.f32.mxu0 0.0
    %2267 = vmatmul.mubr.f32.gmra.mrb[0].mxu0 %v2111
    %v2268 = vpop.f32.mrb[0].mxu0
    %v2269 = vadd.f32 0.0, %v2268
    %v2270 = vpop.f32.mrb[0].mxu0
    %2271 = vmatprep.mubr.f32.mxu0 0.0
    %2272 = vmatmul.mubr.f32.gmra.mrb[0].mxu0 %v2114
    %v2273 = vpop.f32.mrb[0].mxu0
    %v2274 = vadd.f32 0.0, %v2273
    %v2275 = vpop.f32.mrb[0].mxu0
    %2276 = vmatprep.mubr.f32.mxu0 0.0
    %2277 = vmatmul.mubr.f32.gmra.mrb[0].mxu0 %v2117
    %v2278 = vpop.f32.mrb[0].mxu0
    %v2279 = vadd.f32 0.0, %v2278
    %v2280 = vpop.f32.mrb[0].mxu0
    %2281 = vdwg.mxu0
    %2282 = vmatprep.subr.mxu0 0.0
    %2283 = vmatpush1.xpose.msra.mxu0 %v1933
    %2284 = vmatprep.subr.mxu0 0.0
    %2285 = vmatpush1.xpose.msra.mxu0 %v1936
    %2286 = vmatprep.subr.mxu0 0.0
    %2287 = vmatpush1.xpose.msra.mxu0 %v1939
    %2288 = vmatprep.subr.mxu0 0.0
    %2289 = vmatpush1.xpose.msra.mxu0 0.0
    %2290 = vmatprep.subr.mxu0 0.0
    %2291 = vmatpush1.xpose.msra.mxu0 0.0
    %2292 = vmatprep.subr.mxu0 0.0
    %2293 = vmatpush1.xpose.msra.mxu0 0.0
    %2294 = vmatprep.subr.mxu0 0.0
    %2295 = vmatpush1.xpose.msra.mxu0 0.0
    %2296 = vmatprep.subr.mxu0 0.0
    %2297 = vmatpush1.xpose.msra.mxu0 0.0
    %2298 = vmatprep.subr.mxu0 0.0
    %2299 = vmatpush1.xpose.msra.mxu0 0.0
    %2300 = vmatprep.subr.mxu0 0.0
    %2301 = vmatpush1.xpose.msra.mxu0 0.0
    %2302 = vmatprep.subr.mxu0 0.0
    %2303 = vmatpush1.xpose.msra.mxu0 0.0
    %2304 = vmatprep.subr.mxu0 0.0
    %2305 = vmatpush1.xpose.msra.mxu0 0.0
    %2306 = vmatprep.subr.mxu0 0.0
    %2307 = vmatpush1.xpose.msra.mxu0 0.0
    %2308 = vmatprep.subr.mxu0 0.0
    %2309 = vmatpush1.xpose.msra.mxu0 0.0
    %2310 = vmatprep.subr.mxu0 0.0
    %2311 = vmatpush1.xpose.msra.mxu0 0.0
    %2312 = vmatprep.subr.mxu0 0.0
    %2313 = vmatpush1.xpose.msra.mxu0 0.0
    %2314 = vmatprep.subr.mxu0 0.0
    %2315 = vmatpush1.xpose.msra.mxu0 0.0
    %2316 = vmatprep.subr.mxu0 0.0
    %2317 = vmatpush1.xpose.msra.mxu0 0.0
    %2318 = vmatprep.subr.mxu0 0.0
    %2319 = vmatpush1.xpose.msra.mxu0 0.0
    %2320 = vmatprep.subr.mxu0 0.0
    %2321 = vmatpush1.xpose.msra.mxu0 0.0
    %2322 = vmatprep.subr.mxu0 0.0
    %2323 = vmatpush1.xpose.msra.mxu0 0.0
    %2324 = vmatprep.subr.mxu0 0.0
    %2325 = vmatpush1.xpose.msra.mxu0 0.0
    %2326 = vmatprep.subr.mxu0 0.0
    %2327 = vmatpush1.xpose.msra.mxu0 0.0
    %2328 = vmatprep.subr.mxu0 0.0
    %2329 = vmatpush1.xpose.msra.mxu0 0.0
    %2330 = vmatprep.subr.mxu0 0.0
    %2331 = vmatpush1.xpose.msra.mxu0 0.0
    %2332 = vmatprep.subr.mxu0 0.0
    %2333 = vmatpush1.xpose.msra.mxu0 0.0
    %2334 = vmatprep.subr.mxu0 0.0
    %2335 = vmatpush1.xpose.msra.mxu0 0.0
    %2336 = vmatprep.subr.mxu0 0.0
    %2337 = vmatpush1.xpose.msra.mxu0 0.0
    %2338 = vmatprep.subr.mxu0 0.0
    %2339 = vmatpush1.xpose.msra.mxu0 0.0
    %2340 = vmatprep.subr.mxu0 0.0
    %2341 = vmatpush1.xpose.msra.mxu0 0.0
    %2342 = vmatprep.subr.mxu0 0.0
    %2343 = vmatpush1.xpose.msra.mxu0 0.0
    %2344 = vmatprep.subr.mxu0 0.0
    %2345 = vmatpush1.xpose.msra.mxu0 0.0
    %2346 = vmatprep.mubr.f32.mxu0 0.0
    %2347 = vmatmul.mubr.f32.gmra.mrb[0].mxu0 %v2022
    %v2348 = vpop.f32.mrb[0].mxu0
    %v2349 = vadd.f32 %v2269, %v2348
    %v2350 = vpop.f32.mrb[0].mxu0
    %2351 = vmatprep.mubr.f32.mxu0 0.0
    %2352 = vmatmul.mubr.f32.gmra.mrb[0].mxu0 %v2025
    %v2353 = vpop.f32.mrb[0].mxu0
    %v2354 = vadd.f32 %v2274, %v2353
    %v2355 = vpop.f32.mrb[0].mxu0
    %2356 = vmatprep.mubr.f32.mxu0 0.0
    %2357 = vmatmul.mubr.f32.gmra.mrb[0].mxu0 %v2028
    %v2358 = vpop.f32.mrb[0].mxu0
    %v2359 = vadd.f32 %v2279, %v2358
    %v2360 = vpop.f32.mrb[0].mxu0
    %2361 = vdwg.mxu0
    %v2362 = vmul.f32 %v2199, %v2199
    %v2363 = vmul.f32 %v2200, %v2200
    %v2364 = vmul.f32 %v2201, %v2201
    %v2365 = vmul.f32 %v2349, %v2349
    %v2366 = vmul.f32 %v2354, %v2354
    %v2367 = vmul.f32 %v2359, %v2359
    %v2368 = vadd.f32 %v2362, %v2365
    %v2369 = vadd.f32 %v2363, %v2366
    %v2370 = vadd.f32 %v2364, %v2367
    %v2371 = vrsqrt.pop %v2368
    %v2372 = vmul.f32 %v2368, %v2371
    %vm2373 = vcmp.eq.f32.partialorder %v2368, inf
    %v2374 = vsel %vm2373, %v2368, %v2372
    %vm2375 = vcmp.eq.f32.partialorder %v2368, 0.0
    %v2376 = vand.u32 %v2368, 2147483648
    %v2377 = vsel %vm2375, %v2376, %v2374
    %v2378 = vrsqrt.pop %v2369
    %v2379 = vmul.f32 %v2369, %v2378
    %vm2380 = vcmp.eq.f32.partialorder %v2369, inf
    %v2381 = vsel %vm2380, %v2369, %v2379
    %vm2382 = vcmp.eq.f32.partialorder %v2369, 0.0
    %v2383 = vand.u32 %v2369, 2147483648
    %v2384 = vsel %vm2382, %v2383, %v2381
    %v2385 = vrsqrt.pop %v2370
    %v2386 = vmul.f32 %v2370, %v2385
    %vm2387 = vcmp.eq.f32.partialorder %v2370, inf
    %v2388 = vsel %vm2387, %v2370, %v2386
    %vm2389 = vcmp.eq.f32.partialorder %v2370, 0.0
    %v2390 = vand.u32 %v2370, 2147483648
    %v2391 = vsel %vm2389, %v2390, %v2388
    %s2392 = scalar_lea.vmem %s28, 24
    %2393 = vst.msk [vmem:[%s2392] sm:$0xff] %vm1057, %v2377
    %2394 = vst.msk [vmem:[%s2392 + $0x8] sm:$0xff] %vm1057, %v2384
    %2395 = vst.msk [vmem:[%s2392 + $0x10] sm:$0x1] %vm1060, %v2391
    %v2396 = vsel %vm1057, %v2377, -inf
    %2397 = vmax.xlane.f32.xlu0 %v2396
    %v2398 = vpop.xlane.xlu0 %2397
    %v2399 = vsel %vm1057, %v2384, -inf
    %2400 = vmax.xlane.f32.xlu0 %v2399
    %v2401 = vpop.xlane.xlu0 %2400
    %v2402 = vsel %vm1060, %v2391, -inf
    %2403 = vmax.xlane.f32.xlu0 %v2402
    %v2404 = vpop.xlane.xlu0 %2403
    %v2405 = vsub.f32 %v2377, %v2398
    %v2406 = vsub.f32 %v2384, %v2401
    %v2407 = vsub.f32 %v2391, %v2404
    %v2408 = vmul.f32 %v2405, 1.442695
    %v2409 = vpow.pop %v2408
    %v2410 = vmul.f32 %v2406, 1.442695
    %v2411 = vpow.pop %v2410
    %v2412 = vmul.f32 %v2407, 1.442695
    %v2413 = vpow.pop %v2412
    %v2414 = vsel %vm1057, %v2409, 0.0
    %2415 = vadd.xlane.f32.xlu0 %v2414
    %v2416 = vpop.xlane.xlu0 %2415
    %v2417 = vsel %vm1057, %v2411, 0.0
    %2418 = vadd.xlane.f32.xlu0 %v2417
    %v2419 = vpop.xlane.xlu0 %2418
    %v2420 = vsel %vm1060, %v2413, 0.0
    %2421 = vadd.xlane.f32.xlu0 %v2420
    %v2422 = vpop.xlane.xlu0 %2421
    %v2423 = vrcp.pop %v2416
    %v2424 = vrcp.pop %v2419
    %v2425 = vrcp.pop %v2422
    %v2426 = vmul.f32 %v2409, %v2423
    %v2427 = vmul.f32 %v2411, %v2424
    %v2428 = vmul.f32 %v2413, %v2425
    %v2429 = vsel %vm513, %v1676, 0
    %2431 = vmatprep.subr.mxu0 0.0
    %2432 = vmatpush1.msra.mxu0 %v1675
    %2433 = vmatprep.subr.mxu0 0.0
    %2434 = vmatpush1.msra.mxu0 %v2429
    %2435 = vmatprep.subr.mxu0 0.0
    %2436 = vmatpush1.msra.mxu0 0.0
    %2437 = vmatprep.subr.mxu0 0.0
    %2438 = vmatpush1.msra.mxu0 0.0
    %2439 = vmatprep.subr.mxu0 0.0
    %2440 = vmatpush1.msra.mxu0 0.0
    %2441 = vmatprep.subr.mxu0 0.0
    %2442 = vmatpush1.msra.mxu0 0.0
    %2443 = vmatprep.subr.mxu0 0.0
    %2444 = vmatpush1.msra.mxu0 0.0
    %2445 = vmatprep.subr.mxu0 0.0
    %2446 = vmatpush1.msra.mxu0 0.0
    %2447 = vmatprep.subr.mxu0 0.0
    %2448 = vmatpush1.msra.mxu0 0.0
    %2449 = vmatprep.subr.mxu0 0.0
    %2450 = vmatpush1.msra.mxu0 0.0
    %2451 = vmatprep.subr.mxu0 0.0
    %2452 = vmatpush1.msra.mxu0 0.0
    %2453 = vmatprep.subr.mxu0 0.0
    %2454 = vmatpush1.msra.mxu0 0.0
    %2455 = vmatprep.subr.mxu0 0.0
    %2456 = vmatpush1.msra.mxu0 0.0
    %2457 = vmatprep.subr.mxu0 0.0
    %2458 = vmatpush1.msra.mxu0 0.0
    %2459 = vmatprep.subr.mxu0 0.0
    %2460 = vmatpush1.msra.mxu0 0.0
    %2461 = vmatprep.subr.mxu0 0.0
    %2462 = vmatpush1.msra.mxu0 0.0
    %2463 = vmatprep.subr.mxu0 0.0
    %2464 = vmatpush1.msra.mxu0 0.0
    %2465 = vmatprep.subr.mxu0 0.0
    %2466 = vmatpush1.msra.mxu0 0.0
    %2467 = vmatprep.subr.mxu0 0.0
    %2468 = vmatpush1.msra.mxu0 0.0
    %2469 = vmatprep.subr.mxu0 0.0
    %2470 = vmatpush1.msra.mxu0 0.0
    %2471 = vmatprep.subr.mxu0 0.0
    %2472 = vmatpush1.msra.mxu0 0.0
    %2473 = vmatprep.subr.mxu0 0.0
    %2474 = vmatpush1.msra.mxu0 0.0
    %2475 = vmatprep.subr.mxu0 0.0
    %2476 = vmatpush1.msra.mxu0 0.0
    %2477 = vmatprep.subr.mxu0 0.0
    %2478 = vmatpush1.msra.mxu0 0.0
    %2479 = vmatprep.subr.mxu0 0.0
    %2480 = vmatpush1.msra.mxu0 0.0
    %2481 = vmatprep.subr.mxu0 0.0
    %2482 = vmatpush1.msra.mxu0 0.0
    %2483 = vmatprep.subr.mxu0 0.0
    %2484 = vmatpush1.msra.mxu0 0.0
    %2485 = vmatprep.subr.mxu0 0.0
    %2486 = vmatpush1.msra.mxu0 0.0
    %2487 = vmatprep.subr.mxu0 0.0
    %2488 = vmatpush1.msra.mxu0 0.0
    %2489 = vmatprep.subr.mxu0 0.0
    %2490 = vmatpush1.msra.mxu0 0.0
    %2491 = vmatprep.subr.mxu0 0.0
    %2492 = vmatpush1.msra.mxu0 0.0
    %2493 = vmatprep.subr.mxu0 0.0
    %2494 = vmatpush1.msra.mxu0 0.0
    %2495 = vmatprep.mubr.f32.mxu0 0.0
    %2496 = vmatmul.mubr.f32.gmra.mrb[0].mxu0 %v1096
    %v2497 = vpop.f32.mrb[0].mxu0
    %v2498 = vadd.f32 0.0, %v2497
    %v2499 = vpop.f32.mrb[0].mxu0
    %2500 = vmatprep.mubr.f32.mxu0 0.0
    %2501 = vmatmul.mubr.f32.gmra.mrb[0].mxu0 %v1099
    %v2502 = vpop.f32.mrb[0].mxu0
    %v2503 = vadd.f32 0.0, %v2502
    %v2504 = vpop.f32.mrb[0].mxu0
    %2505 = vdwg.mxu0
    %v2507 = vsel %vm318, %v2498, 0
    %v2510 = vsel %vm318, %v2503, 0
    %2512 = vmatprep.subr.mxu0 0.0
    %2513 = vmatpush1.msra.mxu0 %v302
    %2514 = vmatprep.subr.mxu0 0.0
    %2515 = vmatpush1.msra.mxu0 %v303
    %2516 = vmatprep.subr.mxu0 0.0
    %2517 = vmatpush1.msra.mxu0 %v304
    %2518 = vmatprep.subr.mxu0 0.0
    %2519 = vmatpush1.msra.mxu0 %v305
    %2520 = vmatprep.subr.mxu0 0.0
    %2521 = vmatpush1.msra.mxu0 0.0
    %2522 = vmatprep.subr.mxu0 0.0
    %2523 = vmatpush1.msra.mxu0 0.0
    %2524 = vmatprep.subr.mxu0 0.0
    %2525 = vmatpush1.msra.mxu0 0.0
    %2526 = vmatprep.subr.mxu0 0.0
    %2527 = vmatpush1.msra.mxu0 0.0
    %2528 = vmatprep.subr.mxu0 0.0
    %2529 = vmatpush1.msra.mxu0 0.0
    %2530 = vmatprep.subr.mxu0 0.0
    %2531 = vmatpush1.msra.mxu0 0.0
    %2532 = vmatprep.subr.mxu0 0.0
    %2533 = vmatpush1.msra.mxu0 0.0
    %2534 = vmatprep.subr.mxu0 0.0
    %2535 = vmatpush1.msra.mxu0 0.0
    %2536 = vmatprep.subr.mxu0 0.0
    %2537 = vmatpush1.msra.mxu0 0.0
    %2538 = vmatprep.subr.mxu0 0.0
    %2539 = vmatpush1.msra.mxu0 0.0
    %2540 = vmatprep.subr.mxu0 0.0
    %2541 = vmatpush1.msra.mxu0 0.0
    %2542 = vmatprep.subr.mxu0 0.0
    %2543 = vmatpush1.msra.mxu0 0.0
    %2544 = vmatprep.subr.mxu0 0.0
    %2545 = vmatpush1.msra.mxu0 0.0
    %2546 = vmatprep.subr.mxu0 0.0
    %2547 = vmatpush1.msra.mxu0 0.0
    %2548 = vmatprep.subr.mxu0 0.0
    %2549 = vmatpush1.msra.mxu0 0.0
    %2550 = vmatprep.subr.mxu0 0.0
    %2551 = vmatpush1.msra.mxu0 0.0
    %2552 = vmatprep.subr.mxu0 0.0
    %2553 = vmatpush1.msra.mxu0 0.0
    %2554 = vmatprep.subr.mxu0 0.0
    %2555 = vmatpush1.msra.mxu0 0.0
    %2556 = vmatprep.subr.mxu0 0.0
    %2557 = vmatpush1.msra.mxu0 0.0
    %2558 = vmatprep.subr.mxu0 0.0
    %2559 = vmatpush1.msra.mxu0 0.0
    %2560 = vmatprep.subr.mxu0 0.0
    %2561 = vmatpush1.msra.mxu0 0.0
    %2562 = vmatprep.subr.mxu0 0.0
    %2563 = vmatpush1.msra.mxu0 0.0
    %2564 = vmatprep.subr.mxu0 0.0
    %2565 = vmatpush1.msra.mxu0 0.0
    %2566 = vmatprep.subr.mxu0 0.0
    %2567 = vmatpush1.msra.mxu0 0.0
    %2568 = vmatprep.subr.mxu0 0.0
    %2569 = vmatpush1.msra.mxu0 0.0
    %2570 = vmatprep.subr.mxu0 0.0
    %2571 = vmatpush1.msra.mxu0 0.0
    %2572 = vmatprep.subr.mxu0 0.0
    %2573 = vmatpush1.msra.mxu0 0.0
    %2574 = vmatprep.subr.mxu0 0.0
    %2575 = vmatpush1.msra.mxu0 0.0
    %2576 = vmatprep.mubr.f32.mxu0 0.0
    %2577 = vmatmul.mubr.f32.gmra.mrb[0].mxu0 %v2507
    %v2578 = vpop.f32.mrb[0].mxu0
    %v2579 = vadd.f32 0.0, %v2578
    %v2580 = vpop.f32.mrb[0].mxu0
    %2581 = vmatprep.mubr.f32.mxu0 0.0
    %2582 = vmatmul.mubr.f32.gmra.mrb[0].mxu0 %v2510
    %v2583 = vpop.f32.mrb[0].mxu0
    %v2584 = vadd.f32 0.0, %v2583
    %v2585 = vpop.f32.mrb[0].mxu0
    %2586 = vdwg.mxu0
    %2587 = vmatprep.subr.mxu0 0.0
    %2588 = vmatpush1.msra.mxu0 %v306
    %2589 = vmatprep.subr.mxu0 0.0
    %2590 = vmatpush1.msra.mxu0 %v307
    %2591 = vmatprep.subr.mxu0 0.0
    %2592 = vmatpush1.msra.mxu0 %v308
    %2593 = vmatprep.subr.mxu0 0.0
    %2594 = vmatpush1.msra.mxu0 %v309
    %2595 = vmatprep.subr.mxu0 0.0
    %2596 = vmatpush1.msra.mxu0 0.0
    %2597 = vmatprep.subr.mxu0 0.0
    %2598 = vmatpush1.msra.mxu0 0.0
    %2599 = vmatprep.subr.mxu0 0.0
    %2600 = vmatpush1.msra.mxu0 0.0
    %2601 = vmatprep.subr.mxu0 0.0
    %2602 = vmatpush1.msra.mxu0 0.0
    %2603 = vmatprep.subr.mxu0 0.0
    %2604 = vmatpush1.msra.mxu0 0.0
    %2605 = vmatprep.subr.mxu0 0.0
    %2606 = vmatpush1.msra.mxu0 0.0
    %2607 = vmatprep.subr.mxu0 0.0
    %2608 = vmatpush1.msra.mxu0 0.0
    %2609 = vmatprep.subr.mxu0 0.0
    %2610 = vmatpush1.msra.mxu0 0.0
    %2611 = vmatprep.subr.mxu0 0.0
    %2612 = vmatpush1.msra.mxu0 0.0
    %2613 = vmatprep.subr.mxu0 0.0
    %2614 = vmatpush1.msra.mxu0 0.0
    %2615 = vmatprep.subr.mxu0 0.0
    %2616 = vmatpush1.msra.mxu0 0.0
    %2617 = vmatprep.subr.mxu0 0.0
    %2618 = vmatpush1.msra.mxu0 0.0
    %2619 = vmatprep.subr.mxu0 0.0
    %2620 = vmatpush1.msra.mxu0 0.0
    %2621 = vmatprep.subr.mxu0 0.0
    %2622 = vmatpush1.msra.mxu0 0.0
    %2623 = vmatprep.subr.mxu0 0.0
    %2624 = vmatpush1.msra.mxu0 0.0
    %2625 = vmatprep.subr.mxu0 0.0
    %2626 = vmatpush1.msra.mxu0 0.0
    %2627 = vmatprep.subr.mxu0 0.0
    %2628 = vmatpush1.msra.mxu0 0.0
    %2629 = vmatprep.subr.mxu0 0.0
    %2630 = vmatpush1.msra.mxu0 0.0
    %2631 = vmatprep.subr.mxu0 0.0
    %2632 = vmatpush1.msra.mxu0 0.0
    %2633 = vmatprep.subr.mxu0 0.0
    %2634 = vmatpush1.msra.mxu0 0.0
    %2635 = vmatprep.subr.mxu0 0.0
    %2636 = vmatpush1.msra.mxu0 0.0
    %2637 = vmatprep.subr.mxu0 0.0
    %2638 = vmatpush1.msra.mxu0 0.0
    %2639 = vmatprep.subr.mxu0 0.0
    %2640 = vmatpush1.msra.mxu0 0.0
    %2641 = vmatprep.subr.mxu0 0.0
    %2642 = vmatpush1.msra.mxu0 0.0
    %2643 = vmatprep.subr.mxu0 0.0
    %2644 = vmatpush1.msra.mxu0 0.0
    %2645 = vmatprep.subr.mxu0 0.0
    %2646 = vmatpush1.msra.mxu0 0.0
    %2647 = vmatprep.subr.mxu0 0.0
    %2648 = vmatpush1.msra.mxu0 0.0
    %2649 = vmatprep.subr.mxu0 0.0
    %2650 = vmatpush1.msra.mxu0 0.0
    %2651 = vmatprep.mubr.f32.mxu0 0.0
    %2652 = vmatmul.mubr.f32.gmra.mrb[0].mxu0 %v2507
    %v2653 = vpop.f32.mrb[0].mxu0
    %v2654 = vadd.f32 0.0, %v2653
    %v2655 = vpop.f32.mrb[0].mxu0
    %2656 = vmatprep.mubr.f32.mxu0 0.0
    %2657 = vmatmul.mubr.f32.gmra.mrb[0].mxu0 %v2510
    %v2658 = vpop.f32.mrb[0].mxu0
    %v2659 = vadd.f32 0.0, %v2658
    %v2660 = vpop.f32.mrb[0].mxu0
    %2661 = vdwg.mxu0
    %v2663 = vsel %vm1057, %v2579, 0
    %v2666 = vsel %vm1057, %v2584, 0
    %v2669 = vsel %vm1057, %v2426, 0
    %v2672 = vsel %vm1057, %v2427, 0
    %v2675 = vsel %vm1057, %v2428, 0
    %2677 = vmatprep.subr.mxu0 0.0
    %2678 = vmatpush1.xpose.msra.mxu0 %v2669
    %2679 = vmatprep.subr.mxu0 0.0
    %2680 = vmatpush1.xpose.msra.mxu0 %v2672
    %2681 = vmatprep.subr.mxu0 0.0
    %2682 = vmatpush1.xpose.msra.mxu0 %v2675
    %2683 = vmatprep.subr.mxu0 0.0
    %2684 = vmatpush1.xpose.msra.mxu0 0.0
    %2685 = vmatprep.subr.mxu0 0.0
    %2686 = vmatpush1.xpose.msra.mxu0 0.0
    %2687 = vmatprep.subr.mxu0 0.0
    %2688 = vmatpush1.xpose.msra.mxu0 0.0
    %2689 = vmatprep.subr.mxu0 0.0
    %2690 = vmatpush1.xpose.msra.mxu0 0.0
    %2691 = vmatprep.subr.mxu0 0.0
    %2692 = vmatpush1.xpose.msra.mxu0 0.0
    %2693 = vmatprep.subr.mxu0 0.0
    %2694 = vmatpush1.xpose.msra.mxu0 0.0
    %2695 = vmatprep.subr.mxu0 0.0
    %2696 = vmatpush1.xpose.msra.mxu0 0.0
    %2697 = vmatprep.subr.mxu0 0.0
    %2698 = vmatpush1.xpose.msra.mxu0 0.0
    %2699 = vmatprep.subr.mxu0 0.0
    %2700 = vmatpush1.xpose.msra.mxu0 0.0
    %2701 = vmatprep.subr.mxu0 0.0
    %2702 = vmatpush1.xpose.msra.mxu0 0.0
    %2703 = vmatprep.subr.mxu0 0.0
    %2704 = vmatpush1.xpose.msra.mxu0 0.0
    %2705 = vmatprep.subr.mxu0 0.0
    %2706 = vmatpush1.xpose.msra.mxu0 0.0
    %2707 = vmatprep.subr.mxu0 0.0
    %2708 = vmatpush1.xpose.msra.mxu0 0.0
    %2709 = vmatprep.subr.mxu0 0.0
    %2710 = vmatpush1.xpose.msra.mxu0 0.0
    %2711 = vmatprep.subr.mxu0 0.0
    %2712 = vmatpush1.xpose.msra.mxu0 0.0
    %2713 = vmatprep.subr.mxu0 0.0
    %2714 = vmatpush1.xpose.msra.mxu0 0.0
    %2715 = vmatprep.subr.mxu0 0.0
    %2716 = vmatpush1.xpose.msra.mxu0 0.0
    %2717 = vmatprep.subr.mxu0 0.0
    %2718 = vmatpush1.xpose.msra.mxu0 0.0
    %2719 = vmatprep.subr.mxu0 0.0
    %2720 = vmatpush1.xpose.msra.mxu0 0.0
    %2721 = vmatprep.subr.mxu0 0.0
    %2722 = vmatpush1.xpose.msra.mxu0 0.0
    %2723 = vmatprep.subr.mxu0 0.0
    %2724 = vmatpush1.xpose.msra.mxu0 0.0
    %2725 = vmatprep.subr.mxu0 0.0
    %2726 = vmatpush1.xpose.msra.mxu0 0.0
    %2727 = vmatprep.subr.mxu0 0.0
    %2728 = vmatpush1.xpose.msra.mxu0 0.0
    %2729 = vmatprep.subr.mxu0 0.0
    %2730 = vmatpush1.xpose.msra.mxu0 0.0
    %2731 = vmatprep.subr.mxu0 0.0
    %2732 = vmatpush1.xpose.msra.mxu0 0.0
    %2733 = vmatprep.subr.mxu0 0.0
    %2734 = vmatpush1.xpose.msra.mxu0 0.0
    %2735 = vmatprep.subr.mxu0 0.0
    %2736 = vmatpush1.xpose.msra.mxu0 0.0
    %2737 = vmatprep.subr.mxu0 0.0
    %2738 = vmatpush1.xpose.msra.mxu0 0.0
    %2739 = vmatprep.subr.mxu0 0.0
    %2740 = vmatpush1.xpose.msra.mxu0 0.0
    %2741 = vmatprep.mubr.f32.mxu0 0.0
    %2742 = vmatmul.mubr.f32.gmra.mrb[0].mxu0 %v2663
    %v2743 = vpop.f32.mrb[0].mxu0
    %v2744 = vadd.f32 0.0, %v2743
    %v2745 = vpop.f32.mrb[0].mxu0
    %2746 = vmatprep.mubr.f32.mxu0 0.0
    %2747 = vmatmul.mubr.f32.gmra.mrb[0].mxu0 %v2666
    %v2748 = vpop.f32.mrb[0].mxu0
    %v2749 = vadd.f32 0.0, %v2748
    %v2750 = vpop.f32.mrb[0].mxu0
    %2751 = vdwg.mxu0
    %v2753 = vsel %vm1057, %v2654, 0
    %v2756 = vsel %vm1057, %v2659, 0
    %2758 = vmatprep.subr.mxu0 0.0
    %2759 = vmatpush1.xpose.msra.mxu0 %v2669
    %2760 = vmatprep.subr.mxu0 0.0
    %2761 = vmatpush1.xpose.msra.mxu0 %v2672
    %2762 = vmatprep.subr.mxu0 0.0
    %2763 = vmatpush1.xpose.msra.mxu0 %v2675
    %2764 = vmatprep.subr.mxu0 0.0
    %2765 = vmatpush1.xpose.msra.mxu0 0.0
    %2766 = vmatprep.subr.mxu0 0.0
    %2767 = vmatpush1.xpose.msra.mxu0 0.0
    %2768 = vmatprep.subr.mxu0 0.0
    %2769 = vmatpush1.xpose.msra.mxu0 0.0
    %2770 = vmatprep.subr.mxu0 0.0
    %2771 = vmatpush1.xpose.msra.mxu0 0.0
    %2772 = vmatprep.subr.mxu0 0.0
    %2773 = vmatpush1.xpose.msra.mxu0 0.0
    %2774 = vmatprep.subr.mxu0 0.0
    %2775 = vmatpush1.xpose.msra.mxu0 0.0
    %2776 = vmatprep.subr.mxu0 0.0
    %2777 = vmatpush1.xpose.msra.mxu0 0.0
    %2778 = vmatprep.subr.mxu0 0.0
    %2779 = vmatpush1.xpose.msra.mxu0 0.0
    %2780 = vmatprep.subr.mxu0 0.0
    %2781 = vmatpush1.xpose.msra.mxu0 0.0
    %2782 = vmatprep.subr.mxu0 0.0
    %2783 = vmatpush1.xpose.msra.mxu0 0.0
    %2784 = vmatprep.subr.mxu0 0.0
    %2785 = vmatpush1.xpose.msra.mxu0 0.0
    %2786 = vmatprep.subr.mxu0 0.0
    %2787 = vmatpush1.xpose.msra.mxu0 0.0
    %2788 = vmatprep.subr.mxu0 0.0
    %2789 = vmatpush1.xpose.msra.mxu0 0.0
    %2790 = vmatprep.subr.mxu0 0.0
    %2791 = vmatpush1.xpose.msra.mxu0 0.0
    %2792 = vmatprep.subr.mxu0 0.0
    %2793 = vmatpush1.xpose.msra.mxu0 0.0
    %2794 = vmatprep.subr.mxu0 0.0
    %2795 = vmatpush1.xpose.msra.mxu0 0.0
    %2796 = vmatprep.subr.mxu0 0.0
    %2797 = vmatpush1.xpose.msra.mxu0 0.0
    %2798 = vmatprep.subr.mxu0 0.0
    %2799 = vmatpush1.xpose.msra.mxu0 0.0
    %2800 = vmatprep.subr.mxu0 0.0
    %2801 = vmatpush1.xpose.msra.mxu0 0.0
    %2802 = vmatprep.subr.mxu0 0.0
    %2803 = vmatpush1.xpose.msra.mxu0 0.0
    %2804 = vmatprep.subr.mxu0 0.0
    %2805 = vmatpush1.xpose.msra.mxu0 0.0
    %2806 = vmatprep.subr.mxu0 0.0
    %2807 = vmatpush1.xpose.msra.mxu0 0.0
    %2808 = vmatprep.subr.mxu0 0.0
    %2809 = vmatpush1.xpose.msra.mxu0 0.0
    %2810 = vmatprep.subr.mxu0 0.0
    %2811 = vmatpush1.xpose.msra.mxu0 0.0
    %2812 = vmatprep.subr.mxu0 0.0
    %2813 = vmatpush1.xpose.msra.mxu0 0.0
    %2814 = vmatprep.subr.mxu0 0.0
    %2815 = vmatpush1.xpose.msra.mxu0 0.0
    %2816 = vmatprep.subr.mxu0 0.0
    %2817 = vmatpush1.xpose.msra.mxu0 0.0
    %2818 = vmatprep.subr.mxu0 0.0
    %2819 = vmatpush1.xpose.msra.mxu0 0.0
    %2820 = vmatprep.subr.mxu0 0.0
    %2821 = vmatpush1.xpose.msra.mxu0 0.0
    %2822 = vmatprep.mubr.f32.mxu0 0.0
    %2823 = vmatmul.mubr.f32.gmra.mrb[0].mxu0 %v2753
    %v2824 = vpop.f32.mrb[0].mxu0
    %v2825 = vadd.f32 0.0, %v2824
    %v2826 = vpop.f32.mrb[0].mxu0
    %2827 = vmatprep.mubr.f32.mxu0 0.0
    %2828 = vmatmul.mubr.f32.gmra.mrb[0].mxu0 %v2756
    %v2829 = vpop.f32.mrb[0].mxu0
    %v2830 = vadd.f32 0.0, %v2829
    %v2831 = vpop.f32.mrb[0].mxu0
    %2832 = vdwg.mxu0
    %v2834 = vsel %vm1057, %v2825, 0
    %v2837 = vsel %vm1057, %v2830, 0
    %2839 = vmatprep.subr.mxu0 0.0
    %2840 = vmatpush1.msra.mxu0 %v313
    %2841 = vmatprep.subr.mxu0 0.0
    %2842 = vmatpush1.msra.mxu0 %v314
    %2843 = vmatprep.subr.mxu0 0.0
    %2844 = vmatpush1.msra.mxu0 %v1513
    %2845 = vmatprep.subr.mxu0 0.0
    %2846 = vmatpush1.msra.mxu0 0.0
    %2847 = vmatprep.subr.mxu0 0.0
    %2848 = vmatpush1.msra.mxu0 0.0
    %2849 = vmatprep.subr.mxu0 0.0
    %2850 = vmatpush1.msra.mxu0 0.0
    %2851 = vmatprep.subr.mxu0 0.0
    %2852 = vmatpush1.msra.mxu0 0.0
    %2853 = vmatprep.subr.mxu0 0.0
    %2854 = vmatpush1.msra.mxu0 0.0
    %2855 = vmatprep.subr.mxu0 0.0
    %2856 = vmatpush1.msra.mxu0 0.0
    %2857 = vmatprep.subr.mxu0 0.0
    %2858 = vmatpush1.msra.mxu0 0.0
    %2859 = vmatprep.subr.mxu0 0.0
    %2860 = vmatpush1.msra.mxu0 0.0
    %2861 = vmatprep.subr.mxu0 0.0
    %2862 = vmatpush1.msra.mxu0 0.0
    %2863 = vmatprep.subr.mxu0 0.0
    %2864 = vmatpush1.msra.mxu0 0.0
    %2865 = vmatprep.subr.mxu0 0.0
    %2866 = vmatpush1.msra.mxu0 0.0
    %2867 = vmatprep.subr.mxu0 0.0
    %2868 = vmatpush1.msra.mxu0 0.0
    %2869 = vmatprep.subr.mxu0 0.0
    %2870 = vmatpush1.msra.mxu0 0.0
    %2871 = vmatprep.subr.mxu0 0.0
    %2872 = vmatpush1.msra.mxu0 0.0
    %2873 = vmatprep.subr.mxu0 0.0
    %2874 = vmatpush1.msra.mxu0 0.0
    %2875 = vmatprep.subr.mxu0 0.0
    %2876 = vmatpush1.msra.mxu0 0.0
    %2877 = vmatprep.subr.mxu0 0.0
    %2878 = vmatpush1.msra.mxu0 0.0
    %2879 = vmatprep.subr.mxu0 0.0
    %2880 = vmatpush1.msra.mxu0 0.0
    %2881 = vmatprep.subr.mxu0 0.0
    %2882 = vmatpush1.msra.mxu0 0.0
    %2883 = vmatprep.subr.mxu0 0.0
    %2884 = vmatpush1.msra.mxu0 0.0
    %2885 = vmatprep.subr.mxu0 0.0
    %2886 = vmatpush1.msra.mxu0 0.0
    %2887 = vmatprep.subr.mxu0 0.0
    %2888 = vmatpush1.msra.mxu0 0.0
    %2889 = vmatprep.subr.mxu0 0.0
    %2890 = vmatpush1.msra.mxu0 0.0
    %2891 = vmatprep.subr.mxu0 0.0
    %2892 = vmatpush1.msra.mxu0 0.0
    %2893 = vmatprep.subr.mxu0 0.0
    %2894 = vmatpush1.msra.mxu0 0.0
    %2895 = vmatprep.subr.mxu0 0.0
    %2896 = vmatpush1.msra.mxu0 0.0
    %2897 = vmatprep.subr.mxu0 0.0
    %2898 = vmatpush1.msra.mxu0 0.0
    %2899 = vmatprep.subr.mxu0 0.0
    %2900 = vmatpush1.msra.mxu0 0.0
    %2901 = vmatprep.subr.mxu0 0.0
    %2902 = vmatpush1.msra.mxu0 0.0
    %2903 = vmatprep.mubr.f32.mxu0 0.0
    %2904 = vmatmul.mubr.f32.gmra.mrb[0].mxu0 %v2834
    %v2905 = vpop.f32.mrb[0].mxu0
    %v2906 = vadd.f32 0.0, %v2905
    %v2907 = vpop.f32.mrb[0].mxu0
    %2908 = vmatprep.mubr.f32.mxu0 0.0
    %2909 = vmatmul.mubr.f32.gmra.mrb[0].mxu0 %v2837
    %v2910 = vpop.f32.mrb[0].mxu0
    %v2911 = vadd.f32 0.0, %v2910
    %v2912 = vpop.f32.mrb[0].mxu0
    %2913 = vdwg.mxu0
    %v2915 = vsel %vm1057, %v2744, 0
    %v2918 = vsel %vm1057, %v2749, 0
    %2920 = vmatprep.subr.mxu0 0.0
    %2921 = vmatpush1.msra.mxu0 %v310
    %2922 = vmatprep.subr.mxu0 0.0
    %2923 = vmatpush1.msra.mxu0 %v311
    %2924 = vmatprep.subr.mxu0 0.0
    %2925 = vmatpush1.msra.mxu0 %v1597
    %2926 = vmatprep.subr.mxu0 0.0
    %2927 = vmatpush1.msra.mxu0 0.0
    %2928 = vmatprep.subr.mxu0 0.0
    %2929 = vmatpush1.msra.mxu0 0.0
    %2930 = vmatprep.subr.mxu0 0.0
    %2931 = vmatpush1.msra.mxu0 0.0
    %2932 = vmatprep.subr.mxu0 0.0
    %2933 = vmatpush1.msra.mxu0 0.0
    %2934 = vmatprep.subr.mxu0 0.0
    %2935 = vmatpush1.msra.mxu0 0.0
    %2936 = vmatprep.subr.mxu0 0.0
    %2937 = vmatpush1.msra.mxu0 0.0
    %2938 = vmatprep.subr.mxu0 0.0
    %2939 = vmatpush1.msra.mxu0 0.0
    %2940 = vmatprep.subr.mxu0 0.0
    %2941 = vmatpush1.msra.mxu0 0.0
    %2942 = vmatprep.subr.mxu0 0.0
    %2943 = vmatpush1.msra.mxu0 0.0
    %2944 = vmatprep.subr.mxu0 0.0
    %2945 = vmatpush1.msra.mxu0 0.0
    %2946 = vmatprep.subr.mxu0 0.0
    %2947 = vmatpush1.msra.mxu0 0.0
    %2948 = vmatprep.subr.mxu0 0.0
    %2949 = vmatpush1.msra.mxu0 0.0
    %2950 = vmatprep.subr.mxu0 0.0
    %2951 = vmatpush1.msra.mxu0 0.0
    %2952 = vmatprep.subr.mxu0 0.0
    %2953 = vmatpush1.msra.mxu0 0.0
    %2954 = vmatprep.subr.mxu0 0.0
    %2955 = vmatpush1.msra.mxu0 0.0
    %2956 = vmatprep.subr.mxu0 0.0
    %2957 = vmatpush1.msra.mxu0 0.0
    %2958 = vmatprep.subr.mxu0 0.0
    %2959 = vmatpush1.msra.mxu0 0.0
    %2960 = vmatprep.subr.mxu0 0.0
    %2961 = vmatpush1.msra.mxu0 0.0
    %2962 = vmatprep.subr.mxu0 0.0
    %2963 = vmatpush1.msra.mxu0 0.0
    %2964 = vmatprep.subr.mxu0 0.0
    %2965 = vmatpush1.msra.mxu0 0.0
    %2966 = vmatprep.subr.mxu0 0.0
    %2967 = vmatpush1.msra.mxu0 0.0
    %2968 = vmatprep.subr.mxu0 0.0
    %2969 = vmatpush1.msra.mxu0 0.0
    %2970 = vmatprep.subr.mxu0 0.0
    %2971 = vmatpush1.msra.mxu0 0.0
    %2972 = vmatprep.subr.mxu0 0.0
    %2973 = vmatpush1.msra.mxu0 0.0
    %2974 = vmatprep.subr.mxu0 0.0
    %2975 = vmatpush1.msra.mxu0 0.0
    %2976 = vmatprep.subr.mxu0 0.0
    %2977 = vmatpush1.msra.mxu0 0.0
    %2978 = vmatprep.subr.mxu0 0.0
    %2979 = vmatpush1.msra.mxu0 0.0
    %2980 = vmatprep.subr.mxu0 0.0
    %2981 = vmatpush1.msra.mxu0 0.0
    %2982 = vmatprep.subr.mxu0 0.0
    %2983 = vmatpush1.msra.mxu0 0.0
    %2984 = vmatprep.mubr.f32.mxu0 0.0
    %2985 = vmatmul.mubr.f32.gmra.mrb[0].mxu0 %v2915
    %v2986 = vpop.f32.mrb[0].mxu0
    %v2987 = vadd.f32 %v2906, %v2986
    %v2988 = vpop.f32.mrb[0].mxu0
    %2989 = vmatprep.mubr.f32.mxu0 0.0
    %2990 = vmatmul.mubr.f32.gmra.mrb[0].mxu0 %v2918
    %v2991 = vpop.f32.mrb[0].mxu0
    %v2992 = vadd.f32 %v2911, %v2991
    %v2993 = vpop.f32.mrb[0].mxu0
    %2994 = vdwg.mxu0
    %v2997 = vrot.slane %v2987, 3
    %v2998 = vrot.slane %v2992, 3
    %v2999 = vsel %vm513, %v2997, %v2998
    %v3001 = vsel %vm513, %v1671, %v2997
    %v3002 = vld [vmem:[%s10] sm:$0x3]
    %v3003 = vld [vmem:[%s11] sm:$0x3]
    %v3004 = vld [vmem:[#allocation17] sm:$0xff]
    %v3005 = vld [vmem:[#allocation17 + $0x8] sm:$0xff]
    %v3006 = vld [vmem:[#allocation17 + $0x10] sm:$0xff]
    %v3007 = vld [vmem:[#allocation17 + $0x18] sm:$0xff]
    %v3008 = vld [vmem:[#allocation17 + $0x20] sm:$0xff]
    %v3009 = vld [vmem:[#allocation17 + $0x28] sm:$0xff]
    %v3010 = vld [vmem:[#allocation17 + $0x30] sm:$0xff]
    %v3011 = vld [vmem:[#allocation17 + $0x38] sm:$0xff]
    %v3012 = vld [vmem:[#allocation17 + $0x40] sm:$0xff]
    %v3013 = vld [vmem:[#allocation17 + $0x48] sm:$0xff]
    %v3014 = vld [vmem:[#allocation17 + $0x50] sm:$0xff]
    %v3015 = vld [vmem:[#allocation17 + $0x58] sm:$0xff]
    %v3016 = vld [vmem:[#allocation17 + $0x60] sm:$0xff]
    %v3017 = vld [vmem:[#allocation17 + $0x68] sm:$0xff]
    %v3018 = vld [vmem:[#allocation17 + $0x70] sm:$0xff]
    %v3019 = vld [vmem:[#allocation17 + $0x78] sm:$0xff]
    %v3020 = vld [vmem:[#allocation17 + $0x80] sm:$0xff]
    %v3021 = vld [vmem:[#allocation17 + $0x88] sm:$0xff]
    %v3022 = vld [vmem:[#allocation17 + $0x90] sm:$0xff]
    %v3023 = vld [vmem:[#allocation17 + $0x98] sm:$0xff]
    %v3024 = vld [vmem:[#allocation17 + $0xa0] sm:$0xff]
    %v3025 = vld [vmem:[#allocation17 + $0xa8] sm:$0xff]
    %v3026 = vld [vmem:[#allocation17 + $0xb0] sm:$0xff]
    %v3027 = vld [vmem:[#allocation17 + $0xb8] sm:$0xff]
    %v3028 = vld [vmem:[#allocation17 + $0xc0] sm:$0xff]
    %v3029 = vld [vmem:[#allocation17 + $0xc8] sm:$0xff]
    %v3030 = vld [vmem:[#allocation17 + $0xd0] sm:$0xff]
    %v3031 = vld [vmem:[#allocation17 + $0xd8] sm:$0xff]
    %v3032 = vld [vmem:[#allocation17 + $0xe0] sm:$0xff]
    %v3033 = vld [vmem:[#allocation17 + $0xe8] sm:$0xff]
    %v3034 = vld [vmem:[#allocation17 + $0xf0] sm:$0xff]
    %v3035 = vld [vmem:[#allocation17 + $0xf8] sm:$0xff]
    %v3036 = vld [vmem:[#allocation17 + $0x100] sm:$0xff]
    %v3037 = vld [vmem:[#allocation17 + $0x108] sm:$0xff]
    %v3038 = vld [vmem:[#allocation17 + $0x110] sm:$0xff]
    %v3039 = vld [vmem:[#allocation17 + $0x118] sm:$0xff]
    %v3040 = vld [vmem:[#allocation17 + $0x120] sm:$0xff]
    %v3041 = vld [vmem:[#allocation17 + $0x128] sm:$0xff]
    %v3042 = vld [vmem:[#allocation17 + $0x130] sm:$0xff]
    %v3043 = vld [vmem:[#allocation17 + $0x138] sm:$0xff]
    %v3044 = vld [vmem:[#allocation17 + $0x140] sm:$0xff]
    %v3045 = vld [vmem:[#allocation17 + $0x148] sm:$0xff]
    %v3046 = vld [vmem:[#allocation17 + $0x150] sm:$0xff]
    %v3047 = vld [vmem:[#allocation17 + $0x158] sm:$0xff]
    %v3048 = vld [vmem:[#allocation17 + $0x160] sm:$0xff]
    %v3049 = vld [vmem:[#allocation17 + $0x168] sm:$0xff]
    %v3050 = vld [vmem:[#allocation17 + $0x170] sm:$0xff]
    %v3051 = vld [vmem:[#allocation17 + $0x178] sm:$0xff]
    %v3052 = vld [vmem:[#allocation17 + $0x180] sm:$0xff]
    %v3053 = vld [vmem:[#allocation17 + $0x188] sm:$0xff]
    %v3054 = vld [vmem:[#allocation17 + $0x190] sm:$0xff]
    %v3055 = vld [vmem:[#allocation17 + $0x198] sm:$0xff]
    %v3056 = vld [vmem:[#allocation17 + $0x1a0] sm:$0xff]
    %v3057 = vld [vmem:[#allocation17 + $0x1a8] sm:$0xff]
    %v3058 = vld [vmem:[#allocation17 + $0x1b0] sm:$0xff]
    %v3059 = vld [vmem:[#allocation17 + $0x1b8] sm:$0xff]
    %v3060 = vld [vmem:[#allocation17 + $0x1c0] sm:$0xff]
    %v3061 = vld [vmem:[#allocation17 + $0x1c8] sm:$0xff]
    %v3062 = vld [vmem:[#allocation17 + $0x1d0] sm:$0xff]
    %v3063 = vld [vmem:[#allocation17 + $0x1d8] sm:$0xff]
    %v3064 = vld [vmem:[#allocation17 + $0x1e0] sm:$0xff]
    %v3065 = vld [vmem:[#allocation17 + $0x1e8] sm:$0xff]
    %v3066 = vld [vmem:[#allocation17 + $0x1f0] sm:$0xff]
    %v3067 = vld [vmem:[#allocation17 + $0x1f8] sm:$0xff]
    %v3068 = vld [vmem:[%s9] sm:$0xff]
    %v3069 = vld [vmem:[%s9 + $0x8] sm:$0xff]
    %v3070 = vld [vmem:[%s9 + $0x10] sm:$0xff]
    %v3071 = vld [vmem:[%s9 + $0x18] sm:$0xff]
    %v3072 = vld [vmem:[%s9 + $0x20] sm:$0xff]
    %v3073 = vld [vmem:[%s9 + $0x28] sm:$0xff]
    %v3074 = vld [vmem:[%s9 + $0x30] sm:$0xff]
    %v3075 = vld [vmem:[%s9 + $0x38] sm:$0xff]
    %v3077 = vsel %vm318, %v1666, 0
    %v3080 = vsel %vm318, %v3001, 0
    %v3082 = vsel %vm318, %v2999, 0
    %v3084 = vsel %vm318, %v2998, 0
    %3086 = vmatprep.subr.mxu0 %v3069
    %3087 = vmatpush1.msra.mxu0 %v3068
    %3088 = vmatprep.subr.mxu0 %v3071
    %3089 = vmatpush1.msra.mxu0 %v3070
    %3090 = vmatprep.subr.mxu0 %v3073
    %3091 = vmatpush1.msra.mxu0 %v3072
    %3092 = vmatprep.subr.mxu0 %v3075
    %3093 = vmatpush1.msra.mxu0 %v3074
    %3094 = vmatprep.subr.mxu0 0.0
    %3095 = vmatpush1.msra.mxu0 0.0
    %3096 = vmatprep.subr.mxu0 0.0
    %3097 = vmatpush1.msra.mxu0 0.0
    %3098 = vmatprep.subr.mxu0 0.0
    %3099 = vmatpush1.msra.mxu0 0.0
    %3100 = vmatprep.subr.mxu0 0.0
    %3101 = vmatpush1.msra.mxu0 0.0
    %3102 = vmatprep.subr.mxu0 0.0
    %3103 = vmatpush1.msra.mxu0 0.0
    %3104 = vmatprep.subr.mxu0 0.0
    %3105 = vmatpush1.msra.mxu0 0.0
    %3106 = vmatprep.subr.mxu0 0.0
    %3107 = vmatpush1.msra.mxu0 0.0
    %3108 = vmatprep.subr.mxu0 0.0
    %3109 = vmatpush1.msra.mxu0 0.0
    %3110 = vmatprep.subr.mxu0 0.0
    %3111 = vmatpush1.msra.mxu0 0.0
    %3112 = vmatprep.subr.mxu0 0.0
    %3113 = vmatpush1.msra.mxu0 0.0
    %3114 = vmatprep.subr.mxu0 0.0
    %3115 = vmatpush1.msra.mxu0 0.0
    %3116 = vmatprep.subr.mxu0 0.0
    %3117 = vmatpush1.msra.mxu0 0.0
    %3118 = vmatprep.subr.mxu0 0.0
    %3119 = vmatpush1.msra.mxu0 0.0
    %3120 = vmatprep.subr.mxu0 0.0
    %3121 = vmatpush1.msra.mxu0 0.0
    %3122 = vmatprep.subr.mxu0 0.0
    %3123 = vmatpush1.msra.mxu0 0.0
    %3124 = vmatprep.subr.mxu0 0.0
    %3125 = vmatpush1.msra.mxu0 0.0
    %3126 = vmatprep.subr.mxu0 0.0
    %3127 = vmatpush1.msra.mxu0 0.0
    %3128 = vmatprep.subr.mxu0 0.0
    %3129 = vmatpush1.msra.mxu0 0.0
    %3130 = vmatprep.subr.mxu0 0.0
    %3131 = vmatpush1.msra.mxu0 0.0
    %3132 = vmatprep.subr.mxu0 0.0
    %3133 = vmatpush1.msra.mxu0 0.0
    %3134 = vmatprep.subr.mxu0 0.0
    %3135 = vmatpush1.msra.mxu0 0.0
    %3136 = vmatprep.subr.mxu0 0.0
    %3137 = vmatpush1.msra.mxu0 0.0
    %3138 = vmatprep.subr.mxu0 0.0
    %3139 = vmatpush1.msra.mxu0 0.0
    %3140 = vmatprep.subr.mxu0 0.0
    %3141 = vmatpush1.msra.mxu0 0.0
    %3142 = vmatprep.subr.mxu0 0.0
    %3143 = vmatpush1.msra.mxu0 0.0
    %3144 = vmatprep.subr.mxu0 0.0
    %3145 = vmatpush1.msra.mxu0 0.0
    %3146 = vmatprep.subr.mxu0 0.0
    %3147 = vmatpush1.msra.mxu0 0.0
    %3148 = vmatprep.subr.mxu0 0.0
    %3149 = vmatpush1.msra.mxu0 0.0
    %3150 = vmatprep.mubr.f32.mxu0 0.0
    %3151 = vmatmul.mubr.f32.gmra.mrb[0].mxu0 %v3077
    %v3152 = vpop.f32.mrb[0].mxu0
    %v3153 = vadd.f32 0.0, %v3152
    %v3154 = vpop.f32.mrb[0].mxu0
    %v3155 = vadd.f32 0.0, %v3154
    %3156 = vmatprep.mubr.f32.mxu0 0.0
    %3157 = vmatmul.mubr.f32.gmra.mrb[0].mxu0 %v3080
    %v3158 = vpop.f32.mrb[0].mxu0
    %v3159 = vadd.f32 0.0, %v3158
    %v3160 = vpop.f32.mrb[0].mxu0
    %v3161 = vadd.f32 0.0, %v3160
    %3162 = vmatprep.mubr.f32.mxu0 0.0
    %3163 = vmatmul.mubr.f32.gmra.mrb[0].mxu0 %v3082
    %v3164 = vpop.f32.mrb[0].mxu0
    %v3165 = vadd.f32 0.0, %v3164
    %v3166 = vpop.f32.mrb[0].mxu0
    %v3167 = vadd.f32 0.0, %v3166
    %3168 = vmatprep.mubr.f32.mxu0 0.0
    %3169 = vmatmul.mubr.f32.gmra.mrb[0].mxu0 %v3084
    %v3170 = vpop.f32.mrb[0].mxu0
    %v3171 = vadd.f32 0.0, %v3170
    %v3172 = vpop.f32.mrb[0].mxu0
    %v3173 = vadd.f32 0.0, %v3172
    %3174 = vdwg.mxu0
    %v3176 = vlaneseq
    %v3177 = vshrl.u32 %v3176, 7
    %v3178 = vsub.s32 0, %v3177
    %v3179 = vrot.slane %v3002, %v3178
    %v3180 = vlaneseq
    %v3181 = vshrl.u32 %v3180, 7
    %v3182 = vsub.s32 1, %v3181
    %v3183 = vrot.slane %v3002, %v3182
    %v3186 = vmul.f32 %v3153, %v3179
    %v3187 = vmul.f32 %v3155, %v3183
    %v3188 = vmul.f32 %v3159, %v3179
    %v3189 = vmul.f32 %v3161, %v3183
    %v3190 = vmul.f32 %v3165, %v3179
    %v3191 = vmul.f32 %v3167, %v3183
    %v3192 = vmul.f32 %v3171, %v3179
    %v3193 = vmul.f32 %v3173, %v3183
    %v3195 = vlaneseq
    %v3196 = vshrl.u32 %v3195, 7
    %v3197 = vsub.s32 0, %v3196
    %v3198 = vrot.slane %v3003, %v3197
    %v3199 = vlaneseq
    %v3200 = vshrl.u32 %v3199, 7
    %v3201 = vsub.s32 1, %v3200
    %v3202 = vrot.slane %v3003, %v3201
    %v3205 = vadd.f32 %v3186, %v3198
    %v3206 = vadd.f32 %v3187, %v3202
    %v3207 = vadd.f32 %v3188, %v3198
    %v3208 = vadd.f32 %v3189, %v3202
    %v3209 = vadd.f32 %v3190, %v3198
    %v3210 = vadd.f32 %v3191, %v3202
    %v3211 = vadd.f32 %v3192, %v3198
    %v3212 = vadd.f32 %v3193, %v3202
    %v3213 = vld [vmem:[#allocation16] sm:$0xff]
    %v3214 = vld [vmem:[#allocation16 + $0x8] sm:$0xff]
    %v3215 = vld [vmem:[#allocation16 + $0x10] sm:$0xff]
    %v3216 = vld [vmem:[#allocation16 + $0x18] sm:$0x3]
    %vm3217 = vcmask 211968
    %v3219 = vsel %vm3217, %v3213, 0
    %v3222 = vsel %vm3217, %v3214, 0
    %v3225 = vsel %vm3217, %v3215, 0
    %v3228 = vsel %vm3217, %v3216, 0
    %vm3230 = vcmask 1041408
    %v3232 = vsel %vm3230, %v3211, 0
    %3234 = vmatprep.subr.mxu0 0.0
    %3235 = vmatpush1.msra.mxu0 %v3205
    %3236 = vmatprep.subr.mxu0 0.0
    %3237 = vmatpush1.msra.mxu0 %v3207
    %3238 = vmatprep.subr.mxu0 0.0
    %3239 = vmatpush1.msra.mxu0 %v3209
    %3240 = vmatprep.subr.mxu0 0.0
    %3241 = vmatpush1.msra.mxu0 %v3232
    %3242 = vmatprep.subr.mxu0 0.0
    %3243 = vmatpush1.msra.mxu0 0.0
    %3244 = vmatprep.subr.mxu0 0.0
    %3245 = vmatpush1.msra.mxu0 0.0
    %3246 = vmatprep.subr.mxu0 0.0
    %3247 = vmatpush1.msra.mxu0 0.0
    %3248 = vmatprep.subr.mxu0 0.0
    %3249 = vmatpush1.msra.mxu0 0.0
    %3250 = vmatprep.subr.mxu0 0.0
    %3251 = vmatpush1.msra.mxu0 0.0
    %3252 = vmatprep.subr.mxu0 0.0
    %3253 = vmatpush1.msra.mxu0 0.0
    %3254 = vmatprep.subr.mxu0 0.0
    %3255 = vmatpush1.msra.mxu0 0.0
    %3256 = vmatprep.subr.mxu0 0.0
    %3257 = vmatpush1.msra.mxu0 0.0
    %3258 = vmatprep.subr.mxu0 0.0
    %3259 = vmatpush1.msra.mxu0 0.0
    %3260 = vmatprep.subr.mxu0 0.0
    %3261 = vmatpush1.msra.mxu0 0.0
    %3262 = vmatprep.subr.mxu0 0.0
    %3263 = vmatpush1.msra.mxu0 0.0
    %3264 = vmatprep.subr.mxu0 0.0
    %3265 = vmatpush1.msra.mxu0 0.0
    %3266 = vmatprep.subr.mxu0 0.0
    %3267 = vmatpush1.msra.mxu0 0.0
    %3268 = vmatprep.subr.mxu0 0.0
    %3269 = vmatpush1.msra.mxu0 0.0
    %3270 = vmatprep.subr.mxu0 0.0
    %3271 = vmatpush1.msra.mxu0 0.0
    %3272 = vmatprep.subr.mxu0 0.0
    %3273 = vmatpush1.msra.mxu0 0.0
    %3274 = vmatprep.subr.mxu0 0.0
    %3275 = vmatpush1.msra.mxu0 0.0
    %3276 = vmatprep.subr.mxu0 0.0
    %3277 = vmatpush1.msra.mxu0 0.0
    %3278 = vmatprep.subr.mxu0 0.0
    %3279 = vmatpush1.msra.mxu0 0.0
    %3280 = vmatprep.subr.mxu0 0.0
    %3281 = vmatpush1.msra.mxu0 0.0
    %3282 = vmatprep.subr.mxu0 0.0
    %3283 = vmatpush1.msra.mxu0 0.0
    %3284 = vmatprep.subr.mxu0 0.0
    %3285 = vmatpush1.msra.mxu0 0.0
    %3286 = vmatprep.subr.mxu0 0.0
    %3287 = vmatpush1.msra.mxu0 0.0
    %3288 = vmatprep.subr.mxu0 0.0
    %3289 = vmatpush1.msra.mxu0 0.0
    %3290 = vmatprep.subr.mxu0 0.0
    %3291 = vmatpush1.msra.mxu0 0.0
    %3292 = vmatprep.subr.mxu0 0.0
    %3293 = vmatpush1.msra.mxu0 0.0
    %3294 = vmatprep.subr.mxu0 0.0
    %3295 = vmatpush1.msra.mxu0 0.0
    %3296 = vmatprep.subr.mxu0 0.0
    %3297 = vmatpush1.msra.mxu0 0.0
    %3298 = vmatprep.mubr.f32.mxu0 0.0
    %3299 = vmatmul.mubr.f32.gmra.mrb[0].mxu0 %v3219
    %v3300 = vpop.f32.mrb[0].mxu0
    %v3301 = vadd.f32 0.0, %v3300
    %v3302 = vpop.f32.mrb[0].mxu0
    %3303 = vmatprep.mubr.f32.mxu0 0.0
    %3304 = vmatmul.mubr.f32.gmra.mrb[0].mxu0 %v3222
    %v3305 = vpop.f32.mrb[0].mxu0
    %v3306 = vadd.f32 0.0, %v3305
    %v3307 = vpop.f32.mrb[0].mxu0
    %3308 = vmatprep.mubr.f32.mxu0 0.0
    %3309 = vmatmul.mubr.f32.gmra.mrb[0].mxu0 %v3225
    %v3310 = vpop.f32.mrb[0].mxu0
    %v3311 = vadd.f32 0.0, %v3310
    %v3312 = vpop.f32.mrb[0].mxu0
    %3313 = vmatprep.mubr.f32.mxu0 0.0
    %3314 = vmatmul.mubr.f32.gmra.mrb[0].mxu0 %v3228
    %v3315 = vpop.f32.mrb[0].mxu0
    %v3316 = vadd.f32 0.0, %v3315
    %v3317 = vpop.f32.mrb[0].mxu0
    %3318 = vdwg.mxu0
    %s3319 = scalar_lea.vmem [#allocation16], 32
    %v3320 = vld [vmem:[%s3319] sm:$0xff]
    %v3321 = vld [vmem:[%s3319 + $0x8] sm:$0xff]
    %v3322 = vld [vmem:[%s3319 + $0x10] sm:$0xff]
    %v3323 = vld [vmem:[%s3319 + $0x18] sm:$0x3]
    %3327 = vrot.lane.b32.xlu0 %v3205, 96
    %v3328 = vpop.permute.xlu0 %3327
    %3329 = vrot.lane.b32.xlu0 %v3207, 96
    %v3330 = vpop.permute.xlu0 %3329
    %3331 = vrot.lane.b32.xlu0 %v3209, 96
    %v3332 = vpop.permute.xlu0 %3331
    %3333 = vrot.lane.b32.xlu0 %v3211, 96
    %v3334 = vpop.permute.xlu0 %3333
    %v3339 = vsel %vm3217, %v3320, 0
    %v3342 = vsel %vm3217, %v3321, 0
    %v3345 = vsel %vm3217, %v3322, 0
    %v3348 = vsel %vm3217, %v3323, 0
    %v3350 = vsel %vm3230, %v3334, 0
    %3352 = vmatprep.subr.mxu0 0.0
    %3353 = vmatpush1.msra.mxu0 %v3328
    %3354 = vmatprep.subr.mxu0 0.0
    %3355 = vmatpush1.msra.mxu0 %v3330
    %3356 = vmatprep.subr.mxu0 0.0
    %3357 = vmatpush1.msra.mxu0 %v3332
    %3358 = vmatprep.subr.mxu0 0.0
    %3359 = vmatpush1.msra.mxu0 %v3350
    %3360 = vmatprep.subr.mxu0 0.0
    %3361 = vmatpush1.msra.mxu0 0.0
    %3362 = vmatprep.subr.mxu0 0.0
    %3363 = vmatpush1.msra.mxu0 0.0
    %3364 = vmatprep.subr.mxu0 0.0
    %3365 = vmatpush1.msra.mxu0 0.0
    %3366 = vmatprep.subr.mxu0 0.0
    %3367 = vmatpush1.msra.mxu0 0.0
    %3368 = vmatprep.subr.mxu0 0.0
    %3369 = vmatpush1.msra.mxu0 0.0
    %3370 = vmatprep.subr.mxu0 0.0
    %3371 = vmatpush1.msra.mxu0 0.0
    %3372 = vmatprep.subr.mxu0 0.0
    %3373 = vmatpush1.msra.mxu0 0.0
    %3374 = vmatprep.subr.mxu0 0.0
    %3375 = vmatpush1.msra.mxu0 0.0
    %3376 = vmatprep.subr.mxu0 0.0
    %3377 = vmatpush1.msra.mxu0 0.0
    %3378 = vmatprep.subr.mxu0 0.0
    %3379 = vmatpush1.msra.mxu0 0.0
    %3380 = vmatprep.subr.mxu0 0.0
    %3381 = vmatpush1.msra.mxu0 0.0
    %3382 = vmatprep.subr.mxu0 0.0
    %3383 = vmatpush1.msra.mxu0 0.0
    %3384 = vmatprep.subr.mxu0 0.0
    %3385 = vmatpush1.msra.mxu0 0.0
    %3386 = vmatprep.subr.mxu0 0.0
    %3387 = vmatpush1.msra.mxu0 0.0
    %3388 = vmatprep.subr.mxu0 0.0
    %3389 = vmatpush1.msra.mxu0 0.0
    %3390 = vmatprep.subr.mxu0 0.0
    %3391 = vmatpush1.msra.mxu0 0.0
    %3392 = vmatprep.subr.mxu0 0.0
    %3393 = vmatpush1.msra.mxu0 0.0
    %3394 = vmatprep.subr.mxu0 0.0
    %3395 = vmatpush1.msra.mxu0 0.0
    %3396 = vmatprep.subr.mxu0 0.0
    %3397 = vmatpush1.msra.mxu0 0.0
    %3398 = vmatprep.subr.mxu0 0.0
    %3399 = vmatpush1.msra.mxu0 0.0
    %3400 = vmatprep.subr.mxu0 0.0
    %3401 = vmatpush1.msra.mxu0 0.0
    %3402 = vmatprep.subr.mxu0 0.0
    %3403 = vmatpush1.msra.mxu0 0.0
    %3404 = vmatprep.subr.mxu0 0.0
    %3405 = vmatpush1.msra.mxu0 0.0
    %3406 = vmatprep.subr.mxu0 0.0
    %3407 = vmatpush1.msra.mxu0 0.0
    %3408 = vmatprep.subr.mxu0 0.0
    %3409 = vmatpush1.msra.mxu0 0.0
    %3410 = vmatprep.subr.mxu0 0.0
    %3411 = vmatpush1.msra.mxu0 0.0
    %3412 = vmatprep.subr.mxu0 0.0
    %3413 = vmatpush1.msra.mxu0 0.0
    %3414 = vmatprep.subr.mxu0 0.0
    %3415 = vmatpush1.msra.mxu0 0.0
    %3416 = vmatprep.mubr.f32.mxu0 0.0
    %3417 = vmatmul.mubr.f32.gmra.mrb[0].mxu0 %v3339
    %v3418 = vpop.f32.mrb[0].mxu0
    %v3419 = vadd.f32 0.0, %v3418
    %v3420 = vpop.f32.mrb[0].mxu0
    %3421 = vmatprep.mubr.f32.mxu0 0.0
    %3422 = vmatmul.mubr.f32.gmra.mrb[0].mxu0 %v3342
    %v3423 = vpop.f32.mrb[0].mxu0
    %v3424 = vadd.f32 0.0, %v3423
    %v3425 = vpop.f32.mrb[0].mxu0
    %3426 = vmatprep.mubr.f32.mxu0 0.0
    %3427 = vmatmul.mubr.f32.gmra.mrb[0].mxu0 %v3345
    %v3428 = vpop.f32.mrb[0].mxu0
    %v3429 = vadd.f32 0.0, %v3428
    %v3430 = vpop.f32.mrb[0].mxu0
    %3431 = vmatprep.mubr.f32.mxu0 0.0
    %3432 = vmatmul.mubr.f32.gmra.mrb[0].mxu0 %v3348
    %v3433 = vpop.f32.mrb[0].mxu0
    %v3434 = vadd.f32 0.0, %v3433
    %v3435 = vpop.f32.mrb[0].mxu0
    %3436 = vdwg.mxu0
    %s3437 = scalar_lea.vmem [#allocation16], 64
    %v3438 = vld [vmem:[%s3437] sm:$0xff]
    %v3439 = vld [vmem:[%s3437 + $0x8] sm:$0xff]
    %v3440 = vld [vmem:[%s3437 + $0x10] sm:$0xff]
    %v3441 = vld [vmem:[%s3437 + $0x18] sm:$0x3]
    %3442 = vrot.lane.b32.xlu0 %v3205, 64
    %v3443 = vpop.permute.xlu0 %3442
    %3444 = vrot.lane.b32.xlu0 %v3207, 64
    %v3445 = vpop.permute.xlu0 %3444
    %3446 = vrot.lane.b32.xlu0 %v3209, 64
    %v3447 = vpop.permute.xlu0 %3446
    %3448 = vrot.lane.b32.xlu0 %v3211, 64
    %v3449 = vpop.permute.xlu0 %3448
    %v3454 = vsel %vm3217, %v3438, 0
    %v3457 = vsel %vm3217, %v3439, 0
    %v3460 = vsel %vm3217, %v3440, 0
    %v3463 = vsel %vm3217, %v3441, 0
    %v3465 = vsel %vm3230, %v3449, 0
    %3467 = vmatprep.subr.mxu0 0.0
    %3468 = vmatpush1.msra.mxu0 %v3443
    %3469 = vmatprep.subr.mxu0 0.0
    %3470 = vmatpush1.msra.mxu0 %v3445
    %3471 = vmatprep.subr.mxu0 0.0
    %3472 = vmatpush1.msra.mxu0 %v3447
    %3473 = vmatprep.subr.mxu0 0.0
    %3474 = vmatpush1.msra.mxu0 %v3465
    %3475 = vmatprep.subr.mxu0 0.0
    %3476 = vmatpush1.msra.mxu0 0.0
    %3477 = vmatprep.subr.mxu0 0.0
    %3478 = vmatpush1.msra.mxu0 0.0
    %3479 = vmatprep.subr.mxu0 0.0
    %3480 = vmatpush1.msra.mxu0 0.0
    %3481 = vmatprep.subr.mxu0 0.0
    %3482 = vmatpush1.msra.mxu0 0.0
    %3483 = vmatprep.subr.mxu0 0.0
    %3484 = vmatpush1.msra.mxu0 0.0
    %3485 = vmatprep.subr.mxu0 0.0
    %3486 = vmatpush1.msra.mxu0 0.0
    %3487 = vmatprep.subr.mxu0 0.0
    %3488 = vmatpush1.msra.mxu0 0.0
    %3489 = vmatprep.subr.mxu0 0.0
    %3490 = vmatpush1.msra.mxu0 0.0
    %3491 = vmatprep.subr.mxu0 0.0
    %3492 = vmatpush1.msra.mxu0 0.0
    %3493 = vmatprep.subr.mxu0 0.0
    %3494 = vmatpush1.msra.mxu0 0.0
    %3495 = vmatprep.subr.mxu0 0.0
    %3496 = vmatpush1.msra.mxu0 0.0
    %3497 = vmatprep.subr.mxu0 0.0
    %3498 = vmatpush1.msra.mxu0 0.0
    %3499 = vmatprep.subr.mxu0 0.0
    %3500 = vmatpush1.msra.mxu0 0.0
    %3501 = vmatprep.subr.mxu0 0.0
    %3502 = vmatpush1.msra.mxu0 0.0
    %3503 = vmatprep.subr.mxu0 0.0
    %3504 = vmatpush1.msra.mxu0 0.0
    %3505 = vmatprep.subr.mxu0 0.0
    %3506 = vmatpush1.msra.mxu0 0.0
    %3507 = vmatprep.subr.mxu0 0.0
    %3508 = vmatpush1.msra.mxu0 0.0
    %3509 = vmatprep.subr.mxu0 0.0
    %3510 = vmatpush1.msra.mxu0 0.0
    %3511 = vmatprep.subr.mxu0 0.0
    %3512 = vmatpush1.msra.mxu0 0.0
    %3513 = vmatprep.subr.mxu0 0.0
    %3514 = vmatpush1.msra.mxu0 0.0
    %3515 = vmatprep.subr.mxu0 0.0
    %3516 = vmatpush1.msra.mxu0 0.0
    %3517 = vmatprep.subr.mxu0 0.0
    %3518 = vmatpush1.msra.mxu0 0.0
    %3519 = vmatprep.subr.mxu0 0.0
    %3520 = vmatpush1.msra.mxu0 0.0
    %3521 = vmatprep.subr.mxu0 0.0
    %3522 = vmatpush1.msra.mxu0 0.0
    %3523 = vmatprep.subr.mxu0 0.0
    %3524 = vmatpush1.msra.mxu0 0.0
    %3525 = vmatprep.subr.mxu0 0.0
    %3526 = vmatpush1.msra.mxu0 0.0
    %3527 = vmatprep.subr.mxu0 0.0
    %3528 = vmatpush1.msra.mxu0 0.0
    %3529 = vmatprep.subr.mxu0 0.0
    %3530 = vmatpush1.msra.mxu0 0.0
    %3531 = vmatprep.mubr.f32.mxu0 0.0
    %3532 = vmatmul.mubr.f32.gmra.mrb[0].mxu0 %v3454
    %v3533 = vpop.f32.mrb[0].mxu0
    %v3534 = vadd.f32 0.0, %v3533
    %v3535 = vpop.f32.mrb[0].mxu0
    %3536 = vmatprep.mubr.f32.mxu0 0.0
    %3537 = vmatmul.mubr.f32.gmra.mrb[0].mxu0 %v3457
    %v3538 = vpop.f32.mrb[0].mxu0
    %v3539 = vadd.f32 0.0, %v3538
    %v3540 = vpop.f32.mrb[0].mxu0
    %3541 = vmatprep.mubr.f32.mxu0 0.0
    %3542 = vmatmul.mubr.f32.gmra.mrb[0].mxu0 %v3460
    %v3543 = vpop.f32.mrb[0].mxu0
    %v3544 = vadd.f32 0.0, %v3543
    %v3545 = vpop.f32.mrb[0].mxu0
    %3546 = vmatprep.mubr.f32.mxu0 0.0
    %3547 = vmatmul.mubr.f32.gmra.mrb[0].mxu0 %v3463
    %v3548 = vpop.f32.mrb[0].mxu0
    %v3549 = vadd.f32 0.0, %v3548
    %v3550 = vpop.f32.mrb[0].mxu0
    %3551 = vdwg.mxu0
    %s3552 = scalar_lea.vmem [#allocation16], 96
    %v3553 = vld [vmem:[%s3552] sm:$0xff]
    %v3554 = vld [vmem:[%s3552 + $0x8] sm:$0xff]
    %v3555 = vld [vmem:[%s3552 + $0x10] sm:$0xff]
    %v3556 = vld [vmem:[%s3552 + $0x18] sm:$0x3]
    %3557 = vrot.lane.b32.xlu0 %v3205, 32
    %v3558 = vpop.permute.xlu0 %3557
    %3559 = vrot.lane.b32.xlu0 %v3207, 32
    %v3560 = vpop.permute.xlu0 %3559
    %3561 = vrot.lane.b32.xlu0 %v3209, 32
    %v3562 = vpop.permute.xlu0 %3561
    %3563 = vrot.lane.b32.xlu0 %v3211, 32
    %v3564 = vpop.permute.xlu0 %3563
    %v3569 = vsel %vm3217, %v3553, 0
    %v3572 = vsel %vm3217, %v3554, 0
    %v3575 = vsel %vm3217, %v3555, 0
    %v3578 = vsel %vm3217, %v3556, 0
    %v3580 = vsel %vm3230, %v3564, 0
    %3582 = vmatprep.subr.mxu0 0.0
    %3583 = vmatpush1.msra.mxu0 %v3558
    %3584 = vmatprep.subr.mxu0 0.0
    %3585 = vmatpush1.msra.mxu0 %v3560
    %3586 = vmatprep.subr.mxu0 0.0
    %3587 = vmatpush1.msra.mxu0 %v3562
    %3588 = vmatprep.subr.mxu0 0.0
    %3589 = vmatpush1.msra.mxu0 %v3580
    %3590 = vmatprep.subr.mxu0 0.0
    %3591 = vmatpush1.msra.mxu0 0.0
    %3592 = vmatprep.subr.mxu0 0.0
    %3593 = vmatpush1.msra.mxu0 0.0
    %3594 = vmatprep.subr.mxu0 0.0
    %3595 = vmatpush1.msra.mxu0 0.0
    %3596 = vmatprep.subr.mxu0 0.0
    %3597 = vmatpush1.msra.mxu0 0.0
    %3598 = vmatprep.subr.mxu0 0.0
    %3599 = vmatpush1.msra.mxu0 0.0
    %3600 = vmatprep.subr.mxu0 0.0
    %3601 = vmatpush1.msra.mxu0 0.0
    %3602 = vmatprep.subr.mxu0 0.0
    %3603 = vmatpush1.msra.mxu0 0.0
    %3604 = vmatprep.subr.mxu0 0.0
    %3605 = vmatpush1.msra.mxu0 0.0
    %3606 = vmatprep.subr.mxu0 0.0
    %3607 = vmatpush1.msra.mxu0 0.0
    %3608 = vmatprep.subr.mxu0 0.0
    %3609 = vmatpush1.msra.mxu0 0.0
    %3610 = vmatprep.subr.mxu0 0.0
    %3611 = vmatpush1.msra.mxu0 0.0
    %3612 = vmatprep.subr.mxu0 0.0
    %3613 = vmatpush1.msra.mxu0 0.0
    %3614 = vmatprep.subr.mxu0 0.0
    %3615 = vmatpush1.msra.mxu0 0.0
    %3616 = vmatprep.subr.mxu0 0.0
    %3617 = vmatpush1.msra.mxu0 0.0
    %3618 = vmatprep.subr.mxu0 0.0
    %3619 = vmatpush1.msra.mxu0 0.0
    %3620 = vmatprep.subr.mxu0 0.0
    %3621 = vmatpush1.msra.mxu0 0.0
    %3622 = vmatprep.subr.mxu0 0.0
    %3623 = vmatpush1.msra.mxu0 0.0
    %3624 = vmatprep.subr.mxu0 0.0
    %3625 = vmatpush1.msra.mxu0 0.0
    %3626 = vmatprep.subr.mxu0 0.0
    %3627 = vmatpush1.msra.mxu0 0.0
    %3628 = vmatprep.subr.mxu0 0.0
    %3629 = vmatpush1.msra.mxu0 0.0
    %3630 = vmatprep.subr.mxu0 0.0
    %3631 = vmatpush1.msra.mxu0 0.0
    %3632 = vmatprep.subr.mxu0 0.0
    %3633 = vmatpush1.msra.mxu0 0.0
    %3634 = vmatprep.subr.mxu0 0.0
    %3635 = vmatpush1.msra.mxu0 0.0
    %3636 = vmatprep.subr.mxu0 0.0
    %3637 = vmatpush1.msra.mxu0 0.0
    %3638 = vmatprep.subr.mxu0 0.0
    %3639 = vmatpush1.msra.mxu0 0.0
    %3640 = vmatprep.subr.mxu0 0.0
    %3641 = vmatpush1.msra.mxu0 0.0
    %3642 = vmatprep.subr.mxu0 0.0
    %3643 = vmatpush1.msra.mxu0 0.0
    %3644 = vmatprep.subr.mxu0 0.0
    %3645 = vmatpush1.msra.mxu0 0.0
    %3646 = vmatprep.mubr.f32.mxu0 0.0
    %3647 = vmatmul.mubr.f32.gmra.mrb[0].mxu0 %v3569
    %v3648 = vpop.f32.mrb[0].mxu0
    %v3649 = vadd.f32 0.0, %v3648
    %v3650 = vpop.f32.mrb[0].mxu0
    %3651 = vmatprep.mubr.f32.mxu0 0.0
    %3652 = vmatmul.mubr.f32.gmra.mrb[0].mxu0 %v3572
    %v3653 = vpop.f32.mrb[0].mxu0
    %v3654 = vadd.f32 0.0, %v3653
    %v3655 = vpop.f32.mrb[0].mxu0
    %3656 = vmatprep.mubr.f32.mxu0 0.0
    %3657 = vmatmul.mubr.f32.gmra.mrb[0].mxu0 %v3575
    %v3658 = vpop.f32.mrb[0].mxu0
    %v3659 = vadd.f32 0.0, %v3658
    %v3660 = vpop.f32.mrb[0].mxu0
    %3661 = vmatprep.mubr.f32.mxu0 0.0
    %3662 = vmatmul.mubr.f32.gmra.mrb[0].mxu0 %v3578
    %v3663 = vpop.f32.mrb[0].mxu0
    %v3664 = vadd.f32 0.0, %v3663
    %v3665 = vpop.f32.mrb[0].mxu0
    %3666 = vdwg.mxu0
    %s3667 = scalar_lea.vmem [#allocation16], 128
    %v3668 = vld [vmem:[%s3667] sm:$0xff]
    %v3669 = vld [vmem:[%s3667 + $0x8] sm:$0xff]
    %v3670 = vld [vmem:[%s3667 + $0x10] sm:$0xff]
    %v3671 = vld [vmem:[%s3667 + $0x18] sm:$0x3]
    %v3673 = vsel %vm3217, %v3668, 0
    %v3676 = vsel %vm3217, %v3669, 0
    %v3679 = vsel %vm3217, %v3670, 0
    %v3682 = vsel %vm3217, %v3671, 0
    %v3685 = vsel %vm3230, %v3212, 0
    %3687 = vmatprep.subr.mxu0 0.0
    %3688 = vmatpush1.msra.mxu0 %v3206
    %3689 = vmatprep.subr.mxu0 0.0
    %3690 = vmatpush1.msra.mxu0 %v3208
    %3691 = vmatprep.subr.mxu0 0.0
    %3692 = vmatpush1.msra.mxu0 %v3210
    %3693 = vmatprep.subr.mxu0 0.0
    %3694 = vmatpush1.msra.mxu0 %v3685
    %3695 = vmatprep.subr.mxu0 0.0
    %3696 = vmatpush1.msra.mxu0 0.0
    %3697 = vmatprep.subr.mxu0 0.0
    %3698 = vmatpush1.msra.mxu0 0.0
    %3699 = vmatprep.subr.mxu0 0.0
    %3700 = vmatpush1.msra.mxu0 0.0
    %3701 = vmatprep.subr.mxu0 0.0
    %3702 = vmatpush1.msra.mxu0 0.0
    %3703 = vmatprep.subr.mxu0 0.0
    %3704 = vmatpush1.msra.mxu0 0.0
    %3705 = vmatprep.subr.mxu0 0.0
    %3706 = vmatpush1.msra.mxu0 0.0
    %3707 = vmatprep.subr.mxu0 0.0
    %3708 = vmatpush1.msra.mxu0 0.0
    %3709 = vmatprep.subr.mxu0 0.0
    %3710 = vmatpush1.msra.mxu0 0.0
    %3711 = vmatprep.subr.mxu0 0.0
    %3712 = vmatpush1.msra.mxu0 0.0
    %3713 = vmatprep.subr.mxu0 0.0
    %3714 = vmatpush1.msra.mxu0 0.0
    %3715 = vmatprep.subr.mxu0 0.0
    %3716 = vmatpush1.msra.mxu0 0.0
    %3717 = vmatprep.subr.mxu0 0.0
    %3718 = vmatpush1.msra.mxu0 0.0
    %3719 = vmatprep.subr.mxu0 0.0
    %3720 = vmatpush1.msra.mxu0 0.0
    %3721 = vmatprep.subr.mxu0 0.0
    %3722 = vmatpush1.msra.mxu0 0.0
    %3723 = vmatprep.subr.mxu0 0.0
    %3724 = vmatpush1.msra.mxu0 0.0
    %3725 = vmatprep.subr.mxu0 0.0
    %3726 = vmatpush1.msra.mxu0 0.0
    %3727 = vmatprep.subr.mxu0 0.0
    %3728 = vmatpush1.msra.mxu0 0.0
    %3729 = vmatprep.subr.mxu0 0.0
    %3730 = vmatpush1.msra.mxu0 0.0
    %3731 = vmatprep.subr.mxu0 0.0
    %3732 = vmatpush1.msra.mxu0 0.0
    %3733 = vmatprep.subr.mxu0 0.0
    %3734 = vmatpush1.msra.mxu0 0.0
    %3735 = vmatprep.subr.mxu0 0.0
    %3736 = vmatpush1.msra.mxu0 0.0
    %3737 = vmatprep.subr.mxu0 0.0
    %3738 = vmatpush1.msra.mxu0 0.0
    %3739 = vmatprep.subr.mxu0 0.0
    %3740 = vmatpush1.msra.mxu0 0.0
    %3741 = vmatprep.subr.mxu0 0.0
    %3742 = vmatpush1.msra.mxu0 0.0
    %3743 = vmatprep.subr.mxu0 0.0
    %3744 = vmatpush1.msra.mxu0 0.0
    %3745 = vmatprep.subr.mxu0 0.0
    %3746 = vmatpush1.msra.mxu0 0.0
    %3747 = vmatprep.subr.mxu0 0.0
    %3748 = vmatpush1.msra.mxu0 0.0
    %3749 = vmatprep.subr.mxu0 0.0
    %3750 = vmatpush1.msra.mxu0 0.0
    %3751 = vmatprep.mubr.f32.mxu0 0.0
    %3752 = vmatmul.mubr.f32.gmra.mrb[0].mxu0 %v3673
    %v3753 = vpop.f32.mrb[0].mxu0
    %v3754 = vadd.f32 0.0, %v3753
    %v3755 = vpop.f32.mrb[0].mxu0
    %3756 = vmatprep.mubr.f32.mxu0 0.0
    %3757 = vmatmul.mubr.f32.gmra.mrb[0].mxu0 %v3676
    %v3758 = vpop.f32.mrb[0].mxu0
    %v3759 = vadd.f32 0.0, %v3758
    %v3760 = vpop.f32.mrb[0].mxu0
    %3761 = vmatprep.mubr.f32.mxu0 0.0
    %3762 = vmatmul.mubr.f32.gmra.mrb[0].mxu0 %v3679
    %v3763 = vpop.f32.mrb[0].mxu0
    %v3764 = vadd.f32 0.0, %v3763
    %v3765 = vpop.f32.mrb[0].mxu0
    %3766 = vmatprep.mubr.f32.mxu0 0.0
    %3767 = vmatmul.mubr.f32.gmra.mrb[0].mxu0 %v3682
    %v3768 = vpop.f32.mrb[0].mxu0
    %v3769 = vadd.f32 0.0, %v3768
    %v3770 = vpop.f32.mrb[0].mxu0
    %3771 = vdwg.mxu0
    %s3772 = scalar_lea.vmem [#allocation16], 160
    %v3773 = vld [vmem:[%s3772] sm:$0xff]
    %v3774 = vld [vmem:[%s3772 + $0x8] sm:$0xff]
    %v3775 = vld [vmem:[%s3772 + $0x10] sm:$0xff]
    %v3776 = vld [vmem:[%s3772 + $0x18] sm:$0x3]
    %3780 = vrot.lane.b32.xlu0 %v3206, 96
    %v3781 = vpop.permute.xlu0 %3780
    %3782 = vrot.lane.b32.xlu0 %v3208, 96
    %v3783 = vpop.permute.xlu0 %3782
    %3784 = vrot.lane.b32.xlu0 %v3210, 96
    %v3785 = vpop.permute.xlu0 %3784
    %3786 = vrot.lane.b32.xlu0 %v3212, 96
    %v3787 = vpop.permute.xlu0 %3786
    %v3792 = vsel %vm3217, %v3773, 0
    %v3795 = vsel %vm3217, %v3774, 0
    %v3798 = vsel %vm3217, %v3775, 0
    %v3801 = vsel %vm3217, %v3776, 0
    %v3803 = vsel %vm3230, %v3787, 0
    %3805 = vmatprep.subr.mxu0 0.0
    %3806 = vmatpush1.msra.mxu0 %v3781
    %3807 = vmatprep.subr.mxu0 0.0
    %3808 = vmatpush1.msra.mxu0 %v3783
    %3809 = vmatprep.subr.mxu0 0.0
    %3810 = vmatpush1.msra.mxu0 %v3785
    %3811 = vmatprep.subr.mxu0 0.0
    %3812 = vmatpush1.msra.mxu0 %v3803
    %3813 = vmatprep.subr.mxu0 0.0
    %3814 = vmatpush1.msra.mxu0 0.0
    %3815 = vmatprep.subr.mxu0 0.0
    %3816 = vmatpush1.msra.mxu0 0.0
    %3817 = vmatprep.subr.mxu0 0.0
    %3818 = vmatpush1.msra.mxu0 0.0
    %3819 = vmatprep.subr.mxu0 0.0
    %3820 = vmatpush1.msra.mxu0 0.0
    %3821 = vmatprep.subr.mxu0 0.0
    %3822 = vmatpush1.msra.mxu0 0.0
    %3823 = vmatprep.subr.mxu0 0.0
    %3824 = vmatpush1.msra.mxu0 0.0
    %3825 = vmatprep.subr.mxu0 0.0
    %3826 = vmatpush1.msra.mxu0 0.0
    %3827 = vmatprep.subr.mxu0 0.0
    %3828 = vmatpush1.msra.mxu0 0.0
    %3829 = vmatprep.subr.mxu0 0.0
    %3830 = vmatpush1.msra.mxu0 0.0
    %3831 = vmatprep.subr.mxu0 0.0
    %3832 = vmatpush1.msra.mxu0 0.0
    %3833 = vmatprep.subr.mxu0 0.0
    %3834 = vmatpush1.msra.mxu0 0.0
    %3835 = vmatprep.subr.mxu0 0.0
    %3836 = vmatpush1.msra.mxu0 0.0
    %3837 = vmatprep.subr.mxu0 0.0
    %3838 = vmatpush1.msra.mxu0 0.0
    %3839 = vmatprep.subr.mxu0 0.0
    %3840 = vmatpush1.msra.mxu0 0.0
    %3841 = vmatprep.subr.mxu0 0.0
    %3842 = vmatpush1.msra.mxu0 0.0
    %3843 = vmatprep.subr.mxu0 0.0
    %3844 = vmatpush1.msra.mxu0 0.0
    %3845 = vmatprep.subr.mxu0 0.0
    %3846 = vmatpush1.msra.mxu0 0.0
    %3847 = vmatprep.subr.mxu0 0.0
    %3848 = vmatpush1.msra.mxu0 0.0
    %3849 = vmatprep.subr.mxu0 0.0
    %3850 = vmatpush1.msra.mxu0 0.0
    %3851 = vmatprep.subr.mxu0 0.0
    %3852 = vmatpush1.msra.mxu0 0.0
    %3853 = vmatprep.subr.mxu0 0.0
    %3854 = vmatpush1.msra.mxu0 0.0
    %3855 = vmatprep.subr.mxu0 0.0
    %3856 = vmatpush1.msra.mxu0 0.0
    %3857 = vmatprep.subr.mxu0 0.0
    %3858 = vmatpush1.msra.mxu0 0.0
    %3859 = vmatprep.subr.mxu0 0.0
    %3860 = vmatpush1.msra.mxu0 0.0
    %3861 = vmatprep.subr.mxu0 0.0
    %3862 = vmatpush1.msra.mxu0 0.0
    %3863 = vmatprep.subr.mxu0 0.0
    %3864 = vmatpush1.msra.mxu0 0.0
    %3865 = vmatprep.subr.mxu0 0.0
    %3866 = vmatpush1.msra.mxu0 0.0
    %3867 = vmatprep.subr.mxu0 0.0
    %3868 = vmatpush1.msra.mxu0 0.0
    %3869 = vmatprep.mubr.f32.mxu0 0.0
    %3870 = vmatmul.mubr.f32.gmra.mrb[0].mxu0 %v3792
    %v3871 = vpop.f32.mrb[0].mxu0
    %v3872 = vadd.f32 0.0, %v3871
    %v3873 = vpop.f32.mrb[0].mxu0
    %3874 = vmatprep.mubr.f32.mxu0 0.0
    %3875 = vmatmul.mubr.f32.gmra.mrb[0].mxu0 %v3795
    %v3876 = vpop.f32.mrb[0].mxu0
    %v3877 = vadd.f32 0.0, %v3876
    %v3878 = vpop.f32.mrb[0].mxu0
    %3879 = vmatprep.mubr.f32.mxu0 0.0
    %3880 = vmatmul.mubr.f32.gmra.mrb[0].mxu0 %v3798
    %v3881 = vpop.f32.mrb[0].mxu0
    %v3882 = vadd.f32 0.0, %v3881
    %v3883 = vpop.f32.mrb[0].mxu0
    %3884 = vmatprep.mubr.f32.mxu0 0.0
    %3885 = vmatmul.mubr.f32.gmra.mrb[0].mxu0 %v3801
    %v3886 = vpop.f32.mrb[0].mxu0
    %v3887 = vadd.f32 0.0, %v3886
    %v3888 = vpop.f32.mrb[0].mxu0
    %3889 = vdwg.mxu0
    %s3890 = scalar_lea.vmem [#allocation16], 192
    %v3891 = vld [vmem:[%s3890] sm:$0xff]
    %v3892 = vld [vmem:[%s3890 + $0x8] sm:$0xff]
    %v3893 = vld [vmem:[%s3890 + $0x10] sm:$0xff]
    %v3894 = vld [vmem:[%s3890 + $0x18] sm:$0x3]
    %3895 = vrot.lane.b32.xlu0 %v3206, 64
    %v3896 = vpop.permute.xlu0 %3895
    %3897 = vrot.lane.b32.xlu0 %v3208, 64
    %v3898 = vpop.permute.xlu0 %3897
    %3899 = vrot.lane.b32.xlu0 %v3210, 64
    %v3900 = vpop.permute.xlu0 %3899
    %3901 = vrot.lane.b32.xlu0 %v3212, 64
    %v3902 = vpop.permute.xlu0 %3901
    %v3907 = vsel %vm3217, %v3891, 0
    %v3910 = vsel %vm3217, %v3892, 0
    %v3913 = vsel %vm3217, %v3893, 0
    %v3916 = vsel %vm3217, %v3894, 0
    %v3918 = vsel %vm3230, %v3902, 0
    %3920 = vmatprep.subr.mxu0 0.0
    %3921 = vmatpush1.msra.mxu0 %v3896
    %3922 = vmatprep.subr.mxu0 0.0
    %3923 = vmatpush1.msra.mxu0 %v3898
    %3924 = vmatprep.subr.mxu0 0.0
    %3925 = vmatpush1.msra.mxu0 %v3900
    %3926 = vmatprep.subr.mxu0 0.0
    %3927 = vmatpush1.msra.mxu0 %v3918
    %3928 = vmatprep.subr.mxu0 0.0
    %3929 = vmatpush1.msra.mxu0 0.0
    %3930 = vmatprep.subr.mxu0 0.0
    %3931 = vmatpush1.msra.mxu0 0.0
    %3932 = vmatprep.subr.mxu0 0.0
    %3933 = vmatpush1.msra.mxu0 0.0
    %3934 = vmatprep.subr.mxu0 0.0
    %3935 = vmatpush1.msra.mxu0 0.0
    %3936 = vmatprep.subr.mxu0 0.0
    %3937 = vmatpush1.msra.mxu0 0.0
    %3938 = vmatprep.subr.mxu0 0.0
    %3939 = vmatpush1.msra.mxu0 0.0
    %3940 = vmatprep.subr.mxu0 0.0
    %3941 = vmatpush1.msra.mxu0 0.0
    %3942 = vmatprep.subr.mxu0 0.0
    %3943 = vmatpush1.msra.mxu0 0.0
    %3944 = vmatprep.subr.mxu0 0.0
    %3945 = vmatpush1.msra.mxu0 0.0
    %3946 = vmatprep.subr.mxu0 0.0
    %3947 = vmatpush1.msra.mxu0 0.0
    %3948 = vmatprep.subr.mxu0 0.0
    %3949 = vmatpush1.msra.mxu0 0.0
    %3950 = vmatprep.subr.mxu0 0.0
    %3951 = vmatpush1.msra.mxu0 0.0
    %3952 = vmatprep.subr.mxu0 0.0
    %3953 = vmatpush1.msra.mxu0 0.0
    %3954 = vmatprep.subr.mxu0 0.0
    %3955 = vmatpush1.msra.mxu0 0.0
    %3956 = vmatprep.subr.mxu0 0.0
    %3957 = vmatpush1.msra.mxu0 0.0
    %3958 = vmatprep.subr.mxu0 0.0
    %3959 = vmatpush1.msra.mxu0 0.0
    %3960 = vmatprep.subr.mxu0 0.0
    %3961 = vmatpush1.msra.mxu0 0.0
    %3962 = vmatprep.subr.mxu0 0.0
    %3963 = vmatpush1.msra.mxu0 0.0
    %3964 = vmatprep.subr.mxu0 0.0
    %3965 = vmatpush1.msra.mxu0 0.0
    %3966 = vmatprep.subr.mxu0 0.0
    %3967 = vmatpush1.msra.mxu0 0.0
    %3968 = vmatprep.subr.mxu0 0.0
    %3969 = vmatpush1.msra.mxu0 0.0
    %3970 = vmatprep.subr.mxu0 0.0
    %3971 = vmatpush1.msra.mxu0 0.0
    %3972 = vmatprep.subr.mxu0 0.0
    %3973 = vmatpush1.msra.mxu0 0.0
    %3974 = vmatprep.subr.mxu0 0.0
    %3975 = vmatpush1.msra.mxu0 0.0
    %3976 = vmatprep.subr.mxu0 0.0
    %3977 = vmatpush1.msra.mxu0 0.0
    %3978 = vmatprep.subr.mxu0 0.0
    %3979 = vmatpush1.msra.mxu0 0.0
    %3980 = vmatprep.subr.mxu0 0.0
    %3981 = vmatpush1.msra.mxu0 0.0
    %3982 = vmatprep.subr.mxu0 0.0
    %3983 = vmatpush1.msra.mxu0 0.0
    %3984 = vmatprep.mubr.f32.mxu0 0.0
    %3985 = vmatmul.mubr.f32.gmra.mrb[0].mxu0 %v3907
    %v3986 = vpop.f32.mrb[0].mxu0
    %v3987 = vadd.f32 0.0, %v3986
    %v3988 = vpop.f32.mrb[0].mxu0
    %3989 = vmatprep.mubr.f32.mxu0 0.0
    %3990 = vmatmul.mubr.f32.gmra.mrb[0].mxu0 %v3910
    %v3991 = vpop.f32.mrb[0].mxu0
    %v3992 = vadd.f32 0.0, %v3991
    %v3993 = vpop.f32.mrb[0].mxu0
    %3994 = vmatprep.mubr.f32.mxu0 0.0
    %3995 = vmatmul.mubr.f32.gmra.mrb[0].mxu0 %v3913
    %v3996 = vpop.f32.mrb[0].mxu0
    %v3997 = vadd.f32 0.0, %v3996
    %v3998 = vpop.f32.mrb[0].mxu0
    %3999 = vmatprep.mubr.f32.mxu0 0.0
    %4000 = vmatmul.mubr.f32.gmra.mrb[0].mxu0 %v3916
    %v4001 = vpop.f32.mrb[0].mxu0
    %v4002 = vadd.f32 0.0, %v4001
    %v4003 = vpop.f32.mrb[0].mxu0
    %4004 = vdwg.mxu0
    %s4005 = scalar_lea.vmem [#allocation16], 224
    %v4006 = vld [vmem:[%s4005] sm:$0xff]
    %v4007 = vld [vmem:[%s4005 + $0x8] sm:$0xff]
    %v4008 = vld [vmem:[%s4005 + $0x10] sm:$0xff]
    %v4009 = vld [vmem:[%s4005 + $0x18] sm:$0x3]
    %4010 = vrot.lane.b32.xlu0 %v3206, 32
    %v4011 = vpop.permute.xlu0 %4010
    %4012 = vrot.lane.b32.xlu0 %v3208, 32
    %v4013 = vpop.permute.xlu0 %4012
    %4014 = vrot.lane.b32.xlu0 %v3210, 32
    %v4015 = vpop.permute.xlu0 %4014
    %4016 = vrot.lane.b32.xlu0 %v3212, 32
    %v4017 = vpop.permute.xlu0 %4016
    %v4022 = vsel %vm3217, %v4006, 0
    %v4025 = vsel %vm3217, %v4007, 0
    %v4028 = vsel %vm3217, %v4008, 0
    %v4031 = vsel %vm3217, %v4009, 0
    %v4033 = vsel %vm3230, %v4017, 0
    %4035 = vmatprep.subr.mxu0 0.0
    %4036 = vmatpush1.msra.mxu0 %v4011
    %4037 = vmatprep.subr.mxu0 0.0
    %4038 = vmatpush1.msra.mxu0 %v4013
    %4039 = vmatprep.subr.mxu0 0.0
    %4040 = vmatpush1.msra.mxu0 %v4015
    %4041 = vmatprep.subr.mxu0 0.0
    %4042 = vmatpush1.msra.mxu0 %v4033
    %4043 = vmatprep.subr.mxu0 0.0
    %4044 = vmatpush1.msra.mxu0 0.0
    %4045 = vmatprep.subr.mxu0 0.0
    %4046 = vmatpush1.msra.mxu0 0.0
    %4047 = vmatprep.subr.mxu0 0.0
    %4048 = vmatpush1.msra.mxu0 0.0
    %4049 = vmatprep.subr.mxu0 0.0
    %4050 = vmatpush1.msra.mxu0 0.0
    %4051 = vmatprep.subr.mxu0 0.0
    %4052 = vmatpush1.msra.mxu0 0.0
    %4053 = vmatprep.subr.mxu0 0.0
    %4054 = vmatpush1.msra.mxu0 0.0
    %4055 = vmatprep.subr.mxu0 0.0
    %4056 = vmatpush1.msra.mxu0 0.0
    %4057 = vmatprep.subr.mxu0 0.0
    %4058 = vmatpush1.msra.mxu0 0.0
    %4059 = vmatprep.subr.mxu0 0.0
    %4060 = vmatpush1.msra.mxu0 0.0
    %4061 = vmatprep.subr.mxu0 0.0
    %4062 = vmatpush1.msra.mxu0 0.0
    %4063 = vmatprep.subr.mxu0 0.0
    %4064 = vmatpush1.msra.mxu0 0.0
    %4065 = vmatprep.subr.mxu0 0.0
    %4066 = vmatpush1.msra.mxu0 0.0
    %4067 = vmatprep.subr.mxu0 0.0
    %4068 = vmatpush1.msra.mxu0 0.0
    %4069 = vmatprep.subr.mxu0 0.0
    %4070 = vmatpush1.msra.mxu0 0.0
    %4071 = vmatprep.subr.mxu0 0.0
    %4072 = vmatpush1.msra.mxu0 0.0
    %4073 = vmatprep.subr.mxu0 0.0
    %4074 = vmatpush1.msra.mxu0 0.0
    %4075 = vmatprep.subr.mxu0 0.0
    %4076 = vmatpush1.msra.mxu0 0.0
    %4077 = vmatprep.subr.mxu0 0.0
    %4078 = vmatpush1.msra.mxu0 0.0
    %4079 = vmatprep.subr.mxu0 0.0
    %4080 = vmatpush1.msra.mxu0 0.0
    %4081 = vmatprep.subr.mxu0 0.0
    %4082 = vmatpush1.msra.mxu0 0.0
    %4083 = vmatprep.subr.mxu0 0.0
    %4084 = vmatpush1.msra.mxu0 0.0
    %4085 = vmatprep.subr.mxu0 0.0
    %4086 = vmatpush1.msra.mxu0 0.0
    %4087 = vmatprep.subr.mxu0 0.0
    %4088 = vmatpush1.msra.mxu0 0.0
    %4089 = vmatprep.subr.mxu0 0.0
    %4090 = vmatpush1.msra.mxu0 0.0
    %4091 = vmatprep.subr.mxu0 0.0
    %4092 = vmatpush1.msra.mxu0 0.0
    %4093 = vmatprep.subr.mxu0 0.0
    %4094 = vmatpush1.msra.mxu0 0.0
    %4095 = vmatprep.subr.mxu0 0.0
    %4096 = vmatpush1.msra.mxu0 0.0
    %4097 = vmatprep.subr.mxu0 0.0
    %4098 = vmatpush1.msra.mxu0 0.0
    %4099 = vmatprep.mubr.f32.mxu0 0.0
    %4100 = vmatmul.mubr.f32.gmra.mrb[0].mxu0 %v4022
    %v4101 = vpop.f32.mrb[0].mxu0
    %v4102 = vadd.f32 0.0, %v4101
    %v4103 = vpop.f32.mrb[0].mxu0
    %4104 = vmatprep.mubr.f32.mxu0 0.0
    %4105 = vmatmul.mubr.f32.gmra.mrb[0].mxu0 %v4025
    %v4106 = vpop.f32.mrb[0].mxu0
    %v4107 = vadd.f32 0.0, %v4106
    %v4108 = vpop.f32.mrb[0].mxu0
    %4109 = vmatprep.mubr.f32.mxu0 0.0
    %4110 = vmatmul.mubr.f32.gmra.mrb[0].mxu0 %v4028
    %v4111 = vpop.f32.mrb[0].mxu0
    %v4112 = vadd.f32 0.0, %v4111
    %v4113 = vpop.f32.mrb[0].mxu0
    %4114 = vmatprep.mubr.f32.mxu0 0.0
    %4115 = vmatmul.mubr.f32.gmra.mrb[0].mxu0 %v4031
    %v4116 = vpop.f32.mrb[0].mxu0
    %v4117 = vadd.f32 0.0, %v4116
    %v4118 = vpop.f32.mrb[0].mxu0
    %4119 = vdwg.mxu0
    %4124 = vrot.lane.b32.xlu0 %v3419, 32
    %v4125 = vpop.permute.xlu0 %4124
    %4126 = vrot.lane.b32.xlu0 %v3424, 32
    %v4127 = vpop.permute.xlu0 %4126
    %4128 = vrot.lane.b32.xlu0 %v3429, 32
    %v4129 = vpop.permute.xlu0 %4128
    %4130 = vrot.lane.b32.xlu0 %v3434, 32
    %v4131 = vpop.permute.xlu0 %4130
    %4140 = vrot.lane.b32.xlu0 %v3534, 64
    %v4141 = vpop.permute.xlu0 %4140
    %4142 = vrot.lane.b32.xlu0 %v3539, 64
    %v4143 = vpop.permute.xlu0 %4142
    %4144 = vrot.lane.b32.xlu0 %v3544, 64
    %v4145 = vpop.permute.xlu0 %4144
    %4146 = vrot.lane.b32.xlu0 %v3549, 64
    %v4147 = vpop.permute.xlu0 %4146
    %4156 = vrot.lane.b32.xlu0 %v3649, 96
    %v4157 = vpop.permute.xlu0 %4156
    %4158 = vrot.lane.b32.xlu0 %v3654, 96
    %v4159 = vpop.permute.xlu0 %4158
    %4160 = vrot.lane.b32.xlu0 %v3659, 96
    %v4161 = vpop.permute.xlu0 %4160
    %4162 = vrot.lane.b32.xlu0 %v3664, 96
    %v4163 = vpop.permute.xlu0 %4162
    %4172 = vrot.lane.b32.xlu0 %v3872, 32
    %v4173 = vpop.permute.xlu0 %4172
    %4174 = vrot.lane.b32.xlu0 %v3877, 32
    %v4175 = vpop.permute.xlu0 %4174
    %4176 = vrot.lane.b32.xlu0 %v3882, 32
    %v4177 = vpop.permute.xlu0 %4176
    %4178 = vrot.lane.b32.xlu0 %v3887, 32
    %v4179 = vpop.permute.xlu0 %4178
    %4188 = vrot.lane.b32.xlu0 %v3987, 64
    %v4189 = vpop.permute.xlu0 %4188
    %4190 = vrot.lane.b32.xlu0 %v3992, 64
    %v4191 = vpop.permute.xlu0 %4190
    %4192 = vrot.lane.b32.xlu0 %v3997, 64
    %v4193 = vpop.permute.xlu0 %4192
    %4194 = vrot.lane.b32.xlu0 %v4002, 64
    %v4195 = vpop.permute.xlu0 %4194
    %4204 = vrot.lane.b32.xlu0 %v4102, 96
    %v4205 = vpop.permute.xlu0 %4204
    %4206 = vrot.lane.b32.xlu0 %v4107, 96
    %v4207 = vpop.permute.xlu0 %4206
    %4208 = vrot.lane.b32.xlu0 %v4112, 96
    %v4209 = vpop.permute.xlu0 %4208
    %4210 = vrot.lane.b32.xlu0 %v4117, 96
    %v4211 = vpop.permute.xlu0 %4210
    %v4216 = vsel %vm318, %v3301, %v4125
    %v4217 = vsel %vm318, %v3306, %v4127
    %v4218 = vsel %vm318, %v3311, %v4129
    %v4219 = vsel %vm318, %v3316, %v4131
    %vm4220 = vcmask 523264
    %v4221 = vsel %vm4220, %v4216, %v4141
    %v4222 = vsel %vm4220, %v4217, %v4143
    %v4223 = vsel %vm4220, %v4218, %v4145
    %v4224 = vsel %vm4220, %v4219, %v4147
    %vm4225 = vcmask 785408
    %v4226 = vsel %vm4225, %v4221, %v4157
    %v4227 = vsel %vm4225, %v4222, %v4159
    %v4228 = vsel %vm4225, %v4223, %v4161
    %v4229 = vsel %vm4225, %v4224, %v4163
    %v4230 = vsel %vm318, %v3754, %v4173
    %v4231 = vsel %vm318, %v3759, %v4175
    %v4232 = vsel %vm318, %v3764, %v4177
    %v4233 = vsel %vm318, %v3769, %v4179
    %v4234 = vsel %vm4220, %v4230, %v4189
    %v4235 = vsel %vm4220, %v4231, %v4191
    %v4236 = vsel %vm4220, %v4232, %v4193
    %v4237 = vsel %vm4220, %v4233, %v4195
    %v4238 = vsel %vm4225, %v4234, %v4205
    %v4239 = vsel %vm4225, %v4235, %v4207
    %v4240 = vsel %vm4225, %v4236, %v4209
    %v4241 = vsel %vm4225, %v4237, %v4211
    %4242 = vmatprep.subr.mxu0 %v3005
    %4243 = vmatpush1.msra.mxu0 %v3004
    %4244 = vmatprep.subr.mxu0 %v3007
    %4245 = vmatpush1.msra.mxu0 %v3006
    %4246 = vmatprep.subr.mxu0 %v3009
    %4247 = vmatpush1.msra.mxu0 %v3008
    %4248 = vmatprep.subr.mxu0 %v3011
    %4249 = vmatpush1.msra.mxu0 %v3010
    %4250 = vmatprep.subr.mxu0 %v3013
    %4251 = vmatpush1.msra.mxu0 %v3012
    %4252 = vmatprep.subr.mxu0 %v3015
    %4253 = vmatpush1.msra.mxu0 %v3014
    %4254 = vmatprep.subr.mxu0 %v3017
    %4255 = vmatpush1.msra.mxu0 %v3016
    %4256 = vmatprep.subr.mxu0 %v3019
    %4257 = vmatpush1.msra.mxu0 %v3018
    %4258 = vmatprep.subr.mxu0 %v3021
    %4259 = vmatpush1.msra.mxu0 %v3020
    %4260 = vmatprep.subr.mxu0 %v3023
    %4261 = vmatpush1.msra.mxu0 %v3022
    %4262 = vmatprep.subr.mxu0 %v3025
    %4263 = vmatpush1.msra.mxu0 %v3024
    %4264 = vmatprep.subr.mxu0 %v3027
    %4265 = vmatpush1.msra.mxu0 %v3026
    %4266 = vmatprep.subr.mxu0 %v3029
    %4267 = vmatpush1.msra.mxu0 %v3028
    %4268 = vmatprep.subr.mxu0 %v3031
    %4269 = vmatpush1.msra.mxu0 %v3030
    %4270 = vmatprep.subr.mxu0 %v3033
    %4271 = vmatpush1.msra.mxu0 %v3032
    %4272 = vmatprep.subr.mxu0 %v3035
    %4273 = vmatpush1.msra.mxu0 %v3034
    %4274 = vmatprep.subr.mxu0 %v3037
    %4275 = vmatpush1.msra.mxu0 %v3036
    %4276 = vmatprep.subr.mxu0 %v3039
    %4277 = vmatpush1.msra.mxu0 %v3038
    %4278 = vmatprep.subr.mxu0 %v3041
    %4279 = vmatpush1.msra.mxu0 %v3040
    %4280 = vmatprep.subr.mxu0 %v3043
    %4281 = vmatpush1.msra.mxu0 %v3042
    %4282 = vmatprep.subr.mxu0 %v3045
    %4283 = vmatpush1.msra.mxu0 %v3044
    %4284 = vmatprep.subr.mxu0 %v3047
    %4285 = vmatpush1.msra.mxu0 %v3046
    %4286 = vmatprep.subr.mxu0 %v3049
    %4287 = vmatpush1.msra.mxu0 %v3048
    %4288 = vmatprep.subr.mxu0 %v3051
    %4289 = vmatpush1.msra.mxu0 %v3050
    %4290 = vmatprep.subr.mxu0 %v3053
    %4291 = vmatpush1.msra.mxu0 %v3052
    %4292 = vmatprep.subr.mxu0 %v3055
    %4293 = vmatpush1.msra.mxu0 %v3054
    %4294 = vmatprep.subr.mxu0 %v3057
    %4295 = vmatpush1.msra.mxu0 %v3056
    %4296 = vmatprep.subr.mxu0 %v3059
    %4297 = vmatpush1.msra.mxu0 %v3058
    %4298 = vmatprep.subr.mxu0 %v3061
    %4299 = vmatpush1.msra.mxu0 %v3060
    %4300 = vmatprep.subr.mxu0 %v3063
    %4301 = vmatpush1.msra.mxu0 %v3062
    %4302 = vmatprep.subr.mxu0 %v3065
    %4303 = vmatpush1.msra.mxu0 %v3064
    %4304 = vmatprep.subr.mxu0 %v3067
    %4305 = vmatpush1.msra.mxu0 %v3066
    %4306 = vmatprep.mubr.f32.mxu0 %v4238
    %4307 = vmatmul.mubr.f32.gmra.mrb[0].mxu0 %v4226
    %v4308 = vpop.f32.mrb[0].mxu0
    %v4309 = vadd.f32 0.0, %v4308
    %v4310 = vpop.f32.mrb[0].mxu0
    %v4311 = vadd.f32 0.0, %v4310
    %4312 = vmatprep.mubr.f32.mxu0 %v4239
    %4313 = vmatmul.mubr.f32.gmra.mrb[0].mxu0 %v4227
    %v4314 = vpop.f32.mrb[0].mxu0
    %v4315 = vadd.f32 0.0, %v4314
    %v4316 = vpop.f32.mrb[0].mxu0
    %v4317 = vadd.f32 0.0, %v4316
    %4318 = vmatprep.mubr.f32.mxu0 %v4240
    %4319 = vmatmul.mubr.f32.gmra.mrb[0].mxu0 %v4228
    %v4320 = vpop.f32.mrb[0].mxu0
    %v4321 = vadd.f32 0.0, %v4320
    %v4322 = vpop.f32.mrb[0].mxu0
    %v4323 = vadd.f32 0.0, %v4322
    %4324 = vmatprep.mubr.f32.mxu0 %v4241
    %4325 = vmatmul.mubr.f32.gmra.mrb[0].mxu0 %v4229
    %v4326 = vpop.f32.mrb[0].mxu0
    %v4327 = vadd.f32 0.0, %v4326
    %v4328 = vpop.f32.mrb[0].mxu0
    %v4329 = vadd.f32 0.0, %v4328
    %4330 = vdwg.mxu0
    %v4331 = vmul.f32 %v4309, %v3179
    %v4332 = vmul.f32 %v4311, %v3183
    %v4333 = vmul.f32 %v4315, %v3179
    %v4334 = vmul.f32 %v4317, %v3183
    %v4335 = vmul.f32 %v4321, %v3179
    %v4336 = vmul.f32 %v4323, %v3183
    %v4337 = vmul.f32 %v4327, %v3179
    %v4338 = vmul.f32 %v4329, %v3183
    %v4339 = vadd.f32 %v4331, %v3198
    %v4340 = vadd.f32 %v4332, %v3202
    %v4341 = vadd.f32 %v4333, %v3198
    %v4342 = vadd.f32 %v4334, %v3202
    %v4343 = vadd.f32 %v4335, %v3198
    %v4344 = vadd.f32 %v4336, %v3202
    %v4345 = vadd.f32 %v4337, %v3198
    %v4346 = vadd.f32 %v4338, %v3202
    %vm4347 = vcmp.gt.f32.partialorder %v4339, 0.0
    %vm4348 = vcmp.gt.f32.partialorder %v4340, 0.0
    %vm4349 = vcmp.gt.f32.partialorder %v4341, 0.0
    %vm4350 = vcmp.gt.f32.partialorder %v4342, 0.0
    %vm4351 = vcmp.gt.f32.partialorder %v4343, 0.0
    %vm4352 = vcmp.gt.f32.partialorder %v4344, 0.0
    %vm4353 = vcmp.gt.f32.partialorder %v4345, 0.0
    %vm4354 = vcmp.gt.f32.partialorder %v4346, 0.0
    %v4355 = vmin.f32 %v4339, 0.0
    %v4356 = vmin.f32 %v4340, 0.0
    %v4357 = vmin.f32 %v4341, 0.0
    %v4358 = vmin.f32 %v4342, 0.0
    %v4359 = vmin.f32 %v4343, 0.0
    %v4360 = vmin.f32 %v4344, 0.0
    %v4361 = vmin.f32 %v4345, 0.0
    %v4362 = vmin.f32 %v4346, 0.0
    %v4363 = vmul.f32 %v4355, 1.442695
    %v4364 = vpow.pop %v4363
    %v4365 = vmul.f32 %v4356, 1.442695
    %v4366 = vpow.pop %v4365
    %v4367 = vmul.f32 %v4357, 1.442695
    %v4368 = vpow.pop %v4367
    %v4369 = vmul.f32 %v4358, 1.442695
    %v4370 = vpow.pop %v4369
    %v4371 = vmul.f32 %v4359, 1.442695
    %v4372 = vpow.pop %v4371
    %v4373 = vmul.f32 %v4360, 1.442695
    %v4374 = vpow.pop %v4373
    %v4375 = vmul.f32 %v4361, 1.442695
    %v4376 = vpow.pop %v4375
    %v4377 = vmul.f32 %v4362, 1.442695
    %v4378 = vpow.pop %v4377
    %v4379 = vsub.f32 %v4364, 1.0
    %v4380 = vsub.f32 %v4366, 1.0
    %v4381 = vsub.f32 %v4368, 1.0
    %v4382 = vsub.f32 %v4370, 1.0
    %v4383 = vsub.f32 %v4372, 1.0
    %v4384 = vsub.f32 %v4374, 1.0
    %v4385 = vsub.f32 %v4376, 1.0
    %v4386 = vsub.f32 %v4378, 1.0
    %v4387 = vsel %vm4347, %v4339, %v4379
    %v4388 = vsel %vm4348, %v4340, %v4380
    %v4389 = vsel %vm4349, %v4341, %v4381
    %v4390 = vsel %vm4350, %v4342, %v4382
    %v4391 = vsel %vm4351, %v4343, %v4383
    %v4392 = vsel %vm4352, %v4344, %v4384
    %v4393 = vsel %vm4353, %v4345, %v4385
    %v4394 = vsel %vm4354, %v4346, %v4386
    %v4396 = vsel %vm3230, %v4393, 0
    %4398 = vmatprep.subr.mxu0 0.0
    %4399 = vmatpush1.msra.mxu0 %v4387
    %4400 = vmatprep.subr.mxu0 0.0
    %4401 = vmatpush1.msra.mxu0 %v4389
    %4402 = vmatprep.subr.mxu0 0.0
    %4403 = vmatpush1.msra.mxu0 %v4391
    %4404 = vmatprep.subr.mxu0 0.0
    %4405 = vmatpush1.msra.mxu0 %v4396
    %4406 = vmatprep.subr.mxu0 0.0
    %4407 = vmatpush1.msra.mxu0 0.0
    %4408 = vmatprep.subr.mxu0 0.0
    %4409 = vmatpush1.msra.mxu0 0.0
    %4410 = vmatprep.subr.mxu0 0.0
    %4411 = vmatpush1.msra.mxu0 0.0
    %4412 = vmatprep.subr.mxu0 0.0
    %4413 = vmatpush1.msra.mxu0 0.0
    %4414 = vmatprep.subr.mxu0 0.0
    %4415 = vmatpush1.msra.mxu0 0.0
    %4416 = vmatprep.subr.mxu0 0.0
    %4417 = vmatpush1.msra.mxu0 0.0
    %4418 = vmatprep.subr.mxu0 0.0
    %4419 = vmatpush1.msra.mxu0 0.0
    %4420 = vmatprep.subr.mxu0 0.0
    %4421 = vmatpush1.msra.mxu0 0.0
    %4422 = vmatprep.subr.mxu0 0.0
    %4423 = vmatpush1.msra.mxu0 0.0
    %4424 = vmatprep.subr.mxu0 0.0
    %4425 = vmatpush1.msra.mxu0 0.0
    %4426 = vmatprep.subr.mxu0 0.0
    %4427 = vmatpush1.msra.mxu0 0.0
    %4428 = vmatprep.subr.mxu0 0.0
    %4429 = vmatpush1.msra.mxu0 0.0
    %4430 = vmatprep.subr.mxu0 0.0
    %4431 = vmatpush1.msra.mxu0 0.0
    %4432 = vmatprep.subr.mxu0 0.0
    %4433 = vmatpush1.msra.mxu0 0.0
    %4434 = vmatprep.subr.mxu0 0.0
    %4435 = vmatpush1.msra.mxu0 0.0
    %4436 = vmatprep.subr.mxu0 0.0
    %4437 = vmatpush1.msra.mxu0 0.0
    %4438 = vmatprep.subr.mxu0 0.0
    %4439 = vmatpush1.msra.mxu0 0.0
    %4440 = vmatprep.subr.mxu0 0.0
    %4441 = vmatpush1.msra.mxu0 0.0
    %4442 = vmatprep.subr.mxu0 0.0
    %4443 = vmatpush1.msra.mxu0 0.0
    %4444 = vmatprep.subr.mxu0 0.0
    %4445 = vmatpush1.msra.mxu0 0.0
    %4446 = vmatprep.subr.mxu0 0.0
    %4447 = vmatpush1.msra.mxu0 0.0
    %4448 = vmatprep.subr.mxu0 0.0
    %4449 = vmatpush1.msra.mxu0 0.0
    %4450 = vmatprep.subr.mxu0 0.0
    %4451 = vmatpush1.msra.mxu0 0.0
    %4452 = vmatprep.subr.mxu0 0.0
    %4453 = vmatpush1.msra.mxu0 0.0
    %4454 = vmatprep.subr.mxu0 0.0
    %4455 = vmatpush1.msra.mxu0 0.0
    %4456 = vmatprep.subr.mxu0 0.0
    %4457 = vmatpush1.msra.mxu0 0.0
    %4458 = vmatprep.subr.mxu0 0.0
    %4459 = vmatpush1.msra.mxu0 0.0
    %4460 = vmatprep.subr.mxu0 0.0
    %4461 = vmatpush1.msra.mxu0 0.0
    %4462 = vmatprep.mubr.f32.mxu0 0.0
    %4463 = vmatmul.mubr.f32.gmra.mrb[0].mxu0 %v3219
    %v4464 = vpop.f32.mrb[0].mxu0
    %v4465 = vadd.f32 0.0, %v4464
    %v4466 = vpop.f32.mrb[0].mxu0
    %4467 = vmatprep.mubr.f32.mxu0 0.0
    %4468 = vmatmul.mubr.f32.gmra.mrb[0].mxu0 %v3222
    %v4469 = vpop.f32.mrb[0].mxu0
    %v4470 = vadd.f32 0.0, %v4469
    %v4471 = vpop.f32.mrb[0].mxu0
    %4472 = vmatprep.mubr.f32.mxu0 0.0
    %4473 = vmatmul.mubr.f32.gmra.mrb[0].mxu0 %v3225
    %v4474 = vpop.f32.mrb[0].mxu0
    %v4475 = vadd.f32 0.0, %v4474
    %v4476 = vpop.f32.mrb[0].mxu0
    %4477 = vmatprep.mubr.f32.mxu0 0.0
    %4478 = vmatmul.mubr.f32.gmra.mrb[0].mxu0 %v3228
    %v4479 = vpop.f32.mrb[0].mxu0
    %v4480 = vadd.f32 0.0, %v4479
    %v4481 = vpop.f32.mrb[0].mxu0
    %4482 = vdwg.mxu0
    %4486 = vrot.lane.b32.xlu0 %v4387, 96
    %v4487 = vpop.permute.xlu0 %4486
    %4488 = vrot.lane.b32.xlu0 %v4389, 96
    %v4489 = vpop.permute.xlu0 %4488
    %4490 = vrot.lane.b32.xlu0 %v4391, 96
    %v4491 = vpop.permute.xlu0 %4490
    %4492 = vrot.lane.b32.xlu0 %v4393, 96
    %v4493 = vpop.permute.xlu0 %4492
    %v4497 = vsel %vm3230, %v4493, 0
    %4499 = vmatprep.subr.mxu0 0.0
    %4500 = vmatpush1.msra.mxu0 %v4487
    %4501 = vmatprep.subr.mxu0 0.0
    %4502 = vmatpush1.msra.mxu0 %v4489
    %4503 = vmatprep.subr.mxu0 0.0
    %4504 = vmatpush1.msra.mxu0 %v4491
    %4505 = vmatprep.subr.mxu0 0.0
    %4506 = vmatpush1.msra.mxu0 %v4497
    %4507 = vmatprep.subr.mxu0 0.0
    %4508 = vmatpush1.msra.mxu0 0.0
    %4509 = vmatprep.subr.mxu0 0.0
    %4510 = vmatpush1.msra.mxu0 0.0
    %4511 = vmatprep.subr.mxu0 0.0
    %4512 = vmatpush1.msra.mxu0 0.0
    %4513 = vmatprep.subr.mxu0 0.0
    %4514 = vmatpush1.msra.mxu0 0.0
    %4515 = vmatprep.subr.mxu0 0.0
    %4516 = vmatpush1.msra.mxu0 0.0
    %4517 = vmatprep.subr.mxu0 0.0
    %4518 = vmatpush1.msra.mxu0 0.0
    %4519 = vmatprep.subr.mxu0 0.0
    %4520 = vmatpush1.msra.mxu0 0.0
    %4521 = vmatprep.subr.mxu0 0.0
    %4522 = vmatpush1.msra.mxu0 0.0
    %4523 = vmatprep.subr.mxu0 0.0
    %4524 = vmatpush1.msra.mxu0 0.0
    %4525 = vmatprep.subr.mxu0 0.0
    %4526 = vmatpush1.msra.mxu0 0.0
    %4527 = vmatprep.subr.mxu0 0.0
    %4528 = vmatpush1.msra.mxu0 0.0
    %4529 = vmatprep.subr.mxu0 0.0
    %4530 = vmatpush1.msra.mxu0 0.0
    %4531 = vmatprep.subr.mxu0 0.0
    %4532 = vmatpush1.msra.mxu0 0.0
    %4533 = vmatprep.subr.mxu0 0.0
    %4534 = vmatpush1.msra.mxu0 0.0
    %4535 = vmatprep.subr.mxu0 0.0
    %4536 = vmatpush1.msra.mxu0 0.0
    %4537 = vmatprep.subr.mxu0 0.0
    %4538 = vmatpush1.msra.mxu0 0.0
    %4539 = vmatprep.subr.mxu0 0.0
    %4540 = vmatpush1.msra.mxu0 0.0
    %4541 = vmatprep.subr.mxu0 0.0
    %4542 = vmatpush1.msra.mxu0 0.0
    %4543 = vmatprep.subr.mxu0 0.0
    %4544 = vmatpush1.msra.mxu0 0.0
    %4545 = vmatprep.subr.mxu0 0.0
    %4546 = vmatpush1.msra.mxu0 0.0
    %4547 = vmatprep.subr.mxu0 0.0
    %4548 = vmatpush1.msra.mxu0 0.0
    %4549 = vmatprep.subr.mxu0 0.0
    %4550 = vmatpush1.msra.mxu0 0.0
    %4551 = vmatprep.subr.mxu0 0.0
    %4552 = vmatpush1.msra.mxu0 0.0
    %4553 = vmatprep.subr.mxu0 0.0
    %4554 = vmatpush1.msra.mxu0 0.0
    %4555 = vmatprep.subr.mxu0 0.0
    %4556 = vmatpush1.msra.mxu0 0.0
    %4557 = vmatprep.subr.mxu0 0.0
    %4558 = vmatpush1.msra.mxu0 0.0
    %4559 = vmatprep.subr.mxu0 0.0
    %4560 = vmatpush1.msra.mxu0 0.0
    %4561 = vmatprep.subr.mxu0 0.0
    %4562 = vmatpush1.msra.mxu0 0.0
    %4563 = vmatprep.mubr.f32.mxu0 0.0
    %4564 = vmatmul.mubr.f32.gmra.mrb[0].mxu0 %v3339
    %v4565 = vpop.f32.mrb[0].mxu0
    %v4566 = vadd.f32 0.0, %v4565
    %v4567 = vpop.f32.mrb[0].mxu0
    %4568 = vmatprep.mubr.f32.mxu0 0.0
    %4569 = vmatmul.mubr.f32.gmra.mrb[0].mxu0 %v3342
    %v4570 = vpop.f32.mrb[0].mxu0
    %v4571 = vadd.f32 0.0, %v4570
    %v4572 = vpop.f32.mrb[0].mxu0
    %4573 = vmatprep.mubr.f32.mxu0 0.0
    %4574 = vmatmul.mubr.f32.gmra.mrb[0].mxu0 %v3345
    %v4575 = vpop.f32.mrb[0].mxu0
    %v4576 = vadd.f32 0.0, %v4575
    %v4577 = vpop.f32.mrb[0].mxu0
    %4578 = vmatprep.mubr.f32.mxu0 0.0
    %4579 = vmatmul.mubr.f32.gmra.mrb[0].mxu0 %v3348
    %v4580 = vpop.f32.mrb[0].mxu0
    %v4581 = vadd.f32 0.0, %v4580
    %v4582 = vpop.f32.mrb[0].mxu0
    %4583 = vdwg.mxu0
    %4584 = vrot.lane.b32.xlu0 %v4387, 64
    %v4585 = vpop.permute.xlu0 %4584
    %4586 = vrot.lane.b32.xlu0 %v4389, 64
    %v4587 = vpop.permute.xlu0 %4586
    %4588 = vrot.lane.b32.xlu0 %v4391, 64
    %v4589 = vpop.permute.xlu0 %4588
    %4590 = vrot.lane.b32.xlu0 %v4393, 64
    %v4591 = vpop.permute.xlu0 %4590
    %v4595 = vsel %vm3230, %v4591, 0
    %4597 = vmatprep.subr.mxu0 0.0
    %4598 = vmatpush1.msra.mxu0 %v4585
    %4599 = vmatprep.subr.mxu0 0.0
    %4600 = vmatpush1.msra.mxu0 %v4587
    %4601 = vmatprep.subr.mxu0 0.0
    %4602 = vmatpush1.msra.mxu0 %v4589
    %4603 = vmatprep.subr.mxu0 0.0
    %4604 = vmatpush1.msra.mxu0 %v4595
    %4605 = vmatprep.subr.mxu0 0.0
    %4606 = vmatpush1.msra.mxu0 0.0
    %4607 = vmatprep.subr.mxu0 0.0
    %4608 = vmatpush1.msra.mxu0 0.0
    %4609 = vmatprep.subr.mxu0 0.0
    %4610 = vmatpush1.msra.mxu0 0.0
    %4611 = vmatprep.subr.mxu0 0.0
    %4612 = vmatpush1.msra.mxu0 0.0
    %4613 = vmatprep.subr.mxu0 0.0
    %4614 = vmatpush1.msra.mxu0 0.0
    %4615 = vmatprep.subr.mxu0 0.0
    %4616 = vmatpush1.msra.mxu0 0.0
    %4617 = vmatprep.subr.mxu0 0.0
    %4618 = vmatpush1.msra.mxu0 0.0
    %4619 = vmatprep.subr.mxu0 0.0
    %4620 = vmatpush1.msra.mxu0 0.0
    %4621 = vmatprep.subr.mxu0 0.0
    %4622 = vmatpush1.msra.mxu0 0.0
    %4623 = vmatprep.subr.mxu0 0.0
    %4624 = vmatpush1.msra.mxu0 0.0
    %4625 = vmatprep.subr.mxu0 0.0
    %4626 = vmatpush1.msra.mxu0 0.0
    %4627 = vmatprep.subr.mxu0 0.0
    %4628 = vmatpush1.msra.mxu0 0.0
    %4629 = vmatprep.subr.mxu0 0.0
    %4630 = vmatpush1.msra.mxu0 0.0
    %4631 = vmatprep.subr.mxu0 0.0
    %4632 = vmatpush1.msra.mxu0 0.0
    %4633 = vmatprep.subr.mxu0 0.0
    %4634 = vmatpush1.msra.mxu0 0.0
    %4635 = vmatprep.subr.mxu0 0.0
    %4636 = vmatpush1.msra.mxu0 0.0
    %4637 = vmatprep.subr.mxu0 0.0
    %4638 = vmatpush1.msra.mxu0 0.0
    %4639 = vmatprep.subr.mxu0 0.0
    %4640 = vmatpush1.msra.mxu0 0.0
    %4641 = vmatprep.subr.mxu0 0.0
    %4642 = vmatpush1.msra.mxu0 0.0
    %4643 = vmatprep.subr.mxu0 0.0
    %4644 = vmatpush1.msra.mxu0 0.0
    %4645 = vmatprep.subr.mxu0 0.0
    %4646 = vmatpush1.msra.mxu0 0.0
    %4647 = vmatprep.subr.mxu0 0.0
    %4648 = vmatpush1.msra.mxu0 0.0
    %4649 = vmatprep.subr.mxu0 0.0
    %4650 = vmatpush1.msra.mxu0 0.0
    %4651 = vmatprep.subr.mxu0 0.0
    %4652 = vmatpush1.msra.mxu0 0.0
    %4653 = vmatprep.subr.mxu0 0.0
    %4654 = vmatpush1.msra.mxu0 0.0
    %4655 = vmatprep.subr.mxu0 0.0
    %4656 = vmatpush1.msra.mxu0 0.0
    %4657 = vmatprep.subr.mxu0 0.0
    %4658 = vmatpush1.msra.mxu0 0.0
    %4659 = vmatprep.subr.mxu0 0.0
    %4660 = vmatpush1.msra.mxu0 0.0
    %4661 = vmatprep.mubr.f32.mxu0 0.0
    %4662 = vmatmul.mubr.f32.gmra.mrb[0].mxu0 %v3454
    %v4663 = vpop.f32.mrb[0].mxu0
    %v4664 = vadd.f32 0.0, %v4663
    %v4665 = vpop.f32.mrb[0].mxu0
    %4666 = vmatprep.mubr.f32.mxu0 0.0
    %4667 = vmatmul.mubr.f32.gmra.mrb[0].mxu0 %v3457
    %v4668 = vpop.f32.mrb[0].mxu0
    %v4669 = vadd.f32 0.0, %v4668
    %v4670 = vpop.f32.mrb[0].mxu0
    %4671 = vmatprep.mubr.f32.mxu0 0.0
    %4672 = vmatmul.mubr.f32.gmra.mrb[0].mxu0 %v3460
    %v4673 = vpop.f32.mrb[0].mxu0
    %v4674 = vadd.f32 0.0, %v4673
    %v4675 = vpop.f32.mrb[0].mxu0
    %4676 = vmatprep.mubr.f32.mxu0 0.0
    %4677 = vmatmul.mubr.f32.gmra.mrb[0].mxu0 %v3463
    %v4678 = vpop.f32.mrb[0].mxu0
    %v4679 = vadd.f32 0.0, %v4678
    %v4680 = vpop.f32.mrb[0].mxu0
    %4681 = vdwg.mxu0
    %4682 = vrot.lane.b32.xlu0 %v4387, 32
    %v4683 = vpop.permute.xlu0 %4682
    %4684 = vrot.lane.b32.xlu0 %v4389, 32
    %v4685 = vpop.permute.xlu0 %4684
    %4686 = vrot.lane.b32.xlu0 %v4391, 32
    %v4687 = vpop.permute.xlu0 %4686
    %4688 = vrot.lane.b32.xlu0 %v4393, 32
    %v4689 = vpop.permute.xlu0 %4688
    %v4693 = vsel %vm3230, %v4689, 0
    %4695 = vmatprep.subr.mxu0 0.0
    %4696 = vmatpush1.msra.mxu0 %v4683
    %4697 = vmatprep.subr.mxu0 0.0
    %4698 = vmatpush1.msra.mxu0 %v4685
    %4699 = vmatprep.subr.mxu0 0.0
    %4700 = vmatpush1.msra.mxu0 %v4687
    %4701 = vmatprep.subr.mxu0 0.0
    %4702 = vmatpush1.msra.mxu0 %v4693
    %4703 = vmatprep.subr.mxu0 0.0
    %4704 = vmatpush1.msra.mxu0 0.0
    %4705 = vmatprep.subr.mxu0 0.0
    %4706 = vmatpush1.msra.mxu0 0.0
    %4707 = vmatprep.subr.mxu0 0.0
    %4708 = vmatpush1.msra.mxu0 0.0
    %4709 = vmatprep.subr.mxu0 0.0
    %4710 = vmatpush1.msra.mxu0 0.0
    %4711 = vmatprep.subr.mxu0 0.0
    %4712 = vmatpush1.msra.mxu0 0.0
    %4713 = vmatprep.subr.mxu0 0.0
    %4714 = vmatpush1.msra.mxu0 0.0
    %4715 = vmatprep.subr.mxu0 0.0
    %4716 = vmatpush1.msra.mxu0 0.0
    %4717 = vmatprep.subr.mxu0 0.0
    %4718 = vmatpush1.msra.mxu0 0.0
    %4719 = vmatprep.subr.mxu0 0.0
    %4720 = vmatpush1.msra.mxu0 0.0
    %4721 = vmatprep.subr.mxu0 0.0
    %4722 = vmatpush1.msra.mxu0 0.0
    %4723 = vmatprep.subr.mxu0 0.0
    %4724 = vmatpush1.msra.mxu0 0.0
    %4725 = vmatprep.subr.mxu0 0.0
    %4726 = vmatpush1.msra.mxu0 0.0
    %4727 = vmatprep.subr.mxu0 0.0
    %4728 = vmatpush1.msra.mxu0 0.0
    %4729 = vmatprep.subr.mxu0 0.0
    %4730 = vmatpush1.msra.mxu0 0.0
    %4731 = vmatprep.subr.mxu0 0.0
    %4732 = vmatpush1.msra.mxu0 0.0
    %4733 = vmatprep.subr.mxu0 0.0
    %4734 = vmatpush1.msra.mxu0 0.0
    %4735 = vmatprep.subr.mxu0 0.0
    %4736 = vmatpush1.msra.mxu0 0.0
    %4737 = vmatprep.subr.mxu0 0.0
    %4738 = vmatpush1.msra.mxu0 0.0
    %4739 = vmatprep.subr.mxu0 0.0
    %4740 = vmatpush1.msra.mxu0 0.0
    %4741 = vmatprep.subr.mxu0 0.0
    %4742 = vmatpush1.msra.mxu0 0.0
    %4743 = vmatprep.subr.mxu0 0.0
    %4744 = vmatpush1.msra.mxu0 0.0
    %4745 = vmatprep.subr.mxu0 0.0
    %4746 = vmatpush1.msra.mxu0 0.0
    %4747 = vmatprep.subr.mxu0 0.0
    %4748 = vmatpush1.msra.mxu0 0.0
    %4749 = vmatprep.subr.mxu0 0.0
    %4750 = vmatpush1.msra.mxu0 0.0
    %4751 = vmatprep.subr.mxu0 0.0
    %4752 = vmatpush1.msra.mxu0 0.0
    %4753 = vmatprep.subr.mxu0 0.0
    %4754 = vmatpush1.msra.mxu0 0.0
    %4755 = vmatprep.subr.mxu0 0.0
    %4756 = vmatpush1.msra.mxu0 0.0
    %4757 = vmatprep.subr.mxu0 0.0
    %4758 = vmatpush1.msra.mxu0 0.0
    %4759 = vmatprep.mubr.f32.mxu0 0.0
    %4760 = vmatmul.mubr.f32.gmra.mrb[0].mxu0 %v3569
    %v4761 = vpop.f32.mrb[0].mxu0
    %v4762 = vadd.f32 0.0, %v4761
    %v4763 = vpop.f32.mrb[0].mxu0
    %4764 = vmatprep.mubr.f32.mxu0 0.0
    %4765 = vmatmul.mubr.f32.gmra.mrb[0].mxu0 %v3572
    %v4766 = vpop.f32.mrb[0].mxu0
    %v4767 = vadd.f32 0.0, %v4766
    %v4768 = vpop.f32.mrb[0].mxu0
    %4769 = vmatprep.mubr.f32.mxu0 0.0
    %4770 = vmatmul.mubr.f32.gmra.mrb[0].mxu0 %v3575
    %v4771 = vpop.f32.mrb[0].mxu0
    %v4772 = vadd.f32 0.0, %v4771
    %v4773 = vpop.f32.mrb[0].mxu0
    %4774 = vmatprep.mubr.f32.mxu0 0.0
    %4775 = vmatmul.mubr.f32.gmra.mrb[0].mxu0 %v3578
    %v4776 = vpop.f32.mrb[0].mxu0
    %v4777 = vadd.f32 0.0, %v4776
    %v4778 = vpop.f32.mrb[0].mxu0
    %4779 = vdwg.mxu0
    %v4781 = vsel %vm3230, %v4394, 0
    %4783 = vmatprep.subr.mxu0 0.0
    %4784 = vmatpush1.msra.mxu0 %v4388
    %4785 = vmatprep.subr.mxu0 0.0
    %4786 = vmatpush1.msra.mxu0 %v4390
    %4787 = vmatprep.subr.mxu0 0.0
    %4788 = vmatpush1.msra.mxu0 %v4392
    %4789 = vmatprep.subr.mxu0 0.0
    %4790 = vmatpush1.msra.mxu0 %v4781
    %4791 = vmatprep.subr.mxu0 0.0
    %4792 = vmatpush1.msra.mxu0 0.0
    %4793 = vmatprep.subr.mxu0 0.0
    %4794 = vmatpush1.msra.mxu0 0.0
    %4795 = vmatprep.subr.mxu0 0.0
    %4796 = vmatpush1.msra.mxu0 0.0
    %4797 = vmatprep.subr.mxu0 0.0
    %4798 = vmatpush1.msra.mxu0 0.0
    %4799 = vmatprep.subr.mxu0 0.0
    %4800 = vmatpush1.msra.mxu0 0.0
    %4801 = vmatprep.subr.mxu0 0.0
    %4802 = vmatpush1.msra.mxu0 0.0
    %4803 = vmatprep.subr.mxu0 0.0
    %4804 = vmatpush1.msra.mxu0 0.0
    %4805 = vmatprep.subr.mxu0 0.0
    %4806 = vmatpush1.msra.mxu0 0.0
    %4807 = vmatprep.subr.mxu0 0.0
    %4808 = vmatpush1.msra.mxu0 0.0
    %4809 = vmatprep.subr.mxu0 0.0
    %4810 = vmatpush1.msra.mxu0 0.0
    %4811 = vmatprep.subr.mxu0 0.0
    %4812 = vmatpush1.msra.mxu0 0.0
    %4813 = vmatprep.subr.mxu0 0.0
    %4814 = vmatpush1.msra.mxu0 0.0
    %4815 = vmatprep.subr.mxu0 0.0
    %4816 = vmatpush1.msra.mxu0 0.0
    %4817 = vmatprep.subr.mxu0 0.0
    %4818 = vmatpush1.msra.mxu0 0.0
    %4819 = vmatprep.subr.mxu0 0.0
    %4820 = vmatpush1.msra.mxu0 0.0
    %4821 = vmatprep.subr.mxu0 0.0
    %4822 = vmatpush1.msra.mxu0 0.0
    %4823 = vmatprep.subr.mxu0 0.0
    %4824 = vmatpush1.msra.mxu0 0.0
    %4825 = vmatprep.subr.mxu0 0.0
    %4826 = vmatpush1.msra.mxu0 0.0
    %4827 = vmatprep.subr.mxu0 0.0
    %4828 = vmatpush1.msra.mxu0 0.0
    %4829 = vmatprep.subr.mxu0 0.0
    %4830 = vmatpush1.msra.mxu0 0.0
    %4831 = vmatprep.subr.mxu0 0.0
    %4832 = vmatpush1.msra.mxu0 0.0
    %4833 = vmatprep.subr.mxu0 0.0
    %4834 = vmatpush1.msra.mxu0 0.0
    %4835 = vmatprep.subr.mxu0 0.0
    %4836 = vmatpush1.msra.mxu0 0.0
    %4837 = vmatprep.subr.mxu0 0.0
    %4838 = vmatpush1.msra.mxu0 0.0
    %4839 = vmatprep.subr.mxu0 0.0
    %4840 = vmatpush1.msra.mxu0 0.0
    %4841 = vmatprep.subr.mxu0 0.0
    %4842 = vmatpush1.msra.mxu0 0.0
    %4843 = vmatprep.subr.mxu0 0.0
    %4844 = vmatpush1.msra.mxu0 0.0
    %4845 = vmatprep.subr.mxu0 0.0
    %4846 = vmatpush1.msra.mxu0 0.0
    %4847 = vmatprep.mubr.f32.mxu0 0.0
    %4848 = vmatmul.mubr.f32.gmra.mrb[0].mxu0 %v3673
    %v4849 = vpop.f32.mrb[0].mxu0
    %v4850 = vadd.f32 0.0, %v4849
    %v4851 = vpop.f32.mrb[0].mxu0
    %4852 = vmatprep.mubr.f32.mxu0 0.0
    %4853 = vmatmul.mubr.f32.gmra.mrb[0].mxu0 %v3676
    %v4854 = vpop.f32.mrb[0].mxu0
    %v4855 = vadd.f32 0.0, %v4854
    %v4856 = vpop.f32.mrb[0].mxu0
    %4857 = vmatprep.mubr.f32.mxu0 0.0
    %4858 = vmatmul.mubr.f32.gmra.mrb[0].mxu0 %v3679
    %v4859 = vpop.f32.mrb[0].mxu0
    %v4860 = vadd.f32 0.0, %v4859
    %v4861 = vpop.f32.mrb[0].mxu0
    %4862 = vmatprep.mubr.f32.mxu0 0.0
    %4863 = vmatmul.mubr.f32.gmra.mrb[0].mxu0 %v3682
    %v4864 = vpop.f32.mrb[0].mxu0
    %v4865 = vadd.f32 0.0, %v4864
    %v4866 = vpop.f32.mrb[0].mxu0
    %4867 = vdwg.mxu0
    %4871 = vrot.lane.b32.xlu0 %v4388, 96
    %v4872 = vpop.permute.xlu0 %4871
    %4873 = vrot.lane.b32.xlu0 %v4390, 96
    %v4874 = vpop.permute.xlu0 %4873
    %4875 = vrot.lane.b32.xlu0 %v4392, 96
    %v4876 = vpop.permute.xlu0 %4875
    %4877 = vrot.lane.b32.xlu0 %v4394, 96
    %v4878 = vpop.permute.xlu0 %4877
    %v4882 = vsel %vm3230, %v4878, 0
    %4884 = vmatprep.subr.mxu0 0.0
    %4885 = vmatpush1.msra.mxu0 %v4872
    %4886 = vmatprep.subr.mxu0 0.0
    %4887 = vmatpush1.msra.mxu0 %v4874
    %4888 = vmatprep.subr.mxu0 0.0
    %4889 = vmatpush1.msra.mxu0 %v4876
    %4890 = vmatprep.subr.mxu0 0.0
    %4891 = vmatpush1.msra.mxu0 %v4882
    %4892 = vmatprep.subr.mxu0 0.0
    %4893 = vmatpush1.msra.mxu0 0.0
    %4894 = vmatprep.subr.mxu0 0.0
    %4895 = vmatpush1.msra.mxu0 0.0
    %4896 = vmatprep.subr.mxu0 0.0
    %4897 = vmatpush1.msra.mxu0 0.0
    %4898 = vmatprep.subr.mxu0 0.0
    %4899 = vmatpush1.msra.mxu0 0.0
    %4900 = vmatprep.subr.mxu0 0.0
    %4901 = vmatpush1.msra.mxu0 0.0
    %4902 = vmatprep.subr.mxu0 0.0
    %4903 = vmatpush1.msra.mxu0 0.0
    %4904 = vmatprep.subr.mxu0 0.0
    %4905 = vmatpush1.msra.mxu0 0.0
    %4906 = vmatprep.subr.mxu0 0.0
    %4907 = vmatpush1.msra.mxu0 0.0
    %4908 = vmatprep.subr.mxu0 0.0
    %4909 = vmatpush1.msra.mxu0 0.0
    %4910 = vmatprep.subr.mxu0 0.0
    %4911 = vmatpush1.msra.mxu0 0.0
    %4912 = vmatprep.subr.mxu0 0.0
    %4913 = vmatpush1.msra.mxu0 0.0
    %4914 = vmatprep.subr.mxu0 0.0
    %4915 = vmatpush1.msra.mxu0 0.0
    %4916 = vmatprep.subr.mxu0 0.0
    %4917 = vmatpush1.msra.mxu0 0.0
    %4918 = vmatprep.subr.mxu0 0.0
    %4919 = vmatpush1.msra.mxu0 0.0
    %4920 = vmatprep.subr.mxu0 0.0
    %4921 = vmatpush1.msra.mxu0 0.0
    %4922 = vmatprep.subr.mxu0 0.0
    %4923 = vmatpush1.msra.mxu0 0.0
    %4924 = vmatprep.subr.mxu0 0.0
    %4925 = vmatpush1.msra.mxu0 0.0
    %4926 = vmatprep.subr.mxu0 0.0
    %4927 = vmatpush1.msra.mxu0 0.0
    %4928 = vmatprep.subr.mxu0 0.0
    %4929 = vmatpush1.msra.mxu0 0.0
    %4930 = vmatprep.subr.mxu0 0.0
    %4931 = vmatpush1.msra.mxu0 0.0
    %4932 = vmatprep.subr.mxu0 0.0
    %4933 = vmatpush1.msra.mxu0 0.0
    %4934 = vmatprep.subr.mxu0 0.0
    %4935 = vmatpush1.msra.mxu0 0.0
    %4936 = vmatprep.subr.mxu0 0.0
    %4937 = vmatpush1.msra.mxu0 0.0
    %4938 = vmatprep.subr.mxu0 0.0
    %4939 = vmatpush1.msra.mxu0 0.0
    %4940 = vmatprep.subr.mxu0 0.0
    %4941 = vmatpush1.msra.mxu0 0.0
    %4942 = vmatprep.subr.mxu0 0.0
    %4943 = vmatpush1.msra.mxu0 0.0
    %4944 = vmatprep.subr.mxu0 0.0
    %4945 = vmatpush1.msra.mxu0 0.0
    %4946 = vmatprep.subr.mxu0 0.0
    %4947 = vmatpush1.msra.mxu0 0.0
    %4948 = vmatprep.mubr.f32.mxu0 0.0
    %4949 = vmatmul.mubr.f32.gmra.mrb[0].mxu0 %v3792
    %v4950 = vpop.f32.mrb[0].mxu0
    %v4951 = vadd.f32 0.0, %v4950
    %v4952 = vpop.f32.mrb[0].mxu0
    %4953 = vmatprep.mubr.f32.mxu0 0.0
    %4954 = vmatmul.mubr.f32.gmra.mrb[0].mxu0 %v3795
    %v4955 = vpop.f32.mrb[0].mxu0
    %v4956 = vadd.f32 0.0, %v4955
    %v4957 = vpop.f32.mrb[0].mxu0
    %4958 = vmatprep.mubr.f32.mxu0 0.0
    %4959 = vmatmul.mubr.f32.gmra.mrb[0].mxu0 %v3798
    %v4960 = vpop.f32.mrb[0].mxu0
    %v4961 = vadd.f32 0.0, %v4960
    %v4962 = vpop.f32.mrb[0].mxu0
    %4963 = vmatprep.mubr.f32.mxu0 0.0
    %4964 = vmatmul.mubr.f32.gmra.mrb[0].mxu0 %v3801
    %v4965 = vpop.f32.mrb[0].mxu0
    %v4966 = vadd.f32 0.0, %v4965
    %v4967 = vpop.f32.mrb[0].mxu0
    %4968 = vdwg.mxu0
    %4969 = vrot.lane.b32.xlu0 %v4388, 64
    %v4970 = vpop.permute.xlu0 %4969
    %4971 = vrot.lane.b32.xlu0 %v4390, 64
    %v4972 = vpop.permute.xlu0 %4971
    %4973 = vrot.lane.b32.xlu0 %v4392, 64
    %v4974 = vpop.permute.xlu0 %4973
    %4975 = vrot.lane.b32.xlu0 %v4394, 64
    %v4976 = vpop.permute.xlu0 %4975
    %v4980 = vsel %vm3230, %v4976, 0
    %4982 = vmatprep.subr.mxu0 0.0
    %4983 = vmatpush1.msra.mxu0 %v4970
    %4984 = vmatprep.subr.mxu0 0.0
    %4985 = vmatpush1.msra.mxu0 %v4972
    %4986 = vmatprep.subr.mxu0 0.0
    %4987 = vmatpush1.msra.mxu0 %v4974
    %4988 = vmatprep.subr.mxu0 0.0
    %4989 = vmatpush1.msra.mxu0 %v4980
    %4990 = vmatprep.subr.mxu0 0.0
    %4991 = vmatpush1.msra.mxu0 0.0
    %4992 = vmatprep.subr.mxu0 0.0
    %4993 = vmatpush1.msra.mxu0 0.0
    %4994 = vmatprep.subr.mxu0 0.0
    %4995 = vmatpush1.msra.mxu0 0.0
    %4996 = vmatprep.subr.mxu0 0.0
    %4997 = vmatpush1.msra.mxu0 0.0
    %4998 = vmatprep.subr.mxu0 0.0
    %4999 = vmatpush1.msra.mxu0 0.0
    %5000 = vmatprep.subr.mxu0 0.0
    %5001 = vmatpush1.msra.mxu0 0.0
    %5002 = vmatprep.subr.mxu0 0.0
    %5003 = vmatpush1.msra.mxu0 0.0
    %5004 = vmatprep.subr.mxu0 0.0
    %5005 = vmatpush1.msra.mxu0 0.0
    %5006 = vmatprep.subr.mxu0 0.0
    %5007 = vmatpush1.msra.mxu0 0.0
    %5008 = vmatprep.subr.mxu0 0.0
    %5009 = vmatpush1.msra.mxu0 0.0
    %5010 = vmatprep.subr.mxu0 0.0
    %5011 = vmatpush1.msra.mxu0 0.0
    %5012 = vmatprep.subr.mxu0 0.0
    %5013 = vmatpush1.msra.mxu0 0.0
    %5014 = vmatprep.subr.mxu0 0.0
    %5015 = vmatpush1.msra.mxu0 0.0
    %5016 = vmatprep.subr.mxu0 0.0
    %5017 = vmatpush1.msra.mxu0 0.0
    %5018 = vmatprep.subr.mxu0 0.0
    %5019 = vmatpush1.msra.mxu0 0.0
    %5020 = vmatprep.subr.mxu0 0.0
    %5021 = vmatpush1.msra.mxu0 0.0
    %5022 = vmatprep.subr.mxu0 0.0
    %5023 = vmatpush1.msra.mxu0 0.0
    %5024 = vmatprep.subr.mxu0 0.0
    %5025 = vmatpush1.msra.mxu0 0.0
    %5026 = vmatprep.subr.mxu0 0.0
    %5027 = vmatpush1.msra.mxu0 0.0
    %5028 = vmatprep.subr.mxu0 0.0
    %5029 = vmatpush1.msra.mxu0 0.0
    %5030 = vmatprep.subr.mxu0 0.0
    %5031 = vmatpush1.msra.mxu0 0.0
    %5032 = vmatprep.subr.mxu0 0.0
    %5033 = vmatpush1.msra.mxu0 0.0
    %5034 = vmatprep.subr.mxu0 0.0
    %5035 = vmatpush1.msra.mxu0 0.0
    %5036 = vmatprep.subr.mxu0 0.0
    %5037 = vmatpush1.msra.mxu0 0.0
    %5038 = vmatprep.subr.mxu0 0.0
    %5039 = vmatpush1.msra.mxu0 0.0
    %5040 = vmatprep.subr.mxu0 0.0
    %5041 = vmatpush1.msra.mxu0 0.0
    %5042 = vmatprep.subr.mxu0 0.0
    %5043 = vmatpush1.msra.mxu0 0.0
    %5044 = vmatprep.subr.mxu0 0.0
    %5045 = vmatpush1.msra.mxu0 0.0
    %5046 = vmatprep.mubr.f32.mxu0 0.0
    %5047 = vmatmul.mubr.f32.gmra.mrb[0].mxu0 %v3907
    %v5048 = vpop.f32.mrb[0].mxu0
    %v5049 = vadd.f32 0.0, %v5048
    %v5050 = vpop.f32.mrb[0].mxu0
    %5051 = vmatprep.mubr.f32.mxu0 0.0
    %5052 = vmatmul.mubr.f32.gmra.mrb[0].mxu0 %v3910
    %v5053 = vpop.f32.mrb[0].mxu0
    %v5054 = vadd.f32 0.0, %v5053
    %v5055 = vpop.f32.mrb[0].mxu0
    %5056 = vmatprep.mubr.f32.mxu0 0.0
    %5057 = vmatmul.mubr.f32.gmra.mrb[0].mxu0 %v3913
    %v5058 = vpop.f32.mrb[0].mxu0
    %v5059 = vadd.f32 0.0, %v5058
    %v5060 = vpop.f32.mrb[0].mxu0
    %5061 = vmatprep.mubr.f32.mxu0 0.0
    %5062 = vmatmul.mubr.f32.gmra.mrb[0].mxu0 %v3916
    %v5063 = vpop.f32.mrb[0].mxu0
    %v5064 = vadd.f32 0.0, %v5063
    %v5065 = vpop.f32.mrb[0].mxu0
    %5066 = vdwg.mxu0
    %5067 = vrot.lane.b32.xlu0 %v4388, 32
    %v5068 = vpop.permute.xlu0 %5067
    %5069 = vrot.lane.b32.xlu0 %v4390, 32
    %v5070 = vpop.permute.xlu0 %5069
    %5071 = vrot.lane.b32.xlu0 %v4392, 32
    %v5072 = vpop.permute.xlu0 %5071
    %5073 = vrot.lane.b32.xlu0 %v4394, 32
    %v5074 = vpop.permute.xlu0 %5073
    %v5078 = vsel %vm3230, %v5074, 0
    %5080 = vmatprep.subr.mxu0 0.0
    %5081 = vmatpush1.msra.mxu0 %v5068
    %5082 = vmatprep.subr.mxu0 0.0
    %5083 = vmatpush1.msra.mxu0 %v5070
    %5084 = vmatprep.subr.mxu0 0.0
    %5085 = vmatpush1.msra.mxu0 %v5072
    %5086 = vmatprep.subr.mxu0 0.0
    %5087 = vmatpush1.msra.mxu0 %v5078
    %5088 = vmatprep.subr.mxu0 0.0
    %5089 = vmatpush1.msra.mxu0 0.0
    %5090 = vmatprep.subr.mxu0 0.0
    %5091 = vmatpush1.msra.mxu0 0.0
    %5092 = vmatprep.subr.mxu0 0.0
    %5093 = vmatpush1.msra.mxu0 0.0
    %5094 = vmatprep.subr.mxu0 0.0
    %5095 = vmatpush1.msra.mxu0 0.0
    %5096 = vmatprep.subr.mxu0 0.0
    %5097 = vmatpush1.msra.mxu0 0.0
    %5098 = vmatprep.subr.mxu0 0.0
    %5099 = vmatpush1.msra.mxu0 0.0
    %5100 = vmatprep.subr.mxu0 0.0
    %5101 = vmatpush1.msra.mxu0 0.0
    %5102 = vmatprep.subr.mxu0 0.0
    %5103 = vmatpush1.msra.mxu0 0.0
    %5104 = vmatprep.subr.mxu0 0.0
    %5105 = vmatpush1.msra.mxu0 0.0
    %5106 = vmatprep.subr.mxu0 0.0
    %5107 = vmatpush1.msra.mxu0 0.0
    %5108 = vmatprep.subr.mxu0 0.0
    %5109 = vmatpush1.msra.mxu0 0.0
    %5110 = vmatprep.subr.mxu0 0.0
    %5111 = vmatpush1.msra.mxu0 0.0
    %5112 = vmatprep.subr.mxu0 0.0
    %5113 = vmatpush1.msra.mxu0 0.0
    %5114 = vmatprep.subr.mxu0 0.0
    %5115 = vmatpush1.msra.mxu0 0.0
    %5116 = vmatprep.subr.mxu0 0.0
    %5117 = vmatpush1.msra.mxu0 0.0
    %5118 = vmatprep.subr.mxu0 0.0
    %5119 = vmatpush1.msra.mxu0 0.0
    %5120 = vmatprep.subr.mxu0 0.0
    %5121 = vmatpush1.msra.mxu0 0.0
    %5122 = vmatprep.subr.mxu0 0.0
    %5123 = vmatpush1.msra.mxu0 0.0
    %5124 = vmatprep.subr.mxu0 0.0
    %5125 = vmatpush1.msra.mxu0 0.0
    %5126 = vmatprep.subr.mxu0 0.0
    %5127 = vmatpush1.msra.mxu0 0.0
    %5128 = vmatprep.subr.mxu0 0.0
    %5129 = vmatpush1.msra.mxu0 0.0
    %5130 = vmatprep.subr.mxu0 0.0
    %5131 = vmatpush1.msra.mxu0 0.0
    %5132 = vmatprep.subr.mxu0 0.0
    %5133 = vmatpush1.msra.mxu0 0.0
    %5134 = vmatprep.subr.mxu0 0.0
    %5135 = vmatpush1.msra.mxu0 0.0
    %5136 = vmatprep.subr.mxu0 0.0
    %5137 = vmatpush1.msra.mxu0 0.0
    %5138 = vmatprep.subr.mxu0 0.0
    %5139 = vmatpush1.msra.mxu0 0.0
    %5140 = vmatprep.subr.mxu0 0.0
    %5141 = vmatpush1.msra.mxu0 0.0
    %5142 = vmatprep.subr.mxu0 0.0
    %5143 = vmatpush1.msra.mxu0 0.0
    %5144 = vmatprep.mubr.f32.mxu0 0.0
    %5145 = vmatmul.mubr.f32.gmra.mrb[0].mxu0 %v4022
    %v5146 = vpop.f32.mrb[0].mxu0
    %v5147 = vadd.f32 0.0, %v5146
    %v5148 = vpop.f32.mrb[0].mxu0
    %5149 = vmatprep.mubr.f32.mxu0 0.0
    %5150 = vmatmul.mubr.f32.gmra.mrb[0].mxu0 %v4025
    %v5151 = vpop.f32.mrb[0].mxu0
    %v5152 = vadd.f32 0.0, %v5151
    %v5153 = vpop.f32.mrb[0].mxu0
    %5154 = vmatprep.mubr.f32.mxu0 0.0
    %5155 = vmatmul.mubr.f32.gmra.mrb[0].mxu0 %v4028
    %v5156 = vpop.f32.mrb[0].mxu0
    %v5157 = vadd.f32 0.0, %v5156
    %v5158 = vpop.f32.mrb[0].mxu0
    %5159 = vmatprep.mubr.f32.mxu0 0.0
    %5160 = vmatmul.mubr.f32.gmra.mrb[0].mxu0 %v4031
    %v5161 = vpop.f32.mrb[0].mxu0
    %v5162 = vadd.f32 0.0, %v5161
    %v5163 = vpop.f32.mrb[0].mxu0
    %5164 = vdwg.mxu0
    %5169 = vrot.lane.b32.xlu0 %v4566, 32
    %v5170 = vpop.permute.xlu0 %5169
    %5171 = vrot.lane.b32.xlu0 %v4571, 32
    %v5172 = vpop.permute.xlu0 %5171
    %5173 = vrot.lane.b32.xlu0 %v4576, 32
    %v5174 = vpop.permute.xlu0 %5173
    %5175 = vrot.lane.b32.xlu0 %v4581, 32
    %v5176 = vpop.permute.xlu0 %5175
    %5185 = vrot.lane.b32.xlu0 %v4664, 64
    %v5186 = vpop.permute.xlu0 %5185
    %5187 = vrot.lane.b32.xlu0 %v4669, 64
    %v5188 = vpop.permute.xlu0 %5187
    %5189 = vrot.lane.b32.xlu0 %v4674, 64
    %v5190 = vpop.permute.xlu0 %5189
    %5191 = vrot.lane.b32.xlu0 %v4679, 64
    %v5192 = vpop.permute.xlu0 %5191
    %5201 = vrot.lane.b32.xlu0 %v4762, 96
    %v5202 = vpop.permute.xlu0 %5201
    %5203 = vrot.lane.b32.xlu0 %v4767, 96
    %v5204 = vpop.permute.xlu0 %5203
    %5205 = vrot.lane.b32.xlu0 %v4772, 96
    %v5206 = vpop.permute.xlu0 %5205
    %5207 = vrot.lane.b32.xlu0 %v4777, 96
    %v5208 = vpop.permute.xlu0 %5207
    %5217 = vrot.lane.b32.xlu0 %v4951, 32
    %v5218 = vpop.permute.xlu0 %5217
    %5219 = vrot.lane.b32.xlu0 %v4956, 32
    %v5220 = vpop.permute.xlu0 %5219
    %5221 = vrot.lane.b32.xlu0 %v4961, 32
    %v5222 = vpop.permute.xlu0 %5221
    %5223 = vrot.lane.b32.xlu0 %v4966, 32
    %v5224 = vpop.permute.xlu0 %5223
    %5233 = vrot.lane.b32.xlu0 %v5049, 64
    %v5234 = vpop.permute.xlu0 %5233
    %5235 = vrot.lane.b32.xlu0 %v5054, 64
    %v5236 = vpop.permute.xlu0 %5235
    %5237 = vrot.lane.b32.xlu0 %v5059, 64
    %v5238 = vpop.permute.xlu0 %5237
    %5239 = vrot.lane.b32.xlu0 %v5064, 64
    %v5240 = vpop.permute.xlu0 %5239
    %5249 = vrot.lane.b32.xlu0 %v5147, 96
    %v5250 = vpop.permute.xlu0 %5249
    %5251 = vrot.lane.b32.xlu0 %v5152, 96
    %v5252 = vpop.permute.xlu0 %5251
    %5253 = vrot.lane.b32.xlu0 %v5157, 96
    %v5254 = vpop.permute.xlu0 %5253
    %5255 = vrot.lane.b32.xlu0 %v5162, 96
    %v5256 = vpop.permute.xlu0 %5255
    %v5261 = vsel %vm318, %v4465, %v5170
    %v5262 = vsel %vm318, %v4470, %v5172
    %v5263 = vsel %vm318, %v4475, %v5174
    %v5264 = vsel %vm318, %v4480, %v5176
    %v5265 = vsel %vm4220, %v5261, %v5186
    %v5266 = vsel %vm4220, %v5262, %v5188
    %v5267 = vsel %vm4220, %v5263, %v5190
    %v5268 = vsel %vm4220, %v5264, %v5192
    %v5269 = vsel %vm4225, %v5265, %v5202
    %v5270 = vsel %vm4225, %v5266, %v5204
    %v5271 = vsel %vm4225, %v5267, %v5206
    %v5272 = vsel %vm4225, %v5268, %v5208
    %v5273 = vsel %vm318, %v4850, %v5218
    %v5274 = vsel %vm318, %v4855, %v5220
    %v5275 = vsel %vm318, %v4860, %v5222
    %v5276 = vsel %vm318, %v4865, %v5224
    %v5277 = vsel %vm4220, %v5273, %v5234
    %v5278 = vsel %vm4220, %v5274, %v5236
    %v5279 = vsel %vm4220, %v5275, %v5238
    %v5280 = vsel %vm4220, %v5276, %v5240
    %v5281 = vsel %vm4225, %v5277, %v5250
    %v5282 = vsel %vm4225, %v5278, %v5252
    %v5283 = vsel %vm4225, %v5279, %v5254
    %v5284 = vsel %vm4225, %v5280, %v5256
    %5285 = vmatprep.subr.mxu0 %v3005
    %5286 = vmatpush1.msra.mxu0 %v3004
    %5287 = vmatprep.subr.mxu0 %v3007
    %5288 = vmatpush1.msra.mxu0 %v3006
    %5289 = vmatprep.subr.mxu0 %v3009
    %5290 = vmatpush1.msra.mxu0 %v3008
    %5291 = vmatprep.subr.mxu0 %v3011
    %5292 = vmatpush1.msra.mxu0 %v3010
    %5293 = vmatprep.subr.mxu0 %v3013
    %5294 = vmatpush1.msra.mxu0 %v3012
    %5295 = vmatprep.subr.mxu0 %v3015
    %5296 = vmatpush1.msra.mxu0 %v3014
    %5297 = vmatprep.subr.mxu0 %v3017
    %5298 = vmatpush1.msra.mxu0 %v3016
    %5299 = vmatprep.subr.mxu0 %v3019
    %5300 = vmatpush1.msra.mxu0 %v3018
    %5301 = vmatprep.subr.mxu0 %v3021
    %5302 = vmatpush1.msra.mxu0 %v3020
    %5303 = vmatprep.subr.mxu0 %v3023
    %5304 = vmatpush1.msra.mxu0 %v3022
    %5305 = vmatprep.subr.mxu0 %v3025
    %5306 = vmatpush1.msra.mxu0 %v3024
    %5307 = vmatprep.subr.mxu0 %v3027
    %5308 = vmatpush1.msra.mxu0 %v3026
    %5309 = vmatprep.subr.mxu0 %v3029
    %5310 = vmatpush1.msra.mxu0 %v3028
    %5311 = vmatprep.subr.mxu0 %v3031
    %5312 = vmatpush1.msra.mxu0 %v3030
    %5313 = vmatprep.subr.mxu0 %v3033
    %5314 = vmatpush1.msra.mxu0 %v3032
    %5315 = vmatprep.subr.mxu0 %v3035
    %5316 = vmatpush1.msra.mxu0 %v3034
    %5317 = vmatprep.subr.mxu0 %v3037
    %5318 = vmatpush1.msra.mxu0 %v3036
    %5319 = vmatprep.subr.mxu0 %v3039
    %5320 = vmatpush1.msra.mxu0 %v3038
    %5321 = vmatprep.subr.mxu0 %v3041
    %5322 = vmatpush1.msra.mxu0 %v3040
    %5323 = vmatprep.subr.mxu0 %v3043
    %5324 = vmatpush1.msra.mxu0 %v3042
    %5325 = vmatprep.subr.mxu0 %v3045
    %5326 = vmatpush1.msra.mxu0 %v3044
    %5327 = vmatprep.subr.mxu0 %v3047
    %5328 = vmatpush1.msra.mxu0 %v3046
    %5329 = vmatprep.subr.mxu0 %v3049
    %5330 = vmatpush1.msra.mxu0 %v3048
    %5331 = vmatprep.subr.mxu0 %v3051
    %5332 = vmatpush1.msra.mxu0 %v3050
    %5333 = vmatprep.subr.mxu0 %v3053
    %5334 = vmatpush1.msra.mxu0 %v3052
    %5335 = vmatprep.subr.mxu0 %v3055
    %5336 = vmatpush1.msra.mxu0 %v3054
    %5337 = vmatprep.subr.mxu0 %v3057
    %5338 = vmatpush1.msra.mxu0 %v3056
    %5339 = vmatprep.subr.mxu0 %v3059
    %5340 = vmatpush1.msra.mxu0 %v3058
    %5341 = vmatprep.subr.mxu0 %v3061
    %5342 = vmatpush1.msra.mxu0 %v3060
    %5343 = vmatprep.subr.mxu0 %v3063
    %5344 = vmatpush1.msra.mxu0 %v3062
    %5345 = vmatprep.subr.mxu0 %v3065
    %5346 = vmatpush1.msra.mxu0 %v3064
    %5347 = vmatprep.subr.mxu0 %v3067
    %5348 = vmatpush1.msra.mxu0 %v3066
    %5349 = vmatprep.mubr.f32.mxu0 %v5281
    %5350 = vmatmul.mubr.f32.gmra.mrb[0].mxu0 %v5269
    %v5351 = vpop.f32.mrb[0].mxu0
    %v5352 = vadd.f32 0.0, %v5351
    %v5353 = vpop.f32.mrb[0].mxu0
    %v5354 = vadd.f32 0.0, %v5353
    %5355 = vmatprep.mubr.f32.mxu0 %v5282
    %5356 = vmatmul.mubr.f32.gmra.mrb[0].mxu0 %v5270
    %v5357 = vpop.f32.mrb[0].mxu0
    %v5358 = vadd.f32 0.0, %v5357
    %v5359 = vpop.f32.mrb[0].mxu0
    %v5360 = vadd.f32 0.0, %v5359
    %5361 = vmatprep.mubr.f32.mxu0 %v5283
    %5362 = vmatmul.mubr.f32.gmra.mrb[0].mxu0 %v5271
    %v5363 = vpop.f32.mrb[0].mxu0
    %v5364 = vadd.f32 0.0, %v5363
    %v5365 = vpop.f32.mrb[0].mxu0
    %v5366 = vadd.f32 0.0, %v5365
    %5367 = vmatprep.mubr.f32.mxu0 %v5284
    %5368 = vmatmul.mubr.f32.gmra.mrb[0].mxu0 %v5272
    %v5369 = vpop.f32.mrb[0].mxu0
    %v5370 = vadd.f32 0.0, %v5369
    %v5371 = vpop.f32.mrb[0].mxu0
    %v5372 = vadd.f32 0.0, %v5371
    %5373 = vdwg.mxu0
    %v5374 = vmul.f32 %v5352, %v3179
    %v5375 = vmul.f32 %v5354, %v3183
    %v5376 = vmul.f32 %v5358, %v3179
    %v5377 = vmul.f32 %v5360, %v3183
    %v5378 = vmul.f32 %v5364, %v3179
    %v5379 = vmul.f32 %v5366, %v3183
    %v5380 = vmul.f32 %v5370, %v3179
    %v5381 = vmul.f32 %v5372, %v3183
    %v5382 = vadd.f32 %v5374, %v3198
    %v5383 = vadd.f32 %v5375, %v3202
    %v5384 = vadd.f32 %v5376, %v3198
    %v5385 = vadd.f32 %v5377, %v3202
    %v5386 = vadd.f32 %v5378, %v3198
    %v5387 = vadd.f32 %v5379, %v3202
    %v5388 = vadd.f32 %v5380, %v3198
    %v5389 = vadd.f32 %v5381, %v3202
    %vm5390 = vcmp.gt.f32.partialorder %v5382, 0.0
    %vm5391 = vcmp.gt.f32.partialorder %v5383, 0.0
    %vm5392 = vcmp.gt.f32.partialorder %v5384, 0.0
    %vm5393 = vcmp.gt.f32.partialorder %v5385, 0.0
    %vm5394 = vcmp.gt.f32.partialorder %v5386, 0.0
    %vm5395 = vcmp.gt.f32.partialorder %v5387, 0.0
    %vm5396 = vcmp.gt.f32.partialorder %v5388, 0.0
    %vm5397 = vcmp.gt.f32.partialorder %v5389, 0.0
    %v5398 = vmin.f32 %v5382, 0.0
    %v5399 = vmin.f32 %v5383, 0.0
    %v5400 = vmin.f32 %v5384, 0.0
    %v5401 = vmin.f32 %v5385, 0.0
    %v5402 = vmin.f32 %v5386, 0.0
    %v5403 = vmin.f32 %v5387, 0.0
    %v5404 = vmin.f32 %v5388, 0.0
    %v5405 = vmin.f32 %v5389, 0.0
    %v5406 = vmul.f32 %v5398, 1.442695
    %v5407 = vpow.pop %v5406
    %v5408 = vmul.f32 %v5399, 1.442695
    %v5409 = vpow.pop %v5408
    %v5410 = vmul.f32 %v5400, 1.442695
    %v5411 = vpow.pop %v5410
    %v5412 = vmul.f32 %v5401, 1.442695
    %v5413 = vpow.pop %v5412
    %v5414 = vmul.f32 %v5402, 1.442695
    %v5415 = vpow.pop %v5414
    %v5416 = vmul.f32 %v5403, 1.442695
    %v5417 = vpow.pop %v5416
    %v5418 = vmul.f32 %v5404, 1.442695
    %v5419 = vpow.pop %v5418
    %v5420 = vmul.f32 %v5405, 1.442695
    %v5421 = vpow.pop %v5420
    %v5422 = vsub.f32 %v5407, 1.0
    %v5423 = vsub.f32 %v5409, 1.0
    %v5424 = vsub.f32 %v5411, 1.0
    %v5425 = vsub.f32 %v5413, 1.0
    %v5426 = vsub.f32 %v5415, 1.0
    %v5427 = vsub.f32 %v5417, 1.0
    %v5428 = vsub.f32 %v5419, 1.0
    %v5429 = vsub.f32 %v5421, 1.0
    %v5430 = vsel %vm5390, %v5382, %v5422
    %v5431 = vsel %vm5391, %v5383, %v5423
    %v5432 = vsel %vm5392, %v5384, %v5424
    %v5433 = vsel %vm5393, %v5385, %v5425
    %v5434 = vsel %vm5394, %v5386, %v5426
    %v5435 = vsel %vm5395, %v5387, %v5427
    %v5436 = vsel %vm5396, %v5388, %v5428
    %v5437 = vsel %vm5397, %v5389, %v5429
    %v5439 = vsel %vm3230, %v5436, 0
    %5441 = vmatprep.subr.mxu0 0.0
    %5442 = vmatpush1.msra.mxu0 %v5430
    %5443 = vmatprep.subr.mxu0 0.0
    %5444 = vmatpush1.msra.mxu0 %v5432
    %5445 = vmatprep.subr.mxu0 0.0
    %5446 = vmatpush1.msra.mxu0 %v5434
    %5447 = vmatprep.subr.mxu0 0.0
    %5448 = vmatpush1.msra.mxu0 %v5439
    %5449 = vmatprep.subr.mxu0 0.0
    %5450 = vmatpush1.msra.mxu0 0.0
    %5451 = vmatprep.subr.mxu0 0.0
    %5452 = vmatpush1.msra.mxu0 0.0
    %5453 = vmatprep.subr.mxu0 0.0
    %5454 = vmatpush1.msra.mxu0 0.0
    %5455 = vmatprep.subr.mxu0 0.0
    %5456 = vmatpush1.msra.mxu0 0.0
    %5457 = vmatprep.subr.mxu0 0.0
    %5458 = vmatpush1.msra.mxu0 0.0
    %5459 = vmatprep.subr.mxu0 0.0
    %5460 = vmatpush1.msra.mxu0 0.0
    %5461 = vmatprep.subr.mxu0 0.0
    %5462 = vmatpush1.msra.mxu0 0.0
    %5463 = vmatprep.subr.mxu0 0.0
    %5464 = vmatpush1.msra.mxu0 0.0
    %5465 = vmatprep.subr.mxu0 0.0
    %5466 = vmatpush1.msra.mxu0 0.0
    %5467 = vmatprep.subr.mxu0 0.0
    %5468 = vmatpush1.msra.mxu0 0.0
    %5469 = vmatprep.subr.mxu0 0.0
    %5470 = vmatpush1.msra.mxu0 0.0
    %5471 = vmatprep.subr.mxu0 0.0
    %5472 = vmatpush1.msra.mxu0 0.0
    %5473 = vmatprep.subr.mxu0 0.0
    %5474 = vmatpush1.msra.mxu0 0.0
    %5475 = vmatprep.subr.mxu0 0.0
    %5476 = vmatpush1.msra.mxu0 0.0
    %5477 = vmatprep.subr.mxu0 0.0
    %5478 = vmatpush1.msra.mxu0 0.0
    %5479 = vmatprep.subr.mxu0 0.0
    %5480 = vmatpush1.msra.mxu0 0.0
    %5481 = vmatprep.subr.mxu0 0.0
    %5482 = vmatpush1.msra.mxu0 0.0
    %5483 = vmatprep.subr.mxu0 0.0
    %5484 = vmatpush1.msra.mxu0 0.0
    %5485 = vmatprep.subr.mxu0 0.0
    %5486 = vmatpush1.msra.mxu0 0.0
    %5487 = vmatprep.subr.mxu0 0.0
    %5488 = vmatpush1.msra.mxu0 0.0
    %5489 = vmatprep.subr.mxu0 0.0
    %5490 = vmatpush1.msra.mxu0 0.0
    %5491 = vmatprep.subr.mxu0 0.0
    %5492 = vmatpush1.msra.mxu0 0.0
    %5493 = vmatprep.subr.mxu0 0.0
    %5494 = vmatpush1.msra.mxu0 0.0
    %5495 = vmatprep.subr.mxu0 0.0
    %5496 = vmatpush1.msra.mxu0 0.0
    %5497 = vmatprep.subr.mxu0 0.0
    %5498 = vmatpush1.msra.mxu0 0.0
    %5499 = vmatprep.subr.mxu0 0.0
    %5500 = vmatpush1.msra.mxu0 0.0
    %5501 = vmatprep.subr.mxu0 0.0
    %5502 = vmatpush1.msra.mxu0 0.0
    %5503 = vmatprep.subr.mxu0 0.0
    %5504 = vmatpush1.msra.mxu0 0.0
    %5505 = vmatprep.mubr.f32.mxu0 0.0
    %5506 = vmatmul.mubr.f32.gmra.mrb[0].mxu0 %v3219
    %v5507 = vpop.f32.mrb[0].mxu0
    %v5508 = vadd.f32 0.0, %v5507
    %v5509 = vpop.f32.mrb[0].mxu0
    %5510 = vmatprep.mubr.f32.mxu0 0.0
    %5511 = vmatmul.mubr.f32.gmra.mrb[0].mxu0 %v3222
    %v5512 = vpop.f32.mrb[0].mxu0
    %v5513 = vadd.f32 0.0, %v5512
    %v5514 = vpop.f32.mrb[0].mxu0
    %5515 = vmatprep.mubr.f32.mxu0 0.0
    %5516 = vmatmul.mubr.f32.gmra.mrb[0].mxu0 %v3225
    %v5517 = vpop.f32.mrb[0].mxu0
    %v5518 = vadd.f32 0.0, %v5517
    %v5519 = vpop.f32.mrb[0].mxu0
    %5520 = vmatprep.mubr.f32.mxu0 0.0
    %5521 = vmatmul.mubr.f32.gmra.mrb[0].mxu0 %v3228
    %v5522 = vpop.f32.mrb[0].mxu0
    %v5523 = vadd.f32 0.0, %v5522
    %v5524 = vpop.f32.mrb[0].mxu0
    %5525 = vdwg.mxu0
    %5529 = vrot.lane.b32.xlu0 %v5430, 96
    %v5530 = vpop.permute.xlu0 %5529
    %5531 = vrot.lane.b32.xlu0 %v5432, 96
    %v5532 = vpop.permute.xlu0 %5531
    %5533 = vrot.lane.b32.xlu0 %v5434, 96
    %v5534 = vpop.permute.xlu0 %5533
    %5535 = vrot.lane.b32.xlu0 %v5436, 96
    %v5536 = vpop.permute.xlu0 %5535
    %v5540 = vsel %vm3230, %v5536, 0
    %5542 = vmatprep.subr.mxu0 0.0
    %5543 = vmatpush1.msra.mxu0 %v5530
    %5544 = vmatprep.subr.mxu0 0.0
    %5545 = vmatpush1.msra.mxu0 %v5532
    %5546 = vmatprep.subr.mxu0 0.0
    %5547 = vmatpush1.msra.mxu0 %v5534
    %5548 = vmatprep.subr.mxu0 0.0
    %5549 = vmatpush1.msra.mxu0 %v5540
    %5550 = vmatprep.subr.mxu0 0.0
    %5551 = vmatpush1.msra.mxu0 0.0
    %5552 = vmatprep.subr.mxu0 0.0
    %5553 = vmatpush1.msra.mxu0 0.0
    %5554 = vmatprep.subr.mxu0 0.0
    %5555 = vmatpush1.msra.mxu0 0.0
    %5556 = vmatprep.subr.mxu0 0.0
    %5557 = vmatpush1.msra.mxu0 0.0
    %5558 = vmatprep.subr.mxu0 0.0
    %5559 = vmatpush1.msra.mxu0 0.0
    %5560 = vmatprep.subr.mxu0 0.0
    %5561 = vmatpush1.msra.mxu0 0.0
    %5562 = vmatprep.subr.mxu0 0.0
    %5563 = vmatpush1.msra.mxu0 0.0
    %5564 = vmatprep.subr.mxu0 0.0
    %5565 = vmatpush1.msra.mxu0 0.0
    %5566 = vmatprep.subr.mxu0 0.0
    %5567 = vmatpush1.msra.mxu0 0.0
    %5568 = vmatprep.subr.mxu0 0.0
    %5569 = vmatpush1.msra.mxu0 0.0
    %5570 = vmatprep.subr.mxu0 0.0
    %5571 = vmatpush1.msra.mxu0 0.0
    %5572 = vmatprep.subr.mxu0 0.0
    %5573 = vmatpush1.msra.mxu0 0.0
    %5574 = vmatprep.subr.mxu0 0.0
    %5575 = vmatpush1.msra.mxu0 0.0
    %5576 = vmatprep.subr.mxu0 0.0
    %5577 = vmatpush1.msra.mxu0 0.0
    %5578 = vmatprep.subr.mxu0 0.0
    %5579 = vmatpush1.msra.mxu0 0.0
    %5580 = vmatprep.subr.mxu0 0.0
    %5581 = vmatpush1.msra.mxu0 0.0
    %5582 = vmatprep.subr.mxu0 0.0
    %5583 = vmatpush1.msra.mxu0 0.0
    %5584 = vmatprep.subr.mxu0 0.0
    %5585 = vmatpush1.msra.mxu0 0.0
    %5586 = vmatprep.subr.mxu0 0.0
    %5587 = vmatpush1.msra.mxu0 0.0
    %5588 = vmatprep.subr.mxu0 0.0
    %5589 = vmatpush1.msra.mxu0 0.0
    %5590 = vmatprep.subr.mxu0 0.0
    %5591 = vmatpush1.msra.mxu0 0.0
    %5592 = vmatprep.subr.mxu0 0.0
    %5593 = vmatpush1.msra.mxu0 0.0
    %5594 = vmatprep.subr.mxu0 0.0
    %5595 = vmatpush1.msra.mxu0 0.0
    %5596 = vmatprep.subr.mxu0 0.0
    %5597 = vmatpush1.msra.mxu0 0.0
    %5598 = vmatprep.subr.mxu0 0.0
    %5599 = vmatpush1.msra.mxu0 0.0
    %5600 = vmatprep.subr.mxu0 0.0
    %5601 = vmatpush1.msra.mxu0 0.0
    %5602 = vmatprep.subr.mxu0 0.0
    %5603 = vmatpush1.msra.mxu0 0.0
    %5604 = vmatprep.subr.mxu0 0.0
    %5605 = vmatpush1.msra.mxu0 0.0
    %5606 = vmatprep.mubr.f32.mxu0 0.0
    %5607 = vmatmul.mubr.f32.gmra.mrb[0].mxu0 %v3339
    %v5608 = vpop.f32.mrb[0].mxu0
    %v5609 = vadd.f32 0.0, %v5608
    %v5610 = vpop.f32.mrb[0].mxu0
    %5611 = vmatprep.mubr.f32.mxu0 0.0
    %5612 = vmatmul.mubr.f32.gmra.mrb[0].mxu0 %v3342
    %v5613 = vpop.f32.mrb[0].mxu0
    %v5614 = vadd.f32 0.0, %v5613
    %v5615 = vpop.f32.mrb[0].mxu0
    %5616 = vmatprep.mubr.f32.mxu0 0.0
    %5617 = vmatmul.mubr.f32.gmra.mrb[0].mxu0 %v3345
    %v5618 = vpop.f32.mrb[0].mxu0
    %v5619 = vadd.f32 0.0, %v5618
    %v5620 = vpop.f32.mrb[0].mxu0
    %5621 = vmatprep.mubr.f32.mxu0 0.0
    %5622 = vmatmul.mubr.f32.gmra.mrb[0].mxu0 %v3348
    %v5623 = vpop.f32.mrb[0].mxu0
    %v5624 = vadd.f32 0.0, %v5623
    %v5625 = vpop.f32.mrb[0].mxu0
    %5626 = vdwg.mxu0
    %5627 = vrot.lane.b32.xlu0 %v5430, 64
    %v5628 = vpop.permute.xlu0 %5627
    %5629 = vrot.lane.b32.xlu0 %v5432, 64
    %v5630 = vpop.permute.xlu0 %5629
    %5631 = vrot.lane.b32.xlu0 %v5434, 64
    %v5632 = vpop.permute.xlu0 %5631
    %5633 = vrot.lane.b32.xlu0 %v5436, 64
    %v5634 = vpop.permute.xlu0 %5633
    %v5638 = vsel %vm3230, %v5634, 0
    %5640 = vmatprep.subr.mxu0 0.0
    %5641 = vmatpush1.msra.mxu0 %v5628
    %5642 = vmatprep.subr.mxu0 0.0
    %5643 = vmatpush1.msra.mxu0 %v5630
    %5644 = vmatprep.subr.mxu0 0.0
    %5645 = vmatpush1.msra.mxu0 %v5632
    %5646 = vmatprep.subr.mxu0 0.0
    %5647 = vmatpush1.msra.mxu0 %v5638
    %5648 = vmatprep.subr.mxu0 0.0
    %5649 = vmatpush1.msra.mxu0 0.0
    %5650 = vmatprep.subr.mxu0 0.0
    %5651 = vmatpush1.msra.mxu0 0.0
    %5652 = vmatprep.subr.mxu0 0.0
    %5653 = vmatpush1.msra.mxu0 0.0
    %5654 = vmatprep.subr.mxu0 0.0
    %5655 = vmatpush1.msra.mxu0 0.0
    %5656 = vmatprep.subr.mxu0 0.0
    %5657 = vmatpush1.msra.mxu0 0.0
    %5658 = vmatprep.subr.mxu0 0.0
    %5659 = vmatpush1.msra.mxu0 0.0
    %5660 = vmatprep.subr.mxu0 0.0
    %5661 = vmatpush1.msra.mxu0 0.0
    %5662 = vmatprep.subr.mxu0 0.0
    %5663 = vmatpush1.msra.mxu0 0.0
    %5664 = vmatprep.subr.mxu0 0.0
    %5665 = vmatpush1.msra.mxu0 0.0
    %5666 = vmatprep.subr.mxu0 0.0
    %5667 = vmatpush1.msra.mxu0 0.0
    %5668 = vmatprep.subr.mxu0 0.0
    %5669 = vmatpush1.msra.mxu0 0.0
    %5670 = vmatprep.subr.mxu0 0.0
    %5671 = vmatpush1.msra.mxu0 0.0
    %5672 = vmatprep.subr.mxu0 0.0
    %5673 = vmatpush1.msra.mxu0 0.0
    %5674 = vmatprep.subr.mxu0 0.0
    %5675 = vmatpush1.msra.mxu0 0.0
    %5676 = vmatprep.subr.mxu0 0.0
    %5677 = vmatpush1.msra.mxu0 0.0
    %5678 = vmatprep.subr.mxu0 0.0
    %5679 = vmatpush1.msra.mxu0 0.0
    %5680 = vmatprep.subr.mxu0 0.0
    %5681 = vmatpush1.msra.mxu0 0.0
    %5682 = vmatprep.subr.mxu0 0.0
    %5683 = vmatpush1.msra.mxu0 0.0
    %5684 = vmatprep.subr.mxu0 0.0
    %5685 = vmatpush1.msra.mxu0 0.0
    %5686 = vmatprep.subr.mxu0 0.0
    %5687 = vmatpush1.msra.mxu0 0.0
    %5688 = vmatprep.subr.mxu0 0.0
    %5689 = vmatpush1.msra.mxu0 0.0
    %5690 = vmatprep.subr.mxu0 0.0
    %5691 = vmatpush1.msra.mxu0 0.0
    %5692 = vmatprep.subr.mxu0 0.0
    %5693 = vmatpush1.msra.mxu0 0.0
    %5694 = vmatprep.subr.mxu0 0.0
    %5695 = vmatpush1.msra.mxu0 0.0
    %5696 = vmatprep.subr.mxu0 0.0
    %5697 = vmatpush1.msra.mxu0 0.0
    %5698 = vmatprep.subr.mxu0 0.0
    %5699 = vmatpush1.msra.mxu0 0.0
    %5700 = vmatprep.subr.mxu0 0.0
    %5701 = vmatpush1.msra.mxu0 0.0
    %5702 = vmatprep.subr.mxu0 0.0
    %5703 = vmatpush1.msra.mxu0 0.0
    %5704 = vmatprep.mubr.f32.mxu0 0.0
    %5705 = vmatmul.mubr.f32.gmra.mrb[0].mxu0 %v3454
    %v5706 = vpop.f32.mrb[0].mxu0
    %v5707 = vadd.f32 0.0, %v5706
    %v5708 = vpop.f32.mrb[0].mxu0
    %5709 = vmatprep.mubr.f32.mxu0 0.0
    %5710 = vmatmul.mubr.f32.gmra.mrb[0].mxu0 %v3457
    %v5711 = vpop.f32.mrb[0].mxu0
    %v5712 = vadd.f32 0.0, %v5711
    %v5713 = vpop.f32.mrb[0].mxu0
    %5714 = vmatprep.mubr.f32.mxu0 0.0
    %5715 = vmatmul.mubr.f32.gmra.mrb[0].mxu0 %v3460
    %v5716 = vpop.f32.mrb[0].mxu0
    %v5717 = vadd.f32 0.0, %v5716
    %v5718 = vpop.f32.mrb[0].mxu0
    %5719 = vmatprep.mubr.f32.mxu0 0.0
    %5720 = vmatmul.mubr.f32.gmra.mrb[0].mxu0 %v3463
    %v5721 = vpop.f32.mrb[0].mxu0
    %v5722 = vadd.f32 0.0, %v5721
    %v5723 = vpop.f32.mrb[0].mxu0
    %5724 = vdwg.mxu0
    %5725 = vrot.lane.b32.xlu0 %v5430, 32
    %v5726 = vpop.permute.xlu0 %5725
    %5727 = vrot.lane.b32.xlu0 %v5432, 32
    %v5728 = vpop.permute.xlu0 %5727
    %5729 = vrot.lane.b32.xlu0 %v5434, 32
    %v5730 = vpop.permute.xlu0 %5729
    %5731 = vrot.lane.b32.xlu0 %v5436, 32
    %v5732 = vpop.permute.xlu0 %5731
    %v5736 = vsel %vm3230, %v5732, 0
    %5738 = vmatprep.subr.mxu0 0.0
    %5739 = vmatpush1.msra.mxu0 %v5726
    %5740 = vmatprep.subr.mxu0 0.0
    %5741 = vmatpush1.msra.mxu0 %v5728
    %5742 = vmatprep.subr.mxu0 0.0
    %5743 = vmatpush1.msra.mxu0 %v5730
    %5744 = vmatprep.subr.mxu0 0.0
    %5745 = vmatpush1.msra.mxu0 %v5736
    %5746 = vmatprep.subr.mxu0 0.0
    %5747 = vmatpush1.msra.mxu0 0.0
    %5748 = vmatprep.subr.mxu0 0.0
    %5749 = vmatpush1.msra.mxu0 0.0
    %5750 = vmatprep.subr.mxu0 0.0
    %5751 = vmatpush1.msra.mxu0 0.0
    %5752 = vmatprep.subr.mxu0 0.0
    %5753 = vmatpush1.msra.mxu0 0.0
    %5754 = vmatprep.subr.mxu0 0.0
    %5755 = vmatpush1.msra.mxu0 0.0
    %5756 = vmatprep.subr.mxu0 0.0
    %5757 = vmatpush1.msra.mxu0 0.0
    %5758 = vmatprep.subr.mxu0 0.0
    %5759 = vmatpush1.msra.mxu0 0.0
    %5760 = vmatprep.subr.mxu0 0.0
    %5761 = vmatpush1.msra.mxu0 0.0
    %5762 = vmatprep.subr.mxu0 0.0
    %5763 = vmatpush1.msra.mxu0 0.0
    %5764 = vmatprep.subr.mxu0 0.0
    %5765 = vmatpush1.msra.mxu0 0.0
    %5766 = vmatprep.subr.mxu0 0.0
    %5767 = vmatpush1.msra.mxu0 0.0
    %5768 = vmatprep.subr.mxu0 0.0
    %5769 = vmatpush1.msra.mxu0 0.0
    %5770 = vmatprep.subr.mxu0 0.0
    %5771 = vmatpush1.msra.mxu0 0.0
    %5772 = vmatprep.subr.mxu0 0.0
    %5773 = vmatpush1.msra.mxu0 0.0
    %5774 = vmatprep.subr.mxu0 0.0
    %5775 = vmatpush1.msra.mxu0 0.0
    %5776 = vmatprep.subr.mxu0 0.0
    %5777 = vmatpush1.msra.mxu0 0.0
    %5778 = vmatprep.subr.mxu0 0.0
    %5779 = vmatpush1.msra.mxu0 0.0
    %5780 = vmatprep.subr.mxu0 0.0
    %5781 = vmatpush1.msra.mxu0 0.0
    %5782 = vmatprep.subr.mxu0 0.0
    %5783 = vmatpush1.msra.mxu0 0.0
    %5784 = vmatprep.subr.mxu0 0.0
    %5785 = vmatpush1.msra.mxu0 0.0
    %5786 = vmatprep.subr.mxu0 0.0
    %5787 = vmatpush1.msra.mxu0 0.0
    %5788 = vmatprep.subr.mxu0 0.0
    %5789 = vmatpush1.msra.mxu0 0.0
    %5790 = vmatprep.subr.mxu0 0.0
    %5791 = vmatpush1.msra.mxu0 0.0
    %5792 = vmatprep.subr.mxu0 0.0
    %5793 = vmatpush1.msra.mxu0 0.0
    %5794 = vmatprep.subr.mxu0 0.0
    %5795 = vmatpush1.msra.mxu0 0.0
    %5796 = vmatprep.subr.mxu0 0.0
    %5797 = vmatpush1.msra.mxu0 0.0
    %5798 = vmatprep.subr.mxu0 0.0
    %5799 = vmatpush1.msra.mxu0 0.0
    %5800 = vmatprep.subr.mxu0 0.0
    %5801 = vmatpush1.msra.mxu0 0.0
    %5802 = vmatprep.mubr.f32.mxu0 0.0
    %5803 = vmatmul.mubr.f32.gmra.mrb[0].mxu0 %v3569
    %v5804 = vpop.f32.mrb[0].mxu0
    %v5805 = vadd.f32 0.0, %v5804
    %v5806 = vpop.f32.mrb[0].mxu0
    %5807 = vmatprep.mubr.f32.mxu0 0.0
    %5808 = vmatmul.mubr.f32.gmra.mrb[0].mxu0 %v3572
    %v5809 = vpop.f32.mrb[0].mxu0
    %v5810 = vadd.f32 0.0, %v5809
    %v5811 = vpop.f32.mrb[0].mxu0
    %5812 = vmatprep.mubr.f32.mxu0 0.0
    %5813 = vmatmul.mubr.f32.gmra.mrb[0].mxu0 %v3575
    %v5814 = vpop.f32.mrb[0].mxu0
    %v5815 = vadd.f32 0.0, %v5814
    %v5816 = vpop.f32.mrb[0].mxu0
    %5817 = vmatprep.mubr.f32.mxu0 0.0
    %5818 = vmatmul.mubr.f32.gmra.mrb[0].mxu0 %v3578
    %v5819 = vpop.f32.mrb[0].mxu0
    %v5820 = vadd.f32 0.0, %v5819
    %v5821 = vpop.f32.mrb[0].mxu0
    %5822 = vdwg.mxu0
    %v5824 = vsel %vm3230, %v5437, 0
    %5826 = vmatprep.subr.mxu0 0.0
    %5827 = vmatpush1.msra.mxu0 %v5431
    %5828 = vmatprep.subr.mxu0 0.0
    %5829 = vmatpush1.msra.mxu0 %v5433
    %5830 = vmatprep.subr.mxu0 0.0
    %5831 = vmatpush1.msra.mxu0 %v5435
    %5832 = vmatprep.subr.mxu0 0.0
    %5833 = vmatpush1.msra.mxu0 %v5824
    %5834 = vmatprep.subr.mxu0 0.0
    %5835 = vmatpush1.msra.mxu0 0.0
    %5836 = vmatprep.subr.mxu0 0.0
    %5837 = vmatpush1.msra.mxu0 0.0
    %5838 = vmatprep.subr.mxu0 0.0
    %5839 = vmatpush1.msra.mxu0 0.0
    %5840 = vmatprep.subr.mxu0 0.0
    %5841 = vmatpush1.msra.mxu0 0.0
    %5842 = vmatprep.subr.mxu0 0.0
    %5843 = vmatpush1.msra.mxu0 0.0
    %5844 = vmatprep.subr.mxu0 0.0
    %5845 = vmatpush1.msra.mxu0 0.0
    %5846 = vmatprep.subr.mxu0 0.0
    %5847 = vmatpush1.msra.mxu0 0.0
    %5848 = vmatprep.subr.mxu0 0.0
    %5849 = vmatpush1.msra.mxu0 0.0
    %5850 = vmatprep.subr.mxu0 0.0
    %5851 = vmatpush1.msra.mxu0 0.0
    %5852 = vmatprep.subr.mxu0 0.0
    %5853 = vmatpush1.msra.mxu0 0.0
    %5854 = vmatprep.subr.mxu0 0.0
    %5855 = vmatpush1.msra.mxu0 0.0
    %5856 = vmatprep.subr.mxu0 0.0
    %5857 = vmatpush1.msra.mxu0 0.0
    %5858 = vmatprep.subr.mxu0 0.0
    %5859 = vmatpush1.msra.mxu0 0.0
    %5860 = vmatprep.subr.mxu0 0.0
    %5861 = vmatpush1.msra.mxu0 0.0
    %5862 = vmatprep.subr.mxu0 0.0
    %5863 = vmatpush1.msra.mxu0 0.0
    %5864 = vmatprep.subr.mxu0 0.0
    %5865 = vmatpush1.msra.mxu0 0.0
    %5866 = vmatprep.subr.mxu0 0.0
    %5867 = vmatpush1.msra.mxu0 0.0
    %5868 = vmatprep.subr.mxu0 0.0
    %5869 = vmatpush1.msra.mxu0 0.0
    %5870 = vmatprep.subr.mxu0 0.0
    %5871 = vmatpush1.msra.mxu0 0.0
    %5872 = vmatprep.subr.mxu0 0.0
    %5873 = vmatpush1.msra.mxu0 0.0
    %5874 = vmatprep.subr.mxu0 0.0
    %5875 = vmatpush1.msra.mxu0 0.0
    %5876 = vmatprep.subr.mxu0 0.0
    %5877 = vmatpush1.msra.mxu0 0.0
    %5878 = vmatprep.subr.mxu0 0.0
    %5879 = vmatpush1.msra.mxu0 0.0
    %5880 = vmatprep.subr.mxu0 0.0
    %5881 = vmatpush1.msra.mxu0 0.0
    %5882 = vmatprep.subr.mxu0 0.0
    %5883 = vmatpush1.msra.mxu0 0.0
    %5884 = vmatprep.subr.mxu0 0.0
    %5885 = vmatpush1.msra.mxu0 0.0
    %5886 = vmatprep.subr.mxu0 0.0
    %5887 = vmatpush1.msra.mxu0 0.0
    %5888 = vmatprep.subr.mxu0 0.0
    %5889 = vmatpush1.msra.mxu0 0.0
    %5890 = vmatprep.mubr.f32.mxu0 0.0
    %5891 = vmatmul.mubr.f32.gmra.mrb[0].mxu0 %v3673
    %v5892 = vpop.f32.mrb[0].mxu0
    %v5893 = vadd.f32 0.0, %v5892
    %v5894 = vpop.f32.mrb[0].mxu0
    %5895 = vmatprep.mubr.f32.mxu0 0.0
    %5896 = vmatmul.mubr.f32.gmra.mrb[0].mxu0 %v3676
    %v5897 = vpop.f32.mrb[0].mxu0
    %v5898 = vadd.f32 0.0, %v5897
    %v5899 = vpop.f32.mrb[0].mxu0
    %5900 = vmatprep.mubr.f32.mxu0 0.0
    %5901 = vmatmul.mubr.f32.gmra.mrb[0].mxu0 %v3679
    %v5902 = vpop.f32.mrb[0].mxu0
    %v5903 = vadd.f32 0.0, %v5902
    %v5904 = vpop.f32.mrb[0].mxu0
    %5905 = vmatprep.mubr.f32.mxu0 0.0
    %5906 = vmatmul.mubr.f32.gmra.mrb[0].mxu0 %v3682
    %v5907 = vpop.f32.mrb[0].mxu0
    %v5908 = vadd.f32 0.0, %v5907
    %v5909 = vpop.f32.mrb[0].mxu0
    %5910 = vdwg.mxu0
    %5914 = vrot.lane.b32.xlu0 %v5431, 96
    %v5915 = vpop.permute.xlu0 %5914
    %5916 = vrot.lane.b32.xlu0 %v5433, 96
    %v5917 = vpop.permute.xlu0 %5916
    %5918 = vrot.lane.b32.xlu0 %v5435, 96
    %v5919 = vpop.permute.xlu0 %5918
    %5920 = vrot.lane.b32.xlu0 %v5437, 96
    %v5921 = vpop.permute.xlu0 %5920
    %v5925 = vsel %vm3230, %v5921, 0
    %5927 = vmatprep.subr.mxu0 0.0
    %5928 = vmatpush1.msra.mxu0 %v5915
    %5929 = vmatprep.subr.mxu0 0.0
    %5930 = vmatpush1.msra.mxu0 %v5917
    %5931 = vmatprep.subr.mxu0 0.0
    %5932 = vmatpush1.msra.mxu0 %v5919
    %5933 = vmatprep.subr.mxu0 0.0
    %5934 = vmatpush1.msra.mxu0 %v5925
    %5935 = vmatprep.subr.mxu0 0.0
    %5936 = vmatpush1.msra.mxu0 0.0
    %5937 = vmatprep.subr.mxu0 0.0
    %5938 = vmatpush1.msra.mxu0 0.0
    %5939 = vmatprep.subr.mxu0 0.0
    %5940 = vmatpush1.msra.mxu0 0.0
    %5941 = vmatprep.subr.mxu0 0.0
    %5942 = vmatpush1.msra.mxu0 0.0
    %5943 = vmatprep.subr.mxu0 0.0
    %5944 = vmatpush1.msra.mxu0 0.0
    %5945 = vmatprep.subr.mxu0 0.0
    %5946 = vmatpush1.msra.mxu0 0.0
    %5947 = vmatprep.subr.mxu0 0.0
    %5948 = vmatpush1.msra.mxu0 0.0
    %5949 = vmatprep.subr.mxu0 0.0
    %5950 = vmatpush1.msra.mxu0 0.0
    %5951 = vmatprep.subr.mxu0 0.0
    %5952 = vmatpush1.msra.mxu0 0.0
    %5953 = vmatprep.subr.mxu0 0.0
    %5954 = vmatpush1.msra.mxu0 0.0
    %5955 = vmatprep.subr.mxu0 0.0
    %5956 = vmatpush1.msra.mxu0 0.0
    %5957 = vmatprep.subr.mxu0 0.0
    %5958 = vmatpush1.msra.mxu0 0.0
    %5959 = vmatprep.subr.mxu0 0.0
    %5960 = vmatpush1.msra.mxu0 0.0
    %5961 = vmatprep.subr.mxu0 0.0
    %5962 = vmatpush1.msra.mxu0 0.0
    %5963 = vmatprep.subr.mxu0 0.0
    %5964 = vmatpush1.msra.mxu0 0.0
    %5965 = vmatprep.subr.mxu0 0.0
    %5966 = vmatpush1.msra.mxu0 0.0
    %5967 = vmatprep.subr.mxu0 0.0
    %5968 = vmatpush1.msra.mxu0 0.0
    %5969 = vmatprep.subr.mxu0 0.0
    %5970 = vmatpush1.msra.mxu0 0.0
    %5971 = vmatprep.subr.mxu0 0.0
    %5972 = vmatpush1.msra.mxu0 0.0
    %5973 = vmatprep.subr.mxu0 0.0
    %5974 = vmatpush1.msra.mxu0 0.0
    %5975 = vmatprep.subr.mxu0 0.0
    %5976 = vmatpush1.msra.mxu0 0.0
    %5977 = vmatprep.subr.mxu0 0.0
    %5978 = vmatpush1.msra.mxu0 0.0
    %5979 = vmatprep.subr.mxu0 0.0
    %5980 = vmatpush1.msra.mxu0 0.0
    %5981 = vmatprep.subr.mxu0 0.0
    %5982 = vmatpush1.msra.mxu0 0.0
    %5983 = vmatprep.subr.mxu0 0.0
    %5984 = vmatpush1.msra.mxu0 0.0
    %5985 = vmatprep.subr.mxu0 0.0
    %5986 = vmatpush1.msra.mxu0 0.0
    %5987 = vmatprep.subr.mxu0 0.0
    %5988 = vmatpush1.msra.mxu0 0.0
    %5989 = vmatprep.subr.mxu0 0.0
    %5990 = vmatpush1.msra.mxu0 0.0
    %5991 = vmatprep.mubr.f32.mxu0 0.0
    %5992 = vmatmul.mubr.f32.gmra.mrb[0].mxu0 %v3792
    %v5993 = vpop.f32.mrb[0].mxu0
    %v5994 = vadd.f32 0.0, %v5993
    %v5995 = vpop.f32.mrb[0].mxu0
    %5996 = vmatprep.mubr.f32.mxu0 0.0
    %5997 = vmatmul.mubr.f32.gmra.mrb[0].mxu0 %v3795
    %v5998 = vpop.f32.mrb[0].mxu0
    %v5999 = vadd.f32 0.0, %v5998
    %v6000 = vpop.f32.mrb[0].mxu0
    %6001 = vmatprep.mubr.f32.mxu0 0.0
    %6002 = vmatmul.mubr.f32.gmra.mrb[0].mxu0 %v3798
    %v6003 = vpop.f32.mrb[0].mxu0
    %v6004 = vadd.f32 0.0, %v6003
    %v6005 = vpop.f32.mrb[0].mxu0
    %6006 = vmatprep.mubr.f32.mxu0 0.0
    %6007 = vmatmul.mubr.f32.gmra.mrb[0].mxu0 %v3801
    %v6008 = vpop.f32.mrb[0].mxu0
    %v6009 = vadd.f32 0.0, %v6008
    %v6010 = vpop.f32.mrb[0].mxu0
    %6011 = vdwg.mxu0
    %6012 = vrot.lane.b32.xlu0 %v5431, 64
    %v6013 = vpop.permute.xlu0 %6012
    %6014 = vrot.lane.b32.xlu0 %v5433, 64
    %v6015 = vpop.permute.xlu0 %6014
    %6016 = vrot.lane.b32.xlu0 %v5435, 64
    %v6017 = vpop.permute.xlu0 %6016
    %6018 = vrot.lane.b32.xlu0 %v5437, 64
    %v6019 = vpop.permute.xlu0 %6018
    %v6023 = vsel %vm3230, %v6019, 0
    %6025 = vmatprep.subr.mxu0 0.0
    %6026 = vmatpush1.msra.mxu0 %v6013
    %6027 = vmatprep.subr.mxu0 0.0
    %6028 = vmatpush1.msra.mxu0 %v6015
    %6029 = vmatprep.subr.mxu0 0.0
    %6030 = vmatpush1.msra.mxu0 %v6017
    %6031 = vmatprep.subr.mxu0 0.0
    %6032 = vmatpush1.msra.mxu0 %v6023
    %6033 = vmatprep.subr.mxu0 0.0
    %6034 = vmatpush1.msra.mxu0 0.0
    %6035 = vmatprep.subr.mxu0 0.0
    %6036 = vmatpush1.msra.mxu0 0.0
    %6037 = vmatprep.subr.mxu0 0.0
    %6038 = vmatpush1.msra.mxu0 0.0
    %6039 = vmatprep.subr.mxu0 0.0
    %6040 = vmatpush1.msra.mxu0 0.0
    %6041 = vmatprep.subr.mxu0 0.0
    %6042 = vmatpush1.msra.mxu0 0.0
    %6043 = vmatprep.subr.mxu0 0.0
    %6044 = vmatpush1.msra.mxu0 0.0
    %6045 = vmatprep.subr.mxu0 0.0
    %6046 = vmatpush1.msra.mxu0 0.0
    %6047 = vmatprep.subr.mxu0 0.0
    %6048 = vmatpush1.msra.mxu0 0.0
    %6049 = vmatprep.subr.mxu0 0.0
    %6050 = vmatpush1.msra.mxu0 0.0
    %6051 = vmatprep.subr.mxu0 0.0
    %6052 = vmatpush1.msra.mxu0 0.0
    %6053 = vmatprep.subr.mxu0 0.0
    %6054 = vmatpush1.msra.mxu0 0.0
    %6055 = vmatprep.subr.mxu0 0.0
    %6056 = vmatpush1.msra.mxu0 0.0
    %6057 = vmatprep.subr.mxu0 0.0
    %6058 = vmatpush1.msra.mxu0 0.0
    %6059 = vmatprep.subr.mxu0 0.0
    %6060 = vmatpush1.msra.mxu0 0.0
    %6061 = vmatprep.subr.mxu0 0.0
    %6062 = vmatpush1.msra.mxu0 0.0
    %6063 = vmatprep.subr.mxu0 0.0
    %6064 = vmatpush1.msra.mxu0 0.0
    %6065 = vmatprep.subr.mxu0 0.0
    %6066 = vmatpush1.msra.mxu0 0.0
    %6067 = vmatprep.subr.mxu0 0.0
    %6068 = vmatpush1.msra.mxu0 0.0
    %6069 = vmatprep.subr.mxu0 0.0
    %6070 = vmatpush1.msra.mxu0 0.0
    %6071 = vmatprep.subr.mxu0 0.0
    %6072 = vmatpush1.msra.mxu0 0.0
    %6073 = vmatprep.subr.mxu0 0.0
    %6074 = vmatpush1.msra.mxu0 0.0
    %6075 = vmatprep.subr.mxu0 0.0
    %6076 = vmatpush1.msra.mxu0 0.0
    %6077 = vmatprep.subr.mxu0 0.0
    %6078 = vmatpush1.msra.mxu0 0.0
    %6079 = vmatprep.subr.mxu0 0.0
    %6080 = vmatpush1.msra.mxu0 0.0
    %6081 = vmatprep.subr.mxu0 0.0
    %6082 = vmatpush1.msra.mxu0 0.0
    %6083 = vmatprep.subr.mxu0 0.0
    %6084 = vmatpush1.msra.mxu0 0.0
    %6085 = vmatprep.subr.mxu0 0.0
    %6086 = vmatpush1.msra.mxu0 0.0
    %6087 = vmatprep.subr.mxu0 0.0
    %6088 = vmatpush1.msra.mxu0 0.0
    %6089 = vmatprep.mubr.f32.mxu0 0.0
    %6090 = vmatmul.mubr.f32.gmra.mrb[0].mxu0 %v3907
    %v6091 = vpop.f32.mrb[0].mxu0
    %v6092 = vadd.f32 0.0, %v6091
    %v6093 = vpop.f32.mrb[0].mxu0
    %6094 = vmatprep.mubr.f32.mxu0 0.0
    %6095 = vmatmul.mubr.f32.gmra.mrb[0].mxu0 %v3910
    %v6096 = vpop.f32.mrb[0].mxu0
    %v6097 = vadd.f32 0.0, %v6096
    %v6098 = vpop.f32.mrb[0].mxu0
    %6099 = vmatprep.mubr.f32.mxu0 0.0
    %6100 = vmatmul.mubr.f32.gmra.mrb[0].mxu0 %v3913
    %v6101 = vpop.f32.mrb[0].mxu0
    %v6102 = vadd.f32 0.0, %v6101
    %v6103 = vpop.f32.mrb[0].mxu0
    %6104 = vmatprep.mubr.f32.mxu0 0.0
    %6105 = vmatmul.mubr.f32.gmra.mrb[0].mxu0 %v3916
    %v6106 = vpop.f32.mrb[0].mxu0
    %v6107 = vadd.f32 0.0, %v6106
    %v6108 = vpop.f32.mrb[0].mxu0
    %6109 = vdwg.mxu0
    %6110 = vrot.lane.b32.xlu0 %v5431, 32
    %v6111 = vpop.permute.xlu0 %6110
    %6112 = vrot.lane.b32.xlu0 %v5433, 32
    %v6113 = vpop.permute.xlu0 %6112
    %6114 = vrot.lane.b32.xlu0 %v5435, 32
    %v6115 = vpop.permute.xlu0 %6114
    %6116 = vrot.lane.b32.xlu0 %v5437, 32
    %v6117 = vpop.permute.xlu0 %6116
    %v6121 = vsel %vm3230, %v6117, 0
    %6123 = vmatprep.subr.mxu0 0.0
    %6124 = vmatpush1.msra.mxu0 %v6111
    %6125 = vmatprep.subr.mxu0 0.0
    %6126 = vmatpush1.msra.mxu0 %v6113
    %6127 = vmatprep.subr.mxu0 0.0
    %6128 = vmatpush1.msra.mxu0 %v6115
    %6129 = vmatprep.subr.mxu0 0.0
    %6130 = vmatpush1.msra.mxu0 %v6121
    %6131 = vmatprep.subr.mxu0 0.0
    %6132 = vmatpush1.msra.mxu0 0.0
    %6133 = vmatprep.subr.mxu0 0.0
    %6134 = vmatpush1.msra.mxu0 0.0
    %6135 = vmatprep.subr.mxu0 0.0
    %6136 = vmatpush1.msra.mxu0 0.0
    %6137 = vmatprep.subr.mxu0 0.0
    %6138 = vmatpush1.msra.mxu0 0.0
    %6139 = vmatprep.subr.mxu0 0.0
    %6140 = vmatpush1.msra.mxu0 0.0
    %6141 = vmatprep.subr.mxu0 0.0
    %6142 = vmatpush1.msra.mxu0 0.0
    %6143 = vmatprep.subr.mxu0 0.0
    %6144 = vmatpush1.msra.mxu0 0.0
    %6145 = vmatprep.subr.mxu0 0.0
    %6146 = vmatpush1.msra.mxu0 0.0
    %6147 = vmatprep.subr.mxu0 0.0
    %6148 = vmatpush1.msra.mxu0 0.0
    %6149 = vmatprep.subr.mxu0 0.0
    %6150 = vmatpush1.msra.mxu0 0.0
    %6151 = vmatprep.subr.mxu0 0.0
    %6152 = vmatpush1.msra.mxu0 0.0
    %6153 = vmatprep.subr.mxu0 0.0
    %6154 = vmatpush1.msra.mxu0 0.0
    %6155 = vmatprep.subr.mxu0 0.0
    %6156 = vmatpush1.msra.mxu0 0.0
    %6157 = vmatprep.subr.mxu0 0.0
    %6158 = vmatpush1.msra.mxu0 0.0
    %6159 = vmatprep.subr.mxu0 0.0
    %6160 = vmatpush1.msra.mxu0 0.0
    %6161 = vmatprep.subr.mxu0 0.0
    %6162 = vmatpush1.msra.mxu0 0.0
    %6163 = vmatprep.subr.mxu0 0.0
    %6164 = vmatpush1.msra.mxu0 0.0
    %6165 = vmatprep.subr.mxu0 0.0
    %6166 = vmatpush1.msra.mxu0 0.0
    %6167 = vmatprep.subr.mxu0 0.0
    %6168 = vmatpush1.msra.mxu0 0.0
    %6169 = vmatprep.subr.mxu0 0.0
    %6170 = vmatpush1.msra.mxu0 0.0
    %6171 = vmatprep.subr.mxu0 0.0
    %6172 = vmatpush1.msra.mxu0 0.0
    %6173 = vmatprep.subr.mxu0 0.0
    %6174 = vmatpush1.msra.mxu0 0.0
    %6175 = vmatprep.subr.mxu0 0.0
    %6176 = vmatpush1.msra.mxu0 0.0
    %6177 = vmatprep.subr.mxu0 0.0
    %6178 = vmatpush1.msra.mxu0 0.0
    %6179 = vmatprep.subr.mxu0 0.0
    %6180 = vmatpush1.msra.mxu0 0.0
    %6181 = vmatprep.subr.mxu0 0.0
    %6182 = vmatpush1.msra.mxu0 0.0
    %6183 = vmatprep.subr.mxu0 0.0
    %6184 = vmatpush1.msra.mxu0 0.0
    %6185 = vmatprep.subr.mxu0 0.0
    %6186 = vmatpush1.msra.mxu0 0.0
    %6187 = vmatprep.mubr.f32.mxu0 0.0
    %6188 = vmatmul.mubr.f32.gmra.mrb[0].mxu0 %v4022
    %v6189 = vpop.f32.mrb[0].mxu0
    %v6190 = vadd.f32 0.0, %v6189
    %v6191 = vpop.f32.mrb[0].mxu0
    %6192 = vmatprep.mubr.f32.mxu0 0.0
    %6193 = vmatmul.mubr.f32.gmra.mrb[0].mxu0 %v4025
    %v6194 = vpop.f32.mrb[0].mxu0
    %v6195 = vadd.f32 0.0, %v6194
    %v6196 = vpop.f32.mrb[0].mxu0
    %6197 = vmatprep.mubr.f32.mxu0 0.0
    %6198 = vmatmul.mubr.f32.gmra.mrb[0].mxu0 %v4028
    %v6199 = vpop.f32.mrb[0].mxu0
    %v6200 = vadd.f32 0.0, %v6199
    %v6201 = vpop.f32.mrb[0].mxu0
    %6202 = vmatprep.mubr.f32.mxu0 0.0
    %6203 = vmatmul.mubr.f32.gmra.mrb[0].mxu0 %v4031
    %v6204 = vpop.f32.mrb[0].mxu0
    %v6205 = vadd.f32 0.0, %v6204
    %v6206 = vpop.f32.mrb[0].mxu0
    %6207 = vdwg.mxu0
    %6212 = vrot.lane.b32.xlu0 %v5609, 32
    %v6213 = vpop.permute.xlu0 %6212
    %6214 = vrot.lane.b32.xlu0 %v5614, 32
    %v6215 = vpop.permute.xlu0 %6214
    %6216 = vrot.lane.b32.xlu0 %v5619, 32
    %v6217 = vpop.permute.xlu0 %6216
    %6218 = vrot.lane.b32.xlu0 %v5624, 32
    %v6219 = vpop.permute.xlu0 %6218
    %6228 = vrot.lane.b32.xlu0 %v5707, 64
    %v6229 = vpop.permute.xlu0 %6228
    %6230 = vrot.lane.b32.xlu0 %v5712, 64
    %v6231 = vpop.permute.xlu0 %6230
    %6232 = vrot.lane.b32.xlu0 %v5717, 64
    %v6233 = vpop.permute.xlu0 %6232
    %6234 = vrot.lane.b32.xlu0 %v5722, 64
    %v6235 = vpop.permute.xlu0 %6234
    %6244 = vrot.lane.b32.xlu0 %v5805, 96
    %v6245 = vpop.permute.xlu0 %6244
    %6246 = vrot.lane.b32.xlu0 %v5810, 96
    %v6247 = vpop.permute.xlu0 %6246
    %6248 = vrot.lane.b32.xlu0 %v5815, 96
    %v6249 = vpop.permute.xlu0 %6248
    %6250 = vrot.lane.b32.xlu0 %v5820, 96
    %v6251 = vpop.permute.xlu0 %6250
    %6260 = vrot.lane.b32.xlu0 %v5994, 32
    %v6261 = vpop.permute.xlu0 %6260
    %6262 = vrot.lane.b32.xlu0 %v5999, 32
    %v6263 = vpop.permute.xlu0 %6262
    %6264 = vrot.lane.b32.xlu0 %v6004, 32
    %v6265 = vpop.permute.xlu0 %6264
    %6266 = vrot.lane.b32.xlu0 %v6009, 32
    %v6267 = vpop.permute.xlu0 %6266
    %6276 = vrot.lane.b32.xlu0 %v6092, 64
    %v6277 = vpop.permute.xlu0 %6276
    %6278 = vrot.lane.b32.xlu0 %v6097, 64
    %v6279 = vpop.permute.xlu0 %6278
    %6280 = vrot.lane.b32.xlu0 %v6102, 64
    %v6281 = vpop.permute.xlu0 %6280
    %6282 = vrot.lane.b32.xlu0 %v6107, 64
    %v6283 = vpop.permute.xlu0 %6282
    %6292 = vrot.lane.b32.xlu0 %v6190, 96
    %v6293 = vpop.permute.xlu0 %6292
    %6294 = vrot.lane.b32.xlu0 %v6195, 96
    %v6295 = vpop.permute.xlu0 %6294
    %6296 = vrot.lane.b32.xlu0 %v6200, 96
    %v6297 = vpop.permute.xlu0 %6296
    %6298 = vrot.lane.b32.xlu0 %v6205, 96
    %v6299 = vpop.permute.xlu0 %6298
    %v6304 = vsel %vm318, %v5508, %v6213
    %v6305 = vsel %vm318, %v5513, %v6215
    %v6306 = vsel %vm318, %v5518, %v6217
    %v6307 = vsel %vm318, %v5523, %v6219
    %v6308 = vsel %vm4220, %v6304, %v6229
    %v6309 = vsel %vm4220, %v6305, %v6231
    %v6310 = vsel %vm4220, %v6306, %v6233
    %v6311 = vsel %vm4220, %v6307, %v6235
    %v6312 = vsel %vm4225, %v6308, %v6245
    %v6313 = vsel %vm4225, %v6309, %v6247
    %v6314 = vsel %vm4225, %v6310, %v6249
    %v6315 = vsel %vm4225, %v6311, %v6251
    %v6316 = vsel %vm318, %v5893, %v6261
    %v6317 = vsel %vm318, %v5898, %v6263
    %v6318 = vsel %vm318, %v5903, %v6265
    %v6319 = vsel %vm318, %v5908, %v6267
    %v6320 = vsel %vm4220, %v6316, %v6277
    %v6321 = vsel %vm4220, %v6317, %v6279
    %v6322 = vsel %vm4220, %v6318, %v6281
    %v6323 = vsel %vm4220, %v6319, %v6283
    %v6324 = vsel %vm4225, %v6320, %v6293
    %v6325 = vsel %vm4225, %v6321, %v6295
    %v6326 = vsel %vm4225, %v6322, %v6297
    %v6327 = vsel %vm4225, %v6323, %v6299
    %6328 = vmatprep.subr.mxu0 %v3005
    %6329 = vmatpush1.msra.mxu0 %v3004
    %6330 = vmatprep.subr.mxu0 %v3007
    %6331 = vmatpush1.msra.mxu0 %v3006
    %6332 = vmatprep.subr.mxu0 %v3009
    %6333 = vmatpush1.msra.mxu0 %v3008
    %6334 = vmatprep.subr.mxu0 %v3011
    %6335 = vmatpush1.msra.mxu0 %v3010
    %6336 = vmatprep.subr.mxu0 %v3013
    %6337 = vmatpush1.msra.mxu0 %v3012
    %6338 = vmatprep.subr.mxu0 %v3015
    %6339 = vmatpush1.msra.mxu0 %v3014
    %6340 = vmatprep.subr.mxu0 %v3017
    %6341 = vmatpush1.msra.mxu0 %v3016
    %6342 = vmatprep.subr.mxu0 %v3019
    %6343 = vmatpush1.msra.mxu0 %v3018
    %6344 = vmatprep.subr.mxu0 %v3021
    %6345 = vmatpush1.msra.mxu0 %v3020
    %6346 = vmatprep.subr.mxu0 %v3023
    %6347 = vmatpush1.msra.mxu0 %v3022
    %6348 = vmatprep.subr.mxu0 %v3025
    %6349 = vmatpush1.msra.mxu0 %v3024
    %6350 = vmatprep.subr.mxu0 %v3027
    %6351 = vmatpush1.msra.mxu0 %v3026
    %6352 = vmatprep.subr.mxu0 %v3029
    %6353 = vmatpush1.msra.mxu0 %v3028
    %6354 = vmatprep.subr.mxu0 %v3031
    %6355 = vmatpush1.msra.mxu0 %v3030
    %6356 = vmatprep.subr.mxu0 %v3033
    %6357 = vmatpush1.msra.mxu0 %v3032
    %6358 = vmatprep.subr.mxu0 %v3035
    %6359 = vmatpush1.msra.mxu0 %v3034
    %6360 = vmatprep.subr.mxu0 %v3037
    %6361 = vmatpush1.msra.mxu0 %v3036
    %6362 = vmatprep.subr.mxu0 %v3039
    %6363 = vmatpush1.msra.mxu0 %v3038
    %6364 = vmatprep.subr.mxu0 %v3041
    %6365 = vmatpush1.msra.mxu0 %v3040
    %6366 = vmatprep.subr.mxu0 %v3043
    %6367 = vmatpush1.msra.mxu0 %v3042
    %6368 = vmatprep.subr.mxu0 %v3045
    %6369 = vmatpush1.msra.mxu0 %v3044
    %6370 = vmatprep.subr.mxu0 %v3047
    %6371 = vmatpush1.msra.mxu0 %v3046
    %6372 = vmatprep.subr.mxu0 %v3049
    %6373 = vmatpush1.msra.mxu0 %v3048
    %6374 = vmatprep.subr.mxu0 %v3051
    %6375 = vmatpush1.msra.mxu0 %v3050
    %6376 = vmatprep.subr.mxu0 %v3053
    %6377 = vmatpush1.msra.mxu0 %v3052
    %6378 = vmatprep.subr.mxu0 %v3055
    %6379 = vmatpush1.msra.mxu0 %v3054
    %6380 = vmatprep.subr.mxu0 %v3057
    %6381 = vmatpush1.msra.mxu0 %v3056
    %6382 = vmatprep.subr.mxu0 %v3059
    %6383 = vmatpush1.msra.mxu0 %v3058
    %6384 = vmatprep.subr.mxu0 %v3061
    %6385 = vmatpush1.msra.mxu0 %v3060
    %6386 = vmatprep.subr.mxu0 %v3063
    %6387 = vmatpush1.msra.mxu0 %v3062
    %6388 = vmatprep.subr.mxu0 %v3065
    %6389 = vmatpush1.msra.mxu0 %v3064
    %6390 = vmatprep.subr.mxu0 %v3067
    %6391 = vmatpush1.msra.mxu0 %v3066
    %6392 = vmatprep.mubr.f32.mxu0 %v6324
    %6393 = vmatmul.mubr.f32.gmra.mrb[0].mxu0 %v6312
    %v6394 = vpop.f32.mrb[0].mxu0
    %v6395 = vadd.f32 0.0, %v6394
    %v6396 = vpop.f32.mrb[0].mxu0
    %v6397 = vadd.f32 0.0, %v6396
    %6398 = vmatprep.mubr.f32.mxu0 %v6325
    %6399 = vmatmul.mubr.f32.gmra.mrb[0].mxu0 %v6313
    %v6400 = vpop.f32.mrb[0].mxu0
    %v6401 = vadd.f32 0.0, %v6400
    %v6402 = vpop.f32.mrb[0].mxu0
    %v6403 = vadd.f32 0.0, %v6402
    %6404 = vmatprep.mubr.f32.mxu0 %v6326
    %6405 = vmatmul.mubr.f32.gmra.mrb[0].mxu0 %v6314
    %v6406 = vpop.f32.mrb[0].mxu0
    %v6407 = vadd.f32 0.0, %v6406
    %v6408 = vpop.f32.mrb[0].mxu0
    %v6409 = vadd.f32 0.0, %v6408
    %6410 = vmatprep.mubr.f32.mxu0 %v6327
    %6411 = vmatmul.mubr.f32.gmra.mrb[0].mxu0 %v6315
    %v6412 = vpop.f32.mrb[0].mxu0
    %v6413 = vadd.f32 0.0, %v6412
    %v6414 = vpop.f32.mrb[0].mxu0
    %v6415 = vadd.f32 0.0, %v6414
    %6416 = vdwg.mxu0
    %v6417 = vmul.f32 %v6395, %v3179
    %v6418 = vmul.f32 %v6397, %v3183
    %v6419 = vmul.f32 %v6401, %v3179
    %v6420 = vmul.f32 %v6403, %v3183
    %v6421 = vmul.f32 %v6407, %v3179
    %v6422 = vmul.f32 %v6409, %v3183
    %v6423 = vmul.f32 %v6413, %v3179
    %v6424 = vmul.f32 %v6415, %v3183
    %v6425 = vadd.f32 %v6417, %v3198
    %v6426 = vadd.f32 %v6418, %v3202
    %v6427 = vadd.f32 %v6419, %v3198
    %v6428 = vadd.f32 %v6420, %v3202
    %v6429 = vadd.f32 %v6421, %v3198
    %v6430 = vadd.f32 %v6422, %v3202
    %v6431 = vadd.f32 %v6423, %v3198
    %v6432 = vadd.f32 %v6424, %v3202
    %vm6433 = vcmp.gt.f32.partialorder %v6425, 0.0
    %vm6434 = vcmp.gt.f32.partialorder %v6426, 0.0
    %vm6435 = vcmp.gt.f32.partialorder %v6427, 0.0
    %vm6436 = vcmp.gt.f32.partialorder %v6428, 0.0
    %vm6437 = vcmp.gt.f32.partialorder %v6429, 0.0
    %vm6438 = vcmp.gt.f32.partialorder %v6430, 0.0
    %vm6439 = vcmp.gt.f32.partialorder %v6431, 0.0
    %vm6440 = vcmp.gt.f32.partialorder %v6432, 0.0
    %v6441 = vmin.f32 %v6425, 0.0
    %v6442 = vmin.f32 %v6426, 0.0
    %v6443 = vmin.f32 %v6427, 0.0
    %v6444 = vmin.f32 %v6428, 0.0
    %v6445 = vmin.f32 %v6429, 0.0
    %v6446 = vmin.f32 %v6430, 0.0
    %v6447 = vmin.f32 %v6431, 0.0
    %v6448 = vmin.f32 %v6432, 0.0
    %v6449 = vmul.f32 %v6441, 1.442695
    %v6450 = vpow.pop %v6449
    %v6451 = vmul.f32 %v6442, 1.442695
    %v6452 = vpow.pop %v6451
    %v6453 = vmul.f32 %v6443, 1.442695
    %v6454 = vpow.pop %v6453
    %v6455 = vmul.f32 %v6444, 1.442695
    %v6456 = vpow.pop %v6455
    %v6457 = vmul.f32 %v6445, 1.442695
    %v6458 = vpow.pop %v6457
    %v6459 = vmul.f32 %v6446, 1.442695
    %v6460 = vpow.pop %v6459
    %v6461 = vmul.f32 %v6447, 1.442695
    %v6462 = vpow.pop %v6461
    %v6463 = vmul.f32 %v6448, 1.442695
    %v6464 = vpow.pop %v6463
    %v6465 = vsub.f32 %v6450, 1.0
    %v6466 = vsub.f32 %v6452, 1.0
    %v6467 = vsub.f32 %v6454, 1.0
    %v6468 = vsub.f32 %v6456, 1.0
    %v6469 = vsub.f32 %v6458, 1.0
    %v6470 = vsub.f32 %v6460, 1.0
    %v6471 = vsub.f32 %v6462, 1.0
    %v6472 = vsub.f32 %v6464, 1.0
    %v6473 = vsel %vm6433, %v6425, %v6465
    %v6474 = vsel %vm6434, %v6426, %v6466
    %v6475 = vsel %vm6435, %v6427, %v6467
    %v6476 = vsel %vm6436, %v6428, %v6468
    %v6477 = vsel %vm6437, %v6429, %v6469
    %v6478 = vsel %vm6438, %v6430, %v6470
    %v6479 = vsel %vm6439, %v6431, %v6471
    %v6480 = vsel %vm6440, %v6432, %v6472
    %v6481 = vld [vmem:[#allocation19] sm:$0xf]
    %v6483 = vsel %vm3217, %v6481, 0
    %v6486 = vsel %vm3230, %v6479, 0
    %6488 = vmatprep.subr.mxu0 0.0
    %6489 = vmatpush1.msra.mxu0 %v6473
    %6490 = vmatprep.subr.mxu0 0.0
    %6491 = vmatpush1.msra.mxu0 %v6475
    %6492 = vmatprep.subr.mxu0 0.0
    %6493 = vmatpush1.msra.mxu0 %v6477
    %6494 = vmatprep.subr.mxu0 0.0
    %6495 = vmatpush1.msra.mxu0 %v6486
    %6496 = vmatprep.subr.mxu0 0.0
    %6497 = vmatpush1.msra.mxu0 0.0
    %6498 = vmatprep.subr.mxu0 0.0
    %6499 = vmatpush1.msra.mxu0 0.0
    %6500 = vmatprep.subr.mxu0 0.0
    %6501 = vmatpush1.msra.mxu0 0.0
    %6502 = vmatprep.subr.mxu0 0.0
    %6503 = vmatpush1.msra.mxu0 0.0
    %6504 = vmatprep.subr.mxu0 0.0
    %6505 = vmatpush1.msra.mxu0 0.0
    %6506 = vmatprep.subr.mxu0 0.0
    %6507 = vmatpush1.msra.mxu0 0.0
    %6508 = vmatprep.subr.mxu0 0.0
    %6509 = vmatpush1.msra.mxu0 0.0
    %6510 = vmatprep.subr.mxu0 0.0
    %6511 = vmatpush1.msra.mxu0 0.0
    %6512 = vmatprep.subr.mxu0 0.0
    %6513 = vmatpush1.msra.mxu0 0.0
    %6514 = vmatprep.subr.mxu0 0.0
    %6515 = vmatpush1.msra.mxu0 0.0
    %6516 = vmatprep.subr.mxu0 0.0
    %6517 = vmatpush1.msra.mxu0 0.0
    %6518 = vmatprep.subr.mxu0 0.0
    %6519 = vmatpush1.msra.mxu0 0.0
    %6520 = vmatprep.subr.mxu0 0.0
    %6521 = vmatpush1.msra.mxu0 0.0
    %6522 = vmatprep.subr.mxu0 0.0
    %6523 = vmatpush1.msra.mxu0 0.0
    %6524 = vmatprep.subr.mxu0 0.0
    %6525 = vmatpush1.msra.mxu0 0.0
    %6526 = vmatprep.subr.mxu0 0.0
    %6527 = vmatpush1.msra.mxu0 0.0
    %6528 = vmatprep.subr.mxu0 0.0
    %6529 = vmatpush1.msra.mxu0 0.0
    %6530 = vmatprep.subr.mxu0 0.0
    %6531 = vmatpush1.msra.mxu0 0.0
    %6532 = vmatprep.subr.mxu0 0.0
    %6533 = vmatpush1.msra.mxu0 0.0
    %6534 = vmatprep.subr.mxu0 0.0
    %6535 = vmatpush1.msra.mxu0 0.0
    %6536 = vmatprep.subr.mxu0 0.0
    %6537 = vmatpush1.msra.mxu0 0.0
    %6538 = vmatprep.subr.mxu0 0.0
    %6539 = vmatpush1.msra.mxu0 0.0
    %6540 = vmatprep.subr.mxu0 0.0
    %6541 = vmatpush1.msra.mxu0 0.0
    %6542 = vmatprep.subr.mxu0 0.0
    %6543 = vmatpush1.msra.mxu0 0.0
    %6544 = vmatprep.subr.mxu0 0.0
    %6545 = vmatpush1.msra.mxu0 0.0
    %6546 = vmatprep.subr.mxu0 0.0
    %6547 = vmatpush1.msra.mxu0 0.0
    %6548 = vmatprep.subr.mxu0 0.0
    %6549 = vmatpush1.msra.mxu0 0.0
    %6550 = vmatprep.subr.mxu0 0.0
    %6551 = vmatpush1.msra.mxu0 0.0
    %6552 = vmatprep.mubr.f32.mxu0 0.0
    %6553 = vmatmul.mubr.f32.gmra.mrb[0].mxu0 %v6483
    %v6554 = vpop.f32.mrb[0].mxu0
    %v6555 = vadd.f32 0.0, %v6554
    %v6556 = vpop.f32.mrb[0].mxu0
    %6557 = vdwg.mxu0
    %s6558 = scalar_lea.vmem [#allocation19], 4
    %v6559 = vld [vmem:[%s6558] sm:$0xf]
    %6563 = vrot.lane.b32.xlu0 %v6473, 96
    %v6564 = vpop.permute.xlu0 %6563
    %6565 = vrot.lane.b32.xlu0 %v6475, 96
    %v6566 = vpop.permute.xlu0 %6565
    %6567 = vrot.lane.b32.xlu0 %v6477, 96
    %v6568 = vpop.permute.xlu0 %6567
    %6569 = vrot.lane.b32.xlu0 %v6479, 96
    %v6570 = vpop.permute.xlu0 %6569
    %v6575 = vsel %vm3217, %v6559, 0
    %v6577 = vsel %vm3230, %v6570, 0
    %6579 = vmatprep.subr.mxu0 0.0
    %6580 = vmatpush1.msra.mxu0 %v6564
    %6581 = vmatprep.subr.mxu0 0.0
    %6582 = vmatpush1.msra.mxu0 %v6566
    %6583 = vmatprep.subr.mxu0 0.0
    %6584 = vmatpush1.msra.mxu0 %v6568
    %6585 = vmatprep.subr.mxu0 0.0
    %6586 = vmatpush1.msra.mxu0 %v6577
    %6587 = vmatprep.subr.mxu0 0.0
    %6588 = vmatpush1.msra.mxu0 0.0
    %6589 = vmatprep.subr.mxu0 0.0
    %6590 = vmatpush1.msra.mxu0 0.0
    %6591 = vmatprep.subr.mxu0 0.0
    %6592 = vmatpush1.msra.mxu0 0.0
    %6593 = vmatprep.subr.mxu0 0.0
    %6594 = vmatpush1.msra.mxu0 0.0
    %6595 = vmatprep.subr.mxu0 0.0
    %6596 = vmatpush1.msra.mxu0 0.0
    %6597 = vmatprep.subr.mxu0 0.0
    %6598 = vmatpush1.msra.mxu0 0.0
    %6599 = vmatprep.subr.mxu0 0.0
    %6600 = vmatpush1.msra.mxu0 0.0
    %6601 = vmatprep.subr.mxu0 0.0
    %6602 = vmatpush1.msra.mxu0 0.0
    %6603 = vmatprep.subr.mxu0 0.0
    %6604 = vmatpush1.msra.mxu0 0.0
    %6605 = vmatprep.subr.mxu0 0.0
    %6606 = vmatpush1.msra.mxu0 0.0
    %6607 = vmatprep.subr.mxu0 0.0
    %6608 = vmatpush1.msra.mxu0 0.0
    %6609 = vmatprep.subr.mxu0 0.0
    %6610 = vmatpush1.msra.mxu0 0.0
    %6611 = vmatprep.subr.mxu0 0.0
    %6612 = vmatpush1.msra.mxu0 0.0
    %6613 = vmatprep.subr.mxu0 0.0
    %6614 = vmatpush1.msra.mxu0 0.0
    %6615 = vmatprep.subr.mxu0 0.0
    %6616 = vmatpush1.msra.mxu0 0.0
    %6617 = vmatprep.subr.mxu0 0.0
    %6618 = vmatpush1.msra.mxu0 0.0
    %6619 = vmatprep.subr.mxu0 0.0
    %6620 = vmatpush1.msra.mxu0 0.0
    %6621 = vmatprep.subr.mxu0 0.0
    %6622 = vmatpush1.msra.mxu0 0.0
    %6623 = vmatprep.subr.mxu0 0.0
    %6624 = vmatpush1.msra.mxu0 0.0
    %6625 = vmatprep.subr.mxu0 0.0
    %6626 = vmatpush1.msra.mxu0 0.0
    %6627 = vmatprep.subr.mxu0 0.0
    %6628 = vmatpush1.msra.mxu0 0.0
    %6629 = vmatprep.subr.mxu0 0.0
    %6630 = vmatpush1.msra.mxu0 0.0
    %6631 = vmatprep.subr.mxu0 0.0
    %6632 = vmatpush1.msra.mxu0 0.0
    %6633 = vmatprep.subr.mxu0 0.0
    %6634 = vmatpush1.msra.mxu0 0.0
    %6635 = vmatprep.subr.mxu0 0.0
    %6636 = vmatpush1.msra.mxu0 0.0
    %6637 = vmatprep.subr.mxu0 0.0
    %6638 = vmatpush1.msra.mxu0 0.0
    %6639 = vmatprep.subr.mxu0 0.0
    %6640 = vmatpush1.msra.mxu0 0.0
    %6641 = vmatprep.subr.mxu0 0.0
    %6642 = vmatpush1.msra.mxu0 0.0
    %6643 = vmatprep.mubr.f32.mxu0 0.0
    %6644 = vmatmul.mubr.f32.gmra.mrb[0].mxu0 %v6575
    %v6645 = vpop.f32.mrb[0].mxu0
    %v6646 = vadd.f32 0.0, %v6645
    %v6647 = vpop.f32.mrb[0].mxu0
    %6648 = vdwg.mxu0
    %s6649 = scalar_lea.vmem [#allocation19], 8
    %v6650 = vld [vmem:[%s6649] sm:$0xf]
    %6651 = vrot.lane.b32.xlu0 %v6473, 64
    %v6652 = vpop.permute.xlu0 %6651
    %6653 = vrot.lane.b32.xlu0 %v6475, 64
    %v6654 = vpop.permute.xlu0 %6653
    %6655 = vrot.lane.b32.xlu0 %v6477, 64
    %v6656 = vpop.permute.xlu0 %6655
    %6657 = vrot.lane.b32.xlu0 %v6479, 64
    %v6658 = vpop.permute.xlu0 %6657
    %v6663 = vsel %vm3217, %v6650, 0
    %v6665 = vsel %vm3230, %v6658, 0
    %6667 = vmatprep.subr.mxu0 0.0
    %6668 = vmatpush1.msra.mxu0 %v6652
    %6669 = vmatprep.subr.mxu0 0.0
    %6670 = vmatpush1.msra.mxu0 %v6654
    %6671 = vmatprep.subr.mxu0 0.0
    %6672 = vmatpush1.msra.mxu0 %v6656
    %6673 = vmatprep.subr.mxu0 0.0
    %6674 = vmatpush1.msra.mxu0 %v6665
    %6675 = vmatprep.subr.mxu0 0.0
    %6676 = vmatpush1.msra.mxu0 0.0
    %6677 = vmatprep.subr.mxu0 0.0
    %6678 = vmatpush1.msra.mxu0 0.0
    %6679 = vmatprep.subr.mxu0 0.0
    %6680 = vmatpush1.msra.mxu0 0.0
    %6681 = vmatprep.subr.mxu0 0.0
    %6682 = vmatpush1.msra.mxu0 0.0
    %6683 = vmatprep.subr.mxu0 0.0
    %6684 = vmatpush1.msra.mxu0 0.0
    %6685 = vmatprep.subr.mxu0 0.0
    %6686 = vmatpush1.msra.mxu0 0.0
    %6687 = vmatprep.subr.mxu0 0.0
    %6688 = vmatpush1.msra.mxu0 0.0
    %6689 = vmatprep.subr.mxu0 0.0
    %6690 = vmatpush1.msra.mxu0 0.0
    %6691 = vmatprep.subr.mxu0 0.0
    %6692 = vmatpush1.msra.mxu0 0.0
    %6693 = vmatprep.subr.mxu0 0.0
    %6694 = vmatpush1.msra.mxu0 0.0
    %6695 = vmatprep.subr.mxu0 0.0
    %6696 = vmatpush1.msra.mxu0 0.0
    %6697 = vmatprep.subr.mxu0 0.0
    %6698 = vmatpush1.msra.mxu0 0.0
    %6699 = vmatprep.subr.mxu0 0.0
    %6700 = vmatpush1.msra.mxu0 0.0
    %6701 = vmatprep.subr.mxu0 0.0
    %6702 = vmatpush1.msra.mxu0 0.0
    %6703 = vmatprep.subr.mxu0 0.0
    %6704 = vmatpush1.msra.mxu0 0.0
    %6705 = vmatprep.subr.mxu0 0.0
    %6706 = vmatpush1.msra.mxu0 0.0
    %6707 = vmatprep.subr.mxu0 0.0
    %6708 = vmatpush1.msra.mxu0 0.0
    %6709 = vmatprep.subr.mxu0 0.0
    %6710 = vmatpush1.msra.mxu0 0.0
    %6711 = vmatprep.subr.mxu0 0.0
    %6712 = vmatpush1.msra.mxu0 0.0
    %6713 = vmatprep.subr.mxu0 0.0
    %6714 = vmatpush1.msra.mxu0 0.0
    %6715 = vmatprep.subr.mxu0 0.0
    %6716 = vmatpush1.msra.mxu0 0.0
    %6717 = vmatprep.subr.mxu0 0.0
    %6718 = vmatpush1.msra.mxu0 0.0
    %6719 = vmatprep.subr.mxu0 0.0
    %6720 = vmatpush1.msra.mxu0 0.0
    %6721 = vmatprep.subr.mxu0 0.0
    %6722 = vmatpush1.msra.mxu0 0.0
    %6723 = vmatprep.subr.mxu0 0.0
    %6724 = vmatpush1.msra.mxu0 0.0
    %6725 = vmatprep.subr.mxu0 0.0
    %6726 = vmatpush1.msra.mxu0 0.0
    %6727 = vmatprep.subr.mxu0 0.0
    %6728 = vmatpush1.msra.mxu0 0.0
    %6729 = vmatprep.subr.mxu0 0.0
    %6730 = vmatpush1.msra.mxu0 0.0
    %6731 = vmatprep.mubr.f32.mxu0 0.0
    %6732 = vmatmul.mubr.f32.gmra.mrb[0].mxu0 %v6663
    %v6733 = vpop.f32.mrb[0].mxu0
    %v6734 = vadd.f32 0.0, %v6733
    %v6735 = vpop.f32.mrb[0].mxu0
    %6736 = vdwg.mxu0
    %s6737 = scalar_lea.vmem [#allocation19], 12
    %v6738 = vld [vmem:[%s6737] sm:$0xf]
    %6739 = vrot.lane.b32.xlu0 %v6473, 32
    %v6740 = vpop.permute.xlu0 %6739
    %6741 = vrot.lane.b32.xlu0 %v6475, 32
    %v6742 = vpop.permute.xlu0 %6741
    %6743 = vrot.lane.b32.xlu0 %v6477, 32
    %v6744 = vpop.permute.xlu0 %6743
    %6745 = vrot.lane.b32.xlu0 %v6479, 32
    %v6746 = vpop.permute.xlu0 %6745
    %v6751 = vsel %vm3217, %v6738, 0
    %v6753 = vsel %vm3230, %v6746, 0
    %6755 = vmatprep.subr.mxu0 0.0
    %6756 = vmatpush1.msra.mxu0 %v6740
    %6757 = vmatprep.subr.mxu0 0.0
    %6758 = vmatpush1.msra.mxu0 %v6742
    %6759 = vmatprep.subr.mxu0 0.0
    %6760 = vmatpush1.msra.mxu0 %v6744
    %6761 = vmatprep.subr.mxu0 0.0
    %6762 = vmatpush1.msra.mxu0 %v6753
    %6763 = vmatprep.subr.mxu0 0.0
    %6764 = vmatpush1.msra.mxu0 0.0
    %6765 = vmatprep.subr.mxu0 0.0
    %6766 = vmatpush1.msra.mxu0 0.0
    %6767 = vmatprep.subr.mxu0 0.0
    %6768 = vmatpush1.msra.mxu0 0.0
    %6769 = vmatprep.subr.mxu0 0.0
    %6770 = vmatpush1.msra.mxu0 0.0
    %6771 = vmatprep.subr.mxu0 0.0
    %6772 = vmatpush1.msra.mxu0 0.0
    %6773 = vmatprep.subr.mxu0 0.0
    %6774 = vmatpush1.msra.mxu0 0.0
    %6775 = vmatprep.subr.mxu0 0.0
    %6776 = vmatpush1.msra.mxu0 0.0
    %6777 = vmatprep.subr.mxu0 0.0
    %6778 = vmatpush1.msra.mxu0 0.0
    %6779 = vmatprep.subr.mxu0 0.0
    %6780 = vmatpush1.msra.mxu0 0.0
    %6781 = vmatprep.subr.mxu0 0.0
    %6782 = vmatpush1.msra.mxu0 0.0
    %6783 = vmatprep.subr.mxu0 0.0
    %6784 = vmatpush1.msra.mxu0 0.0
    %6785 = vmatprep.subr.mxu0 0.0
    %6786 = vmatpush1.msra.mxu0 0.0
    %6787 = vmatprep.subr.mxu0 0.0
    %6788 = vmatpush1.msra.mxu0 0.0
    %6789 = vmatprep.subr.mxu0 0.0
    %6790 = vmatpush1.msra.mxu0 0.0
    %6791 = vmatprep.subr.mxu0 0.0
    %6792 = vmatpush1.msra.mxu0 0.0
    %6793 = vmatprep.subr.mxu0 0.0
    %6794 = vmatpush1.msra.mxu0 0.0
    %6795 = vmatprep.subr.mxu0 0.0
    %6796 = vmatpush1.msra.mxu0 0.0
    %6797 = vmatprep.subr.mxu0 0.0
    %6798 = vmatpush1.msra.mxu0 0.0
    %6799 = vmatprep.subr.mxu0 0.0
    %6800 = vmatpush1.msra.mxu0 0.0
    %6801 = vmatprep.subr.mxu0 0.0
    %6802 = vmatpush1.msra.mxu0 0.0
    %6803 = vmatprep.subr.mxu0 0.0
    %6804 = vmatpush1.msra.mxu0 0.0
    %6805 = vmatprep.subr.mxu0 0.0
    %6806 = vmatpush1.msra.mxu0 0.0
    %6807 = vmatprep.subr.mxu0 0.0
    %6808 = vmatpush1.msra.mxu0 0.0
    %6809 = vmatprep.subr.mxu0 0.0
    %6810 = vmatpush1.msra.mxu0 0.0
    %6811 = vmatprep.subr.mxu0 0.0
    %6812 = vmatpush1.msra.mxu0 0.0
    %6813 = vmatprep.subr.mxu0 0.0
    %6814 = vmatpush1.msra.mxu0 0.0
    %6815 = vmatprep.subr.mxu0 0.0
    %6816 = vmatpush1.msra.mxu0 0.0
    %6817 = vmatprep.subr.mxu0 0.0
    %6818 = vmatpush1.msra.mxu0 0.0
    %6819 = vmatprep.mubr.f32.mxu0 0.0
    %6820 = vmatmul.mubr.f32.gmra.mrb[0].mxu0 %v6751
    %v6821 = vpop.f32.mrb[0].mxu0
    %v6822 = vadd.f32 0.0, %v6821
    %v6823 = vpop.f32.mrb[0].mxu0
    %6824 = vdwg.mxu0
    %s6825 = scalar_lea.vmem [#allocation19], 16
    %v6826 = vld [vmem:[%s6825] sm:$0xf]
    %v6828 = vsel %vm3217, %v6826, 0
    %v6831 = vsel %vm3230, %v6480, 0
    %6833 = vmatprep.subr.mxu0 0.0
    %6834 = vmatpush1.msra.mxu0 %v6474
    %6835 = vmatprep.subr.mxu0 0.0
    %6836 = vmatpush1.msra.mxu0 %v6476
    %6837 = vmatprep.subr.mxu0 0.0
    %6838 = vmatpush1.msra.mxu0 %v6478
    %6839 = vmatprep.subr.mxu0 0.0
    %6840 = vmatpush1.msra.mxu0 %v6831
    %6841 = vmatprep.subr.mxu0 0.0
    %6842 = vmatpush1.msra.mxu0 0.0
    %6843 = vmatprep.subr.mxu0 0.0
    %6844 = vmatpush1.msra.mxu0 0.0
    %6845 = vmatprep.subr.mxu0 0.0
    %6846 = vmatpush1.msra.mxu0 0.0
    %6847 = vmatprep.subr.mxu0 0.0
    %6848 = vmatpush1.msra.mxu0 0.0
    %6849 = vmatprep.subr.mxu0 0.0
    %6850 = vmatpush1.msra.mxu0 0.0
    %6851 = vmatprep.subr.mxu0 0.0
    %6852 = vmatpush1.msra.mxu0 0.0
    %6853 = vmatprep.subr.mxu0 0.0
    %6854 = vmatpush1.msra.mxu0 0.0
    %6855 = vmatprep.subr.mxu0 0.0
    %6856 = vmatpush1.msra.mxu0 0.0
    %6857 = vmatprep.subr.mxu0 0.0
    %6858 = vmatpush1.msra.mxu0 0.0
    %6859 = vmatprep.subr.mxu0 0.0
    %6860 = vmatpush1.msra.mxu0 0.0
    %6861 = vmatprep.subr.mxu0 0.0
    %6862 = vmatpush1.msra.mxu0 0.0
    %6863 = vmatprep.subr.mxu0 0.0
    %6864 = vmatpush1.msra.mxu0 0.0
    %6865 = vmatprep.subr.mxu0 0.0
    %6866 = vmatpush1.msra.mxu0 0.0
    %6867 = vmatprep.subr.mxu0 0.0
    %6868 = vmatpush1.msra.mxu0 0.0
    %6869 = vmatprep.subr.mxu0 0.0
    %6870 = vmatpush1.msra.mxu0 0.0
    %6871 = vmatprep.subr.mxu0 0.0
    %6872 = vmatpush1.msra.mxu0 0.0
    %6873 = vmatprep.subr.mxu0 0.0
    %6874 = vmatpush1.msra.mxu0 0.0
    %6875 = vmatprep.subr.mxu0 0.0
    %6876 = vmatpush1.msra.mxu0 0.0
    %6877 = vmatprep.subr.mxu0 0.0
    %6878 = vmatpush1.msra.mxu0 0.0
    %6879 = vmatprep.subr.mxu0 0.0
    %6880 = vmatpush1.msra.mxu0 0.0
    %6881 = vmatprep.subr.mxu0 0.0
    %6882 = vmatpush1.msra.mxu0 0.0
    %6883 = vmatprep.subr.mxu0 0.0
    %6884 = vmatpush1.msra.mxu0 0.0
    %6885 = vmatprep.subr.mxu0 0.0
    %6886 = vmatpush1.msra.mxu0 0.0
    %6887 = vmatprep.subr.mxu0 0.0
    %6888 = vmatpush1.msra.mxu0 0.0
    %6889 = vmatprep.subr.mxu0 0.0
    %6890 = vmatpush1.msra.mxu0 0.0
    %6891 = vmatprep.subr.mxu0 0.0
    %6892 = vmatpush1.msra.mxu0 0.0
    %6893 = vmatprep.subr.mxu0 0.0
    %6894 = vmatpush1.msra.mxu0 0.0
    %6895 = vmatprep.subr.mxu0 0.0
    %6896 = vmatpush1.msra.mxu0 0.0
    %6897 = vmatprep.mubr.f32.mxu0 0.0
    %6898 = vmatmul.mubr.f32.gmra.mrb[0].mxu0 %v6828
    %v6899 = vpop.f32.mrb[0].mxu0
    %v6900 = vadd.f32 0.0, %v6899
    %v6901 = vpop.f32.mrb[0].mxu0
    %6902 = vdwg.mxu0
    %s6903 = scalar_lea.vmem [#allocation19], 20
    %v6904 = vld [vmem:[%s6903] sm:$0xf]
    %6908 = vrot.lane.b32.xlu0 %v6474, 96
    %v6909 = vpop.permute.xlu0 %6908
    %6910 = vrot.lane.b32.xlu0 %v6476, 96
    %v6911 = vpop.permute.xlu0 %6910
    %6912 = vrot.lane.b32.xlu0 %v6478, 96
    %v6913 = vpop.permute.xlu0 %6912
    %6914 = vrot.lane.b32.xlu0 %v6480, 96
    %v6915 = vpop.permute.xlu0 %6914
    %v6920 = vsel %vm3217, %v6904, 0
    %v6922 = vsel %vm3230, %v6915, 0
    %6924 = vmatprep.subr.mxu0 0.0
    %6925 = vmatpush1.msra.mxu0 %v6909
    %6926 = vmatprep.subr.mxu0 0.0
    %6927 = vmatpush1.msra.mxu0 %v6911
    %6928 = vmatprep.subr.mxu0 0.0
    %6929 = vmatpush1.msra.mxu0 %v6913
    %6930 = vmatprep.subr.mxu0 0.0
    %6931 = vmatpush1.msra.mxu0 %v6922
    %6932 = vmatprep.subr.mxu0 0.0
    %6933 = vmatpush1.msra.mxu0 0.0
    %6934 = vmatprep.subr.mxu0 0.0
    %6935 = vmatpush1.msra.mxu0 0.0
    %6936 = vmatprep.subr.mxu0 0.0
    %6937 = vmatpush1.msra.mxu0 0.0
    %6938 = vmatprep.subr.mxu0 0.0
    %6939 = vmatpush1.msra.mxu0 0.0
    %6940 = vmatprep.subr.mxu0 0.0
    %6941 = vmatpush1.msra.mxu0 0.0
    %6942 = vmatprep.subr.mxu0 0.0
    %6943 = vmatpush1.msra.mxu0 0.0
    %6944 = vmatprep.subr.mxu0 0.0
    %6945 = vmatpush1.msra.mxu0 0.0
    %6946 = vmatprep.subr.mxu0 0.0
    %6947 = vmatpush1.msra.mxu0 0.0
    %6948 = vmatprep.subr.mxu0 0.0
    %6949 = vmatpush1.msra.mxu0 0.0
    %6950 = vmatprep.subr.mxu0 0.0
    %6951 = vmatpush1.msra.mxu0 0.0
    %6952 = vmatprep.subr.mxu0 0.0
    %6953 = vmatpush1.msra.mxu0 0.0
    %6954 = vmatprep.subr.mxu0 0.0
    %6955 = vmatpush1.msra.mxu0 0.0
    %6956 = vmatprep.subr.mxu0 0.0
    %6957 = vmatpush1.msra.mxu0 0.0
    %6958 = vmatprep.subr.mxu0 0.0
    %6959 = vmatpush1.msra.mxu0 0.0
    %6960 = vmatprep.subr.mxu0 0.0
    %6961 = vmatpush1.msra.mxu0 0.0
    %6962 = vmatprep.subr.mxu0 0.0
    %6963 = vmatpush1.msra.mxu0 0.0
    %6964 = vmatprep.subr.mxu0 0.0
    %6965 = vmatpush1.msra.mxu0 0.0
    %6966 = vmatprep.subr.mxu0 0.0
    %6967 = vmatpush1.msra.mxu0 0.0
    %6968 = vmatprep.subr.mxu0 0.0
    %6969 = vmatpush1.msra.mxu0 0.0
    %6970 = vmatprep.subr.mxu0 0.0
    %6971 = vmatpush1.msra.mxu0 0.0
    %6972 = vmatprep.subr.mxu0 0.0
    %6973 = vmatpush1.msra.mxu0 0.0
    %6974 = vmatprep.subr.mxu0 0.0
    %6975 = vmatpush1.msra.mxu0 0.0
    %6976 = vmatprep.subr.mxu0 0.0
    %6977 = vmatpush1.msra.mxu0 0.0
    %6978 = vmatprep.subr.mxu0 0.0
    %6979 = vmatpush1.msra.mxu0 0.0
    %6980 = vmatprep.subr.mxu0 0.0
    %6981 = vmatpush1.msra.mxu0 0.0
    %6982 = vmatprep.subr.mxu0 0.0
    %6983 = vmatpush1.msra.mxu0 0.0
    %6984 = vmatprep.subr.mxu0 0.0
    %6985 = vmatpush1.msra.mxu0 0.0
    %6986 = vmatprep.subr.mxu0 0.0
    %6987 = vmatpush1.msra.mxu0 0.0
    %6988 = vmatprep.mubr.f32.mxu0 0.0
    %6989 = vmatmul.mubr.f32.gmra.mrb[0].mxu0 %v6920
    %v6990 = vpop.f32.mrb[0].mxu0
    %v6991 = vadd.f32 0.0, %v6990
    %v6992 = vpop.f32.mrb[0].mxu0
    %6993 = vdwg.mxu0
    %s6994 = scalar_lea.vmem [#allocation19], 24
    %v6995 = vld [vmem:[%s6994] sm:$0xf]
    %6996 = vrot.lane.b32.xlu0 %v6474, 64
    %v6997 = vpop.permute.xlu0 %6996
    %6998 = vrot.lane.b32.xlu0 %v6476, 64
    %v6999 = vpop.permute.xlu0 %6998
    %7000 = vrot.lane.b32.xlu0 %v6478, 64
    %v7001 = vpop.permute.xlu0 %7000
    %7002 = vrot.lane.b32.xlu0 %v6480, 64
    %v7003 = vpop.permute.xlu0 %7002
    %v7008 = vsel %vm3217, %v6995, 0
    %v7010 = vsel %vm3230, %v7003, 0
    %7012 = vmatprep.subr.mxu0 0.0
    %7013 = vmatpush1.msra.mxu0 %v6997
    %7014 = vmatprep.subr.mxu0 0.0
    %7015 = vmatpush1.msra.mxu0 %v6999
    %7016 = vmatprep.subr.mxu0 0.0
    %7017 = vmatpush1.msra.mxu0 %v7001
    %7018 = vmatprep.subr.mxu0 0.0
    %7019 = vmatpush1.msra.mxu0 %v7010
    %7020 = vmatprep.subr.mxu0 0.0
    %7021 = vmatpush1.msra.mxu0 0.0
    %7022 = vmatprep.subr.mxu0 0.0
    %7023 = vmatpush1.msra.mxu0 0.0
    %7024 = vmatprep.subr.mxu0 0.0
    %7025 = vmatpush1.msra.mxu0 0.0
    %7026 = vmatprep.subr.mxu0 0.0
    %7027 = vmatpush1.msra.mxu0 0.0
    %7028 = vmatprep.subr.mxu0 0.0
    %7029 = vmatpush1.msra.mxu0 0.0
    %7030 = vmatprep.subr.mxu0 0.0
    %7031 = vmatpush1.msra.mxu0 0.0
    %7032 = vmatprep.subr.mxu0 0.0
    %7033 = vmatpush1.msra.mxu0 0.0
    %7034 = vmatprep.subr.mxu0 0.0
    %7035 = vmatpush1.msra.mxu0 0.0
    %7036 = vmatprep.subr.mxu0 0.0
    %7037 = vmatpush1.msra.mxu0 0.0
    %7038 = vmatprep.subr.mxu0 0.0
    %7039 = vmatpush1.msra.mxu0 0.0
    %7040 = vmatprep.subr.mxu0 0.0
    %7041 = vmatpush1.msra.mxu0 0.0
    %7042 = vmatprep.subr.mxu0 0.0
    %7043 = vmatpush1.msra.mxu0 0.0
    %7044 = vmatprep.subr.mxu0 0.0
    %7045 = vmatpush1.msra.mxu0 0.0
    %7046 = vmatprep.subr.mxu0 0.0
    %7047 = vmatpush1.msra.mxu0 0.0
    %7048 = vmatprep.subr.mxu0 0.0
    %7049 = vmatpush1.msra.mxu0 0.0
    %7050 = vmatprep.subr.mxu0 0.0
    %7051 = vmatpush1.msra.mxu0 0.0
    %7052 = vmatprep.subr.mxu0 0.0
    %7053 = vmatpush1.msra.mxu0 0.0
    %7054 = vmatprep.subr.mxu0 0.0
    %7055 = vmatpush1.msra.mxu0 0.0
    %7056 = vmatprep.subr.mxu0 0.0
    %7057 = vmatpush1.msra.mxu0 0.0
    %7058 = vmatprep.subr.mxu0 0.0
    %7059 = vmatpush1.msra.mxu0 0.0
    %7060 = vmatprep.subr.mxu0 0.0
    %7061 = vmatpush1.msra.mxu0 0.0
    %7062 = vmatprep.subr.mxu0 0.0
    %7063 = vmatpush1.msra.mxu0 0.0
    %7064 = vmatprep.subr.mxu0 0.0
    %7065 = vmatpush1.msra.mxu0 0.0
    %7066 = vmatprep.subr.mxu0 0.0
    %7067 = vmatpush1.msra.mxu0 0.0
    %7068 = vmatprep.subr.mxu0 0.0
    %7069 = vmatpush1.msra.mxu0 0.0
    %7070 = vmatprep.subr.mxu0 0.0
    %7071 = vmatpush1.msra.mxu0 0.0
    %7072 = vmatprep.subr.mxu0 0.0
    %7073 = vmatpush1.msra.mxu0 0.0
    %7074 = vmatprep.subr.mxu0 0.0
    %7075 = vmatpush1.msra.mxu0 0.0
    %7076 = vmatprep.mubr.f32.mxu0 0.0
    %7077 = vmatmul.mubr.f32.gmra.mrb[0].mxu0 %v7008
    %v7078 = vpop.f32.mrb[0].mxu0
    %v7079 = vadd.f32 0.0, %v7078
    %v7080 = vpop.f32.mrb[0].mxu0
    %7081 = vdwg.mxu0
    %s7082 = scalar_lea.vmem [#allocation19], 28
    %v7083 = vld [vmem:[%s7082] sm:$0xf]
    %7084 = vrot.lane.b32.xlu0 %v6474, 32
    %v7085 = vpop.permute.xlu0 %7084
    %7086 = vrot.lane.b32.xlu0 %v6476, 32
    %v7087 = vpop.permute.xlu0 %7086
    %7088 = vrot.lane.b32.xlu0 %v6478, 32
    %v7089 = vpop.permute.xlu0 %7088
    %7090 = vrot.lane.b32.xlu0 %v6480, 32
    %v7091 = vpop.permute.xlu0 %7090
    %v7096 = vsel %vm3217, %v7083, 0
    %v7098 = vsel %vm3230, %v7091, 0
    %7100 = vmatprep.subr.mxu0 0.0
    %7101 = vmatpush1.msra.mxu0 %v7085
    %7102 = vmatprep.subr.mxu0 0.0
    %7103 = vmatpush1.msra.mxu0 %v7087
    %7104 = vmatprep.subr.mxu0 0.0
    %7105 = vmatpush1.msra.mxu0 %v7089
    %7106 = vmatprep.subr.mxu0 0.0
    %7107 = vmatpush1.msra.mxu0 %v7098
    %7108 = vmatprep.subr.mxu0 0.0
    %7109 = vmatpush1.msra.mxu0 0.0
    %7110 = vmatprep.subr.mxu0 0.0
    %7111 = vmatpush1.msra.mxu0 0.0
    %7112 = vmatprep.subr.mxu0 0.0
    %7113 = vmatpush1.msra.mxu0 0.0
    %7114 = vmatprep.subr.mxu0 0.0
    %7115 = vmatpush1.msra.mxu0 0.0
    %7116 = vmatprep.subr.mxu0 0.0
    %7117 = vmatpush1.msra.mxu0 0.0
    %7118 = vmatprep.subr.mxu0 0.0
    %7119 = vmatpush1.msra.mxu0 0.0
    %7120 = vmatprep.subr.mxu0 0.0
    %7121 = vmatpush1.msra.mxu0 0.0
    %7122 = vmatprep.subr.mxu0 0.0
    %7123 = vmatpush1.msra.mxu0 0.0
    %7124 = vmatprep.subr.mxu0 0.0
    %7125 = vmatpush1.msra.mxu0 0.0
    %7126 = vmatprep.subr.mxu0 0.0
    %7127 = vmatpush1.msra.mxu0 0.0
    %7128 = vmatprep.subr.mxu0 0.0
    %7129 = vmatpush1.msra.mxu0 0.0
    %7130 = vmatprep.subr.mxu0 0.0
    %7131 = vmatpush1.msra.mxu0 0.0
    %7132 = vmatprep.subr.mxu0 0.0
    %7133 = vmatpush1.msra.mxu0 0.0
    %7134 = vmatprep.subr.mxu0 0.0
    %7135 = vmatpush1.msra.mxu0 0.0
    %7136 = vmatprep.subr.mxu0 0.0
    %7137 = vmatpush1.msra.mxu0 0.0
    %7138 = vmatprep.subr.mxu0 0.0
    %7139 = vmatpush1.msra.mxu0 0.0
    %7140 = vmatprep.subr.mxu0 0.0
    %7141 = vmatpush1.msra.mxu0 0.0
    %7142 = vmatprep.subr.mxu0 0.0
    %7143 = vmatpush1.msra.mxu0 0.0
    %7144 = vmatprep.subr.mxu0 0.0
    %7145 = vmatpush1.msra.mxu0 0.0
    %7146 = vmatprep.subr.mxu0 0.0
    %7147 = vmatpush1.msra.mxu0 0.0
    %7148 = vmatprep.subr.mxu0 0.0
    %7149 = vmatpush1.msra.mxu0 0.0
    %7150 = vmatprep.subr.mxu0 0.0
    %7151 = vmatpush1.msra.mxu0 0.0
    %7152 = vmatprep.subr.mxu0 0.0
    %7153 = vmatpush1.msra.mxu0 0.0
    %7154 = vmatprep.subr.mxu0 0.0
    %7155 = vmatpush1.msra.mxu0 0.0
    %7156 = vmatprep.subr.mxu0 0.0
    %7157 = vmatpush1.msra.mxu0 0.0
    %7158 = vmatprep.subr.mxu0 0.0
    %7159 = vmatpush1.msra.mxu0 0.0
    %7160 = vmatprep.subr.mxu0 0.0
    %7161 = vmatpush1.msra.mxu0 0.0
    %7162 = vmatprep.subr.mxu0 0.0
    %7163 = vmatpush1.msra.mxu0 0.0
    %7164 = vmatprep.mubr.f32.mxu0 0.0
    %7165 = vmatmul.mubr.f32.gmra.mrb[0].mxu0 %v7096
    %v7166 = vpop.f32.mrb[0].mxu0
    %v7167 = vadd.f32 0.0, %v7166
    %v7168 = vpop.f32.mrb[0].mxu0
    %7169 = vdwg.mxu0
    %v7171 = vrot.slane %v6646, 4
    %v7174 = vrot.slane %v6822, 4
    %v7177 = vrot.slane %v6991, 4
    %v7180 = vrot.slane %v7167, 4
    %vm7182 = vcmask 1043456
    %v7183 = vsel %vm7182, %v6555, %v7171
    %v7184 = vsel %vm7182, %v6734, %v7174
    %v7185 = vsel %vm7182, %v6900, %v7177
    %v7186 = vsel %vm7182, %v7079, %v7180
    %v7187 = vld [vmem:[%s15] sm:$0xff]
    %v7188 = vld [vmem:[%s15 + $0x8] sm:$0xff]
    %v7189 = vld [vmem:[%s15 + $0x10] sm:$0xff]
    %v7190 = vld [vmem:[%s15 + $0x18] sm:$0xff]
    %7192 = vset.pattern.permute.xlu0 0
    %7193 = vperm.xlu0 %7192, %v7187
    %v7194 = vpop.permute.xlu0 %7193
    %7197 = vset.pattern.permute.xlu0 0
    %7198 = vperm.xlu0 %7197, %v7188
    %v7199 = vpop.permute.xlu0 %7198
    %7202 = vset.pattern.permute.xlu0 0
    %7203 = vperm.xlu0 %7202, %v7189
    %v7204 = vpop.permute.xlu0 %7203
    %7207 = vset.pattern.permute.xlu0 0
    %7208 = vperm.xlu0 %7207, %v7190
    %v7209 = vpop.permute.xlu0 %7208
    %v7211 = vmul.f32 %v7183, %v7194
    %v7212 = vmul.f32 %v7184, %v7199
    %v7213 = vmul.f32 %v7185, %v7204
    %v7214 = vmul.f32 %v7186, %v7209
    %v7215 = vld [vmem:[%s16] sm:$0xff]
    %v7216 = vld [vmem:[%s16 + $0x8] sm:$0xff]
    %v7217 = vld [vmem:[%s16 + $0x10] sm:$0xff]
    %v7218 = vld [vmem:[%s16 + $0x18] sm:$0xff]
    %7220 = vset.pattern.permute.xlu0 0
    %7221 = vperm.xlu0 %7220, %v7215
    %v7222 = vpop.permute.xlu0 %7221
    %7225 = vset.pattern.permute.xlu0 0
    %7226 = vperm.xlu0 %7225, %v7216
    %v7227 = vpop.permute.xlu0 %7226
    %7230 = vset.pattern.permute.xlu0 0
    %7231 = vperm.xlu0 %7230, %v7217
    %v7232 = vpop.permute.xlu0 %7231
    %7235 = vset.pattern.permute.xlu0 0
    %7236 = vperm.xlu0 %7235, %v7218
    %v7237 = vpop.permute.xlu0 %7236
    %v7239 = vadd.f32 %v7211, %v7222
    %v7240 = vadd.f32 %v7212, %v7227
    %v7241 = vadd.f32 %v7213, %v7232
    %v7242 = vadd.f32 %v7214, %v7237
    %vm7243 = vcmp.gt.f32.partialorder %v7239, 0.0
    %vm7244 = vcmp.gt.f32.partialorder %v7240, 0.0
    %vm7245 = vcmp.gt.f32.partialorder %v7241, 0.0
    %vm7246 = vcmp.gt.f32.partialorder %v7242, 0.0
    %v7247 = vmin.f32 %v7239, 0.0
    %v7248 = vmin.f32 %v7240, 0.0
    %v7249 = vmin.f32 %v7241, 0.0
    %v7250 = vmin.f32 %v7242, 0.0
    %v7251 = vmul.f32 %v7247, 1.442695
    %v7252 = vpow.pop %v7251
    %v7253 = vmul.f32 %v7248, 1.442695
    %v7254 = vpow.pop %v7253
    %v7255 = vmul.f32 %v7249, 1.442695
    %v7256 = vpow.pop %v7255
    %v7257 = vmul.f32 %v7250, 1.442695
    %v7258 = vpow.pop %v7257
    %v7259 = vsub.f32 %v7252, 1.0
    %v7260 = vsub.f32 %v7254, 1.0
    %v7261 = vsub.f32 %v7256, 1.0
    %v7262 = vsub.f32 %v7258, 1.0
    %v7263 = vsel %vm7243, %v7239, %v7259
    %v7264 = vsel %vm7244, %v7240, %v7260
    %v7265 = vsel %vm7245, %v7241, %v7261
    %v7266 = vsel %vm7246, %v7242, %v7262
    %v7267 = vld [vmem:[#allocation20] sm:$0xff]
    %v7268 = vld [vmem:[#allocation20 + $0x8] sm:$0xff]
    %v7269 = vld [vmem:[#allocation20 + $0x10] sm:$0xff]
    %v7270 = vld [vmem:[#allocation20 + $0x18] sm:$0xff]
    %v7272 = vsel %vm318, %v7263, 0
    %v7275 = vsel %vm318, %v7264, 0
    %v7278 = vsel %vm318, %v7265, 0
    %v7281 = vsel %vm318, %v7266, 0
    %7283 = vmatprep.subr.mxu0 0.0
    %7284 = vmatpush1.msra.mxu0 %v7267
    %7285 = vmatprep.subr.mxu0 0.0
    %7286 = vmatpush1.msra.mxu0 %v7268
    %7287 = vmatprep.subr.mxu0 0.0
    %7288 = vmatpush1.msra.mxu0 %v7269
    %7289 = vmatprep.subr.mxu0 0.0
    %7290 = vmatpush1.msra.mxu0 %v7270
    %7291 = vmatprep.subr.mxu0 0.0
    %7292 = vmatpush1.msra.mxu0 0.0
    %7293 = vmatprep.subr.mxu0 0.0
    %7294 = vmatpush1.msra.mxu0 0.0
    %7295 = vmatprep.subr.mxu0 0.0
    %7296 = vmatpush1.msra.mxu0 0.0
    %7297 = vmatprep.subr.mxu0 0.0
    %7298 = vmatpush1.msra.mxu0 0.0
    %7299 = vmatprep.subr.mxu0 0.0
    %7300 = vmatpush1.msra.mxu0 0.0
    %7301 = vmatprep.subr.mxu0 0.0
    %7302 = vmatpush1.msra.mxu0 0.0
    %7303 = vmatprep.subr.mxu0 0.0
    %7304 = vmatpush1.msra.mxu0 0.0
    %7305 = vmatprep.subr.mxu0 0.0
    %7306 = vmatpush1.msra.mxu0 0.0
    %7307 = vmatprep.subr.mxu0 0.0
    %7308 = vmatpush1.msra.mxu0 0.0
    %7309 = vmatprep.subr.mxu0 0.0
    %7310 = vmatpush1.msra.mxu0 0.0
    %7311 = vmatprep.subr.mxu0 0.0
    %7312 = vmatpush1.msra.mxu0 0.0
    %7313 = vmatprep.subr.mxu0 0.0
    %7314 = vmatpush1.msra.mxu0 0.0
    %7315 = vmatprep.subr.mxu0 0.0
    %7316 = vmatpush1.msra.mxu0 0.0
    %7317 = vmatprep.subr.mxu0 0.0
    %7318 = vmatpush1.msra.mxu0 0.0
    %7319 = vmatprep.subr.mxu0 0.0
    %7320 = vmatpush1.msra.mxu0 0.0
    %7321 = vmatprep.subr.mxu0 0.0
    %7322 = vmatpush1.msra.mxu0 0.0
    %7323 = vmatprep.subr.mxu0 0.0
    %7324 = vmatpush1.msra.mxu0 0.0
    %7325 = vmatprep.subr.mxu0 0.0
    %7326 = vmatpush1.msra.mxu0 0.0
    %7327 = vmatprep.subr.mxu0 0.0
    %7328 = vmatpush1.msra.mxu0 0.0
    %7329 = vmatprep.subr.mxu0 0.0
    %7330 = vmatpush1.msra.mxu0 0.0
    %7331 = vmatprep.subr.mxu0 0.0
    %7332 = vmatpush1.msra.mxu0 0.0
    %7333 = vmatprep.subr.mxu0 0.0
    %7334 = vmatpush1.msra.mxu0 0.0
    %7335 = vmatprep.subr.mxu0 0.0
    %7336 = vmatpush1.msra.mxu0 0.0
    %7337 = vmatprep.subr.mxu0 0.0
    %7338 = vmatpush1.msra.mxu0 0.0
    %7339 = vmatprep.subr.mxu0 0.0
    %7340 = vmatpush1.msra.mxu0 0.0
    %7341 = vmatprep.subr.mxu0 0.0
    %7342 = vmatpush1.msra.mxu0 0.0
    %7343 = vmatprep.subr.mxu0 0.0
    %7344 = vmatpush1.msra.mxu0 0.0
    %7345 = vmatprep.subr.mxu0 0.0
    %7346 = vmatpush1.msra.mxu0 0.0
    %7347 = vmatprep.mubr.f32.mxu0 0.0
    %7348 = vmatmul.mubr.f32.gmra.mrb[0].mxu0 %v7272
    %v7349 = vpop.f32.mrb[0].mxu0
    %v7350 = vadd.f32 0.0, %v7349
    %v7351 = vpop.f32.mrb[0].mxu0
    %7352 = vmatprep.mubr.f32.mxu0 0.0
    %7353 = vmatmul.mubr.f32.gmra.mrb[0].mxu0 %v7275
    %v7354 = vpop.f32.mrb[0].mxu0
    %v7355 = vadd.f32 0.0, %v7354
    %v7356 = vpop.f32.mrb[0].mxu0
    %7357 = vmatprep.mubr.f32.mxu0 0.0
    %7358 = vmatmul.mubr.f32.gmra.mrb[0].mxu0 %v7278
    %v7359 = vpop.f32.mrb[0].mxu0
    %v7360 = vadd.f32 0.0, %v7359
    %v7361 = vpop.f32.mrb[0].mxu0
    %7362 = vmatprep.mubr.f32.mxu0 0.0
    %7363 = vmatmul.mubr.f32.gmra.mrb[0].mxu0 %v7281
    %v7364 = vpop.f32.mrb[0].mxu0
    %v7365 = vadd.f32 0.0, %v7364
    %v7366 = vpop.f32.mrb[0].mxu0
    %7367 = vdwg.mxu0
    %v7368 = vld [vmem:[%s18] sm:$0xff]
    %vm7369 = vcmask 64512
    %v7371 = vsel %vm7369, %v7350, 0
    %v7374 = vsel %vm7369, %v7355, 0
    %v7377 = vsel %vm7369, %v7360, 0
    %v7380 = vsel %vm7369, %v7365, 0
    %7382 = vmatprep.subr.mxu0 0.0
    %7383 = vmatpush1.msra.mxu0 %v7368
    %7384 = vmatprep.subr.mxu0 0.0
    %7385 = vmatpush1.msra.mxu0 0.0
    %7386 = vmatprep.subr.mxu0 0.0
    %7387 = vmatpush1.msra.mxu0 0.0
    %7388 = vmatprep.subr.mxu0 0.0
    %7389 = vmatpush1.msra.mxu0 0.0
    %7390 = vmatprep.subr.mxu0 0.0
    %7391 = vmatpush1.msra.mxu0 0.0
    %7392 = vmatprep.subr.mxu0 0.0
    %7393 = vmatpush1.msra.mxu0 0.0
    %7394 = vmatprep.subr.mxu0 0.0
    %7395 = vmatpush1.msra.mxu0 0.0
    %7396 = vmatprep.subr.mxu0 0.0
    %7397 = vmatpush1.msra.mxu0 0.0
    %7398 = vmatprep.subr.mxu0 0.0
    %7399 = vmatpush1.msra.mxu0 0.0
    %7400 = vmatprep.subr.mxu0 0.0
    %7401 = vmatpush1.msra.mxu0 0.0
    %7402 = vmatprep.subr.mxu0 0.0
    %7403 = vmatpush1.msra.mxu0 0.0
    %7404 = vmatprep.subr.mxu0 0.0
    %7405 = vmatpush1.msra.mxu0 0.0
    %7406 = vmatprep.subr.mxu0 0.0
    %7407 = vmatpush1.msra.mxu0 0.0
    %7408 = vmatprep.subr.mxu0 0.0
    %7409 = vmatpush1.msra.mxu0 0.0
    %7410 = vmatprep.subr.mxu0 0.0
    %7411 = vmatpush1.msra.mxu0 0.0
    %7412 = vmatprep.subr.mxu0 0.0
    %7413 = vmatpush1.msra.mxu0 0.0
    %7414 = vmatprep.subr.mxu0 0.0
    %7415 = vmatpush1.msra.mxu0 0.0
    %7416 = vmatprep.subr.mxu0 0.0
    %7417 = vmatpush1.msra.mxu0 0.0
    %7418 = vmatprep.subr.mxu0 0.0
    %7419 = vmatpush1.msra.mxu0 0.0
    %7420 = vmatprep.subr.mxu0 0.0
    %7421 = vmatpush1.msra.mxu0 0.0
    %7422 = vmatprep.subr.mxu0 0.0
    %7423 = vmatpush1.msra.mxu0 0.0
    %7424 = vmatprep.subr.mxu0 0.0
    %7425 = vmatpush1.msra.mxu0 0.0
    %7426 = vmatprep.subr.mxu0 0.0
    %7427 = vmatpush1.msra.mxu0 0.0
    %7428 = vmatprep.subr.mxu0 0.0
    %7429 = vmatpush1.msra.mxu0 0.0
    %7430 = vmatprep.subr.mxu0 0.0
    %7431 = vmatpush1.msra.mxu0 0.0
    %7432 = vmatprep.subr.mxu0 0.0
    %7433 = vmatpush1.msra.mxu0 0.0
    %7434 = vmatprep.subr.mxu0 0.0
    %7435 = vmatpush1.msra.mxu0 0.0
    %7436 = vmatprep.subr.mxu0 0.0
    %7437 = vmatpush1.msra.mxu0 0.0
    %7438 = vmatprep.subr.mxu0 0.0
    %7439 = vmatpush1.msra.mxu0 0.0
    %7440 = vmatprep.subr.mxu0 0.0
    %7441 = vmatpush1.msra.mxu0 0.0
    %7442 = vmatprep.subr.mxu0 0.0
    %7443 = vmatpush1.msra.mxu0 0.0
    %7444 = vmatprep.subr.mxu0 0.0
    %7445 = vmatpush1.msra.mxu0 0.0
    %7446 = vmatprep.mubr.f32.mxu0 0.0
    %7447 = vmatmul.mubr.f32.gmra.mrb[0].mxu0 %v7371
    %v7448 = vpop.f32.mrb[0].mxu0
    %v7449 = vadd.f32 0.0, %v7448
    %v7450 = vpop.f32.mrb[0].mxu0
    %7451 = vmatprep.mubr.f32.mxu0 0.0
    %7452 = vmatmul.mubr.f32.gmra.mrb[0].mxu0 %v7374
    %v7453 = vpop.f32.mrb[0].mxu0
    %v7454 = vadd.f32 0.0, %v7453
    %v7455 = vpop.f32.mrb[0].mxu0
    %7456 = vmatprep.mubr.f32.mxu0 0.0
    %7457 = vmatmul.mubr.f32.gmra.mrb[0].mxu0 %v7377
    %v7458 = vpop.f32.mrb[0].mxu0
    %v7459 = vadd.f32 0.0, %v7458
    %v7460 = vpop.f32.mrb[0].mxu0
    %7461 = vmatprep.mubr.f32.mxu0 0.0
    %7462 = vmatmul.mubr.f32.gmra.mrb[0].mxu0 %v7380
    %v7463 = vpop.f32.mrb[0].mxu0
    %v7464 = vadd.f32 0.0, %v7463
    %v7465 = vpop.f32.mrb[0].mxu0
    %7466 = vdwg.mxu0
    %v7467 = vld [vmem:[#allocation22] sm:$0xff]
    %v7468 = vld [vmem:[#allocation22 + $0x8] sm:$0xff]
    %v7469 = vld [vmem:[#allocation22 + $0x10] sm:$0xff]
    %v7470 = vld [vmem:[#allocation22 + $0x18] sm:$0xff]
    %v7471 = vmul.f32 %v7449, %v7467
    %v7472 = vmul.f32 %v7454, %v7468
    %v7473 = vmul.f32 %v7459, %v7469
    %v7474 = vmul.f32 %v7464, %v7470
    %v7475 = vld [vmem:[%s20] sm:$0xff]
    %v7476 = vld [vmem:[%s20 + $0x8] sm:$0xff]
    %v7477 = vld [vmem:[%s20 + $0x10] sm:$0xff]
    %v7478 = vld [vmem:[%s20 + $0x18] sm:$0xff]
    %v7479 = vld [vmem:[%s20 + $0x20] sm:$0xff]
    %v7480 = vld [vmem:[%s20 + $0x28] sm:$0xff]
    %v7481 = vld [vmem:[%s20 + $0x30] sm:$0xff]
    %v7482 = vld [vmem:[%s20 + $0x38] sm:$0xff]
    %v7483 = vld [vmem:[%s20 + $0x40] sm:$0xff]
    %v7484 = vld [vmem:[%s20 + $0x48] sm:$0xff]
    %v7485 = vld [vmem:[%s20 + $0x50] sm:$0xff]
    %v7486 = vld [vmem:[%s20 + $0x58] sm:$0xff]
    %v7487 = vld [vmem:[%s20 + $0x60] sm:$0xff]
    %v7488 = vld [vmem:[%s20 + $0x68] sm:$0xff]
    %v7489 = vld [vmem:[%s20 + $0x70] sm:$0xff]
    %v7490 = vld [vmem:[%s20 + $0x78] sm:$0xff]
    %7491 = vmatprep.subr.mxu0 0.0
    %7492 = vmatpush1.msra.mxu0 %v7475
    %7493 = vmatprep.subr.mxu0 0.0
    %7494 = vmatpush1.msra.mxu0 %v7476
    %7495 = vmatprep.subr.mxu0 0.0
    %7496 = vmatpush1.msra.mxu0 %v7477
    %7497 = vmatprep.subr.mxu0 0.0
    %7498 = vmatpush1.msra.mxu0 %v7478
    %7499 = vmatprep.subr.mxu0 0.0
    %7500 = vmatpush1.msra.mxu0 %v7479
    %7501 = vmatprep.subr.mxu0 0.0
    %7502 = vmatpush1.msra.mxu0 %v7480
    %7503 = vmatprep.subr.mxu0 0.0
    %7504 = vmatpush1.msra.mxu0 %v7481
    %7505 = vmatprep.subr.mxu0 0.0
    %7506 = vmatpush1.msra.mxu0 %v7482
    %7507 = vmatprep.subr.mxu0 0.0
    %7508 = vmatpush1.msra.mxu0 %v7483
    %7509 = vmatprep.subr.mxu0 0.0
    %7510 = vmatpush1.msra.mxu0 %v7484
    %7511 = vmatprep.subr.mxu0 0.0
    %7512 = vmatpush1.msra.mxu0 %v7485
    %7513 = vmatprep.subr.mxu0 0.0
    %7514 = vmatpush1.msra.mxu0 %v7486
    %7515 = vmatprep.subr.mxu0 0.0
    %7516 = vmatpush1.msra.mxu0 %v7487
    %7517 = vmatprep.subr.mxu0 0.0
    %7518 = vmatpush1.msra.mxu0 %v7488
    %7519 = vmatprep.subr.mxu0 0.0
    %7520 = vmatpush1.msra.mxu0 %v7489
    %7521 = vmatprep.subr.mxu0 0.0
    %7522 = vmatpush1.msra.mxu0 %v7490
    %7523 = vmatprep.subr.mxu0 0.0
    %7524 = vmatpush1.msra.mxu0 0.0
    %7525 = vmatprep.subr.mxu0 0.0
    %7526 = vmatpush1.msra.mxu0 0.0
    %7527 = vmatprep.subr.mxu0 0.0
    %7528 = vmatpush1.msra.mxu0 0.0
    %7529 = vmatprep.subr.mxu0 0.0
    %7530 = vmatpush1.msra.mxu0 0.0
    %7531 = vmatprep.subr.mxu0 0.0
    %7532 = vmatpush1.msra.mxu0 0.0
    %7533 = vmatprep.subr.mxu0 0.0
    %7534 = vmatpush1.msra.mxu0 0.0
    %7535 = vmatprep.subr.mxu0 0.0
    %7536 = vmatpush1.msra.mxu0 0.0
    %7537 = vmatprep.subr.mxu0 0.0
    %7538 = vmatpush1.msra.mxu0 0.0
    %7539 = vmatprep.subr.mxu0 0.0
    %7540 = vmatpush1.msra.mxu0 0.0
    %7541 = vmatprep.subr.mxu0 0.0
    %7542 = vmatpush1.msra.mxu0 0.0
    %7543 = vmatprep.subr.mxu0 0.0
    %7544 = vmatpush1.msra.mxu0 0.0
    %7545 = vmatprep.subr.mxu0 0.0
    %7546 = vmatpush1.msra.mxu0 0.0
    %7547 = vmatprep.subr.mxu0 0.0
    %7548 = vmatpush1.msra.mxu0 0.0
    %7549 = vmatprep.subr.mxu0 0.0
    %7550 = vmatpush1.msra.mxu0 0.0
    %7551 = vmatprep.subr.mxu0 0.0
    %7552 = vmatpush1.msra.mxu0 0.0
    %7553 = vmatprep.subr.mxu0 0.0
    %7554 = vmatpush1.msra.mxu0 0.0
    %7555 = vmatprep.mubr.f32.mxu0 0.0
    %7556 = vmatmul.mubr.f32.gmra.mrb[0].mxu0 %v7471
    %v7557 = vpop.f32.mrb[0].mxu0
    %v7558 = vadd.f32 0.0, %v7557
    %v7559 = vpop.f32.mrb[0].mxu0
    %7560 = vmatprep.mubr.f32.mxu0 0.0
    %7561 = vmatmul.mubr.f32.gmra.mrb[0].mxu0 %v7472
    %v7562 = vpop.f32.mrb[0].mxu0
    %v7563 = vadd.f32 0.0, %v7562
    %v7564 = vpop.f32.mrb[0].mxu0
    %7565 = vmatprep.mubr.f32.mxu0 0.0
    %7566 = vmatmul.mubr.f32.gmra.mrb[0].mxu0 %v7473
    %v7567 = vpop.f32.mrb[0].mxu0
    %v7568 = vadd.f32 0.0, %v7567
    %v7569 = vpop.f32.mrb[0].mxu0
    %7570 = vmatprep.mubr.f32.mxu0 0.0
    %7571 = vmatmul.mubr.f32.gmra.mrb[0].mxu0 %v7474
    %v7572 = vpop.f32.mrb[0].mxu0
    %v7573 = vadd.f32 0.0, %v7572
    %v7574 = vpop.f32.mrb[0].mxu0
    %7575 = vdwg.mxu0
    %v7576 = vld [vmem:[#allocation23] sm:$0xff]
    %v7577 = vld [vmem:[#allocation23 + $0x8] sm:$0xff]
    %v7578 = vld [vmem:[#allocation23 + $0x10] sm:$0xff]
    %v7579 = vld [vmem:[#allocation23 + $0x18] sm:$0xff]
    %v7581 = vsel %vm318, %v7576, 0
    %v7584 = vsel %vm318, %v7577, 0
    %v7587 = vsel %vm318, %v7578, 0
    %v7590 = vsel %vm318, %v7579, 0
    %7592 = vmatprep.subr.mxu0 0.0
    %7593 = vmatpush1.msra.mxu0 %v7558
    %7594 = vmatprep.subr.mxu0 0.0
    %7595 = vmatpush1.msra.mxu0 %v7563
    %7596 = vmatprep.subr.mxu0 0.0
    %7597 = vmatpush1.msra.mxu0 %v7568
    %7598 = vmatprep.subr.mxu0 0.0
    %7599 = vmatpush1.msra.mxu0 %v7573
    %7600 = vmatprep.subr.mxu0 0.0
    %7601 = vmatpush1.msra.mxu0 0.0
    %7602 = vmatprep.subr.mxu0 0.0
    %7603 = vmatpush1.msra.mxu0 0.0
    %7604 = vmatprep.subr.mxu0 0.0
    %7605 = vmatpush1.msra.mxu0 0.0
    %7606 = vmatprep.subr.mxu0 0.0
    %7607 = vmatpush1.msra.mxu0 0.0
    %7608 = vmatprep.subr.mxu0 0.0
    %7609 = vmatpush1.msra.mxu0 0.0
    %7610 = vmatprep.subr.mxu0 0.0
    %7611 = vmatpush1.msra.mxu0 0.0
    %7612 = vmatprep.subr.mxu0 0.0
    %7613 = vmatpush1.msra.mxu0 0.0
    %7614 = vmatprep.subr.mxu0 0.0
    %7615 = vmatpush1.msra.mxu0 0.0
    %7616 = vmatprep.subr.mxu0 0.0
    %7617 = vmatpush1.msra.mxu0 0.0
    %7618 = vmatprep.subr.mxu0 0.0
    %7619 = vmatpush1.msra.mxu0 0.0
    %7620 = vmatprep.subr.mxu0 0.0
    %7621 = vmatpush1.msra.mxu0 0.0
    %7622 = vmatprep.subr.mxu0 0.0
    %7623 = vmatpush1.msra.mxu0 0.0
    %7624 = vmatprep.subr.mxu0 0.0
    %7625 = vmatpush1.msra.mxu0 0.0
    %7626 = vmatprep.subr.mxu0 0.0
    %7627 = vmatpush1.msra.mxu0 0.0
    %7628 = vmatprep.subr.mxu0 0.0
    %7629 = vmatpush1.msra.mxu0 0.0
    %7630 = vmatprep.subr.mxu0 0.0
    %7631 = vmatpush1.msra.mxu0 0.0
    %7632 = vmatprep.subr.mxu0 0.0
    %7633 = vmatpush1.msra.mxu0 0.0
    %7634 = vmatprep.subr.mxu0 0.0
    %7635 = vmatpush1.msra.mxu0 0.0
    %7636 = vmatprep.subr.mxu0 0.0
    %7637 = vmatpush1.msra.mxu0 0.0
    %7638 = vmatprep.subr.mxu0 0.0
    %7639 = vmatpush1.msra.mxu0 0.0
    %7640 = vmatprep.subr.mxu0 0.0
    %7641 = vmatpush1.msra.mxu0 0.0
    %7642 = vmatprep.subr.mxu0 0.0
    %7643 = vmatpush1.msra.mxu0 0.0
    %7644 = vmatprep.subr.mxu0 0.0
    %7645 = vmatpush1.msra.mxu0 0.0
    %7646 = vmatprep.subr.mxu0 0.0
    %7647 = vmatpush1.msra.mxu0 0.0
    %7648 = vmatprep.subr.mxu0 0.0
    %7649 = vmatpush1.msra.mxu0 0.0
    %7650 = vmatprep.subr.mxu0 0.0
    %7651 = vmatpush1.msra.mxu0 0.0
    %7652 = vmatprep.subr.mxu0 0.0
    %7653 = vmatpush1.msra.mxu0 0.0
    %7654 = vmatprep.subr.mxu0 0.0
    %7655 = vmatpush1.msra.mxu0 0.0
    %7656 = vmatprep.mubr.f32.mxu0 0.0
    %7657 = vmatmul.mubr.f32.gmra.mrb[0].mxu0 %v7581
    %v7658 = vpop.f32.mrb[0].mxu0
    %v7659 = vadd.f32 0.0, %v7658
    %v7660 = vpop.f32.mrb[0].mxu0
    %7661 = vmatprep.mubr.f32.mxu0 0.0
    %7662 = vmatmul.mubr.f32.gmra.mrb[0].mxu0 %v7584
    %v7663 = vpop.f32.mrb[0].mxu0
    %v7664 = vadd.f32 0.0, %v7663
    %v7665 = vpop.f32.mrb[0].mxu0
    %7666 = vmatprep.mubr.f32.mxu0 0.0
    %7667 = vmatmul.mubr.f32.gmra.mrb[0].mxu0 %v7587
    %v7668 = vpop.f32.mrb[0].mxu0
    %v7669 = vadd.f32 0.0, %v7668
    %v7670 = vpop.f32.mrb[0].mxu0
    %7671 = vmatprep.mubr.f32.mxu0 0.0
    %7672 = vmatmul.mubr.f32.gmra.mrb[0].mxu0 %v7590
    %v7673 = vpop.f32.mrb[0].mxu0
    %v7674 = vadd.f32 0.0, %v7673
    %v7675 = vpop.f32.mrb[0].mxu0
    %7676 = vdwg.mxu0
    %v7677 = vld [vmem:[%s22] sm:$0xff]
    %v7678 = vld [vmem:[%s22 + $0x8] sm:$0xff]
    %v7679 = vld [vmem:[%s22 + $0x10] sm:$0xff]
    %v7680 = vld [vmem:[%s22 + $0x18] sm:$0xff]
    %7682 = vset.pattern.permute.xlu0 0
    %7683 = vperm.xlu0 %7682, %v7677
    %v7684 = vpop.permute.xlu0 %7683
    %7687 = vset.pattern.permute.xlu0 0
    %7688 = vperm.xlu0 %7687, %v7678
    %v7689 = vpop.permute.xlu0 %7688
    %7692 = vset.pattern.permute.xlu0 0
    %7693 = vperm.xlu0 %7692, %v7679
    %v7694 = vpop.permute.xlu0 %7693
    %7697 = vset.pattern.permute.xlu0 0
    %7698 = vperm.xlu0 %7697, %v7680
    %v7699 = vpop.permute.xlu0 %7698
    %v7701 = vmul.f32 %v7659, %v7684
    %v7702 = vmul.f32 %v7664, %v7689
    %v7703 = vmul.f32 %v7669, %v7694
    %v7704 = vmul.f32 %v7674, %v7699
    %v7705 = vld [vmem:[%s23] sm:$0xff]
    %v7706 = vld [vmem:[%s23 + $0x8] sm:$0xff]
    %v7707 = vld [vmem:[%s23 + $0x10] sm:$0xff]
    %v7708 = vld [vmem:[%s23 + $0x18] sm:$0xff]
    %7710 = vset.pattern.permute.xlu0 0
    %7711 = vperm.xlu0 %7710, %v7705
    %v7712 = vpop.permute.xlu0 %7711
    %7715 = vset.pattern.permute.xlu0 0
    %7716 = vperm.xlu0 %7715, %v7706
    %v7717 = vpop.permute.xlu0 %7716
    %7720 = vset.pattern.permute.xlu0 0
    %7721 = vperm.xlu0 %7720, %v7707
    %v7722 = vpop.permute.xlu0 %7721
    %7725 = vset.pattern.permute.xlu0 0
    %7726 = vperm.xlu0 %7725, %v7708
    %v7727 = vpop.permute.xlu0 %7726
    %v7729 = vadd.f32 %v7701, %v7712
    %v7730 = vadd.f32 %v7702, %v7717
    %v7731 = vadd.f32 %v7703, %v7722
    %v7732 = vadd.f32 %v7704, %v7727
    %vm7733 = vcmp.gt.f32.partialorder %v7729, 0.0
    %vm7734 = vcmp.gt.f32.partialorder %v7730, 0.0
    %vm7735 = vcmp.gt.f32.partialorder %v7731, 0.0
    %vm7736 = vcmp.gt.f32.partialorder %v7732, 0.0
    %v7737 = vmin.f32 %v7729, 0.0
    %v7738 = vmin.f32 %v7730, 0.0
    %v7739 = vmin.f32 %v7731, 0.0
    %v7740 = vmin.f32 %v7732, 0.0
    %v7741 = vmul.f32 %v7737, 1.442695
    %v7742 = vpow.pop %v7741
    %v7743 = vmul.f32 %v7738, 1.442695
    %v7744 = vpow.pop %v7743
    %v7745 = vmul.f32 %v7739, 1.442695
    %v7746 = vpow.pop %v7745
    %v7747 = vmul.f32 %v7740, 1.442695
    %v7748 = vpow.pop %v7747
    %v7749 = vsub.f32 %v7742, 1.0
    %v7750 = vsub.f32 %v7744, 1.0
    %v7751 = vsub.f32 %v7746, 1.0
    %v7752 = vsub.f32 %v7748, 1.0
    %v7753 = vsel %vm7733, %v7729, %v7749
    %v7754 = vsel %vm7734, %v7730, %v7750
    %v7755 = vsel %vm7735, %v7731, %v7751
    %v7756 = vsel %vm7736, %v7732, %v7752
    %v7757 = vsel %vm7369, %v7753, 0.0
    %7758 = vadd.xlane.f32.xlu0 %v7757
    %v7759 = vpop.xlane.xlu0 %7758
    %v7760 = vsel %vm7369, %v7754, 0.0
    %7761 = vadd.xlane.f32.xlu0 %v7760
    %v7762 = vpop.xlane.xlu0 %7761
    %v7763 = vsel %vm7369, %v7755, 0.0
    %7764 = vadd.xlane.f32.xlu0 %v7763
    %v7765 = vpop.xlane.xlu0 %7764
    %v7766 = vsel %vm7369, %v7756, 0.0
    %7767 = vadd.xlane.f32.xlu0 %v7766
    %v7768 = vpop.xlane.xlu0 %7767
    %v7769 = vrcp.pop 8.0
    %v7770 = vmul.f32 %v7759, %v7769
    %v7771 = vmul.f32 %v7762, %v7769
    %v7772 = vmul.f32 %v7765, %v7769
    %v7773 = vmul.f32 %v7768, %v7769
    %v7774 = vld [vmem:[%s25] sm:$0x3]
    %v7775 = vld [vmem:[#allocation25] sm:$0xff]
    %v7776 = vld [vmem:[#allocation25 + $0x8] sm:$0xff]
    %v7777 = vld [vmem:[#allocation25 + $0x10] sm:$0xff]
    %v7778 = vld [vmem:[#allocation25 + $0x18] sm:$0xff]
    %v7779 = vmul.f32 %v7770, %v7775
    %v7780 = vmul.f32 %v7771, %v7776
    %v7781 = vmul.f32 %v7772, %v7777
    %v7782 = vmul.f32 %v7773, %v7778
    %v7783 = vld [vmem:[%s26] sm:$0x1]
    %v7785 = vlaneseq
    %v7786 = vshrl.u32 %v7785, 7
    %v7787 = vsub.s32 0, %v7786
    %v7788 = vrot.slane %v7783, %v7787
    %v7791 = vsel %vm318, %v7774, 0
    %7793 = vmatprep.subr.mxu0 0.0
    %7794 = vmatpush1.msra.mxu0 %v7779
    %7795 = vmatprep.subr.mxu0 0.0
    %7796 = vmatpush1.msra.mxu0 %v7780
    %7797 = vmatprep.subr.mxu0 0.0
    %7798 = vmatpush1.msra.mxu0 %v7781
    %7799 = vmatprep.subr.mxu0 0.0
    %7800 = vmatpush1.msra.mxu0 %v7782
    %7801 = vmatprep.subr.mxu0 0.0
    %7802 = vmatpush1.msra.mxu0 0.0
    %7803 = vmatprep.subr.mxu0 0.0
    %7804 = vmatpush1.msra.mxu0 0.0
    %7805 = vmatprep.subr.mxu0 0.0
    %7806 = vmatpush1.msra.mxu0 0.0
    %7807 = vmatprep.subr.mxu0 0.0
    %7808 = vmatpush1.msra.mxu0 0.0
    %7809 = vmatprep.subr.mxu0 0.0
    %7810 = vmatpush1.msra.mxu0 0.0
    %7811 = vmatprep.subr.mxu0 0.0
    %7812 = vmatpush1.msra.mxu0 0.0
    %7813 = vmatprep.subr.mxu0 0.0
    %7814 = vmatpush1.msra.mxu0 0.0
    %7815 = vmatprep.subr.mxu0 0.0
    %7816 = vmatpush1.msra.mxu0 0.0
    %7817 = vmatprep.subr.mxu0 0.0
    %7818 = vmatpush1.msra.mxu0 0.0
    %7819 = vmatprep.subr.mxu0 0.0
    %7820 = vmatpush1.msra.mxu0 0.0
    %7821 = vmatprep.subr.mxu0 0.0
    %7822 = vmatpush1.msra.mxu0 0.0
    %7823 = vmatprep.subr.mxu0 0.0
    %7824 = vmatpush1.msra.mxu0 0.0
    %7825 = vmatprep.subr.mxu0 0.0
    %7826 = vmatpush1.msra.mxu0 0.0
    %7827 = vmatprep.subr.mxu0 0.0
    %7828 = vmatpush1.msra.mxu0 0.0
    %7829 = vmatprep.subr.mxu0 0.0
    %7830 = vmatpush1.msra.mxu0 0.0
    %7831 = vmatprep.subr.mxu0 0.0
    %7832 = vmatpush1.msra.mxu0 0.0
    %7833 = vmatprep.subr.mxu0 0.0
    %7834 = vmatpush1.msra.mxu0 0.0
    %7835 = vmatprep.subr.mxu0 0.0
    %7836 = vmatpush1.msra.mxu0 0.0
    %7837 = vmatprep.subr.mxu0 0.0
    %7838 = vmatpush1.msra.mxu0 0.0
    %7839 = vmatprep.subr.mxu0 0.0
    %7840 = vmatpush1.msra.mxu0 0.0
    %7841 = vmatprep.subr.mxu0 0.0
    %7842 = vmatpush1.msra.mxu0 0.0
    %7843 = vmatprep.subr.mxu0 0.0
    %7844 = vmatpush1.msra.mxu0 0.0
    %7845 = vmatprep.subr.mxu0 0.0
    %7846 = vmatpush1.msra.mxu0 0.0
    %7847 = vmatprep.subr.mxu0 0.0
    %7848 = vmatpush1.msra.mxu0 0.0
    %7849 = vmatprep.subr.mxu0 0.0
    %7850 = vmatpush1.msra.mxu0 0.0
    %7851 = vmatprep.subr.mxu0 0.0
    %7852 = vmatpush1.msra.mxu0 0.0
    %7853 = vmatprep.subr.mxu0 0.0
    %7854 = vmatpush1.msra.mxu0 0.0
    %7855 = vmatprep.subr.mxu0 0.0
    %7856 = vmatpush1.msra.mxu0 0.0
    %7857 = vmatprep.mubr.f32.mxu0 0.0
    %7858 = vmatmul.mubr.f32.gmra.mrb[0].mxu0 %v7791
    %v7859 = vpop.f32.mrb[0].mxu0
    %v7860 = vadd.f32 %v7788, %v7859
    %v7861 = vpop.f32.mrb[0].mxu0
    %7862 = vdwg.mxu0
    %vm7863 = vcmask 25600
    %7864 = vst.msk [vmem:[#allocation26] sm:$0x3] %vm7863, %v7860
    // Predicated region
    $region170: #{_lambda_.1} parent=1 // pred_check
      _
    $region171: #{_lambda_.1} parent=1 // pred_check_branch
      %7866 = sbr.rel (0) target = $region173
    $region172: #{_lambda_.1} parent=1 // pred_region
      %s7868 = ssub.s32 32, 32
      %7869 = vsyncadd [#allocation4], %s7868
      %s7871 = sshll.u32 [#allocation26], 4
      %s7872 = int_to_ptr.vmem [resolvable:$true] %s7871
      %7874 = dma.vmem_to_hbm [thread:$0]  %s7872, 32, %s27, [#allocation4]
    $region173: #{_lambda_.1} parent=1 // pred_fallthru
      _
    // Predicated region
    $region174: #{_lambda_.1} parent=1 // pred_check
      _
    $region175: #{_lambda_.1} parent=1 // pred_check_branch
      %7876 = sbr.rel (0) target = $region177
    $region176: #{_lambda_.1} parent=1 // pred_region
      _
    $region177: #{_lambda_.1} parent=1 // pred_fallthru
      _
    // Predicated region
    $region178: #{_lambda_.1} parent=1 // pred_check
      _
    $region179: #{_lambda_.1} parent=1 // pred_check_branch
      %7878 = sbr.rel (0) target = $region181
    $region180: #{_lambda_.1} parent=1 // pred_region
      %7879 = dma.done [#allocation4], 32
    $region181: #{_lambda_.1} parent=1 // pred_fallthru
      _
    // Predicated region
    $region182: #{_lambda_.1} parent=1 // pred_check
      _
    $region183: #{_lambda_.1} parent=1 // pred_check_branch
      %7881 = sbr.rel (0) target = $region185
    $region184: #{_lambda_.1} parent=1 // pred_region
      _
    $region185: #{_lambda_.1} parent=1 // pred_fallthru
      _
    %7882 = vsyncpa [#allocation3], 1
    %7883 = vsyncpa [#allocation6], 1
    %7884 = vsyncpa [#allocation9], 1
    %7885 = vsyncpa [#allocation12], 1
    %7886 = vsyncpa [#allocation15], 1
    %7887 = vsyncpa [#allocation18], 1
    %7888 = vsyncpa [#allocation21], 1
    %7889 = vsyncpa [#allocation24], 1
    %7890 = vsyncpa [#allocation4], 1

</llo_original>
